<compile_context>
chip_gen: v5e
topology: v5e:2x2
jax: 0.10.0
libtpu: 0.0.40
codegen_flags: <defaults>
</compile_context>

<pallas_src>
import functools

import jax
import jax.numpy as jnp
from jax.experimental import pallas as pl
from jax.experimental.pallas import tpu as pltpu


# -----------------------------------------------------------------------------
# host-side (trace-time) packing of weights / constants
# -----------------------------------------------------------------------------
def _row_shift_matrices(B, H):
    """S_dy (dy=-1,+1) with (S_dy @ X)[b*H+h] = X[b*H+h+dy], zero at H edges."""
    BH = B * H
    r = jnp.arange(BH)
    mats = []
    for dy in (-1, 1):
        valid = ((r % H) + dy >= 0) & ((r % H) + dy < H)
        S = (r[None, :] == (r[:, None] + dy)) & valid[:, None]
        mats.append(S.astype(jnp.float32))
    return mats[0], mats[1]


def _conv3x3_packed(w_oihw, W):
    """(Cout, Cin, 3, 3) -> (3, W*Cin, W*Cout); index 0/1/2 <-> dy=-1/0/+1.
    The dx shifts and W zero-padding are folded into off-diagonal blocks."""
    Cout, Cin = w_oihw.shape[:2]
    taps = jnp.transpose(w_oihw, (2, 3, 1, 0))            # (3, 3, Cin, Cout)
    w_idx = jnp.arange(W)
    mats = []
    for i in range(3):                                     # i = dy + 1
        acc = jnp.zeros((W, Cin, W, Cout), w_oihw.dtype)
        for j in range(3):                                 # j = dx + 1
            dx = j - 1
            sel = (w_idx[:, None] == (w_idx[None, :] + dx)).astype(w_oihw.dtype)
            acc = acc + sel[:, None, :, None] * taps[i, j][None, :, None, :]
        mats.append(acc.reshape(W * Cin, W * Cout))
    return jnp.stack(mats)


def _conv1x1_packed(w_oihw, W):
    """(Cout, Cin, 1, 1) -> block-diagonal (W*Cin, W*Cout)."""
    tap = jnp.transpose(w_oihw[:, :, 0, 0])                # (Cin, Cout)
    eye = jnp.eye(W, dtype=w_oihw.dtype)
    return (eye[:, None, :, None] * tap[None, :, None, :]).reshape(
        W * w_oihw.shape[1], W * w_oihw.shape[0])


def _wmean_matrix(W, Cb):
    """A with (row @ A)[w'*Cb+c] = mean over w of row[w*Cb+c] (broadcast back)."""
    eyeC = jnp.eye(Cb, dtype=jnp.float32)
    onesW = jnp.ones((W, W), jnp.float32) / W
    return (onesW[:, None, :, None] * eyeC[None, :, None, :]).reshape(W * Cb, W * Cb)


def _tile_row(v, W):
    """(C,) per-channel vector -> (1, W*C) packed row."""
    return jnp.tile(v, W)[None, :]


# -----------------------------------------------------------------------------
# the single fused kernel
# -----------------------------------------------------------------------------
def _fused_kernel(x_ref, noise_ref, sm_ref, sp_ref, amat_ref, bc3_ref,
                  hw_ref, hb_ref, nwa_ref, nwn_ref, ngb_ref, comb_ref,
                  comb_o_ref, heads_o_ref, state_o_ref, *, S, W):
    n3, n1 = 3 * W, W
    nhd = n3 + n1

    sm = sm_ref[...]                      # (BH, BH) bf16, selects row h-1
    sp = sp_ref[...]                      # (BH, BH) bf16, selects row h+1

    def shifts(x):
        """bf16 (x[h-1], x[h], x[h+1]) with zero padding at batch boundaries."""
        xb = x.astype(jnp.bfloat16)
        xm = jnp.dot(sm, xb, preferred_element_type=jnp.float32).astype(jnp.bfloat16)
        xp = jnp.dot(sp, xb, preferred_element_type=jnp.float32).astype(jnp.bfloat16)
        return xm, xb, xp

    def conv3(xs, w_ref, base):
        """3x3 conv: one MXU matmul per dy tap (dx + W padding are in the weight)."""
        acc = jnp.dot(xs[0], w_ref[base + 0], preferred_element_type=jnp.float32)
        acc = acc + jnp.dot(xs[1], w_ref[base + 1], preferred_element_type=jnp.float32)
        acc = acc + jnp.dot(xs[2], w_ref[base + 2], preferred_element_type=jnp.float32)
        return acc

    def bn(x, s, k):
        """Training-mode BatchNorm2d (batch stats, biased var, eps=1e-5).
        Row-mean over B*H first, then the tiny (1,WC)@(WC,WC) lane-block
        averaging matmul (reordered: ~32x less MXU work, same result)."""
        gamma = ngb_ref[s * 10 + k]       # (1, W*C)
        beta = ngb_ref[s * 10 + k + 1]
        mean = jnp.dot(jnp.mean(x, axis=0, keepdims=True), amat_ref[...],
                       preferred_element_type=jnp.float32)
        xc = x - mean
        var = jnp.dot(jnp.mean(xc * xc, axis=0, keepdims=True), amat_ref[...],
                      preferred_element_type=jnp.float32)
        return xc * jax.lax.rsqrt(var + 1e-5) * gamma + beta

    def head(i, f_s, prev):
        """Fused RGB conv+Tanh / mask conv+Sigmoid + compositing epilogue."""
        hd = conv3(f_s, hw_ref, i * 3) + hb_ref[i]          # (BH, 4W)
        obi = jnp.tanh(hd[:, :n3])                          # (BH, 3W)
        mki = jax.nn.sigmoid(hd[:, n3:nhd])                 # (BH, W)
        heads_o_ref[:, i * nhd:i * nhd + n3] = obi
        heads_o_ref[:, i * nhd + n3:(i + 1) * nhd] = mki
        # broadcast the mask onto the 3 RGB channel slots (exact 0/1 matrix).
        mk3 = jnp.dot(mki, bc3_ref[...], preferred_element_type=jnp.float32)
        if prev is None:                                    # stage 0
            return obi * mk3, mki
        pob, pmk = prev
        ob = obi * mk3 + pob * (1.0 - mk3)
        mk = 1.0 - (1.0 - pmk) * (1.0 - mki)
        return ob, mk

    def nim(s, f_s):
        """NoiseInModule: jointConv+BN+GLU then ResBlock (2 conv+BN, GLU, +res)."""
        n_s = shifts(noise_ref[s])
        acc_v = conv3(f_s, nwa_ref, s * 15 + 0) + conv3(n_s, nwn_ref, s * 6 + 0)
        acc_g = conv3(f_s, nwa_ref, s * 15 + 3) + conv3(n_s, nwn_ref, s * 6 + 3)
        jc = bn(acc_v, s, 0) * jax.nn.sigmoid(bn(acc_g, s, 2))
        j_s = shifts(jc)
        h1 = (bn(conv3(j_s, nwa_ref, s * 15 + 6), s, 4)
              * jax.nn.sigmoid(bn(conv3(j_s, nwa_ref, s * 15 + 9), s, 6)))
        h_s = shifts(h1)
        h2 = bn(conv3(h_s, nwa_ref, s * 15 + 12), s, 8)
        return jc + h2

    f_s = shifts(x_ref[...])
    ob, mk = head(0, f_s, None)
    comb = jnp.dot(f_s[1], comb_ref[0], preferred_element_type=jnp.float32)
    for s in range(S):                                      # unrolled (S static)
        feat = nim(s, f_s)
        f_s = shifts(feat)          # shared by head s+1 and the combined conv
        ob, mk = head(s + 1, f_s, (ob, mk))
        comb = comb + jnp.dot(f_s[1], comb_ref[s + 1],
                              preferred_element_type=jnp.float32)

    comb_o_ref[...] = comb.astype(comb_o_ref.dtype)
    state_o_ref[:, :n3] = ob.astype(state_o_ref.dtype)
    state_o_ref[:, n3:nhd] = mk.astype(state_o_ref.dtype)


# -----------------------------------------------------------------------------
# one-time parameter packing (hoisted out of the per-call path)
# -----------------------------------------------------------------------------
def prepare_params(params, *, B, C, H, W):
    S = len(params["nim"])
    sm, sp = _row_shift_matrices(B, H)
    bf = lambda a: a.astype(jnp.bfloat16)
    pw3 = lambda w: bf(_conv3x3_packed(w, W))
    trow = lambda v: _tile_row(v, W)

    # stage heads: fused rgb+mask weight (3, W*C, 3W+W) and bias (1, 4W)
    head_w, head_b = [], []
    for rgb_p, msk_p in zip(params["rgb"], params["msk"]):
        head_w.append(jnp.concatenate([pw3(rgb_p["w"]), pw3(msk_p["w"])], axis=-1))
        head_b.append(jnp.concatenate([trow(rgb_p["b"]), trow(msk_p["b"])], axis=-1))
    head_w = jnp.concatenate(head_w, axis=0)        # ((S+1)*3, W*C, 4W) bf16
    head_b = jnp.stack(head_b)                      # (S+1, 1, 4W) f32

    nim_wa, nim_wn, nim_gb = [], [], []
    for p in params["nim"]:
        wj = p["jc_w"]                              # (2C, C + C//2, 3, 3)
        nim_wa.append(jnp.concatenate(
            [pw3(wj[:C, :C]), pw3(wj[C:, :C]),            # jointConv val/gate (feat)
             pw3(p["rb_w1"][:C]), pw3(p["rb_w1"][C:]),    # resblock conv1 val/gate
             pw3(p["rb_w2"])], axis=0))                   # resblock conv2
        nim_wn.append(jnp.concatenate(
            [pw3(wj[:C, C:]), pw3(wj[C:, C:])], axis=0))  # jointConv val/gate (noise)
        nim_gb.append(jnp.stack(
            [trow(p["jc_g"][:C]), trow(p["jc_b"][:C]),
             trow(p["jc_g"][C:]), trow(p["jc_b"][C:]),
             trow(p["rb_g1"][:C]), trow(p["rb_b1"][:C]),
             trow(p["rb_g1"][C:]), trow(p["rb_b1"][C:]),
             trow(p["rb_g2"]), trow(p["rb_b2"])]))
    nim_wa = jnp.concatenate(nim_wa, axis=0)        # (S*15, W*C, W*C) bf16
    nim_wn = jnp.concatenate(nim_wn, axis=0)        # (S*6, W*C//2, W*C) bf16
    nim_gb = jnp.concatenate(nim_gb, axis=0)        # (S*10, 1, W*C) f32

    comb = jnp.stack([bf(_conv1x1_packed(params["comb_w"][:, i * C:(i + 1) * C], W))
                      for i in range(S + 1)])       # (S+1, W*C, W*C) bf16

    bcast3 = jnp.repeat(jnp.eye(W, dtype=jnp.float32), 3, axis=1)   # (W, 3W)

    return dict(sm=bf(sm), sp=bf(sp), amat=_wmean_matrix(W, C), bcast3=bcast3,
                head_w=head_w, head_b=head_b,
                nim_wa=nim_wa, nim_wn=nim_wn, nim_gb=nim_gb, comb=comb)


# -----------------------------------------------------------------------------
# forward pass (single pallas_call; NCHW unpacking happens here)
# -----------------------------------------------------------------------------
def multistage_forward(prep, ob_features_nchw, noise_list):
    B, C, H, W = ob_features_nchw.shape
    BH = B * H
    S = len(noise_list)
    n3, n1 = 3 * W, W
    nhd = n3 + n1

    pack = lambda t: t.reshape(BH, W * t.shape[-1])                       # NHWC -> packed
    unpk = lambda p, ch: jnp.transpose(p.reshape(B, H, W, ch), (0, 3, 1, 2))

    x_p = pack(jnp.transpose(ob_features_nchw, (0, 2, 3, 1)))
    noise_p = jnp.stack([pack(n) for n in noise_list])                    # (S, BH, W*C//2)

    args = (x_p, noise_p, prep["sm"], prep["sp"], prep["amat"], prep["bcast3"],
            prep["head_w"], prep["head_b"], prep["nim_wa"], prep["nim_wn"],
            prep["nim_gb"], prep["comb"])

    out_shape = (jax.ShapeDtypeStruct((BH, W * C), jnp.float32),          # combined
                 jax.ShapeDtypeStruct((BH, (S + 1) * nhd), jnp.float32),  # obi|mki per stage
                 jax.ShapeDtypeStruct((BH, nhd), jnp.float32))            # final ob|mask

    in_specs = [pl.BlockSpec(a.shape, lambda i, nd=a.ndim: (0,) * nd) for a in args]
    out_specs = tuple(pl.BlockSpec(s.shape, lambda i, nd=len(s.shape): (0,) * nd)
                      for s in out_shape)

    comb_p, heads_p, state_p = pl.pallas_call(
        functools.partial(_fused_kernel, S=S, W=W),
        grid=(1,),
        in_specs=in_specs,
        out_specs=out_specs,
        out_shape=out_shape,
        compiler_params=pltpu.CompilerParams(dimension_semantics=("arbitrary",)),
    )(*args)

    combined = unpk(comb_p, C)
    ob = unpk(state_p[:, :n3], 3)
    ob_mask = unpk(state_p[:, n3:nhd], 1)
    obs = [unpk(heads_p[:, i * nhd:i * nhd + n3], 3) for i in range(S + 1)]
    masks = [unpk(heads_p[:, i * nhd + n3:(i + 1) * nhd], 1) for i in range(S + 1)]
    return combined, ob, ob_mask, obs, masks


# -----------------------------------------------------------------------------
# deterministic parameter init (shapes follow the PyTorch __init__)
# -----------------------------------------------------------------------------
def init_params(key, C, S):
    keys = iter(jax.random.split(key, 64))
    nk = lambda: next(keys)
    cw = lambda cout, cin, k: 0.1 * jax.random.normal(nk(), (cout, cin, k, k), jnp.float32)

    params = {"rgb": [], "msk": [], "nim": []}
    for _ in range(S + 1):
        params["rgb"].append({"w": cw(3, C, 3),
                              "b": 0.1 * jax.random.normal(nk(), (3,), jnp.float32)})
        params["msk"].append({"w": cw(1, C, 3),
                              "b": 0.1 * jax.random.normal(nk(), (1,), jnp.float32)})
    for _ in range(S):
        params["nim"].append({
            "jc_w": cw(2 * C, C + C // 2, 3),
            "jc_g": jnp.ones((2 * C,), jnp.float32),
            "jc_b": jnp.zeros((2 * C,), jnp.float32),
            "rb_w1": cw(2 * C, C, 3),
            "rb_g1": jnp.ones((2 * C,), jnp.float32),
            "rb_b1": jnp.zeros((2 * C,), jnp.float32),
            "rb_w2": cw(C, C, 3),
            "rb_g2": jnp.ones((C,), jnp.float32),
            "rb_b2": jnp.zeros((C,), jnp.float32),
        })
    params["comb_w"] = cw(C, C * (S + 1), 1)
    return params


if __name__ == "__main__":
    B, C, H, W, S = 2, 8, 16, 16, 2

    key = jax.random.PRNGKey(0)
    kp, kx, kn = jax.random.split(key, 3)

    params = init_params(kp, C, S)
    ob_features = jax.random.normal(kx, (B, C, H, W), jnp.float32)   # NCHW like PyTorch

    # noise (torch.randn equivalent), pre-generated deterministically in NHWC
    nkeys = jax.random.split(kn, S)
    noise_list = [jax.random.normal(nkeys[i], (B, H, W, C // 2), jnp.float32)
                  for i in range(S)]

    prep = prepare_params(params, B=B, C=C, H=H, W=W)

    out = jax.jit(multistage_forward)(prep, ob_features, noise_list)
    jax.block_until_ready(out)

    combined, ob, ob_mask, obs, masks = out
    assert combined.shape == (B, C, H, W)
    assert ob.shape == (B, 3, H, W)
    assert ob_mask.shape == (B, 1, H, W)
    assert len(obs) == S + 1 and len(masks) == S + 1
    assert all(o.shape == (B, 3, H, W) for o in obs)
    assert all(m.shape == (B, 1, H, W) for m in masks)
    print("KERNEL_OK")
</pallas_src>

<mosaic_0001>
module attributes {stable_mosaic.version = 11 : i64} {
  func.func @_fused_kernel(%arg0: i32, %arg1: memref<32x128xf32, #tpu.memory_space<vmem>>, %arg2: memref<2x32x64xf32, #tpu.memory_space<vmem>>, %arg3: memref<32x32xbf16, #tpu.memory_space<vmem>>, %arg4: memref<32x32xbf16, #tpu.memory_space<vmem>>, %arg5: memref<128x128xf32, #tpu.memory_space<vmem>>, %arg6: memref<16x48xf32, #tpu.memory_space<vmem>>, %arg7: memref<9x128x64xbf16, #tpu.memory_space<vmem>>, %arg8: memref<3x1x64xf32, #tpu.memory_space<vmem>>, %arg9: memref<30x128x128xbf16, #tpu.memory_space<vmem>>, %arg10: memref<12x64x128xbf16, #tpu.memory_space<vmem>>, %arg11: memref<20x1x128xf32, #tpu.memory_space<vmem>>, %arg12: memref<3x128x128xbf16, #tpu.memory_space<vmem>>, %arg13: memref<32x128xf32, #tpu.memory_space<vmem>>, %arg14: memref<32x192xf32, #tpu.memory_space<vmem>>, %arg15: memref<32x64xf32, #tpu.memory_space<vmem>>) attributes {dimension_semantics = [#tpu.dimension_semantics<arbitrary>], iteration_bounds = array<i64: 1>, scalar_prefetch = 0 : i64, scratch_operands = 0 : i64, tpu.core_type = #tpu.core_type<tc>, window_params = [{pipeline_mode = #tpu.pipeline_mode<synchronous>, transform_indices = @transform_0, window_bounds = array<i64: 32, 128>}, {pipeline_mode = #tpu.pipeline_mode<synchronous>, transform_indices = @transform_1, window_bounds = array<i64: 2, 32, 64>}, {pipeline_mode = #tpu.pipeline_mode<synchronous>, transform_indices = @transform_2, window_bounds = array<i64: 32, 32>}, {pipeline_mode = #tpu.pipeline_mode<synchronous>, transform_indices = @transform_3, window_bounds = array<i64: 32, 32>}, {pipeline_mode = #tpu.pipeline_mode<synchronous>, transform_indices = @transform_4, window_bounds = array<i64: 128, 128>}, {pipeline_mode = #tpu.pipeline_mode<synchronous>, transform_indices = @transform_5, window_bounds = array<i64: 16, 48>}, {pipeline_mode = #tpu.pipeline_mode<synchronous>, transform_indices = @transform_6, window_bounds = array<i64: 9, 128, 64>}, {pipeline_mode = #tpu.pipeline_mode<synchronous>, transform_indices = @transform_7, window_bounds = array<i64: 3, 1, 64>}, {pipeline_mode = #tpu.pipeline_mode<synchronous>, transform_indices = @transform_8, window_bounds = array<i64: 30, 128, 128>}, {pipeline_mode = #tpu.pipeline_mode<synchronous>, transform_indices = @transform_9, window_bounds = array<i64: 12, 64, 128>}, {pipeline_mode = #tpu.pipeline_mode<synchronous>, transform_indices = @transform_10, window_bounds = array<i64: 20, 1, 128>}, {pipeline_mode = #tpu.pipeline_mode<synchronous>, transform_indices = @transform_11, window_bounds = array<i64: 3, 128, 128>}, {pipeline_mode = #tpu.pipeline_mode<synchronous>, transform_indices = @transform_12, window_bounds = array<i64: 32, 128>}, {pipeline_mode = #tpu.pipeline_mode<synchronous>, transform_indices = @transform_13, window_bounds = array<i64: 32, 192>}, {pipeline_mode = #tpu.pipeline_mode<synchronous>, transform_indices = @transform_14, window_bounds = array<i64: 32, 64>}]} {
    %c0 = arith.constant 0 : index
    %c0_0 = arith.constant 0 : index
    %0 = vector.load %arg3[%c0, %c0_0] : memref<32x32xbf16, #tpu.memory_space<vmem>>, vector<32x32xbf16>
    %c0_1 = arith.constant 0 : index
    %c0_2 = arith.constant 0 : index
    %1 = vector.load %arg4[%c0_1, %c0_2] : memref<32x32xbf16, #tpu.memory_space<vmem>>, vector<32x32xbf16>
    %c0_3 = arith.constant 0 : index
    %c0_4 = arith.constant 0 : index
    %2 = vector.load %arg1[%c0_3, %c0_4] : memref<32x128xf32, #tpu.memory_space<vmem>>, vector<32x128xf32>
    %3 = arith.truncf %2 : vector<32x128xf32> to vector<32x128xbf16>
    %cst = arith.constant dense<0.000000e+00> : vector<32x128xf32>
    %4 = tpu.matmul %0, %3, %cst {dimension_numbers = #tpu.dot_dimension_numbers<[1], [0], [0], [1], [0, 0, 1, 1], [], []>} : vector<32x32xbf16>, vector<32x128xbf16>, vector<32x128xf32> -> vector<32x128xf32>
    %5 = arith.truncf %4 : vector<32x128xf32> to vector<32x128xbf16>
    %cst_5 = arith.constant dense<0.000000e+00> : vector<32x128xf32>
    %6 = tpu.matmul %1, %3, %cst_5 {dimension_numbers = #tpu.dot_dimension_numbers<[1], [0], [0], [1], [0, 0, 1, 1], [], []>} : vector<32x32xbf16>, vector<32x128xbf16>, vector<32x128xf32> -> vector<32x128xf32>
    %7 = arith.truncf %6 : vector<32x128xf32> to vector<32x128xbf16>
    %c0_6 = arith.constant 0 : index
    %c0_7 = arith.constant 0 : index
    %c0_8 = arith.constant 0 : index
    %8 = vector.load %arg7[%c0_6, %c0_7, %c0_8] : memref<9x128x64xbf16, #tpu.memory_space<vmem>>, vector<1x128x64xbf16>
    %9 = vector.shape_cast %8 : vector<1x128x64xbf16> to vector<128x64xbf16>
    %cst_9 = arith.constant dense<0.000000e+00> : vector<32x64xf32>
    %10 = tpu.matmul %5, %9, %cst_9 {dimension_numbers = #tpu.dot_dimension_numbers<[1], [0], [0], [1], [0, 0, 1, 1], [], []>} : vector<32x128xbf16>, vector<128x64xbf16>, vector<32x64xf32> -> vector<32x64xf32>
    %c1 = arith.constant 1 : index
    %c0_10 = arith.constant 0 : index
    %c0_11 = arith.constant 0 : index
    %11 = vector.load %arg7[%c1, %c0_10, %c0_11] : memref<9x128x64xbf16, #tpu.memory_space<vmem>>, vector<1x128x64xbf16>
    %12 = vector.shape_cast %11 : vector<1x128x64xbf16> to vector<128x64xbf16>
    %cst_12 = arith.constant dense<0.000000e+00> : vector<32x64xf32>
    %13 = tpu.matmul %3, %12, %cst_12 {dimension_numbers = #tpu.dot_dimension_numbers<[1], [0], [0], [1], [0, 0, 1, 1], [], []>} : vector<32x128xbf16>, vector<128x64xbf16>, vector<32x64xf32> -> vector<32x64xf32>
    %14 = arith.addf %10, %13 : vector<32x64xf32>
    %c2 = arith.constant 2 : index
    %c0_13 = arith.constant 0 : index
    %c0_14 = arith.constant 0 : index
    %15 = vector.load %arg7[%c2, %c0_13, %c0_14] : memref<9x128x64xbf16, #tpu.memory_space<vmem>>, vector<1x128x64xbf16>
    %16 = vector.shape_cast %15 : vector<1x128x64xbf16> to vector<128x64xbf16>
    %cst_15 = arith.constant dense<0.000000e+00> : vector<32x64xf32>
    %17 = tpu.matmul %7, %16, %cst_15 {dimension_numbers = #tpu.dot_dimension_numbers<[1], [0], [0], [1], [0, 0, 1, 1], [], []>} : vector<32x128xbf16>, vector<128x64xbf16>, vector<32x64xf32> -> vector<32x64xf32>
    %18 = arith.addf %14, %17 : vector<32x64xf32>
    %c0_16 = arith.constant 0 : index
    %c0_17 = arith.constant 0 : index
    %c0_18 = arith.constant 0 : index
    %19 = vector.load %arg8[%c0_16, %c0_17, %c0_18] : memref<3x1x64xf32, #tpu.memory_space<vmem>>, vector<1x1x64xf32>
    %20 = vector.shape_cast %19 : vector<1x1x64xf32> to vector<1x64xf32>
    %21 = vector.broadcast %20 : vector<1x64xf32> to vector<32x64xf32>
    %22 = arith.addf %18, %21 : vector<32x64xf32>
    %23 = vector.extract_strided_slice %22 {offsets = [0, 0], sizes = [32, 48], strides = [1, 1]} : vector<32x64xf32> to vector<32x48xf32>
    %24 = math.tanh %23 : vector<32x48xf32>
    %25 = vector.extract_strided_slice %22 {offsets = [0, 48], sizes = [32, 16], strides = [1, 1]} : vector<32x64xf32> to vector<32x16xf32>
    %26 = arith.negf %25 : vector<32x16xf32>
    %27 = math.exp %26 : vector<32x16xf32>
    %cst_19 = arith.constant 1.000000e+00 : f32
    %28 = vector.broadcast %cst_19 : f32 to vector<32x16xf32>
    %29 = arith.addf %28, %27 : vector<32x16xf32>
    %30 = arith.divf %28, %29 : vector<32x16xf32>
    %c0_20 = arith.constant 0 : index
    %c0_21 = arith.constant 0 : index
    %31 = vector.load %arg14[%c0_20, %c0_21] : memref<32x192xf32, #tpu.memory_space<vmem>>, vector<32x48xf32>
    tpu.vector_store %arg14[%c0_20, %c0_21], %24 {strides = array<i32>} : memref<32x192xf32, #tpu.memory_space<vmem>>, vector<32x48xf32>,
    %c0_22 = arith.constant 0 : index
    %c48 = arith.constant 48 : index
    %32 = vector.load %arg14[%c0_22, %c48] : memref<32x192xf32, #tpu.memory_space<vmem>>, vector<32x16xf32>
    tpu.vector_store %arg14[%c0_22, %c48], %30 {strides = array<i32>} : memref<32x192xf32, #tpu.memory_space<vmem>>, vector<32x16xf32>,
    %c0_23 = arith.constant 0 : index
    %c0_24 = arith.constant 0 : index
    %33 = vector.load %arg6[%c0_23, %c0_24] : memref<16x48xf32, #tpu.memory_space<vmem>>, vector<16x48xf32>
    %cst_25 = arith.constant dense<0.000000e+00> : vector<32x48xf32>
    %34 = tpu.matmul %30, %33, %cst_25 {dimension_numbers = #tpu.dot_dimension_numbers<[1], [0], [0], [1], [0, 0, 1, 1], [], []>} : vector<32x16xf32>, vector<16x48xf32>, vector<32x48xf32> -> vector<32x48xf32>
    %35 = arith.mulf %24, %34 : vector<32x48xf32>
    %c0_26 = arith.constant 0 : index
    %c0_27 = arith.constant 0 : index
    %c0_28 = arith.constant 0 : index
    %36 = vector.load %arg12[%c0_26, %c0_27, %c0_28] : memref<3x128x128xbf16, #tpu.memory_space<vmem>>, vector<1x128x128xbf16>
    %37 = vector.shape_cast %36 : vector<1x128x128xbf16> to vector<128x128xbf16>
    %cst_29 = arith.constant dense<0.000000e+00> : vector<32x128xf32>
    %38 = tpu.matmul %3, %37, %cst_29 {dimension_numbers = #tpu.dot_dimension_numbers<[1], [0], [0], [1], [0, 0, 1, 1], [], []>} : vector<32x128xbf16>, vector<128x128xbf16>, vector<32x128xf32> -> vector<32x128xf32>
    %c0_30 = arith.constant 0 : index
    %c0_31 = arith.constant 0 : index
    %c0_32 = arith.constant 0 : index
    %39 = vector.load %arg2[%c0_30, %c0_31, %c0_32] : memref<2x32x64xf32, #tpu.memory_space<vmem>>, vector<1x32x64xf32>
    %40 = vector.shape_cast %39 : vector<1x32x64xf32> to vector<32x64xf32>
    %41 = arith.truncf %40 : vector<32x64xf32> to vector<32x64xbf16>
    %cst_33 = arith.constant dense<0.000000e+00> : vector<32x64xf32>
    %42 = tpu.matmul %0, %41, %cst_33 {dimension_numbers = #tpu.dot_dimension_numbers<[1], [0], [0], [1], [0, 0, 1, 1], [], []>} : vector<32x32xbf16>, vector<32x64xbf16>, vector<32x64xf32> -> vector<32x64xf32>
    %43 = arith.truncf %42 : vector<32x64xf32> to vector<32x64xbf16>
    %cst_34 = arith.constant dense<0.000000e+00> : vector<32x64xf32>
    %44 = tpu.matmul %1, %41, %cst_34 {dimension_numbers = #tpu.dot_dimension_numbers<[1], [0], [0], [1], [0, 0, 1, 1], [], []>} : vector<32x32xbf16>, vector<32x64xbf16>, vector<32x64xf32> -> vector<32x64xf32>
    %45 = arith.truncf %44 : vector<32x64xf32> to vector<32x64xbf16>
    %c0_35 = arith.constant 0 : index
    %c0_36 = arith.constant 0 : index
    %c0_37 = arith.constant 0 : index
    %46 = vector.load %arg9[%c0_35, %c0_36, %c0_37] : memref<30x128x128xbf16, #tpu.memory_space<vmem>>, vector<1x128x128xbf16>
    %47 = vector.shape_cast %46 : vector<1x128x128xbf16> to vector<128x128xbf16>
    %cst_38 = arith.constant dense<0.000000e+00> : vector<32x128xf32>
    %48 = tpu.matmul %5, %47, %cst_38 {dimension_numbers = #tpu.dot_dimension_numbers<[1], [0], [0], [1], [0, 0, 1, 1], [], []>} : vector<32x128xbf16>, vector<128x128xbf16>, vector<32x128xf32> -> vector<32x128xf32>
    %c1_39 = arith.constant 1 : index
    %c0_40 = arith.constant 0 : index
    %c0_41 = arith.constant 0 : index
    %49 = vector.load %arg9[%c1_39, %c0_40, %c0_41] : memref<30x128x128xbf16, #tpu.memory_space<vmem>>, vector<1x128x128xbf16>
    %50 = vector.shape_cast %49 : vector<1x128x128xbf16> to vector<128x128xbf16>
    %cst_42 = arith.constant dense<0.000000e+00> : vector<32x128xf32>
    %51 = tpu.matmul %3, %50, %cst_42 {dimension_numbers = #tpu.dot_dimension_numbers<[1], [0], [0], [1], [0, 0, 1, 1], [], []>} : vector<32x128xbf16>, vector<128x128xbf16>, vector<32x128xf32> -> vector<32x128xf32>
    %52 = arith.addf %48, %51 : vector<32x128xf32>
    %c2_43 = arith.constant 2 : index
    %c0_44 = arith.constant 0 : index
    %c0_45 = arith.constant 0 : index
    %53 = vector.load %arg9[%c2_43, %c0_44, %c0_45] : memref<30x128x128xbf16, #tpu.memory_space<vmem>>, vector<1x128x128xbf16>
    %54 = vector.shape_cast %53 : vector<1x128x128xbf16> to vector<128x128xbf16>
    %cst_46 = arith.constant dense<0.000000e+00> : vector<32x128xf32>
    %55 = tpu.matmul %7, %54, %cst_46 {dimension_numbers = #tpu.dot_dimension_numbers<[1], [0], [0], [1], [0, 0, 1, 1], [], []>} : vector<32x128xbf16>, vector<128x128xbf16>, vector<32x128xf32> -> vector<32x128xf32>
    %56 = arith.addf %52, %55 : vector<32x128xf32>
    %c0_47 = arith.constant 0 : index
    %c0_48 = arith.constant 0 : index
    %c0_49 = arith.constant 0 : index
    %57 = vector.load %arg10[%c0_47, %c0_48, %c0_49] : memref<12x64x128xbf16, #tpu.memory_space<vmem>>, vector<1x64x128xbf16>
    %58 = vector.shape_cast %57 : vector<1x64x128xbf16> to vector<64x128xbf16>
    %cst_50 = arith.constant dense<0.000000e+00> : vector<32x128xf32>
    %59 = tpu.matmul %43, %58, %cst_50 {dimension_numbers = #tpu.dot_dimension_numbers<[1], [0], [0], [1], [0, 0, 1, 1], [], []>} : vector<32x64xbf16>, vector<64x128xbf16>, vector<32x128xf32> -> vector<32x128xf32>
    %c1_51 = arith.constant 1 : index
    %c0_52 = arith.constant 0 : index
    %c0_53 = arith.constant 0 : index
    %60 = vector.load %arg10[%c1_51, %c0_52, %c0_53] : memref<12x64x128xbf16, #tpu.memory_space<vmem>>, vector<1x64x128xbf16>
    %61 = vector.shape_cast %60 : vector<1x64x128xbf16> to vector<64x128xbf16>
    %cst_54 = arith.constant dense<0.000000e+00> : vector<32x128xf32>
    %62 = tpu.matmul %41, %61, %cst_54 {dimension_numbers = #tpu.dot_dimension_numbers<[1], [0], [0], [1], [0, 0, 1, 1], [], []>} : vector<32x64xbf16>, vector<64x128xbf16>, vector<32x128xf32> -> vector<32x128xf32>
    %63 = arith.addf %59, %62 : vector<32x128xf32>
    %c2_55 = arith.constant 2 : index
    %c0_56 = arith.constant 0 : index
    %c0_57 = arith.constant 0 : index
    %64 = vector.load %arg10[%c2_55, %c0_56, %c0_57] : memref<12x64x128xbf16, #tpu.memory_space<vmem>>, vector<1x64x128xbf16>
    %65 = vector.shape_cast %64 : vector<1x64x128xbf16> to vector<64x128xbf16>
    %cst_58 = arith.constant dense<0.000000e+00> : vector<32x128xf32>
    %66 = tpu.matmul %45, %65, %cst_58 {dimension_numbers = #tpu.dot_dimension_numbers<[1], [0], [0], [1], [0, 0, 1, 1], [], []>} : vector<32x64xbf16>, vector<64x128xbf16>, vector<32x128xf32> -> vector<32x128xf32>
    %67 = arith.addf %63, %66 : vector<32x128xf32>
    %68 = arith.addf %56, %67 : vector<32x128xf32>
    %c3 = arith.constant 3 : index
    %c0_59 = arith.constant 0 : index
    %c0_60 = arith.constant 0 : index
    %69 = vector.load %arg9[%c3, %c0_59, %c0_60] : memref<30x128x128xbf16, #tpu.memory_space<vmem>>, vector<1x128x128xbf16>
    %70 = vector.shape_cast %69 : vector<1x128x128xbf16> to vector<128x128xbf16>
    %cst_61 = arith.constant dense<0.000000e+00> : vector<32x128xf32>
    %71 = tpu.matmul %5, %70, %cst_61 {dimension_numbers = #tpu.dot_dimension_numbers<[1], [0], [0], [1], [0, 0, 1, 1], [], []>} : vector<32x128xbf16>, vector<128x128xbf16>, vector<32x128xf32> -> vector<32x128xf32>
    %c4 = arith.constant 4 : index
    %c0_62 = arith.constant 0 : index
    %c0_63 = arith.constant 0 : index
    %72 = vector.load %arg9[%c4, %c0_62, %c0_63] : memref<30x128x128xbf16, #tpu.memory_space<vmem>>, vector<1x128x128xbf16>
    %73 = vector.shape_cast %72 : vector<1x128x128xbf16> to vector<128x128xbf16>
    %cst_64 = arith.constant dense<0.000000e+00> : vector<32x128xf32>
    %74 = tpu.matmul %3, %73, %cst_64 {dimension_numbers = #tpu.dot_dimension_numbers<[1], [0], [0], [1], [0, 0, 1, 1], [], []>} : vector<32x128xbf16>, vector<128x128xbf16>, vector<32x128xf32> -> vector<32x128xf32>
    %75 = arith.addf %71, %74 : vector<32x128xf32>
    %c5 = arith.constant 5 : index
    %c0_65 = arith.constant 0 : index
    %c0_66 = arith.constant 0 : index
    %76 = vector.load %arg9[%c5, %c0_65, %c0_66] : memref<30x128x128xbf16, #tpu.memory_space<vmem>>, vector<1x128x128xbf16>
    %77 = vector.shape_cast %76 : vector<1x128x128xbf16> to vector<128x128xbf16>
    %cst_67 = arith.constant dense<0.000000e+00> : vector<32x128xf32>
    %78 = tpu.matmul %7, %77, %cst_67 {dimension_numbers = #tpu.dot_dimension_numbers<[1], [0], [0], [1], [0, 0, 1, 1], [], []>} : vector<32x128xbf16>, vector<128x128xbf16>, vector<32x128xf32> -> vector<32x128xf32>
    %79 = arith.addf %75, %78 : vector<32x128xf32>
    %c3_68 = arith.constant 3 : index
    %c0_69 = arith.constant 0 : index
    %c0_70 = arith.constant 0 : index
    %80 = vector.load %arg10[%c3_68, %c0_69, %c0_70] : memref<12x64x128xbf16, #tpu.memory_space<vmem>>, vector<1x64x128xbf16>
    %81 = vector.shape_cast %80 : vector<1x64x128xbf16> to vector<64x128xbf16>
    %cst_71 = arith.constant dense<0.000000e+00> : vector<32x128xf32>
    %82 = tpu.matmul %43, %81, %cst_71 {dimension_numbers = #tpu.dot_dimension_numbers<[1], [0], [0], [1], [0, 0, 1, 1], [], []>} : vector<32x64xbf16>, vector<64x128xbf16>, vector<32x128xf32> -> vector<32x128xf32>
    %c4_72 = arith.constant 4 : index
    %c0_73 = arith.constant 0 : index
    %c0_74 = arith.constant 0 : index
    %83 = vector.load %arg10[%c4_72, %c0_73, %c0_74] : memref<12x64x128xbf16, #tpu.memory_space<vmem>>, vector<1x64x128xbf16>
    %84 = vector.shape_cast %83 : vector<1x64x128xbf16> to vector<64x128xbf16>
    %cst_75 = arith.constant dense<0.000000e+00> : vector<32x128xf32>
    %85 = tpu.matmul %41, %84, %cst_75 {dimension_numbers = #tpu.dot_dimension_numbers<[1], [0], [0], [1], [0, 0, 1, 1], [], []>} : vector<32x64xbf16>, vector<64x128xbf16>, vector<32x128xf32> -> vector<32x128xf32>
    %86 = arith.addf %82, %85 : vector<32x128xf32>
    %c5_76 = arith.constant 5 : index
    %c0_77 = arith.constant 0 : index
    %c0_78 = arith.constant 0 : index
    %87 = vector.load %arg10[%c5_76, %c0_77, %c0_78] : memref<12x64x128xbf16, #tpu.memory_space<vmem>>, vector<1x64x128xbf16>
    %88 = vector.shape_cast %87 : vector<1x64x128xbf16> to vector<64x128xbf16>
    %cst_79 = arith.constant dense<0.000000e+00> : vector<32x128xf32>
    %89 = tpu.matmul %45, %88, %cst_79 {dimension_numbers = #tpu.dot_dimension_numbers<[1], [0], [0], [1], [0, 0, 1, 1], [], []>} : vector<32x64xbf16>, vector<64x128xbf16>, vector<32x128xf32> -> vector<32x128xf32>
    %90 = arith.addf %86, %89 : vector<32x128xf32>
    %91 = arith.addf %79, %90 : vector<32x128xf32>
    %c0_80 = arith.constant 0 : index
    %c0_81 = arith.constant 0 : index
    %c0_82 = arith.constant 0 : index
    %92 = vector.load %arg11[%c0_80, %c0_81, %c0_82] : memref<20x1x128xf32, #tpu.memory_space<vmem>>, vector<1x1x128xf32>
    %93 = vector.shape_cast %92 : vector<1x1x128xf32> to vector<1x128xf32>
    %c1_83 = arith.constant 1 : index
    %c0_84 = arith.constant 0 : index
    %c0_85 = arith.constant 0 : index
    %94 = vector.load %arg11[%c1_83, %c0_84, %c0_85] : memref<20x1x128xf32, #tpu.memory_space<vmem>>, vector<1x1x128xf32>
    %95 = vector.shape_cast %94 : vector<1x1x128xf32> to vector<1x128xf32>
    %cst_86 = arith.constant dense<0.000000e+00> : vector<128xf32>
    %96 = vector.multi_reduction <add>, %68, %cst_86 [0] : vector<32x128xf32> to vector<128xf32>
    %97 = vector.shape_cast %96 : vector<128xf32> to vector<1x128xf32>
    %cst_87 = arith.constant 3.200000e+01 : f32
    %98 = vector.broadcast %cst_87 : f32 to vector<1x128xf32>
    %99 = arith.divf %97, %98 : vector<1x128xf32>
    %c0_88 = arith.constant 0 : index
    %c0_89 = arith.constant 0 : index
    %100 = vector.load %arg5[%c0_88, %c0_89] : memref<128x128xf32, #tpu.memory_space<vmem>>, vector<128x128xf32>
    %cst_90 = arith.constant dense<0.000000e+00> : vector<1x128xf32>
    %101 = tpu.matmul %99, %100, %cst_90 {dimension_numbers = #tpu.dot_dimension_numbers<[1], [0], [0], [1], [0, 0, 1, 1], [], []>} : vector<1x128xf32>, vector<128x128xf32>, vector<1x128xf32> -> vector<1x128xf32>
    %102 = vector.broadcast %101 : vector<1x128xf32> to vector<32x128xf32>
    %103 = arith.subf %68, %102 : vector<32x128xf32>
    %104 = arith.mulf %103, %103 : vector<32x128xf32>
    %cst_91 = arith.constant dense<0.000000e+00> : vector<128xf32>
    %105 = vector.multi_reduction <add>, %104, %cst_91 [0] : vector<32x128xf32> to vector<128xf32>
    %106 = vector.shape_cast %105 : vector<128xf32> to vector<1x128xf32>
    %cst_92 = arith.constant 3.200000e+01 : f32
    %107 = vector.broadcast %cst_92 : f32 to vector<1x128xf32>
    %108 = arith.divf %106, %107 : vector<1x128xf32>
    %c0_93 = arith.constant 0 : index
    %c0_94 = arith.constant 0 : index
    %109 = vector.load %arg5[%c0_93, %c0_94] : memref<128x128xf32, #tpu.memory_space<vmem>>, vector<128x128xf32>
    %cst_95 = arith.constant dense<0.000000e+00> : vector<1x128xf32>
    %110 = tpu.matmul %108, %109, %cst_95 {dimension_numbers = #tpu.dot_dimension_numbers<[1], [0], [0], [1], [0, 0, 1, 1], [], []>} : vector<1x128xf32>, vector<128x128xf32>, vector<1x128xf32> -> vector<1x128xf32>
    %cst_96 = arith.constant 9.99999974E-6 : f32
    %111 = vector.broadcast %cst_96 : f32 to vector<1x128xf32>
    %112 = arith.addf %110, %111 : vector<1x128xf32>
    %113 = math.rsqrt %112 : vector<1x128xf32>
    %114 = vector.broadcast %113 : vector<1x128xf32> to vector<32x128xf32>
    %115 = arith.mulf %103, %114 : vector<32x128xf32>
    %116 = vector.broadcast %93 : vector<1x128xf32> to vector<32x128xf32>
    %117 = arith.mulf %115, %116 : vector<32x128xf32>
    %118 = vector.broadcast %95 : vector<1x128xf32> to vector<32x128xf32>
    %119 = arith.addf %117, %118 : vector<32x128xf32>
    %c2_97 = arith.constant 2 : index
    %c0_98 = arith.constant 0 : index
    %c0_99 = arith.constant 0 : index
    %120 = vector.load %arg11[%c2_97, %c0_98, %c0_99] : memref<20x1x128xf32, #tpu.memory_space<vmem>>, vector<1x1x128xf32>
    %121 = vector.shape_cast %120 : vector<1x1x128xf32> to vector<1x128xf32>
    %c3_100 = arith.constant 3 : index
    %c0_101 = arith.constant 0 : index
    %c0_102 = arith.constant 0 : index
    %122 = vector.load %arg11[%c3_100, %c0_101, %c0_102] : memref<20x1x128xf32, #tpu.memory_space<vmem>>, vector<1x1x128xf32>
    %123 = vector.shape_cast %122 : vector<1x1x128xf32> to vector<1x128xf32>
    %cst_103 = arith.constant dense<0.000000e+00> : vector<128xf32>
    %124 = vector.multi_reduction <add>, %91, %cst_103 [0] : vector<32x128xf32> to vector<128xf32>
    %125 = vector.shape_cast %124 : vector<128xf32> to vector<1x128xf32>
    %cst_104 = arith.constant 3.200000e+01 : f32
    %126 = vector.broadcast %cst_104 : f32 to vector<1x128xf32>
    %127 = arith.divf %125, %126 : vector<1x128xf32>
    %c0_105 = arith.constant 0 : index
    %c0_106 = arith.constant 0 : index
    %128 = vector.load %arg5[%c0_105, %c0_106] : memref<128x128xf32, #tpu.memory_space<vmem>>, vector<128x128xf32>
    %cst_107 = arith.constant dense<0.000000e+00> : vector<1x128xf32>
    %129 = tpu.matmul %127, %128, %cst_107 {dimension_numbers = #tpu.dot_dimension_numbers<[1], [0], [0], [1], [0, 0, 1, 1], [], []>} : vector<1x128xf32>, vector<128x128xf32>, vector<1x128xf32> -> vector<1x128xf32>
    %130 = vector.broadcast %129 : vector<1x128xf32> to vector<32x128xf32>
    %131 = arith.subf %91, %130 : vector<32x128xf32>
    %132 = arith.mulf %131, %131 : vector<32x128xf32>
    %cst_108 = arith.constant dense<0.000000e+00> : vector<128xf32>
    %133 = vector.multi_reduction <add>, %132, %cst_108 [0] : vector<32x128xf32> to vector<128xf32>
    %134 = vector.shape_cast %133 : vector<128xf32> to vector<1x128xf32>
    %cst_109 = arith.constant 3.200000e+01 : f32
    %135 = vector.broadcast %cst_109 : f32 to vector<1x128xf32>
    %136 = arith.divf %134, %135 : vector<1x128xf32>
    %c0_110 = arith.constant 0 : index
    %c0_111 = arith.constant 0 : index
    %137 = vector.load %arg5[%c0_110, %c0_111] : memref<128x128xf32, #tpu.memory_space<vmem>>, vector<128x128xf32>
    %cst_112 = arith.constant dense<0.000000e+00> : vector<1x128xf32>
    %138 = tpu.matmul %136, %137, %cst_112 {dimension_numbers = #tpu.dot_dimension_numbers<[1], [0], [0], [1], [0, 0, 1, 1], [], []>} : vector<1x128xf32>, vector<128x128xf32>, vector<1x128xf32> -> vector<1x128xf32>
    %cst_113 = arith.constant 9.99999974E-6 : f32
    %139 = vector.broadcast %cst_113 : f32 to vector<1x128xf32>
    %140 = arith.addf %138, %139 : vector<1x128xf32>
    %141 = math.rsqrt %140 : vector<1x128xf32>
    %142 = vector.broadcast %141 : vector<1x128xf32> to vector<32x128xf32>
    %143 = arith.mulf %131, %142 : vector<32x128xf32>
    %144 = vector.broadcast %121 : vector<1x128xf32> to vector<32x128xf32>
    %145 = arith.mulf %143, %144 : vector<32x128xf32>
    %146 = vector.broadcast %123 : vector<1x128xf32> to vector<32x128xf32>
    %147 = arith.addf %145, %146 : vector<32x128xf32>
    %148 = arith.negf %147 : vector<32x128xf32>
    %149 = math.exp %148 : vector<32x128xf32>
    %cst_114 = arith.constant 1.000000e+00 : f32
    %150 = vector.broadcast %cst_114 : f32 to vector<32x128xf32>
    %151 = arith.addf %150, %149 : vector<32x128xf32>
    %152 = arith.divf %150, %151 : vector<32x128xf32>
    %153 = arith.mulf %119, %152 : vector<32x128xf32>
    %154 = arith.truncf %153 : vector<32x128xf32> to vector<32x128xbf16>
    %cst_115 = arith.constant dense<0.000000e+00> : vector<32x128xf32>
    %155 = tpu.matmul %0, %154, %cst_115 {dimension_numbers = #tpu.dot_dimension_numbers<[1], [0], [0], [1], [0, 0, 1, 1], [], []>} : vector<32x32xbf16>, vector<32x128xbf16>, vector<32x128xf32> -> vector<32x128xf32>
    %156 = arith.truncf %155 : vector<32x128xf32> to vector<32x128xbf16>
    %cst_116 = arith.constant dense<0.000000e+00> : vector<32x128xf32>
    %157 = tpu.matmul %1, %154, %cst_116 {dimension_numbers = #tpu.dot_dimension_numbers<[1], [0], [0], [1], [0, 0, 1, 1], [], []>} : vector<32x32xbf16>, vector<32x128xbf16>, vector<32x128xf32> -> vector<32x128xf32>
    %158 = arith.truncf %157 : vector<32x128xf32> to vector<32x128xbf16>
    %c6 = arith.constant 6 : index
    %c0_117 = arith.constant 0 : index
    %c0_118 = arith.constant 0 : index
    %159 = vector.load %arg9[%c6, %c0_117, %c0_118] : memref<30x128x128xbf16, #tpu.memory_space<vmem>>, vector<1x128x128xbf16>
    %160 = vector.shape_cast %159 : vector<1x128x128xbf16> to vector<128x128xbf16>
    %cst_119 = arith.constant dense<0.000000e+00> : vector<32x128xf32>
    %161 = tpu.matmul %156, %160, %cst_119 {dimension_numbers = #tpu.dot_dimension_numbers<[1], [0], [0], [1], [0, 0, 1, 1], [], []>} : vector<32x128xbf16>, vector<128x128xbf16>, vector<32x128xf32> -> vector<32x128xf32>
    %c7 = arith.constant 7 : index
    %c0_120 = arith.constant 0 : index
    %c0_121 = arith.constant 0 : index
    %162 = vector.load %arg9[%c7, %c0_120, %c0_121] : memref<30x128x128xbf16, #tpu.memory_space<vmem>>, vector<1x128x128xbf16>
    %163 = vector.shape_cast %162 : vector<1x128x128xbf16> to vector<128x128xbf16>
    %cst_122 = arith.constant dense<0.000000e+00> : vector<32x128xf32>
    %164 = tpu.matmul %154, %163, %cst_122 {dimension_numbers = #tpu.dot_dimension_numbers<[1], [0], [0], [1], [0, 0, 1, 1], [], []>} : vector<32x128xbf16>, vector<128x128xbf16>, vector<32x128xf32> -> vector<32x128xf32>
    %165 = arith.addf %161, %164 : vector<32x128xf32>
    %c8 = arith.constant 8 : index
    %c0_123 = arith.constant 0 : index
    %c0_124 = arith.constant 0 : index
    %166 = vector.load %arg9[%c8, %c0_123, %c0_124] : memref<30x128x128xbf16, #tpu.memory_space<vmem>>, vector<1x128x128xbf16>
    %167 = vector.shape_cast %166 : vector<1x128x128xbf16> to vector<128x128xbf16>
    %cst_125 = arith.constant dense<0.000000e+00> : vector<32x128xf32>
    %168 = tpu.matmul %158, %167, %cst_125 {dimension_numbers = #tpu.dot_dimension_numbers<[1], [0], [0], [1], [0, 0, 1, 1], [], []>} : vector<32x128xbf16>, vector<128x128xbf16>, vector<32x128xf32> -> vector<32x128xf32>
    %169 = arith.addf %165, %168 : vector<32x128xf32>
    %c4_126 = arith.constant 4 : index
    %c0_127 = arith.constant 0 : index
    %c0_128 = arith.constant 0 : index
    %170 = vector.load %arg11[%c4_126, %c0_127, %c0_128] : memref<20x1x128xf32, #tpu.memory_space<vmem>>, vector<1x1x128xf32>
    %171 = vector.shape_cast %170 : vector<1x1x128xf32> to vector<1x128xf32>
    %c5_129 = arith.constant 5 : index
    %c0_130 = arith.constant 0 : index
    %c0_131 = arith.constant 0 : index
    %172 = vector.load %arg11[%c5_129, %c0_130, %c0_131] : memref<20x1x128xf32, #tpu.memory_space<vmem>>, vector<1x1x128xf32>
    %173 = vector.shape_cast %172 : vector<1x1x128xf32> to vector<1x128xf32>
    %cst_132 = arith.constant dense<0.000000e+00> : vector<128xf32>
    %174 = vector.multi_reduction <add>, %169, %cst_132 [0] : vector<32x128xf32> to vector<128xf32>
    %175 = vector.shape_cast %174 : vector<128xf32> to vector<1x128xf32>
    %cst_133 = arith.constant 3.200000e+01 : f32
    %176 = vector.broadcast %cst_133 : f32 to vector<1x128xf32>
    %177 = arith.divf %175, %176 : vector<1x128xf32>
    %c0_134 = arith.constant 0 : index
    %c0_135 = arith.constant 0 : index
    %178 = vector.load %arg5[%c0_134, %c0_135] : memref<128x128xf32, #tpu.memory_space<vmem>>, vector<128x128xf32>
    %cst_136 = arith.constant dense<0.000000e+00> : vector<1x128xf32>
    %179 = tpu.matmul %177, %178, %cst_136 {dimension_numbers = #tpu.dot_dimension_numbers<[1], [0], [0], [1], [0, 0, 1, 1], [], []>} : vector<1x128xf32>, vector<128x128xf32>, vector<1x128xf32> -> vector<1x128xf32>
    %180 = vector.broadcast %179 : vector<1x128xf32> to vector<32x128xf32>
    %181 = arith.subf %169, %180 : vector<32x128xf32>
    %182 = arith.mulf %181, %181 : vector<32x128xf32>
    %cst_137 = arith.constant dense<0.000000e+00> : vector<128xf32>
    %183 = vector.multi_reduction <add>, %182, %cst_137 [0] : vector<32x128xf32> to vector<128xf32>
    %184 = vector.shape_cast %183 : vector<128xf32> to vector<1x128xf32>
    %cst_138 = arith.constant 3.200000e+01 : f32
    %185 = vector.broadcast %cst_138 : f32 to vector<1x128xf32>
    %186 = arith.divf %184, %185 : vector<1x128xf32>
    %c0_139 = arith.constant 0 : index
    %c0_140 = arith.constant 0 : index
    %187 = vector.load %arg5[%c0_139, %c0_140] : memref<128x128xf32, #tpu.memory_space<vmem>>, vector<128x128xf32>
    %cst_141 = arith.constant dense<0.000000e+00> : vector<1x128xf32>
    %188 = tpu.matmul %186, %187, %cst_141 {dimension_numbers = #tpu.dot_dimension_numbers<[1], [0], [0], [1], [0, 0, 1, 1], [], []>} : vector<1x128xf32>, vector<128x128xf32>, vector<1x128xf32> -> vector<1x128xf32>
    %cst_142 = arith.constant 9.99999974E-6 : f32
    %189 = vector.broadcast %cst_142 : f32 to vector<1x128xf32>
    %190 = arith.addf %188, %189 : vector<1x128xf32>
    %191 = math.rsqrt %190 : vector<1x128xf32>
    %192 = vector.broadcast %191 : vector<1x128xf32> to vector<32x128xf32>
    %193 = arith.mulf %181, %192 : vector<32x128xf32>
    %194 = vector.broadcast %171 : vector<1x128xf32> to vector<32x128xf32>
    %195 = arith.mulf %193, %194 : vector<32x128xf32>
    %196 = vector.broadcast %173 : vector<1x128xf32> to vector<32x128xf32>
    %197 = arith.addf %195, %196 : vector<32x128xf32>
    %c9 = arith.constant 9 : index
    %c0_143 = arith.constant 0 : index
    %c0_144 = arith.constant 0 : index
    %198 = vector.load %arg9[%c9, %c0_143, %c0_144] : memref<30x128x128xbf16, #tpu.memory_space<vmem>>, vector<1x128x128xbf16>
    %199 = vector.shape_cast %198 : vector<1x128x128xbf16> to vector<128x128xbf16>
    %cst_145 = arith.constant dense<0.000000e+00> : vector<32x128xf32>
    %200 = tpu.matmul %156, %199, %cst_145 {dimension_numbers = #tpu.dot_dimension_numbers<[1], [0], [0], [1], [0, 0, 1, 1], [], []>} : vector<32x128xbf16>, vector<128x128xbf16>, vector<32x128xf32> -> vector<32x128xf32>
    %c10 = arith.constant 10 : index
    %c0_146 = arith.constant 0 : index
    %c0_147 = arith.constant 0 : index
    %201 = vector.load %arg9[%c10, %c0_146, %c0_147] : memref<30x128x128xbf16, #tpu.memory_space<vmem>>, vector<1x128x128xbf16>
    %202 = vector.shape_cast %201 : vector<1x128x128xbf16> to vector<128x128xbf16>
    %cst_148 = arith.constant dense<0.000000e+00> : vector<32x128xf32>
    %203 = tpu.matmul %154, %202, %cst_148 {dimension_numbers = #tpu.dot_dimension_numbers<[1], [0], [0], [1], [0, 0, 1, 1], [], []>} : vector<32x128xbf16>, vector<128x128xbf16>, vector<32x128xf32> -> vector<32x128xf32>
    %204 = arith.addf %200, %203 : vector<32x128xf32>
    %c11 = arith.constant 11 : index
    %c0_149 = arith.constant 0 : index
    %c0_150 = arith.constant 0 : index
    %205 = vector.load %arg9[%c11, %c0_149, %c0_150] : memref<30x128x128xbf16, #tpu.memory_space<vmem>>, vector<1x128x128xbf16>
    %206 = vector.shape_cast %205 : vector<1x128x128xbf16> to vector<128x128xbf16>
    %cst_151 = arith.constant dense<0.000000e+00> : vector<32x128xf32>
    %207 = tpu.matmul %158, %206, %cst_151 {dimension_numbers = #tpu.dot_dimension_numbers<[1], [0], [0], [1], [0, 0, 1, 1], [], []>} : vector<32x128xbf16>, vector<128x128xbf16>, vector<32x128xf32> -> vector<32x128xf32>
    %208 = arith.addf %204, %207 : vector<32x128xf32>
    %c6_152 = arith.constant 6 : index
    %c0_153 = arith.constant 0 : index
    %c0_154 = arith.constant 0 : index
    %209 = vector.load %arg11[%c6_152, %c0_153, %c0_154] : memref<20x1x128xf32, #tpu.memory_space<vmem>>, vector<1x1x128xf32>
    %210 = vector.shape_cast %209 : vector<1x1x128xf32> to vector<1x128xf32>
    %c7_155 = arith.constant 7 : index
    %c0_156 = arith.constant 0 : index
    %c0_157 = arith.constant 0 : index
    %211 = vector.load %arg11[%c7_155, %c0_156, %c0_157] : memref<20x1x128xf32, #tpu.memory_space<vmem>>, vector<1x1x128xf32>
    %212 = vector.shape_cast %211 : vector<1x1x128xf32> to vector<1x128xf32>
    %cst_158 = arith.constant dense<0.000000e+00> : vector<128xf32>
    %213 = vector.multi_reduction <add>, %208, %cst_158 [0] : vector<32x128xf32> to vector<128xf32>
    %214 = vector.shape_cast %213 : vector<128xf32> to vector<1x128xf32>
    %cst_159 = arith.constant 3.200000e+01 : f32
    %215 = vector.broadcast %cst_159 : f32 to vector<1x128xf32>
    %216 = arith.divf %214, %215 : vector<1x128xf32>
    %c0_160 = arith.constant 0 : index
    %c0_161 = arith.constant 0 : index
    %217 = vector.load %arg5[%c0_160, %c0_161] : memref<128x128xf32, #tpu.memory_space<vmem>>, vector<128x128xf32>
    %cst_162 = arith.constant dense<0.000000e+00> : vector<1x128xf32>
    %218 = tpu.matmul %216, %217, %cst_162 {dimension_numbers = #tpu.dot_dimension_numbers<[1], [0], [0], [1], [0, 0, 1, 1], [], []>} : vector<1x128xf32>, vector<128x128xf32>, vector<1x128xf32> -> vector<1x128xf32>
    %219 = vector.broadcast %218 : vector<1x128xf32> to vector<32x128xf32>
    %220 = arith.subf %208, %219 : vector<32x128xf32>
    %221 = arith.mulf %220, %220 : vector<32x128xf32>
    %cst_163 = arith.constant dense<0.000000e+00> : vector<128xf32>
    %222 = vector.multi_reduction <add>, %221, %cst_163 [0] : vector<32x128xf32> to vector<128xf32>
    %223 = vector.shape_cast %222 : vector<128xf32> to vector<1x128xf32>
    %cst_164 = arith.constant 3.200000e+01 : f32
    %224 = vector.broadcast %cst_164 : f32 to vector<1x128xf32>
    %225 = arith.divf %223, %224 : vector<1x128xf32>
    %c0_165 = arith.constant 0 : index
    %c0_166 = arith.constant 0 : index
    %226 = vector.load %arg5[%c0_165, %c0_166] : memref<128x128xf32, #tpu.memory_space<vmem>>, vector<128x128xf32>
    %cst_167 = arith.constant dense<0.000000e+00> : vector<1x128xf32>
    %227 = tpu.matmul %225, %226, %cst_167 {dimension_numbers = #tpu.dot_dimension_numbers<[1], [0], [0], [1], [0, 0, 1, 1], [], []>} : vector<1x128xf32>, vector<128x128xf32>, vector<1x128xf32> -> vector<1x128xf32>
    %cst_168 = arith.constant 9.99999974E-6 : f32
    %228 = vector.broadcast %cst_168 : f32 to vector<1x128xf32>
    %229 = arith.addf %227, %228 : vector<1x128xf32>
    %230 = math.rsqrt %229 : vector<1x128xf32>
    %231 = vector.broadcast %230 : vector<1x128xf32> to vector<32x128xf32>
    %232 = arith.mulf %220, %231 : vector<32x128xf32>
    %233 = vector.broadcast %210 : vector<1x128xf32> to vector<32x128xf32>
    %234 = arith.mulf %232, %233 : vector<32x128xf32>
    %235 = vector.broadcast %212 : vector<1x128xf32> to vector<32x128xf32>
    %236 = arith.addf %234, %235 : vector<32x128xf32>
    %237 = arith.negf %236 : vector<32x128xf32>
    %238 = math.exp %237 : vector<32x128xf32>
    %cst_169 = arith.constant 1.000000e+00 : f32
    %239 = vector.broadcast %cst_169 : f32 to vector<32x128xf32>
    %240 = arith.addf %239, %238 : vector<32x128xf32>
    %241 = arith.divf %239, %240 : vector<32x128xf32>
    %242 = arith.mulf %197, %241 : vector<32x128xf32>
    %243 = arith.truncf %242 : vector<32x128xf32> to vector<32x128xbf16>
    %cst_170 = arith.constant dense<0.000000e+00> : vector<32x128xf32>
    %244 = tpu.matmul %0, %243, %cst_170 {dimension_numbers = #tpu.dot_dimension_numbers<[1], [0], [0], [1], [0, 0, 1, 1], [], []>} : vector<32x32xbf16>, vector<32x128xbf16>, vector<32x128xf32> -> vector<32x128xf32>
    %245 = arith.truncf %244 : vector<32x128xf32> to vector<32x128xbf16>
    %cst_171 = arith.constant dense<0.000000e+00> : vector<32x128xf32>
    %246 = tpu.matmul %1, %243, %cst_171 {dimension_numbers = #tpu.dot_dimension_numbers<[1], [0], [0], [1], [0, 0, 1, 1], [], []>} : vector<32x32xbf16>, vector<32x128xbf16>, vector<32x128xf32> -> vector<32x128xf32>
    %247 = arith.truncf %246 : vector<32x128xf32> to vector<32x128xbf16>
    %c12 = arith.constant 12 : index
    %c0_172 = arith.constant 0 : index
    %c0_173 = arith.constant 0 : index
    %248 = vector.load %arg9[%c12, %c0_172, %c0_173] : memref<30x128x128xbf16, #tpu.memory_space<vmem>>, vector<1x128x128xbf16>
    %249 = vector.shape_cast %248 : vector<1x128x128xbf16> to vector<128x128xbf16>
    %cst_174 = arith.constant dense<0.000000e+00> : vector<32x128xf32>
    %250 = tpu.matmul %245, %249, %cst_174 {dimension_numbers = #tpu.dot_dimension_numbers<[1], [0], [0], [1], [0, 0, 1, 1], [], []>} : vector<32x128xbf16>, vector<128x128xbf16>, vector<32x128xf32> -> vector<32x128xf32>
    %c13 = arith.constant 13 : index
    %c0_175 = arith.constant 0 : index
    %c0_176 = arith.constant 0 : index
    %251 = vector.load %arg9[%c13, %c0_175, %c0_176] : memref<30x128x128xbf16, #tpu.memory_space<vmem>>, vector<1x128x128xbf16>
    %252 = vector.shape_cast %251 : vector<1x128x128xbf16> to vector<128x128xbf16>
    %cst_177 = arith.constant dense<0.000000e+00> : vector<32x128xf32>
    %253 = tpu.matmul %243, %252, %cst_177 {dimension_numbers = #tpu.dot_dimension_numbers<[1], [0], [0], [1], [0, 0, 1, 1], [], []>} : vector<32x128xbf16>, vector<128x128xbf16>, vector<32x128xf32> -> vector<32x128xf32>
    %254 = arith.addf %250, %253 : vector<32x128xf32>
    %c14 = arith.constant 14 : index
    %c0_178 = arith.constant 0 : index
    %c0_179 = arith.constant 0 : index
    %255 = vector.load %arg9[%c14, %c0_178, %c0_179] : memref<30x128x128xbf16, #tpu.memory_space<vmem>>, vector<1x128x128xbf16>
    %256 = vector.shape_cast %255 : vector<1x128x128xbf16> to vector<128x128xbf16>
    %cst_180 = arith.constant dense<0.000000e+00> : vector<32x128xf32>
    %257 = tpu.matmul %247, %256, %cst_180 {dimension_numbers = #tpu.dot_dimension_numbers<[1], [0], [0], [1], [0, 0, 1, 1], [], []>} : vector<32x128xbf16>, vector<128x128xbf16>, vector<32x128xf32> -> vector<32x128xf32>
    %258 = arith.addf %254, %257 : vector<32x128xf32>
    %c8_181 = arith.constant 8 : index
    %c0_182 = arith.constant 0 : index
    %c0_183 = arith.constant 0 : index
    %259 = vector.load %arg11[%c8_181, %c0_182, %c0_183] : memref<20x1x128xf32, #tpu.memory_space<vmem>>, vector<1x1x128xf32>
    %260 = vector.shape_cast %259 : vector<1x1x128xf32> to vector<1x128xf32>
    %c9_184 = arith.constant 9 : index
    %c0_185 = arith.constant 0 : index
    %c0_186 = arith.constant 0 : index
    %261 = vector.load %arg11[%c9_184, %c0_185, %c0_186] : memref<20x1x128xf32, #tpu.memory_space<vmem>>, vector<1x1x128xf32>
    %262 = vector.shape_cast %261 : vector<1x1x128xf32> to vector<1x128xf32>
    %cst_187 = arith.constant dense<0.000000e+00> : vector<128xf32>
    %263 = vector.multi_reduction <add>, %258, %cst_187 [0] : vector<32x128xf32> to vector<128xf32>
    %264 = vector.shape_cast %263 : vector<128xf32> to vector<1x128xf32>
    %cst_188 = arith.constant 3.200000e+01 : f32
    %265 = vector.broadcast %cst_188 : f32 to vector<1x128xf32>
    %266 = arith.divf %264, %265 : vector<1x128xf32>
    %c0_189 = arith.constant 0 : index
    %c0_190 = arith.constant 0 : index
    %267 = vector.load %arg5[%c0_189, %c0_190] : memref<128x128xf32, #tpu.memory_space<vmem>>, vector<128x128xf32>
    %cst_191 = arith.constant dense<0.000000e+00> : vector<1x128xf32>
    %268 = tpu.matmul %266, %267, %cst_191 {dimension_numbers = #tpu.dot_dimension_numbers<[1], [0], [0], [1], [0, 0, 1, 1], [], []>} : vector<1x128xf32>, vector<128x128xf32>, vector<1x128xf32> -> vector<1x128xf32>
    %269 = vector.broadcast %268 : vector<1x128xf32> to vector<32x128xf32>
    %270 = arith.subf %258, %269 : vector<32x128xf32>
    %271 = arith.mulf %270, %270 : vector<32x128xf32>
    %cst_192 = arith.constant dense<0.000000e+00> : vector<128xf32>
    %272 = vector.multi_reduction <add>, %271, %cst_192 [0] : vector<32x128xf32> to vector<128xf32>
    %273 = vector.shape_cast %272 : vector<128xf32> to vector<1x128xf32>
    %cst_193 = arith.constant 3.200000e+01 : f32
    %274 = vector.broadcast %cst_193 : f32 to vector<1x128xf32>
    %275 = arith.divf %273, %274 : vector<1x128xf32>
    %c0_194 = arith.constant 0 : index
    %c0_195 = arith.constant 0 : index
    %276 = vector.load %arg5[%c0_194, %c0_195] : memref<128x128xf32, #tpu.memory_space<vmem>>, vector<128x128xf32>
    %cst_196 = arith.constant dense<0.000000e+00> : vector<1x128xf32>
    %277 = tpu.matmul %275, %276, %cst_196 {dimension_numbers = #tpu.dot_dimension_numbers<[1], [0], [0], [1], [0, 0, 1, 1], [], []>} : vector<1x128xf32>, vector<128x128xf32>, vector<1x128xf32> -> vector<1x128xf32>
    %cst_197 = arith.constant 9.99999974E-6 : f32
    %278 = vector.broadcast %cst_197 : f32 to vector<1x128xf32>
    %279 = arith.addf %277, %278 : vector<1x128xf32>
    %280 = math.rsqrt %279 : vector<1x128xf32>
    %281 = vector.broadcast %280 : vector<1x128xf32> to vector<32x128xf32>
    %282 = arith.mulf %270, %281 : vector<32x128xf32>
    %283 = vector.broadcast %260 : vector<1x128xf32> to vector<32x128xf32>
    %284 = arith.mulf %282, %283 : vector<32x128xf32>
    %285 = vector.broadcast %262 : vector<1x128xf32> to vector<32x128xf32>
    %286 = arith.addf %284, %285 : vector<32x128xf32>
    %287 = arith.addf %153, %286 : vector<32x128xf32>
    %288 = arith.truncf %287 : vector<32x128xf32> to vector<32x128xbf16>
    %cst_198 = arith.constant dense<0.000000e+00> : vector<32x128xf32>
    %289 = tpu.matmul %0, %288, %cst_198 {dimension_numbers = #tpu.dot_dimension_numbers<[1], [0], [0], [1], [0, 0, 1, 1], [], []>} : vector<32x32xbf16>, vector<32x128xbf16>, vector<32x128xf32> -> vector<32x128xf32>
    %290 = arith.truncf %289 : vector<32x128xf32> to vector<32x128xbf16>
    %cst_199 = arith.constant dense<0.000000e+00> : vector<32x128xf32>
    %291 = tpu.matmul %1, %288, %cst_199 {dimension_numbers = #tpu.dot_dimension_numbers<[1], [0], [0], [1], [0, 0, 1, 1], [], []>} : vector<32x32xbf16>, vector<32x128xbf16>, vector<32x128xf32> -> vector<32x128xf32>
    %292 = arith.truncf %291 : vector<32x128xf32> to vector<32x128xbf16>
    %c3_200 = arith.constant 3 : index
    %c0_201 = arith.constant 0 : index
    %c0_202 = arith.constant 0 : index
    %293 = vector.load %arg7[%c3_200, %c0_201, %c0_202] : memref<9x128x64xbf16, #tpu.memory_space<vmem>>, vector<1x128x64xbf16>
    %294 = vector.shape_cast %293 : vector<1x128x64xbf16> to vector<128x64xbf16>
    %cst_203 = arith.constant dense<0.000000e+00> : vector<32x64xf32>
    %295 = tpu.matmul %290, %294, %cst_203 {dimension_numbers = #tpu.dot_dimension_numbers<[1], [0], [0], [1], [0, 0, 1, 1], [], []>} : vector<32x128xbf16>, vector<128x64xbf16>, vector<32x64xf32> -> vector<32x64xf32>
    %c4_204 = arith.constant 4 : index
    %c0_205 = arith.constant 0 : index
    %c0_206 = arith.constant 0 : index
    %296 = vector.load %arg7[%c4_204, %c0_205, %c0_206] : memref<9x128x64xbf16, #tpu.memory_space<vmem>>, vector<1x128x64xbf16>
    %297 = vector.shape_cast %296 : vector<1x128x64xbf16> to vector<128x64xbf16>
    %cst_207 = arith.constant dense<0.000000e+00> : vector<32x64xf32>
    %298 = tpu.matmul %288, %297, %cst_207 {dimension_numbers = #tpu.dot_dimension_numbers<[1], [0], [0], [1], [0, 0, 1, 1], [], []>} : vector<32x128xbf16>, vector<128x64xbf16>, vector<32x64xf32> -> vector<32x64xf32>
    %299 = arith.addf %295, %298 : vector<32x64xf32>
    %c5_208 = arith.constant 5 : index
    %c0_209 = arith.constant 0 : index
    %c0_210 = arith.constant 0 : index
    %300 = vector.load %arg7[%c5_208, %c0_209, %c0_210] : memref<9x128x64xbf16, #tpu.memory_space<vmem>>, vector<1x128x64xbf16>
    %301 = vector.shape_cast %300 : vector<1x128x64xbf16> to vector<128x64xbf16>
    %cst_211 = arith.constant dense<0.000000e+00> : vector<32x64xf32>
    %302 = tpu.matmul %292, %301, %cst_211 {dimension_numbers = #tpu.dot_dimension_numbers<[1], [0], [0], [1], [0, 0, 1, 1], [], []>} : vector<32x128xbf16>, vector<128x64xbf16>, vector<32x64xf32> -> vector<32x64xf32>
    %303 = arith.addf %299, %302 : vector<32x64xf32>
    %c1_212 = arith.constant 1 : index
    %c0_213 = arith.constant 0 : index
    %c0_214 = arith.constant 0 : index
    %304 = vector.load %arg8[%c1_212, %c0_213, %c0_214] : memref<3x1x64xf32, #tpu.memory_space<vmem>>, vector<1x1x64xf32>
    %305 = vector.shape_cast %304 : vector<1x1x64xf32> to vector<1x64xf32>
    %306 = vector.broadcast %305 : vector<1x64xf32> to vector<32x64xf32>
    %307 = arith.addf %303, %306 : vector<32x64xf32>
    %308 = vector.extract_strided_slice %307 {offsets = [0, 0], sizes = [32, 48], strides = [1, 1]} : vector<32x64xf32> to vector<32x48xf32>
    %309 = math.tanh %308 : vector<32x48xf32>
    %310 = vector.extract_strided_slice %307 {offsets = [0, 48], sizes = [32, 16], strides = [1, 1]} : vector<32x64xf32> to vector<32x16xf32>
    %311 = arith.negf %310 : vector<32x16xf32>
    %312 = math.exp %311 : vector<32x16xf32>
    %cst_215 = arith.constant 1.000000e+00 : f32
    %313 = vector.broadcast %cst_215 : f32 to vector<32x16xf32>
    %314 = arith.addf %313, %312 : vector<32x16xf32>
    %315 = arith.divf %313, %314 : vector<32x16xf32>
    %c0_216 = arith.constant 0 : index
    %c64 = arith.constant 64 : index
    %316 = vector.load %arg14[%c0_216, %c64] : memref<32x192xf32, #tpu.memory_space<vmem>>, vector<32x48xf32>
    tpu.vector_store %arg14[%c0_216, %c64], %309 {strides = array<i32>} : memref<32x192xf32, #tpu.memory_space<vmem>>, vector<32x48xf32>,
    %c0_217 = arith.constant 0 : index
    %c112 = arith.constant 112 : index
    %317 = vector.load %arg14[%c0_217, %c112] : memref<32x192xf32, #tpu.memory_space<vmem>>, vector<32x16xf32>
    tpu.vector_store %arg14[%c0_217, %c112], %315 {strides = array<i32>} : memref<32x192xf32, #tpu.memory_space<vmem>>, vector<32x16xf32>,
    %c0_218 = arith.constant 0 : index
    %c0_219 = arith.constant 0 : index
    %318 = vector.load %arg6[%c0_218, %c0_219] : memref<16x48xf32, #tpu.memory_space<vmem>>, vector<16x48xf32>
    %cst_220 = arith.constant dense<0.000000e+00> : vector<32x48xf32>
    %319 = tpu.matmul %315, %318, %cst_220 {dimension_numbers = #tpu.dot_dimension_numbers<[1], [0], [0], [1], [0, 0, 1, 1], [], []>} : vector<32x16xf32>, vector<16x48xf32>, vector<32x48xf32> -> vector<32x48xf32>
    %320 = arith.mulf %309, %319 : vector<32x48xf32>
    %cst_221 = arith.constant 1.000000e+00 : f32
    %321 = vector.broadcast %cst_221 : f32 to vector<32x48xf32>
    %322 = arith.subf %321, %319 : vector<32x48xf32>
    %323 = arith.mulf %35, %322 : vector<32x48xf32>
    %324 = arith.addf %320, %323 : vector<32x48xf32>
    %cst_222 = arith.constant 1.000000e+00 : f32
    %325 = vector.broadcast %cst_222 : f32 to vector<32x16xf32>
    %326 = arith.subf %325, %30 : vector<32x16xf32>
    %cst_223 = arith.constant 1.000000e+00 : f32
    %327 = vector.broadcast %cst_223 : f32 to vector<32x16xf32>
    %328 = arith.subf %327, %315 : vector<32x16xf32>
    %329 = arith.mulf %326, %328 : vector<32x16xf32>
    %cst_224 = arith.constant 1.000000e+00 : f32
    %330 = vector.broadcast %cst_224 : f32 to vector<32x16xf32>
    %331 = arith.subf %330, %329 : vector<32x16xf32>
    %c1_225 = arith.constant 1 : index
    %c0_226 = arith.constant 0 : index
    %c0_227 = arith.constant 0 : index
    %332 = vector.load %arg12[%c1_225, %c0_226, %c0_227] : memref<3x128x128xbf16, #tpu.memory_space<vmem>>, vector<1x128x128xbf16>
    %333 = vector.shape_cast %332 : vector<1x128x128xbf16> to vector<128x128xbf16>
    %cst_228 = arith.constant dense<0.000000e+00> : vector<32x128xf32>
    %334 = tpu.matmul %288, %333, %cst_228 {dimension_numbers = #tpu.dot_dimension_numbers<[1], [0], [0], [1], [0, 0, 1, 1], [], []>} : vector<32x128xbf16>, vector<128x128xbf16>, vector<32x128xf32> -> vector<32x128xf32>
    %335 = arith.addf %38, %334 : vector<32x128xf32>
    %c1_229 = arith.constant 1 : index
    %c0_230 = arith.constant 0 : index
    %c0_231 = arith.constant 0 : index
    %336 = vector.load %arg2[%c1_229, %c0_230, %c0_231] : memref<2x32x64xf32, #tpu.memory_space<vmem>>, vector<1x32x64xf32>
    %337 = vector.shape_cast %336 : vector<1x32x64xf32> to vector<32x64xf32>
    %338 = arith.truncf %337 : vector<32x64xf32> to vector<32x64xbf16>
    %cst_232 = arith.constant dense<0.000000e+00> : vector<32x64xf32>
    %339 = tpu.matmul %0, %338, %cst_232 {dimension_numbers = #tpu.dot_dimension_numbers<[1], [0], [0], [1], [0, 0, 1, 1], [], []>} : vector<32x32xbf16>, vector<32x64xbf16>, vector<32x64xf32> -> vector<32x64xf32>
    %340 = arith.truncf %339 : vector<32x64xf32> to vector<32x64xbf16>
    %cst_233 = arith.constant dense<0.000000e+00> : vector<32x64xf32>
    %341 = tpu.matmul %1, %338, %cst_233 {dimension_numbers = #tpu.dot_dimension_numbers<[1], [0], [0], [1], [0, 0, 1, 1], [], []>} : vector<32x32xbf16>, vector<32x64xbf16>, vector<32x64xf32> -> vector<32x64xf32>
    %342 = arith.truncf %341 : vector<32x64xf32> to vector<32x64xbf16>
    %c15 = arith.constant 15 : index
    %c0_234 = arith.constant 0 : index
    %c0_235 = arith.constant 0 : index
    %343 = vector.load %arg9[%c15, %c0_234, %c0_235] : memref<30x128x128xbf16, #tpu.memory_space<vmem>>, vector<1x128x128xbf16>
    %344 = vector.shape_cast %343 : vector<1x128x128xbf16> to vector<128x128xbf16>
    %cst_236 = arith.constant dense<0.000000e+00> : vector<32x128xf32>
    %345 = tpu.matmul %290, %344, %cst_236 {dimension_numbers = #tpu.dot_dimension_numbers<[1], [0], [0], [1], [0, 0, 1, 1], [], []>} : vector<32x128xbf16>, vector<128x128xbf16>, vector<32x128xf32> -> vector<32x128xf32>
    %c16 = arith.constant 16 : index
    %c0_237 = arith.constant 0 : index
    %c0_238 = arith.constant 0 : index
    %346 = vector.load %arg9[%c16, %c0_237, %c0_238] : memref<30x128x128xbf16, #tpu.memory_space<vmem>>, vector<1x128x128xbf16>
    %347 = vector.shape_cast %346 : vector<1x128x128xbf16> to vector<128x128xbf16>
    %cst_239 = arith.constant dense<0.000000e+00> : vector<32x128xf32>
    %348 = tpu.matmul %288, %347, %cst_239 {dimension_numbers = #tpu.dot_dimension_numbers<[1], [0], [0], [1], [0, 0, 1, 1], [], []>} : vector<32x128xbf16>, vector<128x128xbf16>, vector<32x128xf32> -> vector<32x128xf32>
    %349 = arith.addf %345, %348 : vector<32x128xf32>
    %c17 = arith.constant 17 : index
    %c0_240 = arith.constant 0 : index
    %c0_241 = arith.constant 0 : index
    %350 = vector.load %arg9[%c17, %c0_240, %c0_241] : memref<30x128x128xbf16, #tpu.memory_space<vmem>>, vector<1x128x128xbf16>
    %351 = vector.shape_cast %350 : vector<1x128x128xbf16> to vector<128x128xbf16>
    %cst_242 = arith.constant dense<0.000000e+00> : vector<32x128xf32>
    %352 = tpu.matmul %292, %351, %cst_242 {dimension_numbers = #tpu.dot_dimension_numbers<[1], [0], [0], [1], [0, 0, 1, 1], [], []>} : vector<32x128xbf16>, vector<128x128xbf16>, vector<32x128xf32> -> vector<32x128xf32>
    %353 = arith.addf %349, %352 : vector<32x128xf32>
    %c6_243 = arith.constant 6 : index
    %c0_244 = arith.constant 0 : index
    %c0_245 = arith.constant 0 : index
    %354 = vector.load %arg10[%c6_243, %c0_244, %c0_245] : memref<12x64x128xbf16, #tpu.memory_space<vmem>>, vector<1x64x128xbf16>
    %355 = vector.shape_cast %354 : vector<1x64x128xbf16> to vector<64x128xbf16>
    %cst_246 = arith.constant dense<0.000000e+00> : vector<32x128xf32>
    %356 = tpu.matmul %340, %355, %cst_246 {dimension_numbers = #tpu.dot_dimension_numbers<[1], [0], [0], [1], [0, 0, 1, 1], [], []>} : vector<32x64xbf16>, vector<64x128xbf16>, vector<32x128xf32> -> vector<32x128xf32>
    %c7_247 = arith.constant 7 : index
    %c0_248 = arith.constant 0 : index
    %c0_249 = arith.constant 0 : index
    %357 = vector.load %arg10[%c7_247, %c0_248, %c0_249] : memref<12x64x128xbf16, #tpu.memory_space<vmem>>, vector<1x64x128xbf16>
    %358 = vector.shape_cast %357 : vector<1x64x128xbf16> to vector<64x128xbf16>
    %cst_250 = arith.constant dense<0.000000e+00> : vector<32x128xf32>
    %359 = tpu.matmul %338, %358, %cst_250 {dimension_numbers = #tpu.dot_dimension_numbers<[1], [0], [0], [1], [0, 0, 1, 1], [], []>} : vector<32x64xbf16>, vector<64x128xbf16>, vector<32x128xf32> -> vector<32x128xf32>
    %360 = arith.addf %356, %359 : vector<32x128xf32>
    %c8_251 = arith.constant 8 : index
    %c0_252 = arith.constant 0 : index
    %c0_253 = arith.constant 0 : index
    %361 = vector.load %arg10[%c8_251, %c0_252, %c0_253] : memref<12x64x128xbf16, #tpu.memory_space<vmem>>, vector<1x64x128xbf16>
    %362 = vector.shape_cast %361 : vector<1x64x128xbf16> to vector<64x128xbf16>
    %cst_254 = arith.constant dense<0.000000e+00> : vector<32x128xf32>
    %363 = tpu.matmul %342, %362, %cst_254 {dimension_numbers = #tpu.dot_dimension_numbers<[1], [0], [0], [1], [0, 0, 1, 1], [], []>} : vector<32x64xbf16>, vector<64x128xbf16>, vector<32x128xf32> -> vector<32x128xf32>
    %364 = arith.addf %360, %363 : vector<32x128xf32>
    %365 = arith.addf %353, %364 : vector<32x128xf32>
    %c18 = arith.constant 18 : index
    %c0_255 = arith.constant 0 : index
    %c0_256 = arith.constant 0 : index
    %366 = vector.load %arg9[%c18, %c0_255, %c0_256] : memref<30x128x128xbf16, #tpu.memory_space<vmem>>, vector<1x128x128xbf16>
    %367 = vector.shape_cast %366 : vector<1x128x128xbf16> to vector<128x128xbf16>
    %cst_257 = arith.constant dense<0.000000e+00> : vector<32x128xf32>
    %368 = tpu.matmul %290, %367, %cst_257 {dimension_numbers = #tpu.dot_dimension_numbers<[1], [0], [0], [1], [0, 0, 1, 1], [], []>} : vector<32x128xbf16>, vector<128x128xbf16>, vector<32x128xf32> -> vector<32x128xf32>
    %c19 = arith.constant 19 : index
    %c0_258 = arith.constant 0 : index
    %c0_259 = arith.constant 0 : index
    %369 = vector.load %arg9[%c19, %c0_258, %c0_259] : memref<30x128x128xbf16, #tpu.memory_space<vmem>>, vector<1x128x128xbf16>
    %370 = vector.shape_cast %369 : vector<1x128x128xbf16> to vector<128x128xbf16>
    %cst_260 = arith.constant dense<0.000000e+00> : vector<32x128xf32>
    %371 = tpu.matmul %288, %370, %cst_260 {dimension_numbers = #tpu.dot_dimension_numbers<[1], [0], [0], [1], [0, 0, 1, 1], [], []>} : vector<32x128xbf16>, vector<128x128xbf16>, vector<32x128xf32> -> vector<32x128xf32>
    %372 = arith.addf %368, %371 : vector<32x128xf32>
    %c20 = arith.constant 20 : index
    %c0_261 = arith.constant 0 : index
    %c0_262 = arith.constant 0 : index
    %373 = vector.load %arg9[%c20, %c0_261, %c0_262] : memref<30x128x128xbf16, #tpu.memory_space<vmem>>, vector<1x128x128xbf16>
    %374 = vector.shape_cast %373 : vector<1x128x128xbf16> to vector<128x128xbf16>
    %cst_263 = arith.constant dense<0.000000e+00> : vector<32x128xf32>
    %375 = tpu.matmul %292, %374, %cst_263 {dimension_numbers = #tpu.dot_dimension_numbers<[1], [0], [0], [1], [0, 0, 1, 1], [], []>} : vector<32x128xbf16>, vector<128x128xbf16>, vector<32x128xf32> -> vector<32x128xf32>
    %376 = arith.addf %372, %375 : vector<32x128xf32>
    %c9_264 = arith.constant 9 : index
    %c0_265 = arith.constant 0 : index
    %c0_266 = arith.constant 0 : index
    %377 = vector.load %arg10[%c9_264, %c0_265, %c0_266] : memref<12x64x128xbf16, #tpu.memory_space<vmem>>, vector<1x64x128xbf16>
    %378 = vector.shape_cast %377 : vector<1x64x128xbf16> to vector<64x128xbf16>
    %cst_267 = arith.constant dense<0.000000e+00> : vector<32x128xf32>
    %379 = tpu.matmul %340, %378, %cst_267 {dimension_numbers = #tpu.dot_dimension_numbers<[1], [0], [0], [1], [0, 0, 1, 1], [], []>} : vector<32x64xbf16>, vector<64x128xbf16>, vector<32x128xf32> -> vector<32x128xf32>
    %c10_268 = arith.constant 10 : index
    %c0_269 = arith.constant 0 : index
    %c0_270 = arith.constant 0 : index
    %380 = vector.load %arg10[%c10_268, %c0_269, %c0_270] : memref<12x64x128xbf16, #tpu.memory_space<vmem>>, vector<1x64x128xbf16>
    %381 = vector.shape_cast %380 : vector<1x64x128xbf16> to vector<64x128xbf16>
    %cst_271 = arith.constant dense<0.000000e+00> : vector<32x128xf32>
    %382 = tpu.matmul %338, %381, %cst_271 {dimension_numbers = #tpu.dot_dimension_numbers<[1], [0], [0], [1], [0, 0, 1, 1], [], []>} : vector<32x64xbf16>, vector<64x128xbf16>, vector<32x128xf32> -> vector<32x128xf32>
    %383 = arith.addf %379, %382 : vector<32x128xf32>
    %c11_272 = arith.constant 11 : index
    %c0_273 = arith.constant 0 : index
    %c0_274 = arith.constant 0 : index
    %384 = vector.load %arg10[%c11_272, %c0_273, %c0_274] : memref<12x64x128xbf16, #tpu.memory_space<vmem>>, vector<1x64x128xbf16>
    %385 = vector.shape_cast %384 : vector<1x64x128xbf16> to vector<64x128xbf16>
    %cst_275 = arith.constant dense<0.000000e+00> : vector<32x128xf32>
    %386 = tpu.matmul %342, %385, %cst_275 {dimension_numbers = #tpu.dot_dimension_numbers<[1], [0], [0], [1], [0, 0, 1, 1], [], []>} : vector<32x64xbf16>, vector<64x128xbf16>, vector<32x128xf32> -> vector<32x128xf32>
    %387 = arith.addf %383, %386 : vector<32x128xf32>
    %388 = arith.addf %376, %387 : vector<32x128xf32>
    %c10_276 = arith.constant 10 : index
    %c0_277 = arith.constant 0 : index
    %c0_278 = arith.constant 0 : index
    %389 = vector.load %arg11[%c10_276, %c0_277, %c0_278] : memref<20x1x128xf32, #tpu.memory_space<vmem>>, vector<1x1x128xf32>
    %390 = vector.shape_cast %389 : vector<1x1x128xf32> to vector<1x128xf32>
    %c11_279 = arith.constant 11 : index
    %c0_280 = arith.constant 0 : index
    %c0_281 = arith.constant 0 : index
    %391 = vector.load %arg11[%c11_279, %c0_280, %c0_281] : memref<20x1x128xf32, #tpu.memory_space<vmem>>, vector<1x1x128xf32>
    %392 = vector.shape_cast %391 : vector<1x1x128xf32> to vector<1x128xf32>
    %cst_282 = arith.constant dense<0.000000e+00> : vector<128xf32>
    %393 = vector.multi_reduction <add>, %365, %cst_282 [0] : vector<32x128xf32> to vector<128xf32>
    %394 = vector.shape_cast %393 : vector<128xf32> to vector<1x128xf32>
    %cst_283 = arith.constant 3.200000e+01 : f32
    %395 = vector.broadcast %cst_283 : f32 to vector<1x128xf32>
    %396 = arith.divf %394, %395 : vector<1x128xf32>
    %c0_284 = arith.constant 0 : index
    %c0_285 = arith.constant 0 : index
    %397 = vector.load %arg5[%c0_284, %c0_285] : memref<128x128xf32, #tpu.memory_space<vmem>>, vector<128x128xf32>
    %cst_286 = arith.constant dense<0.000000e+00> : vector<1x128xf32>
    %398 = tpu.matmul %396, %397, %cst_286 {dimension_numbers = #tpu.dot_dimension_numbers<[1], [0], [0], [1], [0, 0, 1, 1], [], []>} : vector<1x128xf32>, vector<128x128xf32>, vector<1x128xf32> -> vector<1x128xf32>
    %399 = vector.broadcast %398 : vector<1x128xf32> to vector<32x128xf32>
    %400 = arith.subf %365, %399 : vector<32x128xf32>
    %401 = arith.mulf %400, %400 : vector<32x128xf32>
    %cst_287 = arith.constant dense<0.000000e+00> : vector<128xf32>
    %402 = vector.multi_reduction <add>, %401, %cst_287 [0] : vector<32x128xf32> to vector<128xf32>
    %403 = vector.shape_cast %402 : vector<128xf32> to vector<1x128xf32>
    %cst_288 = arith.constant 3.200000e+01 : f32
    %404 = vector.broadcast %cst_288 : f32 to vector<1x128xf32>
    %405 = arith.divf %403, %404 : vector<1x128xf32>
    %c0_289 = arith.constant 0 : index
    %c0_290 = arith.constant 0 : index
    %406 = vector.load %arg5[%c0_289, %c0_290] : memref<128x128xf32, #tpu.memory_space<vmem>>, vector<128x128xf32>
    %cst_291 = arith.constant dense<0.000000e+00> : vector<1x128xf32>
    %407 = tpu.matmul %405, %406, %cst_291 {dimension_numbers = #tpu.dot_dimension_numbers<[1], [0], [0], [1], [0, 0, 1, 1], [], []>} : vector<1x128xf32>, vector<128x128xf32>, vector<1x128xf32> -> vector<1x128xf32>
    %cst_292 = arith.constant 9.99999974E-6 : f32
    %408 = vector.broadcast %cst_292 : f32 to vector<1x128xf32>
    %409 = arith.addf %407, %408 : vector<1x128xf32>
    %410 = math.rsqrt %409 : vector<1x128xf32>
    %411 = vector.broadcast %410 : vector<1x128xf32> to vector<32x128xf32>
    %412 = arith.mulf %400, %411 : vector<32x128xf32>
    %413 = vector.broadcast %390 : vector<1x128xf32> to vector<32x128xf32>
    %414 = arith.mulf %412, %413 : vector<32x128xf32>
    %415 = vector.broadcast %392 : vector<1x128xf32> to vector<32x128xf32>
    %416 = arith.addf %414, %415 : vector<32x128xf32>
    %c12_293 = arith.constant 12 : index
    %c0_294 = arith.constant 0 : index
    %c0_295 = arith.constant 0 : index
    %417 = vector.load %arg11[%c12_293, %c0_294, %c0_295] : memref<20x1x128xf32, #tpu.memory_space<vmem>>, vector<1x1x128xf32>
    %418 = vector.shape_cast %417 : vector<1x1x128xf32> to vector<1x128xf32>
    %c13_296 = arith.constant 13 : index
    %c0_297 = arith.constant 0 : index
    %c0_298 = arith.constant 0 : index
    %419 = vector.load %arg11[%c13_296, %c0_297, %c0_298] : memref<20x1x128xf32, #tpu.memory_space<vmem>>, vector<1x1x128xf32>
    %420 = vector.shape_cast %419 : vector<1x1x128xf32> to vector<1x128xf32>
    %cst_299 = arith.constant dense<0.000000e+00> : vector<128xf32>
    %421 = vector.multi_reduction <add>, %388, %cst_299 [0] : vector<32x128xf32> to vector<128xf32>
    %422 = vector.shape_cast %421 : vector<128xf32> to vector<1x128xf32>
    %cst_300 = arith.constant 3.200000e+01 : f32
    %423 = vector.broadcast %cst_300 : f32 to vector<1x128xf32>
    %424 = arith.divf %422, %423 : vector<1x128xf32>
    %c0_301 = arith.constant 0 : index
    %c0_302 = arith.constant 0 : index
    %425 = vector.load %arg5[%c0_301, %c0_302] : memref<128x128xf32, #tpu.memory_space<vmem>>, vector<128x128xf32>
    %cst_303 = arith.constant dense<0.000000e+00> : vector<1x128xf32>
    %426 = tpu.matmul %424, %425, %cst_303 {dimension_numbers = #tpu.dot_dimension_numbers<[1], [0], [0], [1], [0, 0, 1, 1], [], []>} : vector<1x128xf32>, vector<128x128xf32>, vector<1x128xf32> -> vector<1x128xf32>
    %427 = vector.broadcast %426 : vector<1x128xf32> to vector<32x128xf32>
    %428 = arith.subf %388, %427 : vector<32x128xf32>
    %429 = arith.mulf %428, %428 : vector<32x128xf32>
    %cst_304 = arith.constant dense<0.000000e+00> : vector<128xf32>
    %430 = vector.multi_reduction <add>, %429, %cst_304 [0] : vector<32x128xf32> to vector<128xf32>
    %431 = vector.shape_cast %430 : vector<128xf32> to vector<1x128xf32>
    %cst_305 = arith.constant 3.200000e+01 : f32
    %432 = vector.broadcast %cst_305 : f32 to vector<1x128xf32>
    %433 = arith.divf %431, %432 : vector<1x128xf32>
    %c0_306 = arith.constant 0 : index
    %c0_307 = arith.constant 0 : index
    %434 = vector.load %arg5[%c0_306, %c0_307] : memref<128x128xf32, #tpu.memory_space<vmem>>, vector<128x128xf32>
    %cst_308 = arith.constant dense<0.000000e+00> : vector<1x128xf32>
    %435 = tpu.matmul %433, %434, %cst_308 {dimension_numbers = #tpu.dot_dimension_numbers<[1], [0], [0], [1], [0, 0, 1, 1], [], []>} : vector<1x128xf32>, vector<128x128xf32>, vector<1x128xf32> -> vector<1x128xf32>
    %cst_309 = arith.constant 9.99999974E-6 : f32
    %436 = vector.broadcast %cst_309 : f32 to vector<1x128xf32>
    %437 = arith.addf %435, %436 : vector<1x128xf32>
    %438 = math.rsqrt %437 : vector<1x128xf32>
    %439 = vector.broadcast %438 : vector<1x128xf32> to vector<32x128xf32>
    %440 = arith.mulf %428, %439 : vector<32x128xf32>
    %441 = vector.broadcast %418 : vector<1x128xf32> to vector<32x128xf32>
    %442 = arith.mulf %440, %441 : vector<32x128xf32>
    %443 = vector.broadcast %420 : vector<1x128xf32> to vector<32x128xf32>
    %444 = arith.addf %442, %443 : vector<32x128xf32>
    %445 = arith.negf %444 : vector<32x128xf32>
    %446 = math.exp %445 : vector<32x128xf32>
    %cst_310 = arith.constant 1.000000e+00 : f32
    %447 = vector.broadcast %cst_310 : f32 to vector<32x128xf32>
    %448 = arith.addf %447, %446 : vector<32x128xf32>
    %449 = arith.divf %447, %448 : vector<32x128xf32>
    %450 = arith.mulf %416, %449 : vector<32x128xf32>
    %451 = arith.truncf %450 : vector<32x128xf32> to vector<32x128xbf16>
    %cst_311 = arith.constant dense<0.000000e+00> : vector<32x128xf32>
    %452 = tpu.matmul %0, %451, %cst_311 {dimension_numbers = #tpu.dot_dimension_numbers<[1], [0], [0], [1], [0, 0, 1, 1], [], []>} : vector<32x32xbf16>, vector<32x128xbf16>, vector<32x128xf32> -> vector<32x128xf32>
    %453 = arith.truncf %452 : vector<32x128xf32> to vector<32x128xbf16>
    %cst_312 = arith.constant dense<0.000000e+00> : vector<32x128xf32>
    %454 = tpu.matmul %1, %451, %cst_312 {dimension_numbers = #tpu.dot_dimension_numbers<[1], [0], [0], [1], [0, 0, 1, 1], [], []>} : vector<32x32xbf16>, vector<32x128xbf16>, vector<32x128xf32> -> vector<32x128xf32>
    %455 = arith.truncf %454 : vector<32x128xf32> to vector<32x128xbf16>
    %c21 = arith.constant 21 : index
    %c0_313 = arith.constant 0 : index
    %c0_314 = arith.constant 0 : index
    %456 = vector.load %arg9[%c21, %c0_313, %c0_314] : memref<30x128x128xbf16, #tpu.memory_space<vmem>>, vector<1x128x128xbf16>
    %457 = vector.shape_cast %456 : vector<1x128x128xbf16> to vector<128x128xbf16>
    %cst_315 = arith.constant dense<0.000000e+00> : vector<32x128xf32>
    %458 = tpu.matmul %453, %457, %cst_315 {dimension_numbers = #tpu.dot_dimension_numbers<[1], [0], [0], [1], [0, 0, 1, 1], [], []>} : vector<32x128xbf16>, vector<128x128xbf16>, vector<32x128xf32> -> vector<32x128xf32>
    %c22 = arith.constant 22 : index
    %c0_316 = arith.constant 0 : index
    %c0_317 = arith.constant 0 : index
    %459 = vector.load %arg9[%c22, %c0_316, %c0_317] : memref<30x128x128xbf16, #tpu.memory_space<vmem>>, vector<1x128x128xbf16>
    %460 = vector.shape_cast %459 : vector<1x128x128xbf16> to vector<128x128xbf16>
    %cst_318 = arith.constant dense<0.000000e+00> : vector<32x128xf32>
    %461 = tpu.matmul %451, %460, %cst_318 {dimension_numbers = #tpu.dot_dimension_numbers<[1], [0], [0], [1], [0, 0, 1, 1], [], []>} : vector<32x128xbf16>, vector<128x128xbf16>, vector<32x128xf32> -> vector<32x128xf32>
    %462 = arith.addf %458, %461 : vector<32x128xf32>
    %c23 = arith.constant 23 : index
    %c0_319 = arith.constant 0 : index
    %c0_320 = arith.constant 0 : index
    %463 = vector.load %arg9[%c23, %c0_319, %c0_320] : memref<30x128x128xbf16, #tpu.memory_space<vmem>>, vector<1x128x128xbf16>
    %464 = vector.shape_cast %463 : vector<1x128x128xbf16> to vector<128x128xbf16>
    %cst_321 = arith.constant dense<0.000000e+00> : vector<32x128xf32>
    %465 = tpu.matmul %455, %464, %cst_321 {dimension_numbers = #tpu.dot_dimension_numbers<[1], [0], [0], [1], [0, 0, 1, 1], [], []>} : vector<32x128xbf16>, vector<128x128xbf16>, vector<32x128xf32> -> vector<32x128xf32>
    %466 = arith.addf %462, %465 : vector<32x128xf32>
    %c14_322 = arith.constant 14 : index
    %c0_323 = arith.constant 0 : index
    %c0_324 = arith.constant 0 : index
    %467 = vector.load %arg11[%c14_322, %c0_323, %c0_324] : memref<20x1x128xf32, #tpu.memory_space<vmem>>, vector<1x1x128xf32>
    %468 = vector.shape_cast %467 : vector<1x1x128xf32> to vector<1x128xf32>
    %c15_325 = arith.constant 15 : index
    %c0_326 = arith.constant 0 : index
    %c0_327 = arith.constant 0 : index
    %469 = vector.load %arg11[%c15_325, %c0_326, %c0_327] : memref<20x1x128xf32, #tpu.memory_space<vmem>>, vector<1x1x128xf32>
    %470 = vector.shape_cast %469 : vector<1x1x128xf32> to vector<1x128xf32>
    %cst_328 = arith.constant dense<0.000000e+00> : vector<128xf32>
    %471 = vector.multi_reduction <add>, %466, %cst_328 [0] : vector<32x128xf32> to vector<128xf32>
    %472 = vector.shape_cast %471 : vector<128xf32> to vector<1x128xf32>
    %cst_329 = arith.constant 3.200000e+01 : f32
    %473 = vector.broadcast %cst_329 : f32 to vector<1x128xf32>
    %474 = arith.divf %472, %473 : vector<1x128xf32>
    %c0_330 = arith.constant 0 : index
    %c0_331 = arith.constant 0 : index
    %475 = vector.load %arg5[%c0_330, %c0_331] : memref<128x128xf32, #tpu.memory_space<vmem>>, vector<128x128xf32>
    %cst_332 = arith.constant dense<0.000000e+00> : vector<1x128xf32>
    %476 = tpu.matmul %474, %475, %cst_332 {dimension_numbers = #tpu.dot_dimension_numbers<[1], [0], [0], [1], [0, 0, 1, 1], [], []>} : vector<1x128xf32>, vector<128x128xf32>, vector<1x128xf32> -> vector<1x128xf32>
    %477 = vector.broadcast %476 : vector<1x128xf32> to vector<32x128xf32>
    %478 = arith.subf %466, %477 : vector<32x128xf32>
    %479 = arith.mulf %478, %478 : vector<32x128xf32>
    %cst_333 = arith.constant dense<0.000000e+00> : vector<128xf32>
    %480 = vector.multi_reduction <add>, %479, %cst_333 [0] : vector<32x128xf32> to vector<128xf32>
    %481 = vector.shape_cast %480 : vector<128xf32> to vector<1x128xf32>
    %cst_334 = arith.constant 3.200000e+01 : f32
    %482 = vector.broadcast %cst_334 : f32 to vector<1x128xf32>
    %483 = arith.divf %481, %482 : vector<1x128xf32>
    %c0_335 = arith.constant 0 : index
    %c0_336 = arith.constant 0 : index
    %484 = vector.load %arg5[%c0_335, %c0_336] : memref<128x128xf32, #tpu.memory_space<vmem>>, vector<128x128xf32>
    %cst_337 = arith.constant dense<0.000000e+00> : vector<1x128xf32>
    %485 = tpu.matmul %483, %484, %cst_337 {dimension_numbers = #tpu.dot_dimension_numbers<[1], [0], [0], [1], [0, 0, 1, 1], [], []>} : vector<1x128xf32>, vector<128x128xf32>, vector<1x128xf32> -> vector<1x128xf32>
    %cst_338 = arith.constant 9.99999974E-6 : f32
    %486 = vector.broadcast %cst_338 : f32 to vector<1x128xf32>
    %487 = arith.addf %485, %486 : vector<1x128xf32>
    %488 = math.rsqrt %487 : vector<1x128xf32>
    %489 = vector.broadcast %488 : vector<1x128xf32> to vector<32x128xf32>
    %490 = arith.mulf %478, %489 : vector<32x128xf32>
    %491 = vector.broadcast %468 : vector<1x128xf32> to vector<32x128xf32>
    %492 = arith.mulf %490, %491 : vector<32x128xf32>
    %493 = vector.broadcast %470 : vector<1x128xf32> to vector<32x128xf32>
    %494 = arith.addf %492, %493 : vector<32x128xf32>
    %c24 = arith.constant 24 : index
    %c0_339 = arith.constant 0 : index
    %c0_340 = arith.constant 0 : index
    %495 = vector.load %arg9[%c24, %c0_339, %c0_340] : memref<30x128x128xbf16, #tpu.memory_space<vmem>>, vector<1x128x128xbf16>
    %496 = vector.shape_cast %495 : vector<1x128x128xbf16> to vector<128x128xbf16>
    %cst_341 = arith.constant dense<0.000000e+00> : vector<32x128xf32>
    %497 = tpu.matmul %453, %496, %cst_341 {dimension_numbers = #tpu.dot_dimension_numbers<[1], [0], [0], [1], [0, 0, 1, 1], [], []>} : vector<32x128xbf16>, vector<128x128xbf16>, vector<32x128xf32> -> vector<32x128xf32>
    %c25 = arith.constant 25 : index
    %c0_342 = arith.constant 0 : index
    %c0_343 = arith.constant 0 : index
    %498 = vector.load %arg9[%c25, %c0_342, %c0_343] : memref<30x128x128xbf16, #tpu.memory_space<vmem>>, vector<1x128x128xbf16>
    %499 = vector.shape_cast %498 : vector<1x128x128xbf16> to vector<128x128xbf16>
    %cst_344 = arith.constant dense<0.000000e+00> : vector<32x128xf32>
    %500 = tpu.matmul %451, %499, %cst_344 {dimension_numbers = #tpu.dot_dimension_numbers<[1], [0], [0], [1], [0, 0, 1, 1], [], []>} : vector<32x128xbf16>, vector<128x128xbf16>, vector<32x128xf32> -> vector<32x128xf32>
    %501 = arith.addf %497, %500 : vector<32x128xf32>
    %c26 = arith.constant 26 : index
    %c0_345 = arith.constant 0 : index
    %c0_346 = arith.constant 0 : index
    %502 = vector.load %arg9[%c26, %c0_345, %c0_346] : memref<30x128x128xbf16, #tpu.memory_space<vmem>>, vector<1x128x128xbf16>
    %503 = vector.shape_cast %502 : vector<1x128x128xbf16> to vector<128x128xbf16>
    %cst_347 = arith.constant dense<0.000000e+00> : vector<32x128xf32>
    %504 = tpu.matmul %455, %503, %cst_347 {dimension_numbers = #tpu.dot_dimension_numbers<[1], [0], [0], [1], [0, 0, 1, 1], [], []>} : vector<32x128xbf16>, vector<128x128xbf16>, vector<32x128xf32> -> vector<32x128xf32>
    %505 = arith.addf %501, %504 : vector<32x128xf32>
    %c16_348 = arith.constant 16 : index
    %c0_349 = arith.constant 0 : index
    %c0_350 = arith.constant 0 : index
    %506 = vector.load %arg11[%c16_348, %c0_349, %c0_350] : memref<20x1x128xf32, #tpu.memory_space<vmem>>, vector<1x1x128xf32>
    %507 = vector.shape_cast %506 : vector<1x1x128xf32> to vector<1x128xf32>
    %c17_351 = arith.constant 17 : index
    %c0_352 = arith.constant 0 : index
    %c0_353 = arith.constant 0 : index
    %508 = vector.load %arg11[%c17_351, %c0_352, %c0_353] : memref<20x1x128xf32, #tpu.memory_space<vmem>>, vector<1x1x128xf32>
    %509 = vector.shape_cast %508 : vector<1x1x128xf32> to vector<1x128xf32>
    %cst_354 = arith.constant dense<0.000000e+00> : vector<128xf32>
    %510 = vector.multi_reduction <add>, %505, %cst_354 [0] : vector<32x128xf32> to vector<128xf32>
    %511 = vector.shape_cast %510 : vector<128xf32> to vector<1x128xf32>
    %cst_355 = arith.constant 3.200000e+01 : f32
    %512 = vector.broadcast %cst_355 : f32 to vector<1x128xf32>
    %513 = arith.divf %511, %512 : vector<1x128xf32>
    %c0_356 = arith.constant 0 : index
    %c0_357 = arith.constant 0 : index
    %514 = vector.load %arg5[%c0_356, %c0_357] : memref<128x128xf32, #tpu.memory_space<vmem>>, vector<128x128xf32>
    %cst_358 = arith.constant dense<0.000000e+00> : vector<1x128xf32>
    %515 = tpu.matmul %513, %514, %cst_358 {dimension_numbers = #tpu.dot_dimension_numbers<[1], [0], [0], [1], [0, 0, 1, 1], [], []>} : vector<1x128xf32>, vector<128x128xf32>, vector<1x128xf32> -> vector<1x128xf32>
    %516 = vector.broadcast %515 : vector<1x128xf32> to vector<32x128xf32>
    %517 = arith.subf %505, %516 : vector<32x128xf32>
    %518 = arith.mulf %517, %517 : vector<32x128xf32>
    %cst_359 = arith.constant dense<0.000000e+00> : vector<128xf32>
    %519 = vector.multi_reduction <add>, %518, %cst_359 [0] : vector<32x128xf32> to vector<128xf32>
    %520 = vector.shape_cast %519 : vector<128xf32> to vector<1x128xf32>
    %cst_360 = arith.constant 3.200000e+01 : f32
    %521 = vector.broadcast %cst_360 : f32 to vector<1x128xf32>
    %522 = arith.divf %520, %521 : vector<1x128xf32>
    %c0_361 = arith.constant 0 : index
    %c0_362 = arith.constant 0 : index
    %523 = vector.load %arg5[%c0_361, %c0_362] : memref<128x128xf32, #tpu.memory_space<vmem>>, vector<128x128xf32>
    %cst_363 = arith.constant dense<0.000000e+00> : vector<1x128xf32>
    %524 = tpu.matmul %522, %523, %cst_363 {dimension_numbers = #tpu.dot_dimension_numbers<[1], [0], [0], [1], [0, 0, 1, 1], [], []>} : vector<1x128xf32>, vector<128x128xf32>, vector<1x128xf32> -> vector<1x128xf32>
    %cst_364 = arith.constant 9.99999974E-6 : f32
    %525 = vector.broadcast %cst_364 : f32 to vector<1x128xf32>
    %526 = arith.addf %524, %525 : vector<1x128xf32>
    %527 = math.rsqrt %526 : vector<1x128xf32>
    %528 = vector.broadcast %527 : vector<1x128xf32> to vector<32x128xf32>
    %529 = arith.mulf %517, %528 : vector<32x128xf32>
    %530 = vector.broadcast %507 : vector<1x128xf32> to vector<32x128xf32>
    %531 = arith.mulf %529, %530 : vector<32x128xf32>
    %532 = vector.broadcast %509 : vector<1x128xf32> to vector<32x128xf32>
    %533 = arith.addf %531, %532 : vector<32x128xf32>
    %534 = arith.negf %533 : vector<32x128xf32>
    %535 = math.exp %534 : vector<32x128xf32>
    %cst_365 = arith.constant 1.000000e+00 : f32
    %536 = vector.broadcast %cst_365 : f32 to vector<32x128xf32>
    %537 = arith.addf %536, %535 : vector<32x128xf32>
    %538 = arith.divf %536, %537 : vector<32x128xf32>
    %539 = arith.mulf %494, %538 : vector<32x128xf32>
    %540 = arith.truncf %539 : vector<32x128xf32> to vector<32x128xbf16>
    %cst_366 = arith.constant dense<0.000000e+00> : vector<32x128xf32>
    %541 = tpu.matmul %0, %540, %cst_366 {dimension_numbers = #tpu.dot_dimension_numbers<[1], [0], [0], [1], [0, 0, 1, 1], [], []>} : vector<32x32xbf16>, vector<32x128xbf16>, vector<32x128xf32> -> vector<32x128xf32>
    %542 = arith.truncf %541 : vector<32x128xf32> to vector<32x128xbf16>
    %cst_367 = arith.constant dense<0.000000e+00> : vector<32x128xf32>
    %543 = tpu.matmul %1, %540, %cst_367 {dimension_numbers = #tpu.dot_dimension_numbers<[1], [0], [0], [1], [0, 0, 1, 1], [], []>} : vector<32x32xbf16>, vector<32x128xbf16>, vector<32x128xf32> -> vector<32x128xf32>
    %544 = arith.truncf %543 : vector<32x128xf32> to vector<32x128xbf16>
    %c27 = arith.constant 27 : index
    %c0_368 = arith.constant 0 : index
    %c0_369 = arith.constant 0 : index
    %545 = vector.load %arg9[%c27, %c0_368, %c0_369] : memref<30x128x128xbf16, #tpu.memory_space<vmem>>, vector<1x128x128xbf16>
    %546 = vector.shape_cast %545 : vector<1x128x128xbf16> to vector<128x128xbf16>
    %cst_370 = arith.constant dense<0.000000e+00> : vector<32x128xf32>
    %547 = tpu.matmul %542, %546, %cst_370 {dimension_numbers = #tpu.dot_dimension_numbers<[1], [0], [0], [1], [0, 0, 1, 1], [], []>} : vector<32x128xbf16>, vector<128x128xbf16>, vector<32x128xf32> -> vector<32x128xf32>
    %c28 = arith.constant 28 : index
    %c0_371 = arith.constant 0 : index
    %c0_372 = arith.constant 0 : index
    %548 = vector.load %arg9[%c28, %c0_371, %c0_372] : memref<30x128x128xbf16, #tpu.memory_space<vmem>>, vector<1x128x128xbf16>
    %549 = vector.shape_cast %548 : vector<1x128x128xbf16> to vector<128x128xbf16>
    %cst_373 = arith.constant dense<0.000000e+00> : vector<32x128xf32>
    %550 = tpu.matmul %540, %549, %cst_373 {dimension_numbers = #tpu.dot_dimension_numbers<[1], [0], [0], [1], [0, 0, 1, 1], [], []>} : vector<32x128xbf16>, vector<128x128xbf16>, vector<32x128xf32> -> vector<32x128xf32>
    %551 = arith.addf %547, %550 : vector<32x128xf32>
    %c29 = arith.constant 29 : index
    %c0_374 = arith.constant 0 : index
    %c0_375 = arith.constant 0 : index
    %552 = vector.load %arg9[%c29, %c0_374, %c0_375] : memref<30x128x128xbf16, #tpu.memory_space<vmem>>, vector<1x128x128xbf16>
    %553 = vector.shape_cast %552 : vector<1x128x128xbf16> to vector<128x128xbf16>
    %cst_376 = arith.constant dense<0.000000e+00> : vector<32x128xf32>
    %554 = tpu.matmul %544, %553, %cst_376 {dimension_numbers = #tpu.dot_dimension_numbers<[1], [0], [0], [1], [0, 0, 1, 1], [], []>} : vector<32x128xbf16>, vector<128x128xbf16>, vector<32x128xf32> -> vector<32x128xf32>
    %555 = arith.addf %551, %554 : vector<32x128xf32>
    %c18_377 = arith.constant 18 : index
    %c0_378 = arith.constant 0 : index
    %c0_379 = arith.constant 0 : index
    %556 = vector.load %arg11[%c18_377, %c0_378, %c0_379] : memref<20x1x128xf32, #tpu.memory_space<vmem>>, vector<1x1x128xf32>
    %557 = vector.shape_cast %556 : vector<1x1x128xf32> to vector<1x128xf32>
    %c19_380 = arith.constant 19 : index
    %c0_381 = arith.constant 0 : index
    %c0_382 = arith.constant 0 : index
    %558 = vector.load %arg11[%c19_380, %c0_381, %c0_382] : memref<20x1x128xf32, #tpu.memory_space<vmem>>, vector<1x1x128xf32>
    %559 = vector.shape_cast %558 : vector<1x1x128xf32> to vector<1x128xf32>
    %cst_383 = arith.constant dense<0.000000e+00> : vector<128xf32>
    %560 = vector.multi_reduction <add>, %555, %cst_383 [0] : vector<32x128xf32> to vector<128xf32>
    %561 = vector.shape_cast %560 : vector<128xf32> to vector<1x128xf32>
    %cst_384 = arith.constant 3.200000e+01 : f32
    %562 = vector.broadcast %cst_384 : f32 to vector<1x128xf32>
    %563 = arith.divf %561, %562 : vector<1x128xf32>
    %c0_385 = arith.constant 0 : index
    %c0_386 = arith.constant 0 : index
    %564 = vector.load %arg5[%c0_385, %c0_386] : memref<128x128xf32, #tpu.memory_space<vmem>>, vector<128x128xf32>
    %cst_387 = arith.constant dense<0.000000e+00> : vector<1x128xf32>
    %565 = tpu.matmul %563, %564, %cst_387 {dimension_numbers = #tpu.dot_dimension_numbers<[1], [0], [0], [1], [0, 0, 1, 1], [], []>} : vector<1x128xf32>, vector<128x128xf32>, vector<1x128xf32> -> vector<1x128xf32>
    %566 = vector.broadcast %565 : vector<1x128xf32> to vector<32x128xf32>
    %567 = arith.subf %555, %566 : vector<32x128xf32>
    %568 = arith.mulf %567, %567 : vector<32x128xf32>
    %cst_388 = arith.constant dense<0.000000e+00> : vector<128xf32>
    %569 = vector.multi_reduction <add>, %568, %cst_388 [0] : vector<32x128xf32> to vector<128xf32>
    %570 = vector.shape_cast %569 : vector<128xf32> to vector<1x128xf32>
    %cst_389 = arith.constant 3.200000e+01 : f32
    %571 = vector.broadcast %cst_389 : f32 to vector<1x128xf32>
    %572 = arith.divf %570, %571 : vector<1x128xf32>
    %c0_390 = arith.constant 0 : index
    %c0_391 = arith.constant 0 : index
    %573 = vector.load %arg5[%c0_390, %c0_391] : memref<128x128xf32, #tpu.memory_space<vmem>>, vector<128x128xf32>
    %cst_392 = arith.constant dense<0.000000e+00> : vector<1x128xf32>
    %574 = tpu.matmul %572, %573, %cst_392 {dimension_numbers = #tpu.dot_dimension_numbers<[1], [0], [0], [1], [0, 0, 1, 1], [], []>} : vector<1x128xf32>, vector<128x128xf32>, vector<1x128xf32> -> vector<1x128xf32>
    %cst_393 = arith.constant 9.99999974E-6 : f32
    %575 = vector.broadcast %cst_393 : f32 to vector<1x128xf32>
    %576 = arith.addf %574, %575 : vector<1x128xf32>
    %577 = math.rsqrt %576 : vector<1x128xf32>
    %578 = vector.broadcast %577 : vector<1x128xf32> to vector<32x128xf32>
    %579 = arith.mulf %567, %578 : vector<32x128xf32>
    %580 = vector.broadcast %557 : vector<1x128xf32> to vector<32x128xf32>
    %581 = arith.mulf %579, %580 : vector<32x128xf32>
    %582 = vector.broadcast %559 : vector<1x128xf32> to vector<32x128xf32>
    %583 = arith.addf %581, %582 : vector<32x128xf32>
    %584 = arith.addf %450, %583 : vector<32x128xf32>
    %585 = arith.truncf %584 : vector<32x128xf32> to vector<32x128xbf16>
    %cst_394 = arith.constant dense<0.000000e+00> : vector<32x128xf32>
    %586 = tpu.matmul %0, %585, %cst_394 {dimension_numbers = #tpu.dot_dimension_numbers<[1], [0], [0], [1], [0, 0, 1, 1], [], []>} : vector<32x32xbf16>, vector<32x128xbf16>, vector<32x128xf32> -> vector<32x128xf32>
    %587 = arith.truncf %586 : vector<32x128xf32> to vector<32x128xbf16>
    %cst_395 = arith.constant dense<0.000000e+00> : vector<32x128xf32>
    %588 = tpu.matmul %1, %585, %cst_395 {dimension_numbers = #tpu.dot_dimension_numbers<[1], [0], [0], [1], [0, 0, 1, 1], [], []>} : vector<32x32xbf16>, vector<32x128xbf16>, vector<32x128xf32> -> vector<32x128xf32>
    %589 = arith.truncf %588 : vector<32x128xf32> to vector<32x128xbf16>
    %c6_396 = arith.constant 6 : index
    %c0_397 = arith.constant 0 : index
    %c0_398 = arith.constant 0 : index
    %590 = vector.load %arg7[%c6_396, %c0_397, %c0_398] : memref<9x128x64xbf16, #tpu.memory_space<vmem>>, vector<1x128x64xbf16>
    %591 = vector.shape_cast %590 : vector<1x128x64xbf16> to vector<128x64xbf16>
    %cst_399 = arith.constant dense<0.000000e+00> : vector<32x64xf32>
    %592 = tpu.matmul %587, %591, %cst_399 {dimension_numbers = #tpu.dot_dimension_numbers<[1], [0], [0], [1], [0, 0, 1, 1], [], []>} : vector<32x128xbf16>, vector<128x64xbf16>, vector<32x64xf32> -> vector<32x64xf32>
    %c7_400 = arith.constant 7 : index
    %c0_401 = arith.constant 0 : index
    %c0_402 = arith.constant 0 : index
    %593 = vector.load %arg7[%c7_400, %c0_401, %c0_402] : memref<9x128x64xbf16, #tpu.memory_space<vmem>>, vector<1x128x64xbf16>
    %594 = vector.shape_cast %593 : vector<1x128x64xbf16> to vector<128x64xbf16>
    %cst_403 = arith.constant dense<0.000000e+00> : vector<32x64xf32>
    %595 = tpu.matmul %585, %594, %cst_403 {dimension_numbers = #tpu.dot_dimension_numbers<[1], [0], [0], [1], [0, 0, 1, 1], [], []>} : vector<32x128xbf16>, vector<128x64xbf16>, vector<32x64xf32> -> vector<32x64xf32>
    %596 = arith.addf %592, %595 : vector<32x64xf32>
    %c8_404 = arith.constant 8 : index
    %c0_405 = arith.constant 0 : index
    %c0_406 = arith.constant 0 : index
    %597 = vector.load %arg7[%c8_404, %c0_405, %c0_406] : memref<9x128x64xbf16, #tpu.memory_space<vmem>>, vector<1x128x64xbf16>
    %598 = vector.shape_cast %597 : vector<1x128x64xbf16> to vector<128x64xbf16>
    %cst_407 = arith.constant dense<0.000000e+00> : vector<32x64xf32>
    %599 = tpu.matmul %589, %598, %cst_407 {dimension_numbers = #tpu.dot_dimension_numbers<[1], [0], [0], [1], [0, 0, 1, 1], [], []>} : vector<32x128xbf16>, vector<128x64xbf16>, vector<32x64xf32> -> vector<32x64xf32>
    %600 = arith.addf %596, %599 : vector<32x64xf32>
    %c2_408 = arith.constant 2 : index
    %c0_409 = arith.constant 0 : index
    %c0_410 = arith.constant 0 : index
    %601 = vector.load %arg8[%c2_408, %c0_409, %c0_410] : memref<3x1x64xf32, #tpu.memory_space<vmem>>, vector<1x1x64xf32>
    %602 = vector.shape_cast %601 : vector<1x1x64xf32> to vector<1x64xf32>
    %603 = vector.broadcast %602 : vector<1x64xf32> to vector<32x64xf32>
    %604 = arith.addf %600, %603 : vector<32x64xf32>
    %605 = vector.extract_strided_slice %604 {offsets = [0, 0], sizes = [32, 48], strides = [1, 1]} : vector<32x64xf32> to vector<32x48xf32>
    %606 = math.tanh %605 : vector<32x48xf32>
    %607 = vector.extract_strided_slice %604 {offsets = [0, 48], sizes = [32, 16], strides = [1, 1]} : vector<32x64xf32> to vector<32x16xf32>
    %608 = arith.negf %607 : vector<32x16xf32>
    %609 = math.exp %608 : vector<32x16xf32>
    %cst_411 = arith.constant 1.000000e+00 : f32
    %610 = vector.broadcast %cst_411 : f32 to vector<32x16xf32>
    %611 = arith.addf %610, %609 : vector<32x16xf32>
    %612 = arith.divf %610, %611 : vector<32x16xf32>
    %c0_412 = arith.constant 0 : index
    %c128 = arith.constant 128 : index
    %613 = vector.load %arg14[%c0_412, %c128] : memref<32x192xf32, #tpu.memory_space<vmem>>, vector<32x48xf32>
    tpu.vector_store %arg14[%c0_412, %c128], %606 {strides = array<i32>} : memref<32x192xf32, #tpu.memory_space<vmem>>, vector<32x48xf32>,
    %c0_413 = arith.constant 0 : index
    %c176 = arith.constant 176 : index
    %614 = vector.load %arg14[%c0_413, %c176] : memref<32x192xf32, #tpu.memory_space<vmem>>, vector<32x16xf32>
    tpu.vector_store %arg14[%c0_413, %c176], %612 {strides = array<i32>} : memref<32x192xf32, #tpu.memory_space<vmem>>, vector<32x16xf32>,
    %c0_414 = arith.constant 0 : index
    %c0_415 = arith.constant 0 : index
    %615 = vector.load %arg6[%c0_414, %c0_415] : memref<16x48xf32, #tpu.memory_space<vmem>>, vector<16x48xf32>
    %cst_416 = arith.constant dense<0.000000e+00> : vector<32x48xf32>
    %616 = tpu.matmul %612, %615, %cst_416 {dimension_numbers = #tpu.dot_dimension_numbers<[1], [0], [0], [1], [0, 0, 1, 1], [], []>} : vector<32x16xf32>, vector<16x48xf32>, vector<32x48xf32> -> vector<32x48xf32>
    %617 = arith.mulf %606, %616 : vector<32x48xf32>
    %cst_417 = arith.constant 1.000000e+00 : f32
    %618 = vector.broadcast %cst_417 : f32 to vector<32x48xf32>
    %619 = arith.subf %618, %616 : vector<32x48xf32>
    %620 = arith.mulf %324, %619 : vector<32x48xf32>
    %621 = arith.addf %617, %620 : vector<32x48xf32>
    %cst_418 = arith.constant 1.000000e+00 : f32
    %622 = vector.broadcast %cst_418 : f32 to vector<32x16xf32>
    %623 = arith.subf %622, %331 : vector<32x16xf32>
    %cst_419 = arith.constant 1.000000e+00 : f32
    %624 = vector.broadcast %cst_419 : f32 to vector<32x16xf32>
    %625 = arith.subf %624, %612 : vector<32x16xf32>
    %626 = arith.mulf %623, %625 : vector<32x16xf32>
    %cst_420 = arith.constant 1.000000e+00 : f32
    %627 = vector.broadcast %cst_420 : f32 to vector<32x16xf32>
    %628 = arith.subf %627, %626 : vector<32x16xf32>
    %c2_421 = arith.constant 2 : index
    %c0_422 = arith.constant 0 : index
    %c0_423 = arith.constant 0 : index
    %629 = vector.load %arg12[%c2_421, %c0_422, %c0_423] : memref<3x128x128xbf16, #tpu.memory_space<vmem>>, vector<1x128x128xbf16>
    %630 = vector.shape_cast %629 : vector<1x128x128xbf16> to vector<128x128xbf16>
    %cst_424 = arith.constant dense<0.000000e+00> : vector<32x128xf32>
    %631 = tpu.matmul %585, %630, %cst_424 {dimension_numbers = #tpu.dot_dimension_numbers<[1], [0], [0], [1], [0, 0, 1, 1], [], []>} : vector<32x128xbf16>, vector<128x128xbf16>, vector<32x128xf32> -> vector<32x128xf32>
    %632 = arith.addf %335, %631 : vector<32x128xf32>
    %c0_425 = arith.constant 0 : index
    %c0_426 = arith.constant 0 : index
    %633 = vector.load %arg13[%c0_425, %c0_426] : memref<32x128xf32, #tpu.memory_space<vmem>>, vector<32x128xf32>
    tpu.vector_store %arg13[%c0_425, %c0_426], %632 {strides = array<i32>} : memref<32x128xf32, #tpu.memory_space<vmem>>, vector<32x128xf32>,
    %c0_427 = arith.constant 0 : index
    %c0_428 = arith.constant 0 : index
    %634 = vector.load %arg15[%c0_427, %c0_428] : memref<32x64xf32, #tpu.memory_space<vmem>>, vector<32x48xf32>
    tpu.vector_store %arg15[%c0_427, %c0_428], %621 {strides = array<i32>} : memref<32x64xf32, #tpu.memory_space<vmem>>, vector<32x48xf32>,
    %c0_429 = arith.constant 0 : index
    %c48_430 = arith.constant 48 : index
    %635 = vector.load %arg15[%c0_429, %c48_430] : memref<32x64xf32, #tpu.memory_space<vmem>>, vector<32x16xf32>
    tpu.vector_store %arg15[%c0_429, %c48_430], %628 {strides = array<i32>} : memref<32x64xf32, #tpu.memory_space<vmem>>, vector<32x16xf32>,
    return
  }
  func.func @transform_0(%arg0: i32) -> (i32, i32) {
    %c0_i32 = arith.constant 0 : i32
    %c0_i32_0 = arith.constant 0 : i32
    %c0_i32_1 = arith.constant 0 : i32
    return %c0_i32, %c0_i32_0 : i32, i32
  }
  func.func @transform_1(%arg0: i32) -> (i32, i32, i32) {
    %c0_i32 = arith.constant 0 : i32
    %c0_i32_0 = arith.constant 0 : i32
    %c0_i32_1 = arith.constant 0 : i32
    %c0_i32_2 = arith.constant 0 : i32
    return %c0_i32, %c0_i32_0, %c0_i32_1 : i32, i32, i32
  }
  func.func @transform_2(%arg0: i32) -> (i32, i32) {
    %c0_i32 = arith.constant 0 : i32
    %c0_i32_0 = arith.constant 0 : i32
    %c0_i32_1 = arith.constant 0 : i32
    return %c0_i32, %c0_i32_0 : i32, i32
  }
  func.func @transform_3(%arg0: i32) -> (i32, i32) {
    %c0_i32 = arith.constant 0 : i32
    %c0_i32_0 = arith.constant 0 : i32
    %c0_i32_1 = arith.constant 0 : i32
    return %c0_i32, %c0_i32_0 : i32, i32
  }
  func.func @transform_4(%arg0: i32) -> (i32, i32) {
    %c0_i32 = arith.constant 0 : i32
    %c0_i32_0 = arith.constant 0 : i32
    %c0_i32_1 = arith.constant 0 : i32
    return %c0_i32, %c0_i32_0 : i32, i32
  }
  func.func @transform_5(%arg0: i32) -> (i32, i32) {
    %c0_i32 = arith.constant 0 : i32
    %c0_i32_0 = arith.constant 0 : i32
    %c0_i32_1 = arith.constant 0 : i32
    return %c0_i32, %c0_i32_0 : i32, i32
  }
  func.func @transform_6(%arg0: i32) -> (i32, i32, i32) {
    %c0_i32 = arith.constant 0 : i32
    %c0_i32_0 = arith.constant 0 : i32
    %c0_i32_1 = arith.constant 0 : i32
    %c0_i32_2 = arith.constant 0 : i32
    return %c0_i32, %c0_i32_0, %c0_i32_1 : i32, i32, i32
  }
  func.func @transform_7(%arg0: i32) -> (i32, i32, i32) {
    %c0_i32 = arith.constant 0 : i32
    %c0_i32_0 = arith.constant 0 : i32
    %c0_i32_1 = arith.constant 0 : i32
    %c0_i32_2 = arith.constant 0 : i32
    return %c0_i32, %c0_i32_0, %c0_i32_1 : i32, i32, i32
  }
  func.func @transform_8(%arg0: i32) -> (i32, i32, i32) {
    %c0_i32 = arith.constant 0 : i32
    %c0_i32_0 = arith.constant 0 : i32
    %c0_i32_1 = arith.constant 0 : i32
    %c0_i32_2 = arith.constant 0 : i32
    return %c0_i32, %c0_i32_0, %c0_i32_1 : i32, i32, i32
  }
  func.func @transform_9(%arg0: i32) -> (i32, i32, i32) {
    %c0_i32 = arith.constant 0 : i32
    %c0_i32_0 = arith.constant 0 : i32
    %c0_i32_1 = arith.constant 0 : i32
    %c0_i32_2 = arith.constant 0 : i32
    return %c0_i32, %c0_i32_0, %c0_i32_1 : i32, i32, i32
  }
  func.func @transform_10(%arg0: i32) -> (i32, i32, i32) {
    %c0_i32 = arith.constant 0 : i32
    %c0_i32_0 = arith.constant 0 : i32
    %c0_i32_1 = arith.constant 0 : i32
    %c0_i32_2 = arith.constant 0 : i32
    return %c0_i32, %c0_i32_0, %c0_i32_1 : i32, i32, i32
  }
  func.func @transform_11(%arg0: i32) -> (i32, i32, i32) {
    %c0_i32 = arith.constant 0 : i32
    %c0_i32_0 = arith.constant 0 : i32
    %c0_i32_1 = arith.constant 0 : i32
    %c0_i32_2 = arith.constant 0 : i32
    return %c0_i32, %c0_i32_0, %c0_i32_1 : i32, i32, i32
  }
  func.func @transform_12(%arg0: i32) -> (i32, i32) {
    %c0_i32 = arith.constant 0 : i32
    %c0_i32_0 = arith.constant 0 : i32
    %c0_i32_1 = arith.constant 0 : i32
    return %c0_i32, %c0_i32_0 : i32, i32
  }
  func.func @transform_13(%arg0: i32) -> (i32, i32) {
    %c0_i32 = arith.constant 0 : i32
    %c0_i32_0 = arith.constant 0 : i32
    %c0_i32_1 = arith.constant 0 : i32
    return %c0_i32, %c0_i32_0 : i32, i32
  }
  func.func @transform_14(%arg0: i32) -> (i32, i32) {
    %c0_i32 = arith.constant 0 : i32
    %c0_i32_0 = arith.constant 0 : i32
    %c0_i32_1 = arith.constant 0 : i32
    return %c0_i32, %c0_i32_0 : i32, i32
  }
}

</mosaic_0001>

<llo_original>
// kernel: multistage_forward.1
$region0: #{multistage_forward.1}
  #allocation0 [shape = 'u32[]', space=smem, size = 0x4, offset = 0x4, fixed_abs, tag = 'smem constant byte address 0x4 - core index']
  #allocation1 [shape = 'u32[72,128]{1,0:T(1,128)}', space=vmem, size = 0x9000, scoped, tag = 'internal scratch']
  %s0 = inlined_call_operand.vmem [shape: f32[32,128], index: 0, kind: input, shape index: {}]
  %s1 = inlined_call_operand.vmem [shape: f32[2,32,64], index: 1, kind: input, shape index: {}]
  %s2 = inlined_call_operand.vmem [shape: bf16[32,32], index: 2, kind: input, shape index: {}]
  %s3 = inlined_call_operand.vmem [shape: bf16[32,32], index: 3, kind: input, shape index: {}]
  %s4 = inlined_call_operand.vmem [shape: f32[128,128], index: 4, kind: input, shape index: {}]
  %s5 = inlined_call_operand.vmem [shape: f32[16,48], index: 5, kind: input, shape index: {}]
  %s6 = inlined_call_operand.vmem [shape: bf16[9,128,64], index: 6, kind: input, shape index: {}]
  %s7 = inlined_call_operand.vmem [shape: f32[3,1,64], index: 7, kind: input, shape index: {}]
  %s8 = inlined_call_operand.hbm [shape: bf16[30,128,128], index: 8, kind: input, shape index: {}]
  %s9 = inlined_call_operand.vmem [shape: bf16[12,64,128], index: 9, kind: input, shape index: {}]
  %s10 = inlined_call_operand.vmem [shape: f32[20,1,128], index: 10, kind: input, shape index: {}]
  %s11 = inlined_call_operand.vmem [shape: bf16[3,128,128], index: 11, kind: input, shape index: {}]
  %s12 = inlined_call_operand.vmem [shape: f32[32,128], index: 12, kind: output, shape index: {0}]
  %s13 = inlined_call_operand.vmem [shape: f32[32,192], index: 13, kind: output, shape index: {1}]
  %s14 = inlined_call_operand.vmem [shape: f32[32,64], index: 14, kind: output, shape index: {2}]
  %15 = xla_tuple %s12, %s13, %s14
  %s16 = sld [smem:[#allocation0]]
  $region78: #{multistage_forward.1} parent=0
    _
  %s18 = ssub.s32 1, %s16
  %s19 = scalar_select 0, %s18, %s16
  $region1: #{multistage_forward.1} parent=0
    #allocation2 [shape = 'u8[983040]{0}', space=vmem, size = 0xf0000, scoped, tag = 'input window, operand 8, single buffered']
    #allocation3 [shape = 's32[1]{0}', space=sflag, size = 0x4, scoped, tag = 'scoped memory for multistage_forward.1']
    %20 = vsyncpa [#allocation3], 0
    // Predicated region
    $region2: #{multistage_forward.1} parent=1 // pred_check
      _
    $region3: #{multistage_forward.1} parent=1 // pred_check_branch
      %22 = sbr.rel (0) target = $region5
    $region4: #{multistage_forward.1} parent=1 // pred_region
      _
    $region5: #{multistage_forward.1} parent=1 // pred_fallthru
      _
    // Predicated region
    $region6: #{multistage_forward.1} parent=1 // pred_check
      _
    $region7: #{multistage_forward.1} parent=1 // pred_check_branch
      %24 = sbr.rel (0) target = $region9
    $region8: #{multistage_forward.1} parent=1 // pred_region
      _
    $region9: #{multistage_forward.1} parent=1 // pred_fallthru
      _
    // Predicated region
    $region10: #{multistage_forward.1} parent=1 // pred_check
      _
    $region11: #{multistage_forward.1} parent=1 // pred_check_branch
      %26 = sbr.rel (0) target = $region13
    $region12: #{multistage_forward.1} parent=1 // pred_region
      _
    $region13: #{multistage_forward.1} parent=1 // pred_fallthru
      _
    // Predicated region
    $region14: #{multistage_forward.1} parent=1 // pred_check
      _
    $region15: #{multistage_forward.1} parent=1 // pred_check_branch
      %28 = sbr.rel (0) target = $region17
    $region16: #{multistage_forward.1} parent=1 // pred_region
      _
    $region17: #{multistage_forward.1} parent=1 // pred_fallthru
      _
    // Predicated region
    $region18: #{multistage_forward.1} parent=1 // pred_check
      _
    $region19: #{multistage_forward.1} parent=1 // pred_check_branch
      %30 = sbr.rel (0) target = $region21
    $region20: #{multistage_forward.1} parent=1 // pred_region
      _
    $region21: #{multistage_forward.1} parent=1 // pred_fallthru
      _
    // Predicated region
    $region22: #{multistage_forward.1} parent=1 // pred_check
      _
    $region23: #{multistage_forward.1} parent=1 // pred_check_branch
      %32 = sbr.rel (0) target = $region25
    $region24: #{multistage_forward.1} parent=1 // pred_region
      _
    $region25: #{multistage_forward.1} parent=1 // pred_fallthru
      _
    // Predicated region
    $region26: #{multistage_forward.1} parent=1 // pred_check
      _
    $region27: #{multistage_forward.1} parent=1 // pred_check_branch
      %34 = sbr.rel (0) target = $region29
    $region28: #{multistage_forward.1} parent=1 // pred_region
      _
    $region29: #{multistage_forward.1} parent=1 // pred_fallthru
      _
    // Predicated region
    $region30: #{multistage_forward.1} parent=1 // pred_check
      _
    $region31: #{multistage_forward.1} parent=1 // pred_check_branch
      %36 = sbr.rel (0) target = $region33
    $region32: #{multistage_forward.1} parent=1 // pred_region
      _
    $region33: #{multistage_forward.1} parent=1 // pred_fallthru
      _
    // Predicated region
    $region34: #{multistage_forward.1} parent=1 // pred_check
      _
    $region35: #{multistage_forward.1} parent=1 // pred_check_branch
      %38 = sbr.rel (0) target = $region37
    $region36: #{multistage_forward.1} parent=1 // pred_region
      %40 = vsyncadd [#allocation3], 0
      %s41 = sshll.u32 %s8, 4
      %s42 = int_to_ptr.hbm [resolvable:$true] %s41
      %s43 = sshll.u32 [#allocation2], 4
      %s44 = int_to_ptr.vmem [resolvable:$true] %s43
      %49 = dma.hbm_to_vmem [thread:$0]  %s42, 30720, %s44, [#allocation3], 64, 64, 4
    $region37: #{multistage_forward.1} parent=1 // pred_fallthru
      _
    // Predicated region
    $region38: #{multistage_forward.1} parent=1 // pred_check
      _
    $region39: #{multistage_forward.1} parent=1 // pred_check_branch
      %51 = sbr.rel (0) target = $region41
    $region40: #{multistage_forward.1} parent=1 // pred_region
      _
    $region41: #{multistage_forward.1} parent=1 // pred_fallthru
      _
    // Predicated region
    $region42: #{multistage_forward.1} parent=1 // pred_check
      _
    $region43: #{multistage_forward.1} parent=1 // pred_check_branch
      %53 = sbr.rel (0) target = $region45
    $region44: #{multistage_forward.1} parent=1 // pred_region
      _
    $region45: #{multistage_forward.1} parent=1 // pred_fallthru
      _
    // Predicated region
    $region46: #{multistage_forward.1} parent=1 // pred_check
      _
    $region47: #{multistage_forward.1} parent=1 // pred_check_branch
      %55 = sbr.rel (0) target = $region49
    $region48: #{multistage_forward.1} parent=1 // pred_region
      _
    $region49: #{multistage_forward.1} parent=1 // pred_fallthru
      _
    // Predicated region
    $region50: #{multistage_forward.1} parent=1 // pred_check
      _
    $region51: #{multistage_forward.1} parent=1 // pred_check_branch
      %57 = sbr.rel (0) target = $region53
    $region52: #{multistage_forward.1} parent=1 // pred_region
      %59 = dma.done [#allocation3], 30720
    $region53: #{multistage_forward.1} parent=1 // pred_fallthru
      _
    %v61 = vld [vmem:[%s2] sm:$0xf]
    %v62 = vld [vmem:[%s2 + $0x4] sm:$0xf]
    %v63 = vld [vmem:[%s2 + $0x8] sm:$0xf]
    %v64 = vld [vmem:[%s2 + $0xc] sm:$0xf]
    %v65 = vld [vmem:[%s3] sm:$0xf]
    %v66 = vld [vmem:[%s3 + $0x4] sm:$0xf]
    %v67 = vld [vmem:[%s3 + $0x8] sm:$0xf]
    %v68 = vld [vmem:[%s3 + $0xc] sm:$0xf]
    %v69 = vld [vmem:[%s0] sm:$0xff]
    %v70 = vld [vmem:[%s0 + $0x8] sm:$0xff]
    %v71 = vld [vmem:[%s0 + $0x10] sm:$0xff]
    %v72 = vld [vmem:[%s0 + $0x18] sm:$0xff]
    %v73 = vpack.c.bf16 %v70, %v69
    %v74 = vpack.c.bf16 %v72, %v71
    %v79 = vunpack.c.l.b16 %v61
    %v80 = vunpack.c.l.b16 %v62
    %v81 = vunpack.c.l.b16 %v63
    %v82 = vunpack.c.l.b16 %v64
    %v83 = vpack.c.b16 %v80, %v79
    %v84 = vpack.c.b16 %v82, %v81
    %vm85 = vcmask 261120
    %v87 = vsel %vm85, %v83, 0
    %v90 = vsel %vm85, %v84, 0
    %92 = vmatpush.bf16.msra.mxu0 0
    %93 = vmatpush.bf16.msra.mxu0 0
    %94 = vmatpush.bf16.msra.mxu0 0
    %95 = vmatpush.bf16.msra.mxu0 0
    %96 = vmatpush.bf16.msra.mxu0 0
    %97 = vmatpush.bf16.msra.mxu0 0
    %98 = vmatpush.bf16.msra.mxu0 %v74
    %99 = vmatpush.bf16.msra.mxu0 %v73
    %100 = vmatmul.bf16.gmra.mxu0 %v87
    %v101 = vpop.f32.mrf.mxu0
    %v102 = vadd.f32 0.0, %v101
    %v103 = vpop.f32.mrf.mxu0
    %v104 = vadd.f32 0.0, %v103
    %105 = vmatmul.bf16.gmra.mxu0 %v90
    %v106 = vpop.f32.mrf.mxu0
    %v107 = vadd.f32 0.0, %v106
    %v108 = vpop.f32.mrf.mxu0
    %v109 = vadd.f32 0.0, %v108
    %110 = vdwg.mxu0
    %v111 = vpack.c.bf16 %v104, %v102
    %v112 = vpack.c.bf16 %v109, %v107
    %v117 = vunpack.c.l.b16 %v65
    %v118 = vunpack.c.l.b16 %v66
    %v119 = vunpack.c.l.b16 %v67
    %v120 = vunpack.c.l.b16 %v68
    %v121 = vpack.c.b16 %v118, %v117
    %v122 = vpack.c.b16 %v120, %v119
    %v124 = vsel %vm85, %v121, 0
    %v127 = vsel %vm85, %v122, 0
    %129 = vmatpush.bf16.msra.mxu0 0
    %130 = vmatpush.bf16.msra.mxu0 0
    %131 = vmatpush.bf16.msra.mxu0 0
    %132 = vmatpush.bf16.msra.mxu0 0
    %133 = vmatpush.bf16.msra.mxu0 0
    %134 = vmatpush.bf16.msra.mxu0 0
    %135 = vmatpush.bf16.msra.mxu0 %v74
    %136 = vmatpush.bf16.msra.mxu0 %v73
    %137 = vmatmul.bf16.gmra.mxu0 %v124
    %v138 = vpop.f32.mrf.mxu0
    %v139 = vadd.f32 0.0, %v138
    %v140 = vpop.f32.mrf.mxu0
    %v141 = vadd.f32 0.0, %v140
    %142 = vmatmul.bf16.gmra.mxu0 %v127
    %v143 = vpop.f32.mrf.mxu0
    %v144 = vadd.f32 0.0, %v143
    %v145 = vpop.f32.mrf.mxu0
    %v146 = vadd.f32 0.0, %v145
    %147 = vdwg.mxu0
    %v148 = vpack.c.bf16 %v141, %v139
    %v149 = vpack.c.bf16 %v146, %v144
    %v150 = vld [vmem:[%s6] sm:$0xf]
    %v151 = vld [vmem:[%s6 + $0x4] sm:$0xf]
    %v152 = vld [vmem:[%s6 + $0x8] sm:$0xf]
    %v153 = vld [vmem:[%s6 + $0xc] sm:$0xf]
    %v154 = vld [vmem:[%s6 + $0x10] sm:$0xf]
    %v155 = vld [vmem:[%s6 + $0x14] sm:$0xf]
    %v156 = vld [vmem:[%s6 + $0x18] sm:$0xf]
    %v157 = vld [vmem:[%s6 + $0x1c] sm:$0xf]
    %v158 = vld [vmem:[%s6 + $0x20] sm:$0xf]
    %v159 = vld [vmem:[%s6 + $0x24] sm:$0xf]
    %v160 = vld [vmem:[%s6 + $0x28] sm:$0xf]
    %v161 = vld [vmem:[%s6 + $0x2c] sm:$0xf]
    %v162 = vld [vmem:[%s6 + $0x30] sm:$0xf]
    %v163 = vld [vmem:[%s6 + $0x34] sm:$0xf]
    %v164 = vld [vmem:[%s6 + $0x38] sm:$0xf]
    %v165 = vld [vmem:[%s6 + $0x3c] sm:$0xf]
    %s166 = scalar_lea.vmem %s6, 64
    %v167 = vld [vmem:[%s166] sm:$0xf]
    %v168 = vld [vmem:[%s166 + $0x4] sm:$0xf]
    %v169 = vld [vmem:[%s166 + $0x8] sm:$0xf]
    %v170 = vld [vmem:[%s166 + $0xc] sm:$0xf]
    %v171 = vld [vmem:[%s166 + $0x10] sm:$0xf]
    %v172 = vld [vmem:[%s166 + $0x14] sm:$0xf]
    %v173 = vld [vmem:[%s166 + $0x18] sm:$0xf]
    %v174 = vld [vmem:[%s166 + $0x1c] sm:$0xf]
    %v175 = vld [vmem:[%s166 + $0x20] sm:$0xf]
    %v176 = vld [vmem:[%s166 + $0x24] sm:$0xf]
    %v177 = vld [vmem:[%s166 + $0x28] sm:$0xf]
    %v178 = vld [vmem:[%s166 + $0x2c] sm:$0xf]
    %v179 = vld [vmem:[%s166 + $0x30] sm:$0xf]
    %v180 = vld [vmem:[%s166 + $0x34] sm:$0xf]
    %v181 = vld [vmem:[%s166 + $0x38] sm:$0xf]
    %v182 = vld [vmem:[%s166 + $0x3c] sm:$0xf]
    %v199 = vunpack.c.l.b16 %v167
    %v200 = vunpack.c.l.b16 %v168
    %v201 = vunpack.c.l.b16 %v169
    %v202 = vunpack.c.l.b16 %v170
    %v203 = vunpack.c.l.b16 %v171
    %v204 = vunpack.c.l.b16 %v172
    %v205 = vunpack.c.l.b16 %v173
    %v206 = vunpack.c.l.b16 %v174
    %v207 = vunpack.c.l.b16 %v175
    %v208 = vunpack.c.l.b16 %v176
    %v209 = vunpack.c.l.b16 %v177
    %v210 = vunpack.c.l.b16 %v178
    %v211 = vunpack.c.l.b16 %v179
    %v212 = vunpack.c.l.b16 %v180
    %v213 = vunpack.c.l.b16 %v181
    %v214 = vunpack.c.l.b16 %v182
    %v215 = vpack.c.b16 %v200, %v199
    %v216 = vpack.c.b16 %v202, %v201
    %v217 = vpack.c.b16 %v204, %v203
    %v218 = vpack.c.b16 %v206, %v205
    %v219 = vpack.c.b16 %v208, %v207
    %v220 = vpack.c.b16 %v210, %v209
    %v221 = vpack.c.b16 %v212, %v211
    %v222 = vpack.c.b16 %v214, %v213
    %231 = vmatpush.bf16.msra.mxu0 %v222
    %232 = vmatpush.bf16.msra.mxu0 %v221
    %233 = vmatpush.bf16.msra.mxu0 %v220
    %234 = vmatpush.bf16.msra.mxu0 %v219
    %235 = vmatpush.bf16.msra.mxu0 %v218
    %236 = vmatpush.bf16.msra.mxu0 %v217
    %237 = vmatpush.bf16.msra.mxu0 %v216
    %238 = vmatpush.bf16.msra.mxu0 %v215
    %239 = vmatmul.bf16.gmra.mxu0 %v73
    %v240 = vpop.f32.mrf.mxu0
    %v241 = vadd.f32 0.0, %v240
    %v242 = vpop.f32.mrf.mxu0
    %v243 = vadd.f32 0.0, %v242
    %244 = vmatmul.bf16.gmra.mxu0 %v74
    %v245 = vpop.f32.mrf.mxu0
    %v246 = vadd.f32 0.0, %v245
    %v247 = vpop.f32.mrf.mxu0
    %v248 = vadd.f32 0.0, %v247
    %249 = vdwg.mxu0
    %v266 = vunpack.c.l.b16 %v150
    %v267 = vunpack.c.l.b16 %v151
    %v268 = vunpack.c.l.b16 %v152
    %v269 = vunpack.c.l.b16 %v153
    %v270 = vunpack.c.l.b16 %v154
    %v271 = vunpack.c.l.b16 %v155
    %v272 = vunpack.c.l.b16 %v156
    %v273 = vunpack.c.l.b16 %v157
    %v274 = vunpack.c.l.b16 %v158
    %v275 = vunpack.c.l.b16 %v159
    %v276 = vunpack.c.l.b16 %v160
    %v277 = vunpack.c.l.b16 %v161
    %v278 = vunpack.c.l.b16 %v162
    %v279 = vunpack.c.l.b16 %v163
    %v280 = vunpack.c.l.b16 %v164
    %v281 = vunpack.c.l.b16 %v165
    %v282 = vpack.c.b16 %v267, %v266
    %v283 = vpack.c.b16 %v269, %v268
    %v284 = vpack.c.b16 %v271, %v270
    %v285 = vpack.c.b16 %v273, %v272
    %v286 = vpack.c.b16 %v275, %v274
    %v287 = vpack.c.b16 %v277, %v276
    %v288 = vpack.c.b16 %v279, %v278
    %v289 = vpack.c.b16 %v281, %v280
    %298 = vmatpush.bf16.msra.mxu0 %v289
    %299 = vmatpush.bf16.msra.mxu0 %v288
    %300 = vmatpush.bf16.msra.mxu0 %v287
    %301 = vmatpush.bf16.msra.mxu0 %v286
    %302 = vmatpush.bf16.msra.mxu0 %v285
    %303 = vmatpush.bf16.msra.mxu0 %v284
    %304 = vmatpush.bf16.msra.mxu0 %v283
    %305 = vmatpush.bf16.msra.mxu0 %v282
    %306 = vmatmul.bf16.gmra.mxu0 %v111
    %v307 = vpop.f32.mrf.mxu0
    %v308 = vadd.f32 %v241, %v307
    %v309 = vpop.f32.mrf.mxu0
    %v310 = vadd.f32 %v243, %v309
    %311 = vmatmul.bf16.gmra.mxu0 %v112
    %v312 = vpop.f32.mrf.mxu0
    %v313 = vadd.f32 %v246, %v312
    %v314 = vpop.f32.mrf.mxu0
    %v315 = vadd.f32 %v248, %v314
    %316 = vdwg.mxu0
    %s317 = scalar_lea.vmem %s6, 128
    %v318 = vld [vmem:[%s317] sm:$0xf]
    %v319 = vld [vmem:[%s317 + $0x4] sm:$0xf]
    %v320 = vld [vmem:[%s317 + $0x8] sm:$0xf]
    %v321 = vld [vmem:[%s317 + $0xc] sm:$0xf]
    %v322 = vld [vmem:[%s317 + $0x10] sm:$0xf]
    %v323 = vld [vmem:[%s317 + $0x14] sm:$0xf]
    %v324 = vld [vmem:[%s317 + $0x18] sm:$0xf]
    %v325 = vld [vmem:[%s317 + $0x1c] sm:$0xf]
    %v326 = vld [vmem:[%s317 + $0x20] sm:$0xf]
    %v327 = vld [vmem:[%s317 + $0x24] sm:$0xf]
    %v328 = vld [vmem:[%s317 + $0x28] sm:$0xf]
    %v329 = vld [vmem:[%s317 + $0x2c] sm:$0xf]
    %v330 = vld [vmem:[%s317 + $0x30] sm:$0xf]
    %v331 = vld [vmem:[%s317 + $0x34] sm:$0xf]
    %v332 = vld [vmem:[%s317 + $0x38] sm:$0xf]
    %v333 = vld [vmem:[%s317 + $0x3c] sm:$0xf]
    %v350 = vunpack.c.l.b16 %v318
    %v351 = vunpack.c.l.b16 %v319
    %v352 = vunpack.c.l.b16 %v320
    %v353 = vunpack.c.l.b16 %v321
    %v354 = vunpack.c.l.b16 %v322
    %v355 = vunpack.c.l.b16 %v323
    %v356 = vunpack.c.l.b16 %v324
    %v357 = vunpack.c.l.b16 %v325
    %v358 = vunpack.c.l.b16 %v326
    %v359 = vunpack.c.l.b16 %v327
    %v360 = vunpack.c.l.b16 %v328
    %v361 = vunpack.c.l.b16 %v329
    %v362 = vunpack.c.l.b16 %v330
    %v363 = vunpack.c.l.b16 %v331
    %v364 = vunpack.c.l.b16 %v332
    %v365 = vunpack.c.l.b16 %v333
    %v366 = vpack.c.b16 %v351, %v350
    %v367 = vpack.c.b16 %v353, %v352
    %v368 = vpack.c.b16 %v355, %v354
    %v369 = vpack.c.b16 %v357, %v356
    %v370 = vpack.c.b16 %v359, %v358
    %v371 = vpack.c.b16 %v361, %v360
    %v372 = vpack.c.b16 %v363, %v362
    %v373 = vpack.c.b16 %v365, %v364
    %382 = vmatpush.bf16.msra.mxu0 %v373
    %383 = vmatpush.bf16.msra.mxu0 %v372
    %384 = vmatpush.bf16.msra.mxu0 %v371
    %385 = vmatpush.bf16.msra.mxu0 %v370
    %386 = vmatpush.bf16.msra.mxu0 %v369
    %387 = vmatpush.bf16.msra.mxu0 %v368
    %388 = vmatpush.bf16.msra.mxu0 %v367
    %389 = vmatpush.bf16.msra.mxu0 %v366
    %390 = vmatmul.bf16.gmra.mxu0 %v148
    %v391 = vpop.f32.mrf.mxu0
    %v392 = vadd.f32 0.0, %v391
    %v393 = vpop.f32.mrf.mxu0
    %v394 = vadd.f32 0.0, %v393
    %395 = vmatmul.bf16.gmra.mxu0 %v149
    %v396 = vpop.f32.mrf.mxu0
    %v397 = vadd.f32 0.0, %v396
    %v398 = vpop.f32.mrf.mxu0
    %v399 = vadd.f32 0.0, %v398
    %400 = vdwg.mxu0
    %v401 = vadd.f32 %v308, %v392
    %v402 = vadd.f32 %v310, %v394
    %v403 = vadd.f32 %v313, %v397
    %v404 = vadd.f32 %v315, %v399
    %v405 = vld [vmem:[%s7] sm:$0x1]
    %v407 = vperm.slane %v405, 0
    %v409 = vadd.f32 %v401, %v407
    %v410 = vadd.f32 %v402, %v407
    %v411 = vadd.f32 %v403, %v407
    %v412 = vadd.f32 %v404, %v407
    %v413 = vtanh.pop %v409
    %v414 = vtanh.pop %v410
    %v415 = vtanh.pop %v411
    %v416 = vtanh.pop %v412
    %v417 = vxor.u32 %v409, 2147483648
    %v418 = vxor.u32 %v410, 2147483648
    %v419 = vxor.u32 %v411, 2147483648
    %v420 = vxor.u32 %v412, 2147483648
    %v421 = vmul.f32 %v417, 1.442695
    %v422 = vpow.pop %v421
    %v423 = vmul.f32 %v418, 1.442695
    %v424 = vpow.pop %v423
    %v425 = vmul.f32 %v419, 1.442695
    %v426 = vpow.pop %v425
    %v427 = vmul.f32 %v420, 1.442695
    %v428 = vpow.pop %v427
    %v429 = vadd.f32 %v422, 1.0
    %v430 = vadd.f32 %v424, 1.0
    %v431 = vadd.f32 %v426, 1.0
    %v432 = vadd.f32 %v428, 1.0
    %v433 = vrcp.pop %v429
    %v434 = vmul.f32 %v429, %v433
    %v435 = vsub.f32 1.0, %v434
    %v436 = vmul.f32 %v433, %v435
    %v437 = vadd.f32 %v433, %v436
    %vm438 = vweird.f32 %v429
    %vm439 = vweird.f32 %v433
    %vm440 = vmor %vm438, %vm439
    %v441 = vsel %vm440, %v433, %v437
    %v442 = vand.u32 2147483647, %v429
    %vm443 = vcmp.eq.f32.partialorder %v442, 8.507059e+37
    %v444 = vand.u32 %v429, 2147483648
    %v445 = vor.u32 1.1754944e-38, %v444
    %v446 = vsel %vm443, %v445, %v441
    %v447 = vmul.f32 1.0, %v446
    %v448 = vrcp.pop %v430
    %v449 = vmul.f32 %v430, %v448
    %v450 = vsub.f32 1.0, %v449
    %v451 = vmul.f32 %v448, %v450
    %v452 = vadd.f32 %v448, %v451
    %vm453 = vweird.f32 %v430
    %vm454 = vweird.f32 %v448
    %vm455 = vmor %vm453, %vm454
    %v456 = vsel %vm455, %v448, %v452
    %v457 = vand.u32 2147483647, %v430
    %vm458 = vcmp.eq.f32.partialorder %v457, 8.507059e+37
    %v459 = vand.u32 %v430, 2147483648
    %v460 = vor.u32 1.1754944e-38, %v459
    %v461 = vsel %vm458, %v460, %v456
    %v462 = vmul.f32 1.0, %v461
    %v463 = vrcp.pop %v431
    %v464 = vmul.f32 %v431, %v463
    %v465 = vsub.f32 1.0, %v464
    %v466 = vmul.f32 %v463, %v465
    %v467 = vadd.f32 %v463, %v466
    %vm468 = vweird.f32 %v431
    %vm469 = vweird.f32 %v463
    %vm470 = vmor %vm468, %vm469
    %v471 = vsel %vm470, %v463, %v467
    %v472 = vand.u32 2147483647, %v431
    %vm473 = vcmp.eq.f32.partialorder %v472, 8.507059e+37
    %v474 = vand.u32 %v431, 2147483648
    %v475 = vor.u32 1.1754944e-38, %v474
    %v476 = vsel %vm473, %v475, %v471
    %v477 = vmul.f32 1.0, %v476
    %v478 = vrcp.pop %v432
    %v479 = vmul.f32 %v432, %v478
    %v480 = vsub.f32 1.0, %v479
    %v481 = vmul.f32 %v478, %v480
    %v482 = vadd.f32 %v478, %v481
    %vm483 = vweird.f32 %v432
    %vm484 = vweird.f32 %v478
    %vm485 = vmor %vm483, %vm484
    %v486 = vsel %vm485, %v478, %v482
    %v487 = vand.u32 2147483647, %v432
    %vm488 = vcmp.eq.f32.partialorder %v487, 8.507059e+37
    %v489 = vand.u32 %v432, 2147483648
    %v490 = vor.u32 1.1754944e-38, %v489
    %v491 = vsel %vm488, %v490, %v486
    %v492 = vmul.f32 1.0, %v491
    %vm493 = vcmask 392192
    %494 = vst.msk [vmem:[%s13] sm:$0xff] %vm493, %v413
    %495 = vst.msk [vmem:[%s13 + $0x10] sm:$0xff] %vm493, %v414
    %496 = vst.msk [vmem:[%s13 + $0x20] sm:$0xff] %vm493, %v415
    %497 = vst.msk [vmem:[%s13 + $0x30] sm:$0xff] %vm493, %v416
    %vm498 = vcmask 523648
    %499 = vst.msk [vmem:[%s13] sm:$0xff] %vm498, %v447
    %500 = vst.msk [vmem:[%s13 + $0x10] sm:$0xff] %vm498, %v462
    %501 = vst.msk [vmem:[%s13 + $0x20] sm:$0xff] %vm498, %v477
    %502 = vst.msk [vmem:[%s13 + $0x30] sm:$0xff] %vm498, %v492
    %v503 = vld [vmem:[%s5] sm:$0xff]
    %v504 = vld [vmem:[%s5 + $0x8] sm:$0xff]
    %509 = vrot.lane.b32.xlu0 %v447, 80
    %v510 = vpop.permute.xlu0 %509
    %511 = vrot.lane.b32.xlu0 %v462, 80
    %v512 = vpop.permute.xlu0 %511
    %513 = vrot.lane.b32.xlu0 %v477, 80
    %v514 = vpop.permute.xlu0 %513
    %515 = vrot.lane.b32.xlu0 %v492, 80
    %v516 = vpop.permute.xlu0 %515
    %vm517 = vcmask 130048
    %v518 = vsel %vm517, %v510, 0
    %v520 = vsel %vm517, %v512, 0
    %v522 = vsel %vm517, %v514, 0
    %v524 = vsel %vm517, %v516, 0
    %526 = vmatpush.msra.mxu0 0.0
    %527 = vmatpush.msra.mxu0 0.0
    %528 = vmatpush.msra.mxu0 0.0
    %529 = vmatpush.msra.mxu0 0.0
    %530 = vmatpush.msra.mxu0 0.0
    %531 = vmatpush.msra.mxu0 0.0
    %532 = vmatpush.msra.mxu0 0.0
    %533 = vmatpush.msra.mxu0 0.0
    %534 = vmatpush.msra.mxu0 0.0
    %535 = vmatpush.msra.mxu0 0.0
    %536 = vmatpush.msra.mxu0 0.0
    %537 = vmatpush.msra.mxu0 0.0
    %538 = vmatpush.msra.mxu0 0.0
    %539 = vmatpush.msra.mxu0 0.0
    %540 = vmatpush.msra.mxu0 %v504
    %541 = vmatpush.msra.mxu0 %v503
    %542 = vmatmul.f32.gmra.mxu0 %v518
    %v543 = vpop.f32.mrf.mxu0
    %v544 = vadd.f32 0.0, %v543
    %545 = vmatmul.f32.gmra.mxu0 %v520
    %v546 = vpop.f32.mrf.mxu0
    %v547 = vadd.f32 0.0, %v546
    %548 = vmatmul.f32.gmra.mxu0 %v522
    %v549 = vpop.f32.mrf.mxu0
    %v550 = vadd.f32 0.0, %v549
    %551 = vmatmul.f32.gmra.mxu0 %v524
    %v552 = vpop.f32.mrf.mxu0
    %v553 = vadd.f32 0.0, %v552
    %554 = vdwg.mxu0
    %v555 = vmul.f32 %v413, %v544
    %v556 = vmul.f32 %v414, %v547
    %v557 = vmul.f32 %v415, %v550
    %v558 = vmul.f32 %v416, %v553
    %v559 = vld [vmem:[%s11] sm:$0xf]
    %v560 = vld [vmem:[%s11 + $0x4] sm:$0xf]
    %v561 = vld [vmem:[%s11 + $0x8] sm:$0xf]
    %v562 = vld [vmem:[%s11 + $0xc] sm:$0xf]
    %v563 = vld [vmem:[%s11 + $0x10] sm:$0xf]
    %v564 = vld [vmem:[%s11 + $0x14] sm:$0xf]
    %v565 = vld [vmem:[%s11 + $0x18] sm:$0xf]
    %v566 = vld [vmem:[%s11 + $0x1c] sm:$0xf]
    %v567 = vld [vmem:[%s11 + $0x20] sm:$0xf]
    %v568 = vld [vmem:[%s11 + $0x24] sm:$0xf]
    %v569 = vld [vmem:[%s11 + $0x28] sm:$0xf]
    %v570 = vld [vmem:[%s11 + $0x2c] sm:$0xf]
    %v571 = vld [vmem:[%s11 + $0x30] sm:$0xf]
    %v572 = vld [vmem:[%s11 + $0x34] sm:$0xf]
    %v573 = vld [vmem:[%s11 + $0x38] sm:$0xf]
    %v574 = vld [vmem:[%s11 + $0x3c] sm:$0xf]
    %v575 = vld [vmem:[%s1] sm:$0xff]
    %v576 = vld [vmem:[%s1 + $0x8] sm:$0xff]
    %v577 = vld [vmem:[%s1 + $0x10] sm:$0xff]
    %v578 = vld [vmem:[%s1 + $0x18] sm:$0xff]
    %v579 = vpack.c.bf16 %v576, %v575
    %v580 = vpack.c.bf16 %v578, %v577
    %581 = vmatpush.bf16.msra.mxu0 0
    %582 = vmatpush.bf16.msra.mxu0 0
    %583 = vmatpush.bf16.msra.mxu0 0
    %584 = vmatpush.bf16.msra.mxu0 0
    %585 = vmatpush.bf16.msra.mxu0 0
    %586 = vmatpush.bf16.msra.mxu0 0
    %587 = vmatpush.bf16.msra.mxu0 %v580
    %588 = vmatpush.bf16.msra.mxu0 %v579
    %589 = vmatmul.bf16.gmra.mxu0 %v87
    %v590 = vpop.f32.mrf.mxu0
    %v591 = vadd.f32 0.0, %v590
    %v592 = vpop.f32.mrf.mxu0
    %v593 = vadd.f32 0.0, %v592
    %594 = vmatmul.bf16.gmra.mxu0 %v90
    %v595 = vpop.f32.mrf.mxu0
    %v596 = vadd.f32 0.0, %v595
    %v597 = vpop.f32.mrf.mxu0
    %v598 = vadd.f32 0.0, %v597
    %599 = vdwg.mxu0
    %v600 = vpack.c.bf16 %v593, %v591
    %v601 = vpack.c.bf16 %v598, %v596
    %602 = vmatpush.bf16.msra.mxu0 0
    %603 = vmatpush.bf16.msra.mxu0 0
    %604 = vmatpush.bf16.msra.mxu0 0
    %605 = vmatpush.bf16.msra.mxu0 0
    %606 = vmatpush.bf16.msra.mxu0 0
    %607 = vmatpush.bf16.msra.mxu0 0
    %608 = vmatpush.bf16.msra.mxu0 %v580
    %609 = vmatpush.bf16.msra.mxu0 %v579
    %610 = vmatmul.bf16.gmra.mxu0 %v124
    %v611 = vpop.f32.mrf.mxu0
    %v612 = vadd.f32 0.0, %v611
    %v613 = vpop.f32.mrf.mxu0
    %v614 = vadd.f32 0.0, %v613
    %615 = vmatmul.bf16.gmra.mxu0 %v127
    %v616 = vpop.f32.mrf.mxu0
    %v617 = vadd.f32 0.0, %v616
    %v618 = vpop.f32.mrf.mxu0
    %v619 = vadd.f32 0.0, %v618
    %620 = vdwg.mxu0
    %v621 = vpack.c.bf16 %v614, %v612
    %v622 = vpack.c.bf16 %v619, %v617
    %v623 = vld [vmem:[#allocation2] sm:$0xf]
    %v624 = vld [vmem:[#allocation2 + $0x4] sm:$0xf]
    %v625 = vld [vmem:[#allocation2 + $0x8] sm:$0xf]
    %v626 = vld [vmem:[#allocation2 + $0xc] sm:$0xf]
    %v627 = vld [vmem:[#allocation2 + $0x10] sm:$0xf]
    %v628 = vld [vmem:[#allocation2 + $0x14] sm:$0xf]
    %v629 = vld [vmem:[#allocation2 + $0x18] sm:$0xf]
    %v630 = vld [vmem:[#allocation2 + $0x1c] sm:$0xf]
    %v631 = vld [vmem:[#allocation2 + $0x20] sm:$0xf]
    %v632 = vld [vmem:[#allocation2 + $0x24] sm:$0xf]
    %v633 = vld [vmem:[#allocation2 + $0x28] sm:$0xf]
    %v634 = vld [vmem:[#allocation2 + $0x2c] sm:$0xf]
    %v635 = vld [vmem:[#allocation2 + $0x30] sm:$0xf]
    %v636 = vld [vmem:[#allocation2 + $0x34] sm:$0xf]
    %v637 = vld [vmem:[#allocation2 + $0x38] sm:$0xf]
    %v638 = vld [vmem:[#allocation2 + $0x3c] sm:$0xf]
    %s639 = scalar_lea.vmem [#allocation2], 64
    %v640 = vld [vmem:[%s639] sm:$0xf]
    %v641 = vld [vmem:[%s639 + $0x4] sm:$0xf]
    %v642 = vld [vmem:[%s639 + $0x8] sm:$0xf]
    %v643 = vld [vmem:[%s639 + $0xc] sm:$0xf]
    %v644 = vld [vmem:[%s639 + $0x10] sm:$0xf]
    %v645 = vld [vmem:[%s639 + $0x14] sm:$0xf]
    %v646 = vld [vmem:[%s639 + $0x18] sm:$0xf]
    %v647 = vld [vmem:[%s639 + $0x1c] sm:$0xf]
    %v648 = vld [vmem:[%s639 + $0x20] sm:$0xf]
    %v649 = vld [vmem:[%s639 + $0x24] sm:$0xf]
    %v650 = vld [vmem:[%s639 + $0x28] sm:$0xf]
    %v651 = vld [vmem:[%s639 + $0x2c] sm:$0xf]
    %v652 = vld [vmem:[%s639 + $0x30] sm:$0xf]
    %v653 = vld [vmem:[%s639 + $0x34] sm:$0xf]
    %v654 = vld [vmem:[%s639 + $0x38] sm:$0xf]
    %v655 = vld [vmem:[%s639 + $0x3c] sm:$0xf]
    %v672 = vunpack.c.l.b16 %v640
    %v673 = vunpack.c.l.b16 %v641
    %v674 = vunpack.c.l.b16 %v642
    %v675 = vunpack.c.l.b16 %v643
    %v676 = vunpack.c.l.b16 %v644
    %v677 = vunpack.c.l.b16 %v645
    %v678 = vunpack.c.l.b16 %v646
    %v679 = vunpack.c.l.b16 %v647
    %v680 = vunpack.c.l.b16 %v648
    %v681 = vunpack.c.l.b16 %v649
    %v682 = vunpack.c.l.b16 %v650
    %v683 = vunpack.c.l.b16 %v651
    %v684 = vunpack.c.l.b16 %v652
    %v685 = vunpack.c.l.b16 %v653
    %v686 = vunpack.c.l.b16 %v654
    %v687 = vunpack.c.l.b16 %v655
    %v688 = vpack.c.b16 %v673, %v672
    %v689 = vpack.c.b16 %v675, %v674
    %v690 = vpack.c.b16 %v677, %v676
    %v691 = vpack.c.b16 %v679, %v678
    %v692 = vpack.c.b16 %v681, %v680
    %v693 = vpack.c.b16 %v683, %v682
    %v694 = vpack.c.b16 %v685, %v684
    %v695 = vpack.c.b16 %v687, %v686
    %704 = vmatpush.bf16.msra.mxu0 %v695
    %705 = vmatpush.bf16.msra.mxu0 %v694
    %706 = vmatpush.bf16.msra.mxu0 %v693
    %707 = vmatpush.bf16.msra.mxu0 %v692
    %708 = vmatpush.bf16.msra.mxu0 %v691
    %709 = vmatpush.bf16.msra.mxu0 %v690
    %710 = vmatpush.bf16.msra.mxu0 %v689
    %711 = vmatpush.bf16.msra.mxu0 %v688
    %712 = vmatmul.bf16.gmra.mxu0 %v73
    %v713 = vpop.f32.mrf.mxu0
    %v714 = vadd.f32 0.0, %v713
    %v715 = vpop.f32.mrf.mxu0
    %v716 = vadd.f32 0.0, %v715
    %717 = vmatmul.bf16.gmra.mxu0 %v74
    %v718 = vpop.f32.mrf.mxu0
    %v719 = vadd.f32 0.0, %v718
    %v720 = vpop.f32.mrf.mxu0
    %v721 = vadd.f32 0.0, %v720
    %722 = vdwg.mxu0
    %v739 = vunpack.c.l.b16 %v623
    %v740 = vunpack.c.l.b16 %v624
    %v741 = vunpack.c.l.b16 %v625
    %v742 = vunpack.c.l.b16 %v626
    %v743 = vunpack.c.l.b16 %v627
    %v744 = vunpack.c.l.b16 %v628
    %v745 = vunpack.c.l.b16 %v629
    %v746 = vunpack.c.l.b16 %v630
    %v747 = vunpack.c.l.b16 %v631
    %v748 = vunpack.c.l.b16 %v632
    %v749 = vunpack.c.l.b16 %v633
    %v750 = vunpack.c.l.b16 %v634
    %v751 = vunpack.c.l.b16 %v635
    %v752 = vunpack.c.l.b16 %v636
    %v753 = vunpack.c.l.b16 %v637
    %v754 = vunpack.c.l.b16 %v638
    %v755 = vpack.c.b16 %v740, %v739
    %v756 = vpack.c.b16 %v742, %v741
    %v757 = vpack.c.b16 %v744, %v743
    %v758 = vpack.c.b16 %v746, %v745
    %v759 = vpack.c.b16 %v748, %v747
    %v760 = vpack.c.b16 %v750, %v749
    %v761 = vpack.c.b16 %v752, %v751
    %v762 = vpack.c.b16 %v754, %v753
    %771 = vmatpush.bf16.msra.mxu0 %v762
    %772 = vmatpush.bf16.msra.mxu0 %v761
    %773 = vmatpush.bf16.msra.mxu0 %v760
    %774 = vmatpush.bf16.msra.mxu0 %v759
    %775 = vmatpush.bf16.msra.mxu0 %v758
    %776 = vmatpush.bf16.msra.mxu0 %v757
    %777 = vmatpush.bf16.msra.mxu0 %v756
    %778 = vmatpush.bf16.msra.mxu0 %v755
    %779 = vmatmul.bf16.gmra.mxu0 %v111
    %v780 = vpop.f32.mrf.mxu0
    %v781 = vadd.f32 %v714, %v780
    %v782 = vpop.f32.mrf.mxu0
    %v783 = vadd.f32 %v716, %v782
    %784 = vmatmul.bf16.gmra.mxu0 %v112
    %v785 = vpop.f32.mrf.mxu0
    %v786 = vadd.f32 %v719, %v785
    %v787 = vpop.f32.mrf.mxu0
    %v788 = vadd.f32 %v721, %v787
    %789 = vdwg.mxu0
    %s790 = scalar_lea.vmem [#allocation2], 128
    %v791 = vld [vmem:[%s790] sm:$0xf]
    %v792 = vld [vmem:[%s790 + $0x4] sm:$0xf]
    %v793 = vld [vmem:[%s790 + $0x8] sm:$0xf]
    %v794 = vld [vmem:[%s790 + $0xc] sm:$0xf]
    %v795 = vld [vmem:[%s790 + $0x10] sm:$0xf]
    %v796 = vld [vmem:[%s790 + $0x14] sm:$0xf]
    %v797 = vld [vmem:[%s790 + $0x18] sm:$0xf]
    %v798 = vld [vmem:[%s790 + $0x1c] sm:$0xf]
    %v799 = vld [vmem:[%s790 + $0x20] sm:$0xf]
    %v800 = vld [vmem:[%s790 + $0x24] sm:$0xf]
    %v801 = vld [vmem:[%s790 + $0x28] sm:$0xf]
    %v802 = vld [vmem:[%s790 + $0x2c] sm:$0xf]
    %v803 = vld [vmem:[%s790 + $0x30] sm:$0xf]
    %v804 = vld [vmem:[%s790 + $0x34] sm:$0xf]
    %v805 = vld [vmem:[%s790 + $0x38] sm:$0xf]
    %v806 = vld [vmem:[%s790 + $0x3c] sm:$0xf]
    %v823 = vunpack.c.l.b16 %v791
    %v824 = vunpack.c.l.b16 %v792
    %v825 = vunpack.c.l.b16 %v793
    %v826 = vunpack.c.l.b16 %v794
    %v827 = vunpack.c.l.b16 %v795
    %v828 = vunpack.c.l.b16 %v796
    %v829 = vunpack.c.l.b16 %v797
    %v830 = vunpack.c.l.b16 %v798
    %v831 = vunpack.c.l.b16 %v799
    %v832 = vunpack.c.l.b16 %v800
    %v833 = vunpack.c.l.b16 %v801
    %v834 = vunpack.c.l.b16 %v802
    %v835 = vunpack.c.l.b16 %v803
    %v836 = vunpack.c.l.b16 %v804
    %v837 = vunpack.c.l.b16 %v805
    %v838 = vunpack.c.l.b16 %v806
    %v839 = vpack.c.b16 %v824, %v823
    %v840 = vpack.c.b16 %v826, %v825
    %v841 = vpack.c.b16 %v828, %v827
    %v842 = vpack.c.b16 %v830, %v829
    %v843 = vpack.c.b16 %v832, %v831
    %v844 = vpack.c.b16 %v834, %v833
    %v845 = vpack.c.b16 %v836, %v835
    %v846 = vpack.c.b16 %v838, %v837
    %855 = vmatpush.bf16.msra.mxu0 %v846
    %856 = vmatpush.bf16.msra.mxu0 %v845
    %857 = vmatpush.bf16.msra.mxu0 %v844
    %858 = vmatpush.bf16.msra.mxu0 %v843
    %859 = vmatpush.bf16.msra.mxu0 %v842
    %860 = vmatpush.bf16.msra.mxu0 %v841
    %861 = vmatpush.bf16.msra.mxu0 %v840
    %862 = vmatpush.bf16.msra.mxu0 %v839
    %863 = vmatmul.bf16.gmra.mxu0 %v148
    %v864 = vpop.f32.mrf.mxu0
    %v865 = vadd.f32 0.0, %v864
    %v866 = vpop.f32.mrf.mxu0
    %v867 = vadd.f32 0.0, %v866
    %868 = vmatmul.bf16.gmra.mxu0 %v149
    %v869 = vpop.f32.mrf.mxu0
    %v870 = vadd.f32 0.0, %v869
    %v871 = vpop.f32.mrf.mxu0
    %v872 = vadd.f32 0.0, %v871
    %873 = vdwg.mxu0
    %v874 = vadd.f32 %v781, %v865
    %v875 = vadd.f32 %v783, %v867
    %v876 = vadd.f32 %v786, %v870
    %v877 = vadd.f32 %v788, %v872
    %v878 = vld [vmem:[%s9] sm:$0xf]
    %v879 = vld [vmem:[%s9 + $0x4] sm:$0xf]
    %v880 = vld [vmem:[%s9 + $0x8] sm:$0xf]
    %v881 = vld [vmem:[%s9 + $0xc] sm:$0xf]
    %v882 = vld [vmem:[%s9 + $0x10] sm:$0xf]
    %v883 = vld [vmem:[%s9 + $0x14] sm:$0xf]
    %v884 = vld [vmem:[%s9 + $0x18] sm:$0xf]
    %v885 = vld [vmem:[%s9 + $0x1c] sm:$0xf]
    %s886 = scalar_lea.vmem %s9, 32
    %v887 = vld [vmem:[%s886] sm:$0xf]
    %v888 = vld [vmem:[%s886 + $0x4] sm:$0xf]
    %v889 = vld [vmem:[%s886 + $0x8] sm:$0xf]
    %v890 = vld [vmem:[%s886 + $0xc] sm:$0xf]
    %v891 = vld [vmem:[%s886 + $0x10] sm:$0xf]
    %v892 = vld [vmem:[%s886 + $0x14] sm:$0xf]
    %v893 = vld [vmem:[%s886 + $0x18] sm:$0xf]
    %v894 = vld [vmem:[%s886 + $0x1c] sm:$0xf]
    %v903 = vunpack.c.l.b16 %v887
    %v904 = vunpack.c.l.b16 %v888
    %v905 = vunpack.c.l.b16 %v889
    %v906 = vunpack.c.l.b16 %v890
    %v907 = vunpack.c.l.b16 %v891
    %v908 = vunpack.c.l.b16 %v892
    %v909 = vunpack.c.l.b16 %v893
    %v910 = vunpack.c.l.b16 %v894
    %v911 = vpack.c.b16 %v904, %v903
    %v912 = vpack.c.b16 %v906, %v905
    %v913 = vpack.c.b16 %v908, %v907
    %v914 = vpack.c.b16 %v910, %v909
    %vm919 = vcmask 523264
    %v921 = vsel %vm919, %v579, 0
    %v924 = vsel %vm919, %v580, 0
    %926 = vmatpush.bf16.msra.mxu0 0
    %927 = vmatpush.bf16.msra.mxu0 0
    %928 = vmatpush.bf16.msra.mxu0 0
    %929 = vmatpush.bf16.msra.mxu0 0
    %930 = vmatpush.bf16.msra.mxu0 %v914
    %931 = vmatpush.bf16.msra.mxu0 %v913
    %932 = vmatpush.bf16.msra.mxu0 %v912
    %933 = vmatpush.bf16.msra.mxu0 %v911
    %934 = vmatmul.bf16.gmra.mxu0 %v921
    %v935 = vpop.f32.mrf.mxu0
    %v936 = vadd.f32 0.0, %v935
    %v937 = vpop.f32.mrf.mxu0
    %v938 = vadd.f32 0.0, %v937
    %939 = vmatmul.bf16.gmra.mxu0 %v924
    %v940 = vpop.f32.mrf.mxu0
    %v941 = vadd.f32 0.0, %v940
    %v942 = vpop.f32.mrf.mxu0
    %v943 = vadd.f32 0.0, %v942
    %944 = vdwg.mxu0
    %v953 = vunpack.c.l.b16 %v878
    %v954 = vunpack.c.l.b16 %v879
    %v955 = vunpack.c.l.b16 %v880
    %v956 = vunpack.c.l.b16 %v881
    %v957 = vunpack.c.l.b16 %v882
    %v958 = vunpack.c.l.b16 %v883
    %v959 = vunpack.c.l.b16 %v884
    %v960 = vunpack.c.l.b16 %v885
    %v961 = vpack.c.b16 %v954, %v953
    %v962 = vpack.c.b16 %v956, %v955
    %v963 = vpack.c.b16 %v958, %v957
    %v964 = vpack.c.b16 %v960, %v959
    %v970 = vsel %vm919, %v600, 0
    %v973 = vsel %vm919, %v601, 0
    %975 = vmatpush.bf16.msra.mxu0 0
    %976 = vmatpush.bf16.msra.mxu0 0
    %977 = vmatpush.bf16.msra.mxu0 0
    %978 = vmatpush.bf16.msra.mxu0 0
    %979 = vmatpush.bf16.msra.mxu0 %v964
    %980 = vmatpush.bf16.msra.mxu0 %v963
    %981 = vmatpush.bf16.msra.mxu0 %v962
    %982 = vmatpush.bf16.msra.mxu0 %v961
    %983 = vmatmul.bf16.gmra.mxu0 %v970
    %v984 = vpop.f32.mrf.mxu0
    %v985 = vadd.f32 %v936, %v984
    %v986 = vpop.f32.mrf.mxu0
    %v987 = vadd.f32 %v938, %v986
    %988 = vmatmul.bf16.gmra.mxu0 %v973
    %v989 = vpop.f32.mrf.mxu0
    %v990 = vadd.f32 %v941, %v989
    %v991 = vpop.f32.mrf.mxu0
    %v992 = vadd.f32 %v943, %v991
    %993 = vdwg.mxu0
    %s994 = scalar_lea.vmem %s9, 64
    %v995 = vld [vmem:[%s994] sm:$0xf]
    %v996 = vld [vmem:[%s994 + $0x4] sm:$0xf]
    %v997 = vld [vmem:[%s994 + $0x8] sm:$0xf]
    %v998 = vld [vmem:[%s994 + $0xc] sm:$0xf]
    %v999 = vld [vmem:[%s994 + $0x10] sm:$0xf]
    %v1000 = vld [vmem:[%s994 + $0x14] sm:$0xf]
    %v1001 = vld [vmem:[%s994 + $0x18] sm:$0xf]
    %v1002 = vld [vmem:[%s994 + $0x1c] sm:$0xf]
    %v1011 = vunpack.c.l.b16 %v995
    %v1012 = vunpack.c.l.b16 %v996
    %v1013 = vunpack.c.l.b16 %v997
    %v1014 = vunpack.c.l.b16 %v998
    %v1015 = vunpack.c.l.b16 %v999
    %v1016 = vunpack.c.l.b16 %v1000
    %v1017 = vunpack.c.l.b16 %v1001
    %v1018 = vunpack.c.l.b16 %v1002
    %v1019 = vpack.c.b16 %v1012, %v1011
    %v1020 = vpack.c.b16 %v1014, %v1013
    %v1021 = vpack.c.b16 %v1016, %v1015
    %v1022 = vpack.c.b16 %v1018, %v1017
    %v1028 = vsel %vm919, %v621, 0
    %v1031 = vsel %vm919, %v622, 0
    %1033 = vmatpush.bf16.msra.mxu0 0
    %1034 = vmatpush.bf16.msra.mxu0 0
    %1035 = vmatpush.bf16.msra.mxu0 0
    %1036 = vmatpush.bf16.msra.mxu0 0
    %1037 = vmatpush.bf16.msra.mxu0 %v1022
    %1038 = vmatpush.bf16.msra.mxu0 %v1021
    %1039 = vmatpush.bf16.msra.mxu0 %v1020
    %1040 = vmatpush.bf16.msra.mxu0 %v1019
    %1041 = vmatmul.bf16.gmra.mxu0 %v1028
    %v1042 = vpop.f32.mrf.mxu0
    %v1043 = vadd.f32 0.0, %v1042
    %v1044 = vpop.f32.mrf.mxu0
    %v1045 = vadd.f32 0.0, %v1044
    %1046 = vmatmul.bf16.gmra.mxu0 %v1031
    %v1047 = vpop.f32.mrf.mxu0
    %v1048 = vadd.f32 0.0, %v1047
    %v1049 = vpop.f32.mrf.mxu0
    %v1050 = vadd.f32 0.0, %v1049
    %1051 = vdwg.mxu0
    %v1052 = vadd.f32 %v985, %v1043
    %v1053 = vadd.f32 %v987, %v1045
    %v1054 = vadd.f32 %v990, %v1048
    %v1055 = vadd.f32 %v992, %v1050
    %v1056 = vadd.f32 %v874, %v1052
    %v1057 = vadd.f32 %v875, %v1053
    %v1058 = vadd.f32 %v876, %v1054
    %v1059 = vadd.f32 %v877, %v1055
    %s1060 = scalar_lea.vmem [#allocation2], 192
    %v1061 = vld [vmem:[%s1060] sm:$0xf]
    %v1062 = vld [vmem:[%s1060 + $0x4] sm:$0xf]
    %v1063 = vld [vmem:[%s1060 + $0x8] sm:$0xf]
    %v1064 = vld [vmem:[%s1060 + $0xc] sm:$0xf]
    %v1065 = vld [vmem:[%s1060 + $0x10] sm:$0xf]
    %v1066 = vld [vmem:[%s1060 + $0x14] sm:$0xf]
    %v1067 = vld [vmem:[%s1060 + $0x18] sm:$0xf]
    %v1068 = vld [vmem:[%s1060 + $0x1c] sm:$0xf]
    %v1069 = vld [vmem:[%s1060 + $0x20] sm:$0xf]
    %v1070 = vld [vmem:[%s1060 + $0x24] sm:$0xf]
    %v1071 = vld [vmem:[%s1060 + $0x28] sm:$0xf]
    %v1072 = vld [vmem:[%s1060 + $0x2c] sm:$0xf]
    %v1073 = vld [vmem:[%s1060 + $0x30] sm:$0xf]
    %v1074 = vld [vmem:[%s1060 + $0x34] sm:$0xf]
    %v1075 = vld [vmem:[%s1060 + $0x38] sm:$0xf]
    %v1076 = vld [vmem:[%s1060 + $0x3c] sm:$0xf]
    %s1077 = scalar_lea.vmem [#allocation2], 256
    %v1078 = vld [vmem:[%s1077] sm:$0xf]
    %v1079 = vld [vmem:[%s1077 + $0x4] sm:$0xf]
    %v1080 = vld [vmem:[%s1077 + $0x8] sm:$0xf]
    %v1081 = vld [vmem:[%s1077 + $0xc] sm:$0xf]
    %v1082 = vld [vmem:[%s1077 + $0x10] sm:$0xf]
    %v1083 = vld [vmem:[%s1077 + $0x14] sm:$0xf]
    %v1084 = vld [vmem:[%s1077 + $0x18] sm:$0xf]
    %v1085 = vld [vmem:[%s1077 + $0x1c] sm:$0xf]
    %v1086 = vld [vmem:[%s1077 + $0x20] sm:$0xf]
    %v1087 = vld [vmem:[%s1077 + $0x24] sm:$0xf]
    %v1088 = vld [vmem:[%s1077 + $0x28] sm:$0xf]
    %v1089 = vld [vmem:[%s1077 + $0x2c] sm:$0xf]
    %v1090 = vld [vmem:[%s1077 + $0x30] sm:$0xf]
    %v1091 = vld [vmem:[%s1077 + $0x34] sm:$0xf]
    %v1092 = vld [vmem:[%s1077 + $0x38] sm:$0xf]
    %v1093 = vld [vmem:[%s1077 + $0x3c] sm:$0xf]
    %v1110 = vunpack.c.l.b16 %v1078
    %v1111 = vunpack.c.l.b16 %v1079
    %v1112 = vunpack.c.l.b16 %v1080
    %v1113 = vunpack.c.l.b16 %v1081
    %v1114 = vunpack.c.l.b16 %v1082
    %v1115 = vunpack.c.l.b16 %v1083
    %v1116 = vunpack.c.l.b16 %v1084
    %v1117 = vunpack.c.l.b16 %v1085
    %v1118 = vunpack.c.l.b16 %v1086
    %v1119 = vunpack.c.l.b16 %v1087
    %v1120 = vunpack.c.l.b16 %v1088
    %v1121 = vunpack.c.l.b16 %v1089
    %v1122 = vunpack.c.l.b16 %v1090
    %v1123 = vunpack.c.l.b16 %v1091
    %v1124 = vunpack.c.l.b16 %v1092
    %v1125 = vunpack.c.l.b16 %v1093
    %v1126 = vpack.c.b16 %v1111, %v1110
    %v1127 = vpack.c.b16 %v1113, %v1112
    %v1128 = vpack.c.b16 %v1115, %v1114
    %v1129 = vpack.c.b16 %v1117, %v1116
    %v1130 = vpack.c.b16 %v1119, %v1118
    %v1131 = vpack.c.b16 %v1121, %v1120
    %v1132 = vpack.c.b16 %v1123, %v1122
    %v1133 = vpack.c.b16 %v1125, %v1124
    %1142 = vmatpush.bf16.msra.mxu0 %v1133
    %1143 = vmatpush.bf16.msra.mxu0 %v1132
    %1144 = vmatpush.bf16.msra.mxu0 %v1131
    %1145 = vmatpush.bf16.msra.mxu0 %v1130
    %1146 = vmatpush.bf16.msra.mxu0 %v1129
    %1147 = vmatpush.bf16.msra.mxu0 %v1128
    %1148 = vmatpush.bf16.msra.mxu0 %v1127
    %1149 = vmatpush.bf16.msra.mxu0 %v1126
    %1150 = vmatmul.bf16.gmra.mxu0 %v73
    %v1151 = vpop.f32.mrf.mxu0
    %v1152 = vadd.f32 0.0, %v1151
    %v1153 = vpop.f32.mrf.mxu0
    %v1154 = vadd.f32 0.0, %v1153
    %1155 = vmatmul.bf16.gmra.mxu0 %v74
    %v1156 = vpop.f32.mrf.mxu0
    %v1157 = vadd.f32 0.0, %v1156
    %v1158 = vpop.f32.mrf.mxu0
    %v1159 = vadd.f32 0.0, %v1158
    %1160 = vdwg.mxu0
    %v1177 = vunpack.c.l.b16 %v1061
    %v1178 = vunpack.c.l.b16 %v1062
    %v1179 = vunpack.c.l.b16 %v1063
    %v1180 = vunpack.c.l.b16 %v1064
    %v1181 = vunpack.c.l.b16 %v1065
    %v1182 = vunpack.c.l.b16 %v1066
    %v1183 = vunpack.c.l.b16 %v1067
    %v1184 = vunpack.c.l.b16 %v1068
    %v1185 = vunpack.c.l.b16 %v1069
    %v1186 = vunpack.c.l.b16 %v1070
    %v1187 = vunpack.c.l.b16 %v1071
    %v1188 = vunpack.c.l.b16 %v1072
    %v1189 = vunpack.c.l.b16 %v1073
    %v1190 = vunpack.c.l.b16 %v1074
    %v1191 = vunpack.c.l.b16 %v1075
    %v1192 = vunpack.c.l.b16 %v1076
    %v1193 = vpack.c.b16 %v1178, %v1177
    %v1194 = vpack.c.b16 %v1180, %v1179
    %v1195 = vpack.c.b16 %v1182, %v1181
    %v1196 = vpack.c.b16 %v1184, %v1183
    %v1197 = vpack.c.b16 %v1186, %v1185
    %v1198 = vpack.c.b16 %v1188, %v1187
    %v1199 = vpack.c.b16 %v1190, %v1189
    %v1200 = vpack.c.b16 %v1192, %v1191
    %1209 = vmatpush.bf16.msra.mxu0 %v1200
    %1210 = vmatpush.bf16.msra.mxu0 %v1199
    %1211 = vmatpush.bf16.msra.mxu0 %v1198
    %1212 = vmatpush.bf16.msra.mxu0 %v1197
    %1213 = vmatpush.bf16.msra.mxu0 %v1196
    %1214 = vmatpush.bf16.msra.mxu0 %v1195
    %1215 = vmatpush.bf16.msra.mxu0 %v1194
    %1216 = vmatpush.bf16.msra.mxu0 %v1193
    %1217 = vmatmul.bf16.gmra.mxu0 %v111
    %v1218 = vpop.f32.mrf.mxu0
    %v1219 = vadd.f32 %v1152, %v1218
    %v1220 = vpop.f32.mrf.mxu0
    %v1221 = vadd.f32 %v1154, %v1220
    %1222 = vmatmul.bf16.gmra.mxu0 %v112
    %v1223 = vpop.f32.mrf.mxu0
    %v1224 = vadd.f32 %v1157, %v1223
    %v1225 = vpop.f32.mrf.mxu0
    %v1226 = vadd.f32 %v1159, %v1225
    %1227 = vdwg.mxu0
    %s1228 = scalar_lea.vmem [#allocation2], 320
    %v1229 = vld [vmem:[%s1228] sm:$0xf]
    %v1230 = vld [vmem:[%s1228 + $0x4] sm:$0xf]
    %v1231 = vld [vmem:[%s1228 + $0x8] sm:$0xf]
    %v1232 = vld [vmem:[%s1228 + $0xc] sm:$0xf]
    %v1233 = vld [vmem:[%s1228 + $0x10] sm:$0xf]
    %v1234 = vld [vmem:[%s1228 + $0x14] sm:$0xf]
    %v1235 = vld [vmem:[%s1228 + $0x18] sm:$0xf]
    %v1236 = vld [vmem:[%s1228 + $0x1c] sm:$0xf]
    %v1237 = vld [vmem:[%s1228 + $0x20] sm:$0xf]
    %v1238 = vld [vmem:[%s1228 + $0x24] sm:$0xf]
    %v1239 = vld [vmem:[%s1228 + $0x28] sm:$0xf]
    %v1240 = vld [vmem:[%s1228 + $0x2c] sm:$0xf]
    %v1241 = vld [vmem:[%s1228 + $0x30] sm:$0xf]
    %v1242 = vld [vmem:[%s1228 + $0x34] sm:$0xf]
    %v1243 = vld [vmem:[%s1228 + $0x38] sm:$0xf]
    %v1244 = vld [vmem:[%s1228 + $0x3c] sm:$0xf]
    %v1261 = vunpack.c.l.b16 %v1229
    %v1262 = vunpack.c.l.b16 %v1230
    %v1263 = vunpack.c.l.b16 %v1231
    %v1264 = vunpack.c.l.b16 %v1232
    %v1265 = vunpack.c.l.b16 %v1233
    %v1266 = vunpack.c.l.b16 %v1234
    %v1267 = vunpack.c.l.b16 %v1235
    %v1268 = vunpack.c.l.b16 %v1236
    %v1269 = vunpack.c.l.b16 %v1237
    %v1270 = vunpack.c.l.b16 %v1238
    %v1271 = vunpack.c.l.b16 %v1239
    %v1272 = vunpack.c.l.b16 %v1240
    %v1273 = vunpack.c.l.b16 %v1241
    %v1274 = vunpack.c.l.b16 %v1242
    %v1275 = vunpack.c.l.b16 %v1243
    %v1276 = vunpack.c.l.b16 %v1244
    %v1277 = vpack.c.b16 %v1262, %v1261
    %v1278 = vpack.c.b16 %v1264, %v1263
    %v1279 = vpack.c.b16 %v1266, %v1265
    %v1280 = vpack.c.b16 %v1268, %v1267
    %v1281 = vpack.c.b16 %v1270, %v1269
    %v1282 = vpack.c.b16 %v1272, %v1271
    %v1283 = vpack.c.b16 %v1274, %v1273
    %v1284 = vpack.c.b16 %v1276, %v1275
    %1293 = vmatpush.bf16.msra.mxu0 %v1284
    %1294 = vmatpush.bf16.msra.mxu0 %v1283
    %1295 = vmatpush.bf16.msra.mxu0 %v1282
    %1296 = vmatpush.bf16.msra.mxu0 %v1281
    %1297 = vmatpush.bf16.msra.mxu0 %v1280
    %1298 = vmatpush.bf16.msra.mxu0 %v1279
    %1299 = vmatpush.bf16.msra.mxu0 %v1278
    %1300 = vmatpush.bf16.msra.mxu0 %v1277
    %1301 = vmatmul.bf16.gmra.mxu0 %v148
    %v1302 = vpop.f32.mrf.mxu0
    %v1303 = vadd.f32 0.0, %v1302
    %v1304 = vpop.f32.mrf.mxu0
    %v1305 = vadd.f32 0.0, %v1304
    %1306 = vmatmul.bf16.gmra.mxu0 %v149
    %v1307 = vpop.f32.mrf.mxu0
    %v1308 = vadd.f32 0.0, %v1307
    %v1309 = vpop.f32.mrf.mxu0
    %v1310 = vadd.f32 0.0, %v1309
    %1311 = vdwg.mxu0
    %v1312 = vadd.f32 %v1219, %v1303
    %v1313 = vadd.f32 %v1221, %v1305
    %v1314 = vadd.f32 %v1224, %v1308
    %v1315 = vadd.f32 %v1226, %v1310
    %s1316 = scalar_lea.vmem %s9, 96
    %v1317 = vld [vmem:[%s1316] sm:$0xf]
    %v1318 = vld [vmem:[%s1316 + $0x4] sm:$0xf]
    %v1319 = vld [vmem:[%s1316 + $0x8] sm:$0xf]
    %v1320 = vld [vmem:[%s1316 + $0xc] sm:$0xf]
    %v1321 = vld [vmem:[%s1316 + $0x10] sm:$0xf]
    %v1322 = vld [vmem:[%s1316 + $0x14] sm:$0xf]
    %v1323 = vld [vmem:[%s1316 + $0x18] sm:$0xf]
    %v1324 = vld [vmem:[%s1316 + $0x1c] sm:$0xf]
    %s1325 = scalar_lea.vmem %s9, 128
    %v1326 = vld [vmem:[%s1325] sm:$0xf]
    %v1327 = vld [vmem:[%s1325 + $0x4] sm:$0xf]
    %v1328 = vld [vmem:[%s1325 + $0x8] sm:$0xf]
    %v1329 = vld [vmem:[%s1325 + $0xc] sm:$0xf]
    %v1330 = vld [vmem:[%s1325 + $0x10] sm:$0xf]
    %v1331 = vld [vmem:[%s1325 + $0x14] sm:$0xf]
    %v1332 = vld [vmem:[%s1325 + $0x18] sm:$0xf]
    %v1333 = vld [vmem:[%s1325 + $0x1c] sm:$0xf]
    %v1342 = vunpack.c.l.b16 %v1326
    %v1343 = vunpack.c.l.b16 %v1327
    %v1344 = vunpack.c.l.b16 %v1328
    %v1345 = vunpack.c.l.b16 %v1329
    %v1346 = vunpack.c.l.b16 %v1330
    %v1347 = vunpack.c.l.b16 %v1331
    %v1348 = vunpack.c.l.b16 %v1332
    %v1349 = vunpack.c.l.b16 %v1333
    %v1350 = vpack.c.b16 %v1343, %v1342
    %v1351 = vpack.c.b16 %v1345, %v1344
    %v1352 = vpack.c.b16 %v1347, %v1346
    %v1353 = vpack.c.b16 %v1349, %v1348
    %1358 = vmatpush.bf16.msra.mxu0 0
    %1359 = vmatpush.bf16.msra.mxu0 0
    %1360 = vmatpush.bf16.msra.mxu0 0
    %1361 = vmatpush.bf16.msra.mxu0 0
    %1362 = vmatpush.bf16.msra.mxu0 %v1353
    %1363 = vmatpush.bf16.msra.mxu0 %v1352
    %1364 = vmatpush.bf16.msra.mxu0 %v1351
    %1365 = vmatpush.bf16.msra.mxu0 %v1350
    %1366 = vmatmul.bf16.gmra.mxu0 %v921
    %v1367 = vpop.f32.mrf.mxu0
    %v1368 = vadd.f32 0.0, %v1367
    %v1369 = vpop.f32.mrf.mxu0
    %v1370 = vadd.f32 0.0, %v1369
    %1371 = vmatmul.bf16.gmra.mxu0 %v924
    %v1372 = vpop.f32.mrf.mxu0
    %v1373 = vadd.f32 0.0, %v1372
    %v1374 = vpop.f32.mrf.mxu0
    %v1375 = vadd.f32 0.0, %v1374
    %1376 = vdwg.mxu0
    %v1385 = vunpack.c.l.b16 %v1317
    %v1386 = vunpack.c.l.b16 %v1318
    %v1387 = vunpack.c.l.b16 %v1319
    %v1388 = vunpack.c.l.b16 %v1320
    %v1389 = vunpack.c.l.b16 %v1321
    %v1390 = vunpack.c.l.b16 %v1322
    %v1391 = vunpack.c.l.b16 %v1323
    %v1392 = vunpack.c.l.b16 %v1324
    %v1393 = vpack.c.b16 %v1386, %v1385
    %v1394 = vpack.c.b16 %v1388, %v1387
    %v1395 = vpack.c.b16 %v1390, %v1389
    %v1396 = vpack.c.b16 %v1392, %v1391
    %1401 = vmatpush.bf16.msra.mxu0 0
    %1402 = vmatpush.bf16.msra.mxu0 0
    %1403 = vmatpush.bf16.msra.mxu0 0
    %1404 = vmatpush.bf16.msra.mxu0 0
    %1405 = vmatpush.bf16.msra.mxu0 %v1396
    %1406 = vmatpush.bf16.msra.mxu0 %v1395
    %1407 = vmatpush.bf16.msra.mxu0 %v1394
    %1408 = vmatpush.bf16.msra.mxu0 %v1393
    %1409 = vmatmul.bf16.gmra.mxu0 %v970
    %v1410 = vpop.f32.mrf.mxu0
    %v1411 = vadd.f32 %v1368, %v1410
    %v1412 = vpop.f32.mrf.mxu0
    %v1413 = vadd.f32 %v1370, %v1412
    %1414 = vmatmul.bf16.gmra.mxu0 %v973
    %v1415 = vpop.f32.mrf.mxu0
    %v1416 = vadd.f32 %v1373, %v1415
    %v1417 = vpop.f32.mrf.mxu0
    %v1418 = vadd.f32 %v1375, %v1417
    %1419 = vdwg.mxu0
    %s1420 = scalar_lea.vmem %s9, 160
    %v1421 = vld [vmem:[%s1420] sm:$0xf]
    %v1422 = vld [vmem:[%s1420 + $0x4] sm:$0xf]
    %v1423 = vld [vmem:[%s1420 + $0x8] sm:$0xf]
    %v1424 = vld [vmem:[%s1420 + $0xc] sm:$0xf]
    %v1425 = vld [vmem:[%s1420 + $0x10] sm:$0xf]
    %v1426 = vld [vmem:[%s1420 + $0x14] sm:$0xf]
    %v1427 = vld [vmem:[%s1420 + $0x18] sm:$0xf]
    %v1428 = vld [vmem:[%s1420 + $0x1c] sm:$0xf]
    %v1437 = vunpack.c.l.b16 %v1421
    %v1438 = vunpack.c.l.b16 %v1422
    %v1439 = vunpack.c.l.b16 %v1423
    %v1440 = vunpack.c.l.b16 %v1424
    %v1441 = vunpack.c.l.b16 %v1425
    %v1442 = vunpack.c.l.b16 %v1426
    %v1443 = vunpack.c.l.b16 %v1427
    %v1444 = vunpack.c.l.b16 %v1428
    %v1445 = vpack.c.b16 %v1438, %v1437
    %v1446 = vpack.c.b16 %v1440, %v1439
    %v1447 = vpack.c.b16 %v1442, %v1441
    %v1448 = vpack.c.b16 %v1444, %v1443
    %1453 = vmatpush.bf16.msra.mxu0 0
    %1454 = vmatpush.bf16.msra.mxu0 0
    %1455 = vmatpush.bf16.msra.mxu0 0
    %1456 = vmatpush.bf16.msra.mxu0 0
    %1457 = vmatpush.bf16.msra.mxu0 %v1448
    %1458 = vmatpush.bf16.msra.mxu0 %v1447
    %1459 = vmatpush.bf16.msra.mxu0 %v1446
    %1460 = vmatpush.bf16.msra.mxu0 %v1445
    %1461 = vmatmul.bf16.gmra.mxu0 %v1028
    %v1462 = vpop.f32.mrf.mxu0
    %v1463 = vadd.f32 0.0, %v1462
    %v1464 = vpop.f32.mrf.mxu0
    %v1465 = vadd.f32 0.0, %v1464
    %1466 = vmatmul.bf16.gmra.mxu0 %v1031
    %v1467 = vpop.f32.mrf.mxu0
    %v1468 = vadd.f32 0.0, %v1467
    %v1469 = vpop.f32.mrf.mxu0
    %v1470 = vadd.f32 0.0, %v1469
    %1471 = vdwg.mxu0
    %v1472 = vadd.f32 %v1411, %v1463
    %v1473 = vadd.f32 %v1413, %v1465
    %v1474 = vadd.f32 %v1416, %v1468
    %v1475 = vadd.f32 %v1418, %v1470
    %v1476 = vadd.f32 %v1312, %v1472
    %v1477 = vadd.f32 %v1313, %v1473
    %v1478 = vadd.f32 %v1314, %v1474
    %v1479 = vadd.f32 %v1315, %v1475
    %v1480 = vld [vmem:[%s10] sm:$0x1]
    %s1481 = scalar_lea.vmem %s10, 1
    %v1482 = vld [vmem:[%s1481] sm:$0x1]
    %v1483 = vadd.f32 %v1056, %v1057
    %v1484 = vadd.f32 %v1483, %v1058
    %v1485 = vadd.f32 %v1484, %v1059
    %v1486 = vrot.slane %v1485, 4
    %v1487 = vadd.f32 %v1485, %v1486
    %v1488 = vrot.slane %v1487, 2
    %v1489 = vadd.f32 %v1487, %v1488
    %v1490 = vrot.slane %v1489, 1
    %v1491 = vadd.f32 %v1489, %v1490
    %v1492 = vrcp.pop 32.0
    %v1493 = vmul.f32 32.0, %v1492
    %v1494 = vsub.f32 1.0, %v1493
    %v1495 = vmul.f32 %v1492, %v1494
    %v1496 = vadd.f32 %v1492, %v1495
    %vm1497 = vweird.f32 %v1492
    %v1498 = vsel %vm1497, %v1492, %v1496
    %v1499 = vmul.f32 %v1491, %v1498
    %v1500 = vld [vmem:[%s4] sm:$0xff]
    %v1501 = vld [vmem:[%s4 + $0x8] sm:$0xff]
    %v1502 = vld [vmem:[%s4 + $0x10] sm:$0xff]
    %v1503 = vld [vmem:[%s4 + $0x18] sm:$0xff]
    %v1504 = vld [vmem:[%s4 + $0x20] sm:$0xff]
    %v1505 = vld [vmem:[%s4 + $0x28] sm:$0xff]
    %v1506 = vld [vmem:[%s4 + $0x30] sm:$0xff]
    %v1507 = vld [vmem:[%s4 + $0x38] sm:$0xff]
    %v1508 = vld [vmem:[%s4 + $0x40] sm:$0xff]
    %v1509 = vld [vmem:[%s4 + $0x48] sm:$0xff]
    %v1510 = vld [vmem:[%s4 + $0x50] sm:$0xff]
    %v1511 = vld [vmem:[%s4 + $0x58] sm:$0xff]
    %v1512 = vld [vmem:[%s4 + $0x60] sm:$0xff]
    %v1513 = vld [vmem:[%s4 + $0x68] sm:$0xff]
    %v1514 = vld [vmem:[%s4 + $0x70] sm:$0xff]
    %v1515 = vld [vmem:[%s4 + $0x78] sm:$0xff]
    %1516 = vmatpush.msra.mxu0 %v1515
    %1517 = vmatpush.msra.mxu0 %v1514
    %1518 = vmatpush.msra.mxu0 %v1513
    %1519 = vmatpush.msra.mxu0 %v1512
    %1520 = vmatpush.msra.mxu0 %v1511
    %1521 = vmatpush.msra.mxu0 %v1510
    %1522 = vmatpush.msra.mxu0 %v1509
    %1523 = vmatpush.msra.mxu0 %v1508
    %1524 = vmatpush.msra.mxu0 %v1507
    %1525 = vmatpush.msra.mxu0 %v1506
    %1526 = vmatpush.msra.mxu0 %v1505
    %1527 = vmatpush.msra.mxu0 %v1504
    %1528 = vmatpush.msra.mxu0 %v1503
    %1529 = vmatpush.msra.mxu0 %v1502
    %1530 = vmatpush.msra.mxu0 %v1501
    %1531 = vmatpush.msra.mxu0 %v1500
    %1532 = vmatmul.f32.gmra.mxu0 %v1499
    %v1533 = vpop.f32.mrf.mxu0
    %v1534 = vadd.f32 0.0, %v1533
    %1535 = vdwg.mxu0
    %v1536 = vperm.slane %v1534, 0
    %v1537 = vsub.f32 %v1056, %v1536
    %v1538 = vsub.f32 %v1057, %v1536
    %v1539 = vsub.f32 %v1058, %v1536
    %v1540 = vsub.f32 %v1059, %v1536
    %v1541 = vmul.f32 %v1537, %v1537
    %v1542 = vmul.f32 %v1538, %v1538
    %v1543 = vmul.f32 %v1539, %v1539
    %v1544 = vmul.f32 %v1540, %v1540
    %v1545 = vadd.f32 %v1541, %v1542
    %v1546 = vadd.f32 %v1545, %v1543
    %v1547 = vadd.f32 %v1546, %v1544
    %v1548 = vrot.slane %v1547, 4
    %v1549 = vadd.f32 %v1547, %v1548
    %v1550 = vrot.slane %v1549, 2
    %v1551 = vadd.f32 %v1549, %v1550
    %v1552 = vrot.slane %v1551, 1
    %v1553 = vadd.f32 %v1551, %v1552
    %v1554 = vmul.f32 %v1553, %v1498
    %1555 = vmatpush.msra.mxu0 %v1515
    %1556 = vmatpush.msra.mxu0 %v1514
    %1557 = vmatpush.msra.mxu0 %v1513
    %1558 = vmatpush.msra.mxu0 %v1512
    %1559 = vmatpush.msra.mxu0 %v1511
    %1560 = vmatpush.msra.mxu0 %v1510
    %1561 = vmatpush.msra.mxu0 %v1509
    %1562 = vmatpush.msra.mxu0 %v1508
    %1563 = vmatpush.msra.mxu0 %v1507
    %1564 = vmatpush.msra.mxu0 %v1506
    %1565 = vmatpush.msra.mxu0 %v1505
    %1566 = vmatpush.msra.mxu0 %v1504
    %1567 = vmatpush.msra.mxu0 %v1503
    %1568 = vmatpush.msra.mxu0 %v1502
    %1569 = vmatpush.msra.mxu0 %v1501
    %1570 = vmatpush.msra.mxu0 %v1500
    %1571 = vmatmul.f32.gmra.mxu0 %v1554
    %v1572 = vpop.f32.mrf.mxu0
    %v1573 = vadd.f32 1e-05, %v1572
    %1574 = vdwg.mxu0
    %v1575 = vrsqrt.pop %v1573
    %v1576 = vmul.f32 %v1575, %v1573
    %v1577 = vmul.f32 %v1576, %v1575
    %v1578 = vmul.f32 0.5, %v1577
    %v1579 = vsub.f32 1.5, %v1578
    %v1580 = vmul.f32 %v1575, %v1579
    %vm1581 = vweird.f32 %v1573
    %vm1582 = vweird.f32 %v1575
    %vm1583 = vmor %vm1581, %vm1582
    %v1584 = vsel %vm1583, %v1575, %v1580
    %v1585 = vperm.slane %v1584, 0
    %v1586 = vmul.f32 %v1537, %v1585
    %v1587 = vmul.f32 %v1538, %v1585
    %v1588 = vmul.f32 %v1539, %v1585
    %v1589 = vmul.f32 %v1540, %v1585
    %v1591 = vperm.slane %v1480, 0
    %v1593 = vmul.f32 %v1586, %v1591
    %v1594 = vmul.f32 %v1587, %v1591
    %v1595 = vmul.f32 %v1588, %v1591
    %v1596 = vmul.f32 %v1589, %v1591
    %v1598 = vperm.slane %v1482, 0
    %v1600 = vadd.f32 %v1593, %v1598
    %v1601 = vadd.f32 %v1594, %v1598
    %v1602 = vadd.f32 %v1595, %v1598
    %v1603 = vadd.f32 %v1596, %v1598
    %s1604 = scalar_lea.vmem %s10, 2
    %v1605 = vld [vmem:[%s1604] sm:$0x1]
    %s1606 = scalar_lea.vmem %s10, 3
    %v1607 = vld [vmem:[%s1606] sm:$0x1]
    %v1608 = vadd.f32 %v1476, %v1477
    %v1609 = vadd.f32 %v1608, %v1478
    %v1610 = vadd.f32 %v1609, %v1479
    %v1611 = vrot.slane %v1610, 4
    %v1612 = vadd.f32 %v1610, %v1611
    %v1613 = vrot.slane %v1612, 2
    %v1614 = vadd.f32 %v1612, %v1613
    %v1615 = vrot.slane %v1614, 1
    %v1616 = vadd.f32 %v1614, %v1615
    %v1617 = vmul.f32 %v1616, %v1498
    %1618 = vmatpush.msra.mxu0 %v1515
    %1619 = vmatpush.msra.mxu0 %v1514
    %1620 = vmatpush.msra.mxu0 %v1513
    %1621 = vmatpush.msra.mxu0 %v1512
    %1622 = vmatpush.msra.mxu0 %v1511
    %1623 = vmatpush.msra.mxu0 %v1510
    %1624 = vmatpush.msra.mxu0 %v1509
    %1625 = vmatpush.msra.mxu0 %v1508
    %1626 = vmatpush.msra.mxu0 %v1507
    %1627 = vmatpush.msra.mxu0 %v1506
    %1628 = vmatpush.msra.mxu0 %v1505
    %1629 = vmatpush.msra.mxu0 %v1504
    %1630 = vmatpush.msra.mxu0 %v1503
    %1631 = vmatpush.msra.mxu0 %v1502
    %1632 = vmatpush.msra.mxu0 %v1501
    %1633 = vmatpush.msra.mxu0 %v1500
    %1634 = vmatmul.f32.gmra.mxu0 %v1617
    %v1635 = vpop.f32.mrf.mxu0
    %v1636 = vadd.f32 0.0, %v1635
    %1637 = vdwg.mxu0
    %v1638 = vperm.slane %v1636, 0
    %v1639 = vsub.f32 %v1476, %v1638
    %v1640 = vsub.f32 %v1477, %v1638
    %v1641 = vsub.f32 %v1478, %v1638
    %v1642 = vsub.f32 %v1479, %v1638
    %v1643 = vmul.f32 %v1639, %v1639
    %v1644 = vmul.f32 %v1640, %v1640
    %v1645 = vmul.f32 %v1641, %v1641
    %v1646 = vmul.f32 %v1642, %v1642
    %v1647 = vadd.f32 %v1643, %v1644
    %v1648 = vadd.f32 %v1647, %v1645
    %v1649 = vadd.f32 %v1648, %v1646
    %v1650 = vrot.slane %v1649, 4
    %v1651 = vadd.f32 %v1649, %v1650
    %v1652 = vrot.slane %v1651, 2
    %v1653 = vadd.f32 %v1651, %v1652
    %v1654 = vrot.slane %v1653, 1
    %v1655 = vadd.f32 %v1653, %v1654
    %v1656 = vmul.f32 %v1655, %v1498
    %1657 = vmatpush.msra.mxu0 %v1515
    %1658 = vmatpush.msra.mxu0 %v1514
    %1659 = vmatpush.msra.mxu0 %v1513
    %1660 = vmatpush.msra.mxu0 %v1512
    %1661 = vmatpush.msra.mxu0 %v1511
    %1662 = vmatpush.msra.mxu0 %v1510
    %1663 = vmatpush.msra.mxu0 %v1509
    %1664 = vmatpush.msra.mxu0 %v1508
    %1665 = vmatpush.msra.mxu0 %v1507
    %1666 = vmatpush.msra.mxu0 %v1506
    %1667 = vmatpush.msra.mxu0 %v1505
    %1668 = vmatpush.msra.mxu0 %v1504
    %1669 = vmatpush.msra.mxu0 %v1503
    %1670 = vmatpush.msra.mxu0 %v1502
    %1671 = vmatpush.msra.mxu0 %v1501
    %1672 = vmatpush.msra.mxu0 %v1500
    %1673 = vmatmul.f32.gmra.mxu0 %v1656
    %v1674 = vpop.f32.mrf.mxu0
    %v1675 = vadd.f32 1e-05, %v1674
    %1676 = vdwg.mxu0
    %v1677 = vrsqrt.pop %v1675
    %v1678 = vmul.f32 %v1677, %v1675
    %v1679 = vmul.f32 %v1678, %v1677
    %v1680 = vmul.f32 0.5, %v1679
    %v1681 = vsub.f32 1.5, %v1680
    %v1682 = vmul.f32 %v1677, %v1681
    %vm1683 = vweird.f32 %v1675
    %vm1684 = vweird.f32 %v1677
    %vm1685 = vmor %vm1683, %vm1684
    %v1686 = vsel %vm1685, %v1677, %v1682
    %v1687 = vperm.slane %v1686, 0
    %v1688 = vmul.f32 %v1639, %v1687
    %v1689 = vmul.f32 %v1640, %v1687
    %v1690 = vmul.f32 %v1641, %v1687
    %v1691 = vmul.f32 %v1642, %v1687
    %v1693 = vperm.slane %v1605, 0
    %v1695 = vmul.f32 %v1688, %v1693
    %v1696 = vmul.f32 %v1689, %v1693
    %v1697 = vmul.f32 %v1690, %v1693
    %v1698 = vmul.f32 %v1691, %v1693
    %v1700 = vperm.slane %v1607, 0
    %v1702 = vadd.f32 %v1695, %v1700
    %v1703 = vadd.f32 %v1696, %v1700
    %v1704 = vadd.f32 %v1697, %v1700
    %v1705 = vadd.f32 %v1698, %v1700
    %v1706 = vxor.u32 %v1702, 2147483648
    %v1707 = vxor.u32 %v1703, 2147483648
    %v1708 = vxor.u32 %v1704, 2147483648
    %v1709 = vxor.u32 %v1705, 2147483648
    %v1710 = vmul.f32 %v1706, 1.442695
    %v1711 = vpow.pop %v1710
    %v1712 = vmul.f32 %v1707, 1.442695
    %v1713 = vpow.pop %v1712
    %v1714 = vmul.f32 %v1708, 1.442695
    %v1715 = vpow.pop %v1714
    %v1716 = vmul.f32 %v1709, 1.442695
    %v1717 = vpow.pop %v1716
    %v1718 = vadd.f32 %v1711, 1.0
    %v1719 = vadd.f32 %v1713, 1.0
    %v1720 = vadd.f32 %v1715, 1.0
    %v1721 = vadd.f32 %v1717, 1.0
    %v1722 = vrcp.pop %v1718
    %v1723 = vmul.f32 %v1718, %v1722
    %v1724 = vsub.f32 1.0, %v1723
    %v1725 = vmul.f32 %v1722, %v1724
    %v1726 = vadd.f32 %v1722, %v1725
    %vm1727 = vweird.f32 %v1718
    %vm1728 = vweird.f32 %v1722
    %vm1729 = vmor %vm1727, %vm1728
    %v1730 = vsel %vm1729, %v1722, %v1726
    %v1731 = vand.u32 2147483647, %v1718
    %vm1732 = vcmp.eq.f32.partialorder %v1731, 8.507059e+37
    %v1733 = vand.u32 %v1718, 2147483648
    %v1734 = vor.u32 1.1754944e-38, %v1733
    %v1735 = vsel %vm1732, %v1734, %v1730
    %v1736 = vmul.f32 1.0, %v1735
    %v1737 = vrcp.pop %v1719
    %v1738 = vmul.f32 %v1719, %v1737
    %v1739 = vsub.f32 1.0, %v1738
    %v1740 = vmul.f32 %v1737, %v1739
    %v1741 = vadd.f32 %v1737, %v1740
    %vm1742 = vweird.f32 %v1719
    %vm1743 = vweird.f32 %v1737
    %vm1744 = vmor %vm1742, %vm1743
    %v1745 = vsel %vm1744, %v1737, %v1741
    %v1746 = vand.u32 2147483647, %v1719
    %vm1747 = vcmp.eq.f32.partialorder %v1746, 8.507059e+37
    %v1748 = vand.u32 %v1719, 2147483648
    %v1749 = vor.u32 1.1754944e-38, %v1748
    %v1750 = vsel %vm1747, %v1749, %v1745
    %v1751 = vmul.f32 1.0, %v1750
    %v1752 = vrcp.pop %v1720
    %v1753 = vmul.f32 %v1720, %v1752
    %v1754 = vsub.f32 1.0, %v1753
    %v1755 = vmul.f32 %v1752, %v1754
    %v1756 = vadd.f32 %v1752, %v1755
    %vm1757 = vweird.f32 %v1720
    %vm1758 = vweird.f32 %v1752
    %vm1759 = vmor %vm1757, %vm1758
    %v1760 = vsel %vm1759, %v1752, %v1756
    %v1761 = vand.u32 2147483647, %v1720
    %vm1762 = vcmp.eq.f32.partialorder %v1761, 8.507059e+37
    %v1763 = vand.u32 %v1720, 2147483648
    %v1764 = vor.u32 1.1754944e-38, %v1763
    %v1765 = vsel %vm1762, %v1764, %v1760
    %v1766 = vmul.f32 1.0, %v1765
    %v1767 = vrcp.pop %v1721
    %v1768 = vmul.f32 %v1721, %v1767
    %v1769 = vsub.f32 1.0, %v1768
    %v1770 = vmul.f32 %v1767, %v1769
    %v1771 = vadd.f32 %v1767, %v1770
    %vm1772 = vweird.f32 %v1721
    %vm1773 = vweird.f32 %v1767
    %vm1774 = vmor %vm1772, %vm1773
    %v1775 = vsel %vm1774, %v1767, %v1771
    %v1776 = vand.u32 2147483647, %v1721
    %vm1777 = vcmp.eq.f32.partialorder %v1776, 8.507059e+37
    %v1778 = vand.u32 %v1721, 2147483648
    %v1779 = vor.u32 1.1754944e-38, %v1778
    %v1780 = vsel %vm1777, %v1779, %v1775
    %v1781 = vmul.f32 1.0, %v1780
    %v1782 = vmul.f32 %v1600, %v1736
    %v1783 = vmul.f32 %v1601, %v1751
    %v1784 = vmul.f32 %v1602, %v1766
    %v1785 = vmul.f32 %v1603, %v1781
    %v1786 = vpack.c.bf16 %v1783, %v1782
    %v1787 = vpack.c.bf16 %v1785, %v1784
    %1788 = vmatpush.bf16.msra.mxu0 0
    %1789 = vmatpush.bf16.msra.mxu0 0
    %1790 = vmatpush.bf16.msra.mxu0 0
    %1791 = vmatpush.bf16.msra.mxu0 0
    %1792 = vmatpush.bf16.msra.mxu0 0
    %1793 = vmatpush.bf16.msra.mxu0 0
    %1794 = vmatpush.bf16.msra.mxu0 %v1787
    %1795 = vmatpush.bf16.msra.mxu0 %v1786
    %1796 = vmatmul.bf16.gmra.mxu0 %v87
    %v1797 = vpop.f32.mrf.mxu0
    %v1798 = vadd.f32 0.0, %v1797
    %v1799 = vpop.f32.mrf.mxu0
    %v1800 = vadd.f32 0.0, %v1799
    %1801 = vmatmul.bf16.gmra.mxu0 %v90
    %v1802 = vpop.f32.mrf.mxu0
    %v1803 = vadd.f32 0.0, %v1802
    %v1804 = vpop.f32.mrf.mxu0
    %v1805 = vadd.f32 0.0, %v1804
    %1806 = vdwg.mxu0
    %v1807 = vpack.c.bf16 %v1800, %v1798
    %v1808 = vpack.c.bf16 %v1805, %v1803
    %1809 = vmatpush.bf16.msra.mxu0 0
    %1810 = vmatpush.bf16.msra.mxu0 0
    %1811 = vmatpush.bf16.msra.mxu0 0
    %1812 = vmatpush.bf16.msra.mxu0 0
    %1813 = vmatpush.bf16.msra.mxu0 0
    %1814 = vmatpush.bf16.msra.mxu0 0
    %1815 = vmatpush.bf16.msra.mxu0 %v1787
    %1816 = vmatpush.bf16.msra.mxu0 %v1786
    %1817 = vmatmul.bf16.gmra.mxu0 %v124
    %v1818 = vpop.f32.mrf.mxu0
    %v1819 = vadd.f32 0.0, %v1818
    %v1820 = vpop.f32.mrf.mxu0
    %v1821 = vadd.f32 0.0, %v1820
    %1822 = vmatmul.bf16.gmra.mxu0 %v127
    %v1823 = vpop.f32.mrf.mxu0
    %v1824 = vadd.f32 0.0, %v1823
    %v1825 = vpop.f32.mrf.mxu0
    %v1826 = vadd.f32 0.0, %v1825
    %1827 = vdwg.mxu0
    %v1828 = vpack.c.bf16 %v1821, %v1819
    %v1829 = vpack.c.bf16 %v1826, %v1824
    %s1830 = scalar_lea.vmem [#allocation2], 384
    %v1831 = vld [vmem:[%s1830] sm:$0xf]
    %v1832 = vld [vmem:[%s1830 + $0x4] sm:$0xf]
    %v1833 = vld [vmem:[%s1830 + $0x8] sm:$0xf]
    %v1834 = vld [vmem:[%s1830 + $0xc] sm:$0xf]
    %v1835 = vld [vmem:[%s1830 + $0x10] sm:$0xf]
    %v1836 = vld [vmem:[%s1830 + $0x14] sm:$0xf]
    %v1837 = vld [vmem:[%s1830 + $0x18] sm:$0xf]
    %v1838 = vld [vmem:[%s1830 + $0x1c] sm:$0xf]
    %v1839 = vld [vmem:[%s1830 + $0x20] sm:$0xf]
    %v1840 = vld [vmem:[%s1830 + $0x24] sm:$0xf]
    %v1841 = vld [vmem:[%s1830 + $0x28] sm:$0xf]
    %v1842 = vld [vmem:[%s1830 + $0x2c] sm:$0xf]
    %v1843 = vld [vmem:[%s1830 + $0x30] sm:$0xf]
    %v1844 = vld [vmem:[%s1830 + $0x34] sm:$0xf]
    %v1845 = vld [vmem:[%s1830 + $0x38] sm:$0xf]
    %v1846 = vld [vmem:[%s1830 + $0x3c] sm:$0xf]
    %s1847 = scalar_lea.vmem [#allocation2], 448
    %v1848 = vld [vmem:[%s1847] sm:$0xf]
    %v1849 = vld [vmem:[%s1847 + $0x4] sm:$0xf]
    %v1850 = vld [vmem:[%s1847 + $0x8] sm:$0xf]
    %v1851 = vld [vmem:[%s1847 + $0xc] sm:$0xf]
    %v1852 = vld [vmem:[%s1847 + $0x10] sm:$0xf]
    %v1853 = vld [vmem:[%s1847 + $0x14] sm:$0xf]
    %v1854 = vld [vmem:[%s1847 + $0x18] sm:$0xf]
    %v1855 = vld [vmem:[%s1847 + $0x1c] sm:$0xf]
    %v1856 = vld [vmem:[%s1847 + $0x20] sm:$0xf]
    %v1857 = vld [vmem:[%s1847 + $0x24] sm:$0xf]
    %v1858 = vld [vmem:[%s1847 + $0x28] sm:$0xf]
    %v1859 = vld [vmem:[%s1847 + $0x2c] sm:$0xf]
    %v1860 = vld [vmem:[%s1847 + $0x30] sm:$0xf]
    %v1861 = vld [vmem:[%s1847 + $0x34] sm:$0xf]
    %v1862 = vld [vmem:[%s1847 + $0x38] sm:$0xf]
    %v1863 = vld [vmem:[%s1847 + $0x3c] sm:$0xf]
    %v1880 = vunpack.c.l.b16 %v1848
    %v1881 = vunpack.c.l.b16 %v1849
    %v1882 = vunpack.c.l.b16 %v1850
    %v1883 = vunpack.c.l.b16 %v1851
    %v1884 = vunpack.c.l.b16 %v1852
    %v1885 = vunpack.c.l.b16 %v1853
    %v1886 = vunpack.c.l.b16 %v1854
    %v1887 = vunpack.c.l.b16 %v1855
    %v1888 = vunpack.c.l.b16 %v1856
    %v1889 = vunpack.c.l.b16 %v1857
    %v1890 = vunpack.c.l.b16 %v1858
    %v1891 = vunpack.c.l.b16 %v1859
    %v1892 = vunpack.c.l.b16 %v1860
    %v1893 = vunpack.c.l.b16 %v1861
    %v1894 = vunpack.c.l.b16 %v1862
    %v1895 = vunpack.c.l.b16 %v1863
    %v1896 = vpack.c.b16 %v1881, %v1880
    %v1897 = vpack.c.b16 %v1883, %v1882
    %v1898 = vpack.c.b16 %v1885, %v1884
    %v1899 = vpack.c.b16 %v1887, %v1886
    %v1900 = vpack.c.b16 %v1889, %v1888
    %v1901 = vpack.c.b16 %v1891, %v1890
    %v1902 = vpack.c.b16 %v1893, %v1892
    %v1903 = vpack.c.b16 %v1895, %v1894
    %1912 = vmatpush.bf16.msra.mxu0 %v1903
    %1913 = vmatpush.bf16.msra.mxu0 %v1902
    %1914 = vmatpush.bf16.msra.mxu0 %v1901
    %1915 = vmatpush.bf16.msra.mxu0 %v1900
    %1916 = vmatpush.bf16.msra.mxu0 %v1899
    %1917 = vmatpush.bf16.msra.mxu0 %v1898
    %1918 = vmatpush.bf16.msra.mxu0 %v1897
    %1919 = vmatpush.bf16.msra.mxu0 %v1896
    %1920 = vmatmul.bf16.gmra.mxu0 %v1786
    %v1921 = vpop.f32.mrf.mxu0
    %v1922 = vadd.f32 0.0, %v1921
    %v1923 = vpop.f32.mrf.mxu0
    %v1924 = vadd.f32 0.0, %v1923
    %1925 = vmatmul.bf16.gmra.mxu0 %v1787
    %v1926 = vpop.f32.mrf.mxu0
    %v1927 = vadd.f32 0.0, %v1926
    %v1928 = vpop.f32.mrf.mxu0
    %v1929 = vadd.f32 0.0, %v1928
    %1930 = vdwg.mxu0
    %v1947 = vunpack.c.l.b16 %v1831
    %v1948 = vunpack.c.l.b16 %v1832
    %v1949 = vunpack.c.l.b16 %v1833
    %v1950 = vunpack.c.l.b16 %v1834
    %v1951 = vunpack.c.l.b16 %v1835
    %v1952 = vunpack.c.l.b16 %v1836
    %v1953 = vunpack.c.l.b16 %v1837
    %v1954 = vunpack.c.l.b16 %v1838
    %v1955 = vunpack.c.l.b16 %v1839
    %v1956 = vunpack.c.l.b16 %v1840
    %v1957 = vunpack.c.l.b16 %v1841
    %v1958 = vunpack.c.l.b16 %v1842
    %v1959 = vunpack.c.l.b16 %v1843
    %v1960 = vunpack.c.l.b16 %v1844
    %v1961 = vunpack.c.l.b16 %v1845
    %v1962 = vunpack.c.l.b16 %v1846
    %v1963 = vpack.c.b16 %v1948, %v1947
    %v1964 = vpack.c.b16 %v1950, %v1949
    %v1965 = vpack.c.b16 %v1952, %v1951
    %v1966 = vpack.c.b16 %v1954, %v1953
    %v1967 = vpack.c.b16 %v1956, %v1955
    %v1968 = vpack.c.b16 %v1958, %v1957
    %v1969 = vpack.c.b16 %v1960, %v1959
    %v1970 = vpack.c.b16 %v1962, %v1961
    %1979 = vmatpush.bf16.msra.mxu0 %v1970
    %1980 = vmatpush.bf16.msra.mxu0 %v1969
    %1981 = vmatpush.bf16.msra.mxu0 %v1968
    %1982 = vmatpush.bf16.msra.mxu0 %v1967
    %1983 = vmatpush.bf16.msra.mxu0 %v1966
    %1984 = vmatpush.bf16.msra.mxu0 %v1965
    %1985 = vmatpush.bf16.msra.mxu0 %v1964
    %1986 = vmatpush.bf16.msra.mxu0 %v1963
    %1987 = vmatmul.bf16.gmra.mxu0 %v1807
    %v1988 = vpop.f32.mrf.mxu0
    %v1989 = vadd.f32 %v1922, %v1988
    %v1990 = vpop.f32.mrf.mxu0
    %v1991 = vadd.f32 %v1924, %v1990
    %1992 = vmatmul.bf16.gmra.mxu0 %v1808
    %v1993 = vpop.f32.mrf.mxu0
    %v1994 = vadd.f32 %v1927, %v1993
    %v1995 = vpop.f32.mrf.mxu0
    %v1996 = vadd.f32 %v1929, %v1995
    %1997 = vdwg.mxu0
    %s1998 = scalar_lea.vmem [#allocation2], 512
    %v1999 = vld [vmem:[%s1998] sm:$0xf]
    %v2000 = vld [vmem:[%s1998 + $0x4] sm:$0xf]
    %v2001 = vld [vmem:[%s1998 + $0x8] sm:$0xf]
    %v2002 = vld [vmem:[%s1998 + $0xc] sm:$0xf]
    %v2003 = vld [vmem:[%s1998 + $0x10] sm:$0xf]
    %v2004 = vld [vmem:[%s1998 + $0x14] sm:$0xf]
    %v2005 = vld [vmem:[%s1998 + $0x18] sm:$0xf]
    %v2006 = vld [vmem:[%s1998 + $0x1c] sm:$0xf]
    %v2007 = vld [vmem:[%s1998 + $0x20] sm:$0xf]
    %v2008 = vld [vmem:[%s1998 + $0x24] sm:$0xf]
    %v2009 = vld [vmem:[%s1998 + $0x28] sm:$0xf]
    %v2010 = vld [vmem:[%s1998 + $0x2c] sm:$0xf]
    %v2011 = vld [vmem:[%s1998 + $0x30] sm:$0xf]
    %v2012 = vld [vmem:[%s1998 + $0x34] sm:$0xf]
    %v2013 = vld [vmem:[%s1998 + $0x38] sm:$0xf]
    %v2014 = vld [vmem:[%s1998 + $0x3c] sm:$0xf]
    %v2031 = vunpack.c.l.b16 %v1999
    %v2032 = vunpack.c.l.b16 %v2000
    %v2033 = vunpack.c.l.b16 %v2001
    %v2034 = vunpack.c.l.b16 %v2002
    %v2035 = vunpack.c.l.b16 %v2003
    %v2036 = vunpack.c.l.b16 %v2004
    %v2037 = vunpack.c.l.b16 %v2005
    %v2038 = vunpack.c.l.b16 %v2006
    %v2039 = vunpack.c.l.b16 %v2007
    %v2040 = vunpack.c.l.b16 %v2008
    %v2041 = vunpack.c.l.b16 %v2009
    %v2042 = vunpack.c.l.b16 %v2010
    %v2043 = vunpack.c.l.b16 %v2011
    %v2044 = vunpack.c.l.b16 %v2012
    %v2045 = vunpack.c.l.b16 %v2013
    %v2046 = vunpack.c.l.b16 %v2014
    %v2047 = vpack.c.b16 %v2032, %v2031
    %v2048 = vpack.c.b16 %v2034, %v2033
    %v2049 = vpack.c.b16 %v2036, %v2035
    %v2050 = vpack.c.b16 %v2038, %v2037
    %v2051 = vpack.c.b16 %v2040, %v2039
    %v2052 = vpack.c.b16 %v2042, %v2041
    %v2053 = vpack.c.b16 %v2044, %v2043
    %v2054 = vpack.c.b16 %v2046, %v2045
    %2063 = vmatpush.bf16.msra.mxu0 %v2054
    %2064 = vmatpush.bf16.msra.mxu0 %v2053
    %2065 = vmatpush.bf16.msra.mxu0 %v2052
    %2066 = vmatpush.bf16.msra.mxu0 %v2051
    %2067 = vmatpush.bf16.msra.mxu0 %v2050
    %2068 = vmatpush.bf16.msra.mxu0 %v2049
    %2069 = vmatpush.bf16.msra.mxu0 %v2048
    %2070 = vmatpush.bf16.msra.mxu0 %v2047
    %2071 = vmatmul.bf16.gmra.mxu0 %v1828
    %v2072 = vpop.f32.mrf.mxu0
    %v2073 = vadd.f32 0.0, %v2072
    %v2074 = vpop.f32.mrf.mxu0
    %v2075 = vadd.f32 0.0, %v2074
    %2076 = vmatmul.bf16.gmra.mxu0 %v1829
    %v2077 = vpop.f32.mrf.mxu0
    %v2078 = vadd.f32 0.0, %v2077
    %v2079 = vpop.f32.mrf.mxu0
    %v2080 = vadd.f32 0.0, %v2079
    %2081 = vdwg.mxu0
    %v2082 = vadd.f32 %v1989, %v2073
    %v2083 = vadd.f32 %v1991, %v2075
    %v2084 = vadd.f32 %v1994, %v2078
    %v2085 = vadd.f32 %v1996, %v2080
    %s2086 = scalar_lea.vmem %s10, 4
    %v2087 = vld [vmem:[%s2086] sm:$0x1]
    %s2088 = scalar_lea.vmem %s10, 5
    %v2089 = vld [vmem:[%s2088] sm:$0x1]
    %v2090 = vadd.f32 %v2082, %v2083
    %v2091 = vadd.f32 %v2090, %v2084
    %v2092 = vadd.f32 %v2091, %v2085
    %v2093 = vrot.slane %v2092, 4
    %v2094 = vadd.f32 %v2092, %v2093
    %v2095 = vrot.slane %v2094, 2
    %v2096 = vadd.f32 %v2094, %v2095
    %v2097 = vrot.slane %v2096, 1
    %v2098 = vadd.f32 %v2096, %v2097
    %v2099 = vmul.f32 %v2098, %v1498
    %2100 = vmatpush.msra.mxu0 %v1515
    %2101 = vmatpush.msra.mxu0 %v1514
    %2102 = vmatpush.msra.mxu0 %v1513
    %2103 = vmatpush.msra.mxu0 %v1512
    %2104 = vmatpush.msra.mxu0 %v1511
    %2105 = vmatpush.msra.mxu0 %v1510
    %2106 = vmatpush.msra.mxu0 %v1509
    %2107 = vmatpush.msra.mxu0 %v1508
    %2108 = vmatpush.msra.mxu0 %v1507
    %2109 = vmatpush.msra.mxu0 %v1506
    %2110 = vmatpush.msra.mxu0 %v1505
    %2111 = vmatpush.msra.mxu0 %v1504
    %2112 = vmatpush.msra.mxu0 %v1503
    %2113 = vmatpush.msra.mxu0 %v1502
    %2114 = vmatpush.msra.mxu0 %v1501
    %2115 = vmatpush.msra.mxu0 %v1500
    %2116 = vmatmul.f32.gmra.mxu0 %v2099
    %v2117 = vpop.f32.mrf.mxu0
    %v2118 = vadd.f32 0.0, %v2117
    %2119 = vdwg.mxu0
    %v2120 = vperm.slane %v2118, 0
    %v2121 = vsub.f32 %v2082, %v2120
    %v2122 = vsub.f32 %v2083, %v2120
    %v2123 = vsub.f32 %v2084, %v2120
    %v2124 = vsub.f32 %v2085, %v2120
    %v2125 = vmul.f32 %v2121, %v2121
    %v2126 = vmul.f32 %v2122, %v2122
    %v2127 = vmul.f32 %v2123, %v2123
    %v2128 = vmul.f32 %v2124, %v2124
    %v2129 = vadd.f32 %v2125, %v2126
    %v2130 = vadd.f32 %v2129, %v2127
    %v2131 = vadd.f32 %v2130, %v2128
    %v2132 = vrot.slane %v2131, 4
    %v2133 = vadd.f32 %v2131, %v2132
    %v2134 = vrot.slane %v2133, 2
    %v2135 = vadd.f32 %v2133, %v2134
    %v2136 = vrot.slane %v2135, 1
    %v2137 = vadd.f32 %v2135, %v2136
    %v2138 = vmul.f32 %v2137, %v1498
    %2139 = vmatpush.msra.mxu0 %v1515
    %2140 = vmatpush.msra.mxu0 %v1514
    %2141 = vmatpush.msra.mxu0 %v1513
    %2142 = vmatpush.msra.mxu0 %v1512
    %2143 = vmatpush.msra.mxu0 %v1511
    %2144 = vmatpush.msra.mxu0 %v1510
    %2145 = vmatpush.msra.mxu0 %v1509
    %2146 = vmatpush.msra.mxu0 %v1508
    %2147 = vmatpush.msra.mxu0 %v1507
    %2148 = vmatpush.msra.mxu0 %v1506
    %2149 = vmatpush.msra.mxu0 %v1505
    %2150 = vmatpush.msra.mxu0 %v1504
    %2151 = vmatpush.msra.mxu0 %v1503
    %2152 = vmatpush.msra.mxu0 %v1502
    %2153 = vmatpush.msra.mxu0 %v1501
    %2154 = vmatpush.msra.mxu0 %v1500
    %2155 = vmatmul.f32.gmra.mxu0 %v2138
    %v2156 = vpop.f32.mrf.mxu0
    %v2157 = vadd.f32 1e-05, %v2156
    %2158 = vdwg.mxu0
    %v2159 = vrsqrt.pop %v2157
    %v2160 = vmul.f32 %v2159, %v2157
    %v2161 = vmul.f32 %v2160, %v2159
    %v2162 = vmul.f32 0.5, %v2161
    %v2163 = vsub.f32 1.5, %v2162
    %v2164 = vmul.f32 %v2159, %v2163
    %vm2165 = vweird.f32 %v2157
    %vm2166 = vweird.f32 %v2159
    %vm2167 = vmor %vm2165, %vm2166
    %v2168 = vsel %vm2167, %v2159, %v2164
    %v2169 = vperm.slane %v2168, 0
    %v2170 = vmul.f32 %v2121, %v2169
    %v2171 = vmul.f32 %v2122, %v2169
    %v2172 = vmul.f32 %v2123, %v2169
    %v2173 = vmul.f32 %v2124, %v2169
    %v2175 = vperm.slane %v2087, 0
    %v2177 = vmul.f32 %v2170, %v2175
    %v2178 = vmul.f32 %v2171, %v2175
    %v2179 = vmul.f32 %v2172, %v2175
    %v2180 = vmul.f32 %v2173, %v2175
    %v2182 = vperm.slane %v2089, 0
    %v2184 = vadd.f32 %v2177, %v2182
    %v2185 = vadd.f32 %v2178, %v2182
    %v2186 = vadd.f32 %v2179, %v2182
    %v2187 = vadd.f32 %v2180, %v2182
    %s2188 = scalar_lea.vmem [#allocation2], 576
    %v2189 = vld [vmem:[%s2188] sm:$0xf]
    %v2190 = vld [vmem:[%s2188 + $0x4] sm:$0xf]
    %v2191 = vld [vmem:[%s2188 + $0x8] sm:$0xf]
    %v2192 = vld [vmem:[%s2188 + $0xc] sm:$0xf]
    %v2193 = vld [vmem:[%s2188 + $0x10] sm:$0xf]
    %v2194 = vld [vmem:[%s2188 + $0x14] sm:$0xf]
    %v2195 = vld [vmem:[%s2188 + $0x18] sm:$0xf]
    %v2196 = vld [vmem:[%s2188 + $0x1c] sm:$0xf]
    %v2197 = vld [vmem:[%s2188 + $0x20] sm:$0xf]
    %v2198 = vld [vmem:[%s2188 + $0x24] sm:$0xf]
    %v2199 = vld [vmem:[%s2188 + $0x28] sm:$0xf]
    %v2200 = vld [vmem:[%s2188 + $0x2c] sm:$0xf]
    %v2201 = vld [vmem:[%s2188 + $0x30] sm:$0xf]
    %v2202 = vld [vmem:[%s2188 + $0x34] sm:$0xf]
    %v2203 = vld [vmem:[%s2188 + $0x38] sm:$0xf]
    %v2204 = vld [vmem:[%s2188 + $0x3c] sm:$0xf]
    %s2205 = scalar_lea.vmem [#allocation2], 640
    %v2206 = vld [vmem:[%s2205] sm:$0xf]
    %v2207 = vld [vmem:[%s2205 + $0x4] sm:$0xf]
    %v2208 = vld [vmem:[%s2205 + $0x8] sm:$0xf]
    %v2209 = vld [vmem:[%s2205 + $0xc] sm:$0xf]
    %v2210 = vld [vmem:[%s2205 + $0x10] sm:$0xf]
    %v2211 = vld [vmem:[%s2205 + $0x14] sm:$0xf]
    %v2212 = vld [vmem:[%s2205 + $0x18] sm:$0xf]
    %v2213 = vld [vmem:[%s2205 + $0x1c] sm:$0xf]
    %v2214 = vld [vmem:[%s2205 + $0x20] sm:$0xf]
    %v2215 = vld [vmem:[%s2205 + $0x24] sm:$0xf]
    %v2216 = vld [vmem:[%s2205 + $0x28] sm:$0xf]
    %v2217 = vld [vmem:[%s2205 + $0x2c] sm:$0xf]
    %v2218 = vld [vmem:[%s2205 + $0x30] sm:$0xf]
    %v2219 = vld [vmem:[%s2205 + $0x34] sm:$0xf]
    %v2220 = vld [vmem:[%s2205 + $0x38] sm:$0xf]
    %v2221 = vld [vmem:[%s2205 + $0x3c] sm:$0xf]
    %v2238 = vunpack.c.l.b16 %v2206
    %v2239 = vunpack.c.l.b16 %v2207
    %v2240 = vunpack.c.l.b16 %v2208
    %v2241 = vunpack.c.l.b16 %v2209
    %v2242 = vunpack.c.l.b16 %v2210
    %v2243 = vunpack.c.l.b16 %v2211
    %v2244 = vunpack.c.l.b16 %v2212
    %v2245 = vunpack.c.l.b16 %v2213
    %v2246 = vunpack.c.l.b16 %v2214
    %v2247 = vunpack.c.l.b16 %v2215
    %v2248 = vunpack.c.l.b16 %v2216
    %v2249 = vunpack.c.l.b16 %v2217
    %v2250 = vunpack.c.l.b16 %v2218
    %v2251 = vunpack.c.l.b16 %v2219
    %v2252 = vunpack.c.l.b16 %v2220
    %v2253 = vunpack.c.l.b16 %v2221
    %v2254 = vpack.c.b16 %v2239, %v2238
    %v2255 = vpack.c.b16 %v2241, %v2240
    %v2256 = vpack.c.b16 %v2243, %v2242
    %v2257 = vpack.c.b16 %v2245, %v2244
    %v2258 = vpack.c.b16 %v2247, %v2246
    %v2259 = vpack.c.b16 %v2249, %v2248
    %v2260 = vpack.c.b16 %v2251, %v2250
    %v2261 = vpack.c.b16 %v2253, %v2252
    %2270 = vmatpush.bf16.msra.mxu0 %v2261
    %2271 = vmatpush.bf16.msra.mxu0 %v2260
    %2272 = vmatpush.bf16.msra.mxu0 %v2259
    %2273 = vmatpush.bf16.msra.mxu0 %v2258
    %2274 = vmatpush.bf16.msra.mxu0 %v2257
    %2275 = vmatpush.bf16.msra.mxu0 %v2256
    %2276 = vmatpush.bf16.msra.mxu0 %v2255
    %2277 = vmatpush.bf16.msra.mxu0 %v2254
    %2278 = vmatmul.bf16.gmra.mxu0 %v1786
    %v2279 = vpop.f32.mrf.mxu0
    %v2280 = vadd.f32 0.0, %v2279
    %v2281 = vpop.f32.mrf.mxu0
    %v2282 = vadd.f32 0.0, %v2281
    %2283 = vmatmul.bf16.gmra.mxu0 %v1787
    %v2284 = vpop.f32.mrf.mxu0
    %v2285 = vadd.f32 0.0, %v2284
    %v2286 = vpop.f32.mrf.mxu0
    %v2287 = vadd.f32 0.0, %v2286
    %2288 = vdwg.mxu0
    %v2305 = vunpack.c.l.b16 %v2189
    %v2306 = vunpack.c.l.b16 %v2190
    %v2307 = vunpack.c.l.b16 %v2191
    %v2308 = vunpack.c.l.b16 %v2192
    %v2309 = vunpack.c.l.b16 %v2193
    %v2310 = vunpack.c.l.b16 %v2194
    %v2311 = vunpack.c.l.b16 %v2195
    %v2312 = vunpack.c.l.b16 %v2196
    %v2313 = vunpack.c.l.b16 %v2197
    %v2314 = vunpack.c.l.b16 %v2198
    %v2315 = vunpack.c.l.b16 %v2199
    %v2316 = vunpack.c.l.b16 %v2200
    %v2317 = vunpack.c.l.b16 %v2201
    %v2318 = vunpack.c.l.b16 %v2202
    %v2319 = vunpack.c.l.b16 %v2203
    %v2320 = vunpack.c.l.b16 %v2204
    %v2321 = vpack.c.b16 %v2306, %v2305
    %v2322 = vpack.c.b16 %v2308, %v2307
    %v2323 = vpack.c.b16 %v2310, %v2309
    %v2324 = vpack.c.b16 %v2312, %v2311
    %v2325 = vpack.c.b16 %v2314, %v2313
    %v2326 = vpack.c.b16 %v2316, %v2315
    %v2327 = vpack.c.b16 %v2318, %v2317
    %v2328 = vpack.c.b16 %v2320, %v2319
    %2337 = vmatpush.bf16.msra.mxu0 %v2328
    %2338 = vmatpush.bf16.msra.mxu0 %v2327
    %2339 = vmatpush.bf16.msra.mxu0 %v2326
    %2340 = vmatpush.bf16.msra.mxu0 %v2325
    %2341 = vmatpush.bf16.msra.mxu0 %v2324
    %2342 = vmatpush.bf16.msra.mxu0 %v2323
    %2343 = vmatpush.bf16.msra.mxu0 %v2322
    %2344 = vmatpush.bf16.msra.mxu0 %v2321
    %2345 = vmatmul.bf16.gmra.mxu0 %v1807
    %v2346 = vpop.f32.mrf.mxu0
    %v2347 = vadd.f32 %v2280, %v2346
    %v2348 = vpop.f32.mrf.mxu0
    %v2349 = vadd.f32 %v2282, %v2348
    %2350 = vmatmul.bf16.gmra.mxu0 %v1808
    %v2351 = vpop.f32.mrf.mxu0
    %v2352 = vadd.f32 %v2285, %v2351
    %v2353 = vpop.f32.mrf.mxu0
    %v2354 = vadd.f32 %v2287, %v2353
    %2355 = vdwg.mxu0
    %s2356 = scalar_lea.vmem [#allocation2], 704
    %v2357 = vld [vmem:[%s2356] sm:$0xf]
    %v2358 = vld [vmem:[%s2356 + $0x4] sm:$0xf]
    %v2359 = vld [vmem:[%s2356 + $0x8] sm:$0xf]
    %v2360 = vld [vmem:[%s2356 + $0xc] sm:$0xf]
    %v2361 = vld [vmem:[%s2356 + $0x10] sm:$0xf]
    %v2362 = vld [vmem:[%s2356 + $0x14] sm:$0xf]
    %v2363 = vld [vmem:[%s2356 + $0x18] sm:$0xf]
    %v2364 = vld [vmem:[%s2356 + $0x1c] sm:$0xf]
    %v2365 = vld [vmem:[%s2356 + $0x20] sm:$0xf]
    %v2366 = vld [vmem:[%s2356 + $0x24] sm:$0xf]
    %v2367 = vld [vmem:[%s2356 + $0x28] sm:$0xf]
    %v2368 = vld [vmem:[%s2356 + $0x2c] sm:$0xf]
    %v2369 = vld [vmem:[%s2356 + $0x30] sm:$0xf]
    %v2370 = vld [vmem:[%s2356 + $0x34] sm:$0xf]
    %v2371 = vld [vmem:[%s2356 + $0x38] sm:$0xf]
    %v2372 = vld [vmem:[%s2356 + $0x3c] sm:$0xf]
    %v2389 = vunpack.c.l.b16 %v2357
    %v2390 = vunpack.c.l.b16 %v2358
    %v2391 = vunpack.c.l.b16 %v2359
    %v2392 = vunpack.c.l.b16 %v2360
    %v2393 = vunpack.c.l.b16 %v2361
    %v2394 = vunpack.c.l.b16 %v2362
    %v2395 = vunpack.c.l.b16 %v2363
    %v2396 = vunpack.c.l.b16 %v2364
    %v2397 = vunpack.c.l.b16 %v2365
    %v2398 = vunpack.c.l.b16 %v2366
    %v2399 = vunpack.c.l.b16 %v2367
    %v2400 = vunpack.c.l.b16 %v2368
    %v2401 = vunpack.c.l.b16 %v2369
    %v2402 = vunpack.c.l.b16 %v2370
    %v2403 = vunpack.c.l.b16 %v2371
    %v2404 = vunpack.c.l.b16 %v2372
    %v2405 = vpack.c.b16 %v2390, %v2389
    %v2406 = vpack.c.b16 %v2392, %v2391
    %v2407 = vpack.c.b16 %v2394, %v2393
    %v2408 = vpack.c.b16 %v2396, %v2395
    %v2409 = vpack.c.b16 %v2398, %v2397
    %v2410 = vpack.c.b16 %v2400, %v2399
    %v2411 = vpack.c.b16 %v2402, %v2401
    %v2412 = vpack.c.b16 %v2404, %v2403
    %2421 = vmatpush.bf16.msra.mxu0 %v2412
    %2422 = vmatpush.bf16.msra.mxu0 %v2411
    %2423 = vmatpush.bf16.msra.mxu0 %v2410
    %2424 = vmatpush.bf16.msra.mxu0 %v2409
    %2425 = vmatpush.bf16.msra.mxu0 %v2408
    %2426 = vmatpush.bf16.msra.mxu0 %v2407
    %2427 = vmatpush.bf16.msra.mxu0 %v2406
    %2428 = vmatpush.bf16.msra.mxu0 %v2405
    %2429 = vmatmul.bf16.gmra.mxu0 %v1828
    %v2430 = vpop.f32.mrf.mxu0
    %v2431 = vadd.f32 0.0, %v2430
    %v2432 = vpop.f32.mrf.mxu0
    %v2433 = vadd.f32 0.0, %v2432
    %2434 = vmatmul.bf16.gmra.mxu0 %v1829
    %v2435 = vpop.f32.mrf.mxu0
    %v2436 = vadd.f32 0.0, %v2435
    %v2437 = vpop.f32.mrf.mxu0
    %v2438 = vadd.f32 0.0, %v2437
    %2439 = vdwg.mxu0
    %v2440 = vadd.f32 %v2347, %v2431
    %v2441 = vadd.f32 %v2349, %v2433
    %v2442 = vadd.f32 %v2352, %v2436
    %v2443 = vadd.f32 %v2354, %v2438
    %s2444 = scalar_lea.vmem %s10, 6
    %v2445 = vld [vmem:[%s2444] sm:$0x1]
    %s2446 = scalar_lea.vmem %s10, 7
    %v2447 = vld [vmem:[%s2446] sm:$0x1]
    %v2448 = vadd.f32 %v2440, %v2441
    %v2449 = vadd.f32 %v2448, %v2442
    %v2450 = vadd.f32 %v2449, %v2443
    %v2451 = vrot.slane %v2450, 4
    %v2452 = vadd.f32 %v2450, %v2451
    %v2453 = vrot.slane %v2452, 2
    %v2454 = vadd.f32 %v2452, %v2453
    %v2455 = vrot.slane %v2454, 1
    %v2456 = vadd.f32 %v2454, %v2455
    %v2457 = vmul.f32 %v2456, %v1498
    %2458 = vmatpush.msra.mxu0 %v1515
    %2459 = vmatpush.msra.mxu0 %v1514
    %2460 = vmatpush.msra.mxu0 %v1513
    %2461 = vmatpush.msra.mxu0 %v1512
    %2462 = vmatpush.msra.mxu0 %v1511
    %2463 = vmatpush.msra.mxu0 %v1510
    %2464 = vmatpush.msra.mxu0 %v1509
    %2465 = vmatpush.msra.mxu0 %v1508
    %2466 = vmatpush.msra.mxu0 %v1507
    %2467 = vmatpush.msra.mxu0 %v1506
    %2468 = vmatpush.msra.mxu0 %v1505
    %2469 = vmatpush.msra.mxu0 %v1504
    %2470 = vmatpush.msra.mxu0 %v1503
    %2471 = vmatpush.msra.mxu0 %v1502
    %2472 = vmatpush.msra.mxu0 %v1501
    %2473 = vmatpush.msra.mxu0 %v1500
    %2474 = vmatmul.f32.gmra.mxu0 %v2457
    %v2475 = vpop.f32.mrf.mxu0
    %v2476 = vadd.f32 0.0, %v2475
    %2477 = vdwg.mxu0
    %v2478 = vperm.slane %v2476, 0
    %v2479 = vsub.f32 %v2440, %v2478
    %v2480 = vsub.f32 %v2441, %v2478
    %v2481 = vsub.f32 %v2442, %v2478
    %v2482 = vsub.f32 %v2443, %v2478
    %v2483 = vmul.f32 %v2479, %v2479
    %v2484 = vmul.f32 %v2480, %v2480
    %v2485 = vmul.f32 %v2481, %v2481
    %v2486 = vmul.f32 %v2482, %v2482
    %v2487 = vadd.f32 %v2483, %v2484
    %v2488 = vadd.f32 %v2487, %v2485
    %v2489 = vadd.f32 %v2488, %v2486
    %v2490 = vrot.slane %v2489, 4
    %v2491 = vadd.f32 %v2489, %v2490
    %v2492 = vrot.slane %v2491, 2
    %v2493 = vadd.f32 %v2491, %v2492
    %v2494 = vrot.slane %v2493, 1
    %v2495 = vadd.f32 %v2493, %v2494
    %v2496 = vmul.f32 %v2495, %v1498
    %2497 = vmatpush.msra.mxu0 %v1515
    %2498 = vmatpush.msra.mxu0 %v1514
    %2499 = vmatpush.msra.mxu0 %v1513
    %2500 = vmatpush.msra.mxu0 %v1512
    %2501 = vmatpush.msra.mxu0 %v1511
    %2502 = vmatpush.msra.mxu0 %v1510
    %2503 = vmatpush.msra.mxu0 %v1509
    %2504 = vmatpush.msra.mxu0 %v1508
    %2505 = vmatpush.msra.mxu0 %v1507
    %2506 = vmatpush.msra.mxu0 %v1506
    %2507 = vmatpush.msra.mxu0 %v1505
    %2508 = vmatpush.msra.mxu0 %v1504
    %2509 = vmatpush.msra.mxu0 %v1503
    %2510 = vmatpush.msra.mxu0 %v1502
    %2511 = vmatpush.msra.mxu0 %v1501
    %2512 = vmatpush.msra.mxu0 %v1500
    %2513 = vmatmul.f32.gmra.mxu0 %v2496
    %v2514 = vpop.f32.mrf.mxu0
    %v2515 = vadd.f32 1e-05, %v2514
    %2516 = vdwg.mxu0
    %v2517 = vrsqrt.pop %v2515
    %v2518 = vmul.f32 %v2517, %v2515
    %v2519 = vmul.f32 %v2518, %v2517
    %v2520 = vmul.f32 0.5, %v2519
    %v2521 = vsub.f32 1.5, %v2520
    %v2522 = vmul.f32 %v2517, %v2521
    %vm2523 = vweird.f32 %v2515
    %vm2524 = vweird.f32 %v2517
    %vm2525 = vmor %vm2523, %vm2524
    %v2526 = vsel %vm2525, %v2517, %v2522
    %v2527 = vperm.slane %v2526, 0
    %v2528 = vmul.f32 %v2479, %v2527
    %v2529 = vmul.f32 %v2480, %v2527
    %v2530 = vmul.f32 %v2481, %v2527
    %v2531 = vmul.f32 %v2482, %v2527
    %v2533 = vperm.slane %v2445, 0
    %v2535 = vmul.f32 %v2528, %v2533
    %v2536 = vmul.f32 %v2529, %v2533
    %v2537 = vmul.f32 %v2530, %v2533
    %v2538 = vmul.f32 %v2531, %v2533
    %v2540 = vperm.slane %v2447, 0
    %v2542 = vadd.f32 %v2535, %v2540
    %v2543 = vadd.f32 %v2536, %v2540
    %v2544 = vadd.f32 %v2537, %v2540
    %v2545 = vadd.f32 %v2538, %v2540
    %v2546 = vxor.u32 %v2542, 2147483648
    %v2547 = vxor.u32 %v2543, 2147483648
    %v2548 = vxor.u32 %v2544, 2147483648
    %v2549 = vxor.u32 %v2545, 2147483648
    %v2550 = vmul.f32 %v2546, 1.442695
    %v2551 = vpow.pop %v2550
    %v2552 = vmul.f32 %v2547, 1.442695
    %v2553 = vpow.pop %v2552
    %v2554 = vmul.f32 %v2548, 1.442695
    %v2555 = vpow.pop %v2554
    %v2556 = vmul.f32 %v2549, 1.442695
    %v2557 = vpow.pop %v2556
    %v2558 = vadd.f32 %v2551, 1.0
    %v2559 = vadd.f32 %v2553, 1.0
    %v2560 = vadd.f32 %v2555, 1.0
    %v2561 = vadd.f32 %v2557, 1.0
    %v2562 = vrcp.pop %v2558
    %v2563 = vmul.f32 %v2558, %v2562
    %v2564 = vsub.f32 1.0, %v2563
    %v2565 = vmul.f32 %v2562, %v2564
    %v2566 = vadd.f32 %v2562, %v2565
    %vm2567 = vweird.f32 %v2558
    %vm2568 = vweird.f32 %v2562
    %vm2569 = vmor %vm2567, %vm2568
    %v2570 = vsel %vm2569, %v2562, %v2566
    %v2571 = vand.u32 2147483647, %v2558
    %vm2572 = vcmp.eq.f32.partialorder %v2571, 8.507059e+37
    %v2573 = vand.u32 %v2558, 2147483648
    %v2574 = vor.u32 1.1754944e-38, %v2573
    %v2575 = vsel %vm2572, %v2574, %v2570
    %v2576 = vmul.f32 1.0, %v2575
    %v2577 = vrcp.pop %v2559
    %v2578 = vmul.f32 %v2559, %v2577
    %v2579 = vsub.f32 1.0, %v2578
    %v2580 = vmul.f32 %v2577, %v2579
    %v2581 = vadd.f32 %v2577, %v2580
    %vm2582 = vweird.f32 %v2559
    %vm2583 = vweird.f32 %v2577
    %vm2584 = vmor %vm2582, %vm2583
    %v2585 = vsel %vm2584, %v2577, %v2581
    %v2586 = vand.u32 2147483647, %v2559
    %vm2587 = vcmp.eq.f32.partialorder %v2586, 8.507059e+37
    %v2588 = vand.u32 %v2559, 2147483648
    %v2589 = vor.u32 1.1754944e-38, %v2588
    %v2590 = vsel %vm2587, %v2589, %v2585
    %v2591 = vmul.f32 1.0, %v2590
    %v2592 = vrcp.pop %v2560
    %v2593 = vmul.f32 %v2560, %v2592
    %v2594 = vsub.f32 1.0, %v2593
    %v2595 = vmul.f32 %v2592, %v2594
    %v2596 = vadd.f32 %v2592, %v2595
    %vm2597 = vweird.f32 %v2560
    %vm2598 = vweird.f32 %v2592
    %vm2599 = vmor %vm2597, %vm2598
    %v2600 = vsel %vm2599, %v2592, %v2596
    %v2601 = vand.u32 2147483647, %v2560
    %vm2602 = vcmp.eq.f32.partialorder %v2601, 8.507059e+37
    %v2603 = vand.u32 %v2560, 2147483648
    %v2604 = vor.u32 1.1754944e-38, %v2603
    %v2605 = vsel %vm2602, %v2604, %v2600
    %v2606 = vmul.f32 1.0, %v2605
    %v2607 = vrcp.pop %v2561
    %v2608 = vmul.f32 %v2561, %v2607
    %v2609 = vsub.f32 1.0, %v2608
    %v2610 = vmul.f32 %v2607, %v2609
    %v2611 = vadd.f32 %v2607, %v2610
    %vm2612 = vweird.f32 %v2561
    %vm2613 = vweird.f32 %v2607
    %vm2614 = vmor %vm2612, %vm2613
    %v2615 = vsel %vm2614, %v2607, %v2611
    %v2616 = vand.u32 2147483647, %v2561
    %vm2617 = vcmp.eq.f32.partialorder %v2616, 8.507059e+37
    %v2618 = vand.u32 %v2561, 2147483648
    %v2619 = vor.u32 1.1754944e-38, %v2618
    %v2620 = vsel %vm2617, %v2619, %v2615
    %v2621 = vmul.f32 1.0, %v2620
    %v2622 = vmul.f32 %v2184, %v2576
    %v2623 = vmul.f32 %v2185, %v2591
    %v2624 = vmul.f32 %v2186, %v2606
    %v2625 = vmul.f32 %v2187, %v2621
    %v2626 = vpack.c.bf16 %v2623, %v2622
    %v2627 = vpack.c.bf16 %v2625, %v2624
    %2628 = vmatpush.bf16.msra.mxu0 0
    %2629 = vmatpush.bf16.msra.mxu0 0
    %2630 = vmatpush.bf16.msra.mxu0 0
    %2631 = vmatpush.bf16.msra.mxu0 0
    %2632 = vmatpush.bf16.msra.mxu0 0
    %2633 = vmatpush.bf16.msra.mxu0 0
    %2634 = vmatpush.bf16.msra.mxu0 %v2627
    %2635 = vmatpush.bf16.msra.mxu0 %v2626
    %2636 = vmatmul.bf16.gmra.mxu0 %v87
    %v2637 = vpop.f32.mrf.mxu0
    %v2638 = vadd.f32 0.0, %v2637
    %v2639 = vpop.f32.mrf.mxu0
    %v2640 = vadd.f32 0.0, %v2639
    %2641 = vmatmul.bf16.gmra.mxu0 %v90
    %v2642 = vpop.f32.mrf.mxu0
    %v2643 = vadd.f32 0.0, %v2642
    %v2644 = vpop.f32.mrf.mxu0
    %v2645 = vadd.f32 0.0, %v2644
    %2646 = vdwg.mxu0
    %v2647 = vpack.c.bf16 %v2640, %v2638
    %v2648 = vpack.c.bf16 %v2645, %v2643
    %2649 = vmatpush.bf16.msra.mxu0 0
    %2650 = vmatpush.bf16.msra.mxu0 0
    %2651 = vmatpush.bf16.msra.mxu0 0
    %2652 = vmatpush.bf16.msra.mxu0 0
    %2653 = vmatpush.bf16.msra.mxu0 0
    %2654 = vmatpush.bf16.msra.mxu0 0
    %2655 = vmatpush.bf16.msra.mxu0 %v2627
    %2656 = vmatpush.bf16.msra.mxu0 %v2626
    %2657 = vmatmul.bf16.gmra.mxu0 %v124
    %v2658 = vpop.f32.mrf.mxu0
    %v2659 = vadd.f32 0.0, %v2658
    %v2660 = vpop.f32.mrf.mxu0
    %v2661 = vadd.f32 0.0, %v2660
    %2662 = vmatmul.bf16.gmra.mxu0 %v127
    %v2663 = vpop.f32.mrf.mxu0
    %v2664 = vadd.f32 0.0, %v2663
    %v2665 = vpop.f32.mrf.mxu0
    %v2666 = vadd.f32 0.0, %v2665
    %2667 = vdwg.mxu0
    %v2668 = vpack.c.bf16 %v2661, %v2659
    %v2669 = vpack.c.bf16 %v2666, %v2664
    %s2670 = scalar_lea.vmem [#allocation2], 768
    %v2671 = vld [vmem:[%s2670] sm:$0xf]
    %v2672 = vld [vmem:[%s2670 + $0x4] sm:$0xf]
    %v2673 = vld [vmem:[%s2670 + $0x8] sm:$0xf]
    %v2674 = vld [vmem:[%s2670 + $0xc] sm:$0xf]
    %v2675 = vld [vmem:[%s2670 + $0x10] sm:$0xf]
    %v2676 = vld [vmem:[%s2670 + $0x14] sm:$0xf]
    %v2677 = vld [vmem:[%s2670 + $0x18] sm:$0xf]
    %v2678 = vld [vmem:[%s2670 + $0x1c] sm:$0xf]
    %v2679 = vld [vmem:[%s2670 + $0x20] sm:$0xf]
    %v2680 = vld [vmem:[%s2670 + $0x24] sm:$0xf]
    %v2681 = vld [vmem:[%s2670 + $0x28] sm:$0xf]
    %v2682 = vld [vmem:[%s2670 + $0x2c] sm:$0xf]
    %v2683 = vld [vmem:[%s2670 + $0x30] sm:$0xf]
    %v2684 = vld [vmem:[%s2670 + $0x34] sm:$0xf]
    %v2685 = vld [vmem:[%s2670 + $0x38] sm:$0xf]
    %v2686 = vld [vmem:[%s2670 + $0x3c] sm:$0xf]
    %s2687 = scalar_lea.vmem [#allocation2], 832
    %v2688 = vld [vmem:[%s2687] sm:$0xf]
    %v2689 = vld [vmem:[%s2687 + $0x4] sm:$0xf]
    %v2690 = vld [vmem:[%s2687 + $0x8] sm:$0xf]
    %v2691 = vld [vmem:[%s2687 + $0xc] sm:$0xf]
    %v2692 = vld [vmem:[%s2687 + $0x10] sm:$0xf]
    %v2693 = vld [vmem:[%s2687 + $0x14] sm:$0xf]
    %v2694 = vld [vmem:[%s2687 + $0x18] sm:$0xf]
    %v2695 = vld [vmem:[%s2687 + $0x1c] sm:$0xf]
    %v2696 = vld [vmem:[%s2687 + $0x20] sm:$0xf]
    %v2697 = vld [vmem:[%s2687 + $0x24] sm:$0xf]
    %v2698 = vld [vmem:[%s2687 + $0x28] sm:$0xf]
    %v2699 = vld [vmem:[%s2687 + $0x2c] sm:$0xf]
    %v2700 = vld [vmem:[%s2687 + $0x30] sm:$0xf]
    %v2701 = vld [vmem:[%s2687 + $0x34] sm:$0xf]
    %v2702 = vld [vmem:[%s2687 + $0x38] sm:$0xf]
    %v2703 = vld [vmem:[%s2687 + $0x3c] sm:$0xf]
    %v2720 = vunpack.c.l.b16 %v2688
    %v2721 = vunpack.c.l.b16 %v2689
    %v2722 = vunpack.c.l.b16 %v2690
    %v2723 = vunpack.c.l.b16 %v2691
    %v2724 = vunpack.c.l.b16 %v2692
    %v2725 = vunpack.c.l.b16 %v2693
    %v2726 = vunpack.c.l.b16 %v2694
    %v2727 = vunpack.c.l.b16 %v2695
    %v2728 = vunpack.c.l.b16 %v2696
    %v2729 = vunpack.c.l.b16 %v2697
    %v2730 = vunpack.c.l.b16 %v2698
    %v2731 = vunpack.c.l.b16 %v2699
    %v2732 = vunpack.c.l.b16 %v2700
    %v2733 = vunpack.c.l.b16 %v2701
    %v2734 = vunpack.c.l.b16 %v2702
    %v2735 = vunpack.c.l.b16 %v2703
    %v2736 = vpack.c.b16 %v2721, %v2720
    %v2737 = vpack.c.b16 %v2723, %v2722
    %v2738 = vpack.c.b16 %v2725, %v2724
    %v2739 = vpack.c.b16 %v2727, %v2726
    %v2740 = vpack.c.b16 %v2729, %v2728
    %v2741 = vpack.c.b16 %v2731, %v2730
    %v2742 = vpack.c.b16 %v2733, %v2732
    %v2743 = vpack.c.b16 %v2735, %v2734
    %2752 = vmatpush.bf16.msra.mxu0 %v2743
    %2753 = vmatpush.bf16.msra.mxu0 %v2742
    %2754 = vmatpush.bf16.msra.mxu0 %v2741
    %2755 = vmatpush.bf16.msra.mxu0 %v2740
    %2756 = vmatpush.bf16.msra.mxu0 %v2739
    %2757 = vmatpush.bf16.msra.mxu0 %v2738
    %2758 = vmatpush.bf16.msra.mxu0 %v2737
    %2759 = vmatpush.bf16.msra.mxu0 %v2736
    %2760 = vmatmul.bf16.gmra.mxu0 %v2626
    %v2761 = vpop.f32.mrf.mxu0
    %v2762 = vadd.f32 0.0, %v2761
    %v2763 = vpop.f32.mrf.mxu0
    %v2764 = vadd.f32 0.0, %v2763
    %2765 = vmatmul.bf16.gmra.mxu0 %v2627
    %v2766 = vpop.f32.mrf.mxu0
    %v2767 = vadd.f32 0.0, %v2766
    %v2768 = vpop.f32.mrf.mxu0
    %v2769 = vadd.f32 0.0, %v2768
    %2770 = vdwg.mxu0
    %v2787 = vunpack.c.l.b16 %v2671
    %v2788 = vunpack.c.l.b16 %v2672
    %v2789 = vunpack.c.l.b16 %v2673
    %v2790 = vunpack.c.l.b16 %v2674
    %v2791 = vunpack.c.l.b16 %v2675
    %v2792 = vunpack.c.l.b16 %v2676
    %v2793 = vunpack.c.l.b16 %v2677
    %v2794 = vunpack.c.l.b16 %v2678
    %v2795 = vunpack.c.l.b16 %v2679
    %v2796 = vunpack.c.l.b16 %v2680
    %v2797 = vunpack.c.l.b16 %v2681
    %v2798 = vunpack.c.l.b16 %v2682
    %v2799 = vunpack.c.l.b16 %v2683
    %v2800 = vunpack.c.l.b16 %v2684
    %v2801 = vunpack.c.l.b16 %v2685
    %v2802 = vunpack.c.l.b16 %v2686
    %v2803 = vpack.c.b16 %v2788, %v2787
    %v2804 = vpack.c.b16 %v2790, %v2789
    %v2805 = vpack.c.b16 %v2792, %v2791
    %v2806 = vpack.c.b16 %v2794, %v2793
    %v2807 = vpack.c.b16 %v2796, %v2795
    %v2808 = vpack.c.b16 %v2798, %v2797
    %v2809 = vpack.c.b16 %v2800, %v2799
    %v2810 = vpack.c.b16 %v2802, %v2801
    %2819 = vmatpush.bf16.msra.mxu0 %v2810
    %2820 = vmatpush.bf16.msra.mxu0 %v2809
    %2821 = vmatpush.bf16.msra.mxu0 %v2808
    %2822 = vmatpush.bf16.msra.mxu0 %v2807
    %2823 = vmatpush.bf16.msra.mxu0 %v2806
    %2824 = vmatpush.bf16.msra.mxu0 %v2805
    %2825 = vmatpush.bf16.msra.mxu0 %v2804
    %2826 = vmatpush.bf16.msra.mxu0 %v2803
    %2827 = vmatmul.bf16.gmra.mxu0 %v2647
    %v2828 = vpop.f32.mrf.mxu0
    %v2829 = vadd.f32 %v2762, %v2828
    %v2830 = vpop.f32.mrf.mxu0
    %v2831 = vadd.f32 %v2764, %v2830
    %2832 = vmatmul.bf16.gmra.mxu0 %v2648
    %v2833 = vpop.f32.mrf.mxu0
    %v2834 = vadd.f32 %v2767, %v2833
    %v2835 = vpop.f32.mrf.mxu0
    %v2836 = vadd.f32 %v2769, %v2835
    %2837 = vdwg.mxu0
    %s2838 = scalar_lea.vmem [#allocation2], 896
    %v2839 = vld [vmem:[%s2838] sm:$0xf]
    %v2840 = vld [vmem:[%s2838 + $0x4] sm:$0xf]
    %v2841 = vld [vmem:[%s2838 + $0x8] sm:$0xf]
    %v2842 = vld [vmem:[%s2838 + $0xc] sm:$0xf]
    %v2843 = vld [vmem:[%s2838 + $0x10] sm:$0xf]
    %v2844 = vld [vmem:[%s2838 + $0x14] sm:$0xf]
    %v2845 = vld [vmem:[%s2838 + $0x18] sm:$0xf]
    %v2846 = vld [vmem:[%s2838 + $0x1c] sm:$0xf]
    %v2847 = vld [vmem:[%s2838 + $0x20] sm:$0xf]
    %v2848 = vld [vmem:[%s2838 + $0x24] sm:$0xf]
    %v2849 = vld [vmem:[%s2838 + $0x28] sm:$0xf]
    %v2850 = vld [vmem:[%s2838 + $0x2c] sm:$0xf]
    %v2851 = vld [vmem:[%s2838 + $0x30] sm:$0xf]
    %v2852 = vld [vmem:[%s2838 + $0x34] sm:$0xf]
    %v2853 = vld [vmem:[%s2838 + $0x38] sm:$0xf]
    %v2854 = vld [vmem:[%s2838 + $0x3c] sm:$0xf]
    %v2871 = vunpack.c.l.b16 %v2839
    %v2872 = vunpack.c.l.b16 %v2840
    %v2873 = vunpack.c.l.b16 %v2841
    %v2874 = vunpack.c.l.b16 %v2842
    %v2875 = vunpack.c.l.b16 %v2843
    %v2876 = vunpack.c.l.b16 %v2844
    %v2877 = vunpack.c.l.b16 %v2845
    %v2878 = vunpack.c.l.b16 %v2846
    %v2879 = vunpack.c.l.b16 %v2847
    %v2880 = vunpack.c.l.b16 %v2848
    %v2881 = vunpack.c.l.b16 %v2849
    %v2882 = vunpack.c.l.b16 %v2850
    %v2883 = vunpack.c.l.b16 %v2851
    %v2884 = vunpack.c.l.b16 %v2852
    %v2885 = vunpack.c.l.b16 %v2853
    %v2886 = vunpack.c.l.b16 %v2854
    %v2887 = vpack.c.b16 %v2872, %v2871
    %v2888 = vpack.c.b16 %v2874, %v2873
    %v2889 = vpack.c.b16 %v2876, %v2875
    %v2890 = vpack.c.b16 %v2878, %v2877
    %v2891 = vpack.c.b16 %v2880, %v2879
    %v2892 = vpack.c.b16 %v2882, %v2881
    %v2893 = vpack.c.b16 %v2884, %v2883
    %v2894 = vpack.c.b16 %v2886, %v2885
    %2903 = vmatpush.bf16.msra.mxu0 %v2894
    %2904 = vmatpush.bf16.msra.mxu0 %v2893
    %2905 = vmatpush.bf16.msra.mxu0 %v2892
    %2906 = vmatpush.bf16.msra.mxu0 %v2891
    %2907 = vmatpush.bf16.msra.mxu0 %v2890
    %2908 = vmatpush.bf16.msra.mxu0 %v2889
    %2909 = vmatpush.bf16.msra.mxu0 %v2888
    %2910 = vmatpush.bf16.msra.mxu0 %v2887
    %2911 = vmatmul.bf16.gmra.mxu0 %v2668
    %v2912 = vpop.f32.mrf.mxu0
    %v2913 = vadd.f32 0.0, %v2912
    %v2914 = vpop.f32.mrf.mxu0
    %v2915 = vadd.f32 0.0, %v2914
    %2916 = vmatmul.bf16.gmra.mxu0 %v2669
    %v2917 = vpop.f32.mrf.mxu0
    %v2918 = vadd.f32 0.0, %v2917
    %v2919 = vpop.f32.mrf.mxu0
    %v2920 = vadd.f32 0.0, %v2919
    %2921 = vdwg.mxu0
    %v2922 = vadd.f32 %v2829, %v2913
    %v2923 = vadd.f32 %v2831, %v2915
    %v2924 = vadd.f32 %v2834, %v2918
    %v2925 = vadd.f32 %v2836, %v2920
    %s2926 = scalar_lea.vmem %s10, 8
    %v2927 = vld [vmem:[%s2926] sm:$0x1]
    %s2928 = scalar_lea.vmem %s10, 9
    %v2929 = vld [vmem:[%s2928] sm:$0x1]
    %v2930 = vadd.f32 %v2922, %v2923
    %v2931 = vadd.f32 %v2930, %v2924
    %v2932 = vadd.f32 %v2931, %v2925
    %v2933 = vrot.slane %v2932, 4
    %v2934 = vadd.f32 %v2932, %v2933
    %v2935 = vrot.slane %v2934, 2
    %v2936 = vadd.f32 %v2934, %v2935
    %v2937 = vrot.slane %v2936, 1
    %v2938 = vadd.f32 %v2936, %v2937
    %v2939 = vmul.f32 %v2938, %v1498
    %2940 = vmatpush.msra.mxu0 %v1515
    %2941 = vmatpush.msra.mxu0 %v1514
    %2942 = vmatpush.msra.mxu0 %v1513
    %2943 = vmatpush.msra.mxu0 %v1512
    %2944 = vmatpush.msra.mxu0 %v1511
    %2945 = vmatpush.msra.mxu0 %v1510
    %2946 = vmatpush.msra.mxu0 %v1509
    %2947 = vmatpush.msra.mxu0 %v1508
    %2948 = vmatpush.msra.mxu0 %v1507
    %2949 = vmatpush.msra.mxu0 %v1506
    %2950 = vmatpush.msra.mxu0 %v1505
    %2951 = vmatpush.msra.mxu0 %v1504
    %2952 = vmatpush.msra.mxu0 %v1503
    %2953 = vmatpush.msra.mxu0 %v1502
    %2954 = vmatpush.msra.mxu0 %v1501
    %2955 = vmatpush.msra.mxu0 %v1500
    %2956 = vmatmul.f32.gmra.mxu0 %v2939
    %v2957 = vpop.f32.mrf.mxu0
    %v2958 = vadd.f32 0.0, %v2957
    %2959 = vdwg.mxu0
    %v2960 = vperm.slane %v2958, 0
    %v2961 = vsub.f32 %v2922, %v2960
    %v2962 = vsub.f32 %v2923, %v2960
    %v2963 = vsub.f32 %v2924, %v2960
    %v2964 = vsub.f32 %v2925, %v2960
    %v2965 = vmul.f32 %v2961, %v2961
    %v2966 = vmul.f32 %v2962, %v2962
    %v2967 = vmul.f32 %v2963, %v2963
    %v2968 = vmul.f32 %v2964, %v2964
    %v2969 = vadd.f32 %v2965, %v2966
    %v2970 = vadd.f32 %v2969, %v2967
    %v2971 = vadd.f32 %v2970, %v2968
    %v2972 = vrot.slane %v2971, 4
    %v2973 = vadd.f32 %v2971, %v2972
    %v2974 = vrot.slane %v2973, 2
    %v2975 = vadd.f32 %v2973, %v2974
    %v2976 = vrot.slane %v2975, 1
    %v2977 = vadd.f32 %v2975, %v2976
    %v2978 = vmul.f32 %v2977, %v1498
    %2979 = vmatpush.msra.mxu0 %v1515
    %2980 = vmatpush.msra.mxu0 %v1514
    %2981 = vmatpush.msra.mxu0 %v1513
    %2982 = vmatpush.msra.mxu0 %v1512
    %2983 = vmatpush.msra.mxu0 %v1511
    %2984 = vmatpush.msra.mxu0 %v1510
    %2985 = vmatpush.msra.mxu0 %v1509
    %2986 = vmatpush.msra.mxu0 %v1508
    %2987 = vmatpush.msra.mxu0 %v1507
    %2988 = vmatpush.msra.mxu0 %v1506
    %2989 = vmatpush.msra.mxu0 %v1505
    %2990 = vmatpush.msra.mxu0 %v1504
    %2991 = vmatpush.msra.mxu0 %v1503
    %2992 = vmatpush.msra.mxu0 %v1502
    %2993 = vmatpush.msra.mxu0 %v1501
    %2994 = vmatpush.msra.mxu0 %v1500
    %2995 = vmatmul.f32.gmra.mxu0 %v2978
    %v2996 = vpop.f32.mrf.mxu0
    %v2997 = vadd.f32 1e-05, %v2996
    %2998 = vdwg.mxu0
    %v2999 = vrsqrt.pop %v2997
    %v3000 = vmul.f32 %v2999, %v2997
    %v3001 = vmul.f32 %v3000, %v2999
    %v3002 = vmul.f32 0.5, %v3001
    %v3003 = vsub.f32 1.5, %v3002
    %v3004 = vmul.f32 %v2999, %v3003
    %vm3005 = vweird.f32 %v2997
    %vm3006 = vweird.f32 %v2999
    %vm3007 = vmor %vm3005, %vm3006
    %v3008 = vsel %vm3007, %v2999, %v3004
    %v3009 = vperm.slane %v3008, 0
    %v3010 = vmul.f32 %v2961, %v3009
    %v3011 = vmul.f32 %v2962, %v3009
    %v3012 = vmul.f32 %v2963, %v3009
    %v3013 = vmul.f32 %v2964, %v3009
    %v3015 = vperm.slane %v2927, 0
    %v3017 = vmul.f32 %v3010, %v3015
    %v3018 = vmul.f32 %v3011, %v3015
    %v3019 = vmul.f32 %v3012, %v3015
    %v3020 = vmul.f32 %v3013, %v3015
    %v3022 = vperm.slane %v2929, 0
    %v3024 = vadd.f32 %v3017, %v3022
    %v3025 = vadd.f32 %v3018, %v3022
    %v3026 = vadd.f32 %v3019, %v3022
    %v3027 = vadd.f32 %v3020, %v3022
    %v3028 = vadd.f32 %v1782, %v3024
    %v3029 = vadd.f32 %v1783, %v3025
    %v3030 = vadd.f32 %v1784, %v3026
    %v3031 = vadd.f32 %v1785, %v3027
    %v3032 = vpack.c.bf16 %v3029, %v3028
    %v3033 = vpack.c.bf16 %v3031, %v3030
    %3034 = vmatpush.bf16.msra.mxu0 0
    %3035 = vmatpush.bf16.msra.mxu0 0
    %3036 = vmatpush.bf16.msra.mxu0 0
    %3037 = vmatpush.bf16.msra.mxu0 0
    %3038 = vmatpush.bf16.msra.mxu0 0
    %3039 = vmatpush.bf16.msra.mxu0 0
    %3040 = vmatpush.bf16.msra.mxu0 %v3033
    %3041 = vmatpush.bf16.msra.mxu0 %v3032
    %3042 = vmatmul.bf16.gmra.mxu0 %v87
    %v3043 = vpop.f32.mrf.mxu0
    %v3044 = vadd.f32 0.0, %v3043
    %v3045 = vpop.f32.mrf.mxu0
    %v3046 = vadd.f32 0.0, %v3045
    %3047 = vmatmul.bf16.gmra.mxu0 %v90
    %v3048 = vpop.f32.mrf.mxu0
    %v3049 = vadd.f32 0.0, %v3048
    %v3050 = vpop.f32.mrf.mxu0
    %v3051 = vadd.f32 0.0, %v3050
    %3052 = vdwg.mxu0
    %v3053 = vpack.c.bf16 %v3046, %v3044
    %v3054 = vpack.c.bf16 %v3051, %v3049
    %3055 = vmatpush.bf16.msra.mxu0 0
    %3056 = vmatpush.bf16.msra.mxu0 0
    %3057 = vmatpush.bf16.msra.mxu0 0
    %3058 = vmatpush.bf16.msra.mxu0 0
    %3059 = vmatpush.bf16.msra.mxu0 0
    %3060 = vmatpush.bf16.msra.mxu0 0
    %3061 = vmatpush.bf16.msra.mxu0 %v3033
    %3062 = vmatpush.bf16.msra.mxu0 %v3032
    %3063 = vmatmul.bf16.gmra.mxu0 %v124
    %v3064 = vpop.f32.mrf.mxu0
    %v3065 = vadd.f32 0.0, %v3064
    %v3066 = vpop.f32.mrf.mxu0
    %v3067 = vadd.f32 0.0, %v3066
    %3068 = vmatmul.bf16.gmra.mxu0 %v127
    %v3069 = vpop.f32.mrf.mxu0
    %v3070 = vadd.f32 0.0, %v3069
    %v3071 = vpop.f32.mrf.mxu0
    %v3072 = vadd.f32 0.0, %v3071
    %3073 = vdwg.mxu0
    %v3074 = vpack.c.bf16 %v3067, %v3065
    %v3075 = vpack.c.bf16 %v3072, %v3070
    %s3076 = scalar_lea.vmem %s6, 192
    %v3077 = vld [vmem:[%s3076] sm:$0xf]
    %v3078 = vld [vmem:[%s3076 + $0x4] sm:$0xf]
    %v3079 = vld [vmem:[%s3076 + $0x8] sm:$0xf]
    %v3080 = vld [vmem:[%s3076 + $0xc] sm:$0xf]
    %v3081 = vld [vmem:[%s3076 + $0x10] sm:$0xf]
    %v3082 = vld [vmem:[%s3076 + $0x14] sm:$0xf]
    %v3083 = vld [vmem:[%s3076 + $0x18] sm:$0xf]
    %v3084 = vld [vmem:[%s3076 + $0x1c] sm:$0xf]
    %v3085 = vld [vmem:[%s3076 + $0x20] sm:$0xf]
    %v3086 = vld [vmem:[%s3076 + $0x24] sm:$0xf]
    %v3087 = vld [vmem:[%s3076 + $0x28] sm:$0xf]
    %v3088 = vld [vmem:[%s3076 + $0x2c] sm:$0xf]
    %v3089 = vld [vmem:[%s3076 + $0x30] sm:$0xf]
    %v3090 = vld [vmem:[%s3076 + $0x34] sm:$0xf]
    %v3091 = vld [vmem:[%s3076 + $0x38] sm:$0xf]
    %v3092 = vld [vmem:[%s3076 + $0x3c] sm:$0xf]
    %s3093 = scalar_lea.vmem %s6, 256
    %v3094 = vld [vmem:[%s3093] sm:$0xf]
    %v3095 = vld [vmem:[%s3093 + $0x4] sm:$0xf]
    %v3096 = vld [vmem:[%s3093 + $0x8] sm:$0xf]
    %v3097 = vld [vmem:[%s3093 + $0xc] sm:$0xf]
    %v3098 = vld [vmem:[%s3093 + $0x10] sm:$0xf]
    %v3099 = vld [vmem:[%s3093 + $0x14] sm:$0xf]
    %v3100 = vld [vmem:[%s3093 + $0x18] sm:$0xf]
    %v3101 = vld [vmem:[%s3093 + $0x1c] sm:$0xf]
    %v3102 = vld [vmem:[%s3093 + $0x20] sm:$0xf]
    %v3103 = vld [vmem:[%s3093 + $0x24] sm:$0xf]
    %v3104 = vld [vmem:[%s3093 + $0x28] sm:$0xf]
    %v3105 = vld [vmem:[%s3093 + $0x2c] sm:$0xf]
    %v3106 = vld [vmem:[%s3093 + $0x30] sm:$0xf]
    %v3107 = vld [vmem:[%s3093 + $0x34] sm:$0xf]
    %v3108 = vld [vmem:[%s3093 + $0x38] sm:$0xf]
    %v3109 = vld [vmem:[%s3093 + $0x3c] sm:$0xf]
    %v3126 = vunpack.c.l.b16 %v3094
    %v3127 = vunpack.c.l.b16 %v3095
    %v3128 = vunpack.c.l.b16 %v3096
    %v3129 = vunpack.c.l.b16 %v3097
    %v3130 = vunpack.c.l.b16 %v3098
    %v3131 = vunpack.c.l.b16 %v3099
    %v3132 = vunpack.c.l.b16 %v3100
    %v3133 = vunpack.c.l.b16 %v3101
    %v3134 = vunpack.c.l.b16 %v3102
    %v3135 = vunpack.c.l.b16 %v3103
    %v3136 = vunpack.c.l.b16 %v3104
    %v3137 = vunpack.c.l.b16 %v3105
    %v3138 = vunpack.c.l.b16 %v3106
    %v3139 = vunpack.c.l.b16 %v3107
    %v3140 = vunpack.c.l.b16 %v3108
    %v3141 = vunpack.c.l.b16 %v3109
    %v3142 = vpack.c.b16 %v3127, %v3126
    %v3143 = vpack.c.b16 %v3129, %v3128
    %v3144 = vpack.c.b16 %v3131, %v3130
    %v3145 = vpack.c.b16 %v3133, %v3132
    %v3146 = vpack.c.b16 %v3135, %v3134
    %v3147 = vpack.c.b16 %v3137, %v3136
    %v3148 = vpack.c.b16 %v3139, %v3138
    %v3149 = vpack.c.b16 %v3141, %v3140
    %3158 = vmatpush.bf16.msra.mxu0 %v3149
    %3159 = vmatpush.bf16.msra.mxu0 %v3148
    %3160 = vmatpush.bf16.msra.mxu0 %v3147
    %3161 = vmatpush.bf16.msra.mxu0 %v3146
    %3162 = vmatpush.bf16.msra.mxu0 %v3145
    %3163 = vmatpush.bf16.msra.mxu0 %v3144
    %3164 = vmatpush.bf16.msra.mxu0 %v3143
    %3165 = vmatpush.bf16.msra.mxu0 %v3142
    %3166 = vmatmul.bf16.gmra.mxu0 %v3032
    %v3167 = vpop.f32.mrf.mxu0
    %v3168 = vadd.f32 0.0, %v3167
    %v3169 = vpop.f32.mrf.mxu0
    %v3170 = vadd.f32 0.0, %v3169
    %3171 = vmatmul.bf16.gmra.mxu0 %v3033
    %v3172 = vpop.f32.mrf.mxu0
    %v3173 = vadd.f32 0.0, %v3172
    %v3174 = vpop.f32.mrf.mxu0
    %v3175 = vadd.f32 0.0, %v3174
    %3176 = vdwg.mxu0
    %v3193 = vunpack.c.l.b16 %v3077
    %v3194 = vunpack.c.l.b16 %v3078
    %v3195 = vunpack.c.l.b16 %v3079
    %v3196 = vunpack.c.l.b16 %v3080
    %v3197 = vunpack.c.l.b16 %v3081
    %v3198 = vunpack.c.l.b16 %v3082
    %v3199 = vunpack.c.l.b16 %v3083
    %v3200 = vunpack.c.l.b16 %v3084
    %v3201 = vunpack.c.l.b16 %v3085
    %v3202 = vunpack.c.l.b16 %v3086
    %v3203 = vunpack.c.l.b16 %v3087
    %v3204 = vunpack.c.l.b16 %v3088
    %v3205 = vunpack.c.l.b16 %v3089
    %v3206 = vunpack.c.l.b16 %v3090
    %v3207 = vunpack.c.l.b16 %v3091
    %v3208 = vunpack.c.l.b16 %v3092
    %v3209 = vpack.c.b16 %v3194, %v3193
    %v3210 = vpack.c.b16 %v3196, %v3195
    %v3211 = vpack.c.b16 %v3198, %v3197
    %v3212 = vpack.c.b16 %v3200, %v3199
    %v3213 = vpack.c.b16 %v3202, %v3201
    %v3214 = vpack.c.b16 %v3204, %v3203
    %v3215 = vpack.c.b16 %v3206, %v3205
    %v3216 = vpack.c.b16 %v3208, %v3207
    %3225 = vmatpush.bf16.msra.mxu0 %v3216
    %3226 = vmatpush.bf16.msra.mxu0 %v3215
    %3227 = vmatpush.bf16.msra.mxu0 %v3214
    %3228 = vmatpush.bf16.msra.mxu0 %v3213
    %3229 = vmatpush.bf16.msra.mxu0 %v3212
    %3230 = vmatpush.bf16.msra.mxu0 %v3211
    %3231 = vmatpush.bf16.msra.mxu0 %v3210
    %3232 = vmatpush.bf16.msra.mxu0 %v3209
    %3233 = vmatmul.bf16.gmra.mxu0 %v3053
    %v3234 = vpop.f32.mrf.mxu0
    %v3235 = vadd.f32 %v3168, %v3234
    %v3236 = vpop.f32.mrf.mxu0
    %v3237 = vadd.f32 %v3170, %v3236
    %3238 = vmatmul.bf16.gmra.mxu0 %v3054
    %v3239 = vpop.f32.mrf.mxu0
    %v3240 = vadd.f32 %v3173, %v3239
    %v3241 = vpop.f32.mrf.mxu0
    %v3242 = vadd.f32 %v3175, %v3241
    %3243 = vdwg.mxu0
    %s3244 = scalar_lea.vmem %s6, 320
    %v3245 = vld [vmem:[%s3244] sm:$0xf]
    %v3246 = vld [vmem:[%s3244 + $0x4] sm:$0xf]
    %v3247 = vld [vmem:[%s3244 + $0x8] sm:$0xf]
    %v3248 = vld [vmem:[%s3244 + $0xc] sm:$0xf]
    %v3249 = vld [vmem:[%s3244 + $0x10] sm:$0xf]
    %v3250 = vld [vmem:[%s3244 + $0x14] sm:$0xf]
    %v3251 = vld [vmem:[%s3244 + $0x18] sm:$0xf]
    %v3252 = vld [vmem:[%s3244 + $0x1c] sm:$0xf]
    %v3253 = vld [vmem:[%s3244 + $0x20] sm:$0xf]
    %v3254 = vld [vmem:[%s3244 + $0x24] sm:$0xf]
    %v3255 = vld [vmem:[%s3244 + $0x28] sm:$0xf]
    %v3256 = vld [vmem:[%s3244 + $0x2c] sm:$0xf]
    %v3257 = vld [vmem:[%s3244 + $0x30] sm:$0xf]
    %v3258 = vld [vmem:[%s3244 + $0x34] sm:$0xf]
    %v3259 = vld [vmem:[%s3244 + $0x38] sm:$0xf]
    %v3260 = vld [vmem:[%s3244 + $0x3c] sm:$0xf]
    %v3277 = vunpack.c.l.b16 %v3245
    %v3278 = vunpack.c.l.b16 %v3246
    %v3279 = vunpack.c.l.b16 %v3247
    %v3280 = vunpack.c.l.b16 %v3248
    %v3281 = vunpack.c.l.b16 %v3249
    %v3282 = vunpack.c.l.b16 %v3250
    %v3283 = vunpack.c.l.b16 %v3251
    %v3284 = vunpack.c.l.b16 %v3252
    %v3285 = vunpack.c.l.b16 %v3253
    %v3286 = vunpack.c.l.b16 %v3254
    %v3287 = vunpack.c.l.b16 %v3255
    %v3288 = vunpack.c.l.b16 %v3256
    %v3289 = vunpack.c.l.b16 %v3257
    %v3290 = vunpack.c.l.b16 %v3258
    %v3291 = vunpack.c.l.b16 %v3259
    %v3292 = vunpack.c.l.b16 %v3260
    %v3293 = vpack.c.b16 %v3278, %v3277
    %v3294 = vpack.c.b16 %v3280, %v3279
    %v3295 = vpack.c.b16 %v3282, %v3281
    %v3296 = vpack.c.b16 %v3284, %v3283
    %v3297 = vpack.c.b16 %v3286, %v3285
    %v3298 = vpack.c.b16 %v3288, %v3287
    %v3299 = vpack.c.b16 %v3290, %v3289
    %v3300 = vpack.c.b16 %v3292, %v3291
    %3309 = vmatpush.bf16.msra.mxu0 %v3300
    %3310 = vmatpush.bf16.msra.mxu0 %v3299
    %3311 = vmatpush.bf16.msra.mxu0 %v3298
    %3312 = vmatpush.bf16.msra.mxu0 %v3297
    %3313 = vmatpush.bf16.msra.mxu0 %v3296
    %3314 = vmatpush.bf16.msra.mxu0 %v3295
    %3315 = vmatpush.bf16.msra.mxu0 %v3294
    %3316 = vmatpush.bf16.msra.mxu0 %v3293
    %3317 = vmatmul.bf16.gmra.mxu0 %v3074
    %v3318 = vpop.f32.mrf.mxu0
    %v3319 = vadd.f32 0.0, %v3318
    %v3320 = vpop.f32.mrf.mxu0
    %v3321 = vadd.f32 0.0, %v3320
    %3322 = vmatmul.bf16.gmra.mxu0 %v3075
    %v3323 = vpop.f32.mrf.mxu0
    %v3324 = vadd.f32 0.0, %v3323
    %v3325 = vpop.f32.mrf.mxu0
    %v3326 = vadd.f32 0.0, %v3325
    %3327 = vdwg.mxu0
    %v3328 = vadd.f32 %v3235, %v3319
    %v3329 = vadd.f32 %v3237, %v3321
    %v3330 = vadd.f32 %v3240, %v3324
    %v3331 = vadd.f32 %v3242, %v3326
    %s3332 = scalar_lea.vmem %s7, 1
    %v3333 = vld [vmem:[%s3332] sm:$0x1]
    %v3335 = vperm.slane %v3333, 0
    %v3337 = vadd.f32 %v3328, %v3335
    %v3338 = vadd.f32 %v3329, %v3335
    %v3339 = vadd.f32 %v3330, %v3335
    %v3340 = vadd.f32 %v3331, %v3335
    %v3341 = vtanh.pop %v3337
    %v3342 = vtanh.pop %v3338
    %v3343 = vtanh.pop %v3339
    %v3344 = vtanh.pop %v3340
    %v3345 = vxor.u32 %v3337, 2147483648
    %v3346 = vxor.u32 %v3338, 2147483648
    %v3347 = vxor.u32 %v3339, 2147483648
    %v3348 = vxor.u32 %v3340, 2147483648
    %v3349 = vmul.f32 %v3345, 1.442695
    %v3350 = vpow.pop %v3349
    %v3351 = vmul.f32 %v3346, 1.442695
    %v3352 = vpow.pop %v3351
    %v3353 = vmul.f32 %v3347, 1.442695
    %v3354 = vpow.pop %v3353
    %v3355 = vmul.f32 %v3348, 1.442695
    %v3356 = vpow.pop %v3355
    %v3357 = vadd.f32 %v3350, 1.0
    %v3358 = vadd.f32 %v3352, 1.0
    %v3359 = vadd.f32 %v3354, 1.0
    %v3360 = vadd.f32 %v3356, 1.0
    %v3361 = vrcp.pop %v3357
    %v3362 = vmul.f32 %v3357, %v3361
    %v3363 = vsub.f32 1.0, %v3362
    %v3364 = vmul.f32 %v3361, %v3363
    %v3365 = vadd.f32 %v3361, %v3364
    %vm3366 = vweird.f32 %v3357
    %vm3367 = vweird.f32 %v3361
    %vm3368 = vmor %vm3366, %vm3367
    %v3369 = vsel %vm3368, %v3361, %v3365
    %v3370 = vand.u32 2147483647, %v3357
    %vm3371 = vcmp.eq.f32.partialorder %v3370, 8.507059e+37
    %v3372 = vand.u32 %v3357, 2147483648
    %v3373 = vor.u32 1.1754944e-38, %v3372
    %v3374 = vsel %vm3371, %v3373, %v3369
    %v3375 = vmul.f32 1.0, %v3374
    %v3376 = vrcp.pop %v3358
    %v3377 = vmul.f32 %v3358, %v3376
    %v3378 = vsub.f32 1.0, %v3377
    %v3379 = vmul.f32 %v3376, %v3378
    %v3380 = vadd.f32 %v3376, %v3379
    %vm3381 = vweird.f32 %v3358
    %vm3382 = vweird.f32 %v3376
    %vm3383 = vmor %vm3381, %vm3382
    %v3384 = vsel %vm3383, %v3376, %v3380
    %v3385 = vand.u32 2147483647, %v3358
    %vm3386 = vcmp.eq.f32.partialorder %v3385, 8.507059e+37
    %v3387 = vand.u32 %v3358, 2147483648
    %v3388 = vor.u32 1.1754944e-38, %v3387
    %v3389 = vsel %vm3386, %v3388, %v3384
    %v3390 = vmul.f32 1.0, %v3389
    %v3391 = vrcp.pop %v3359
    %v3392 = vmul.f32 %v3359, %v3391
    %v3393 = vsub.f32 1.0, %v3392
    %v3394 = vmul.f32 %v3391, %v3393
    %v3395 = vadd.f32 %v3391, %v3394
    %vm3396 = vweird.f32 %v3359
    %vm3397 = vweird.f32 %v3391
    %vm3398 = vmor %vm3396, %vm3397
    %v3399 = vsel %vm3398, %v3391, %v3395
    %v3400 = vand.u32 2147483647, %v3359
    %vm3401 = vcmp.eq.f32.partialorder %v3400, 8.507059e+37
    %v3402 = vand.u32 %v3359, 2147483648
    %v3403 = vor.u32 1.1754944e-38, %v3402
    %v3404 = vsel %vm3401, %v3403, %v3399
    %v3405 = vmul.f32 1.0, %v3404
    %v3406 = vrcp.pop %v3360
    %v3407 = vmul.f32 %v3360, %v3406
    %v3408 = vsub.f32 1.0, %v3407
    %v3409 = vmul.f32 %v3406, %v3408
    %v3410 = vadd.f32 %v3406, %v3409
    %vm3411 = vweird.f32 %v3360
    %vm3412 = vweird.f32 %v3406
    %vm3413 = vmor %vm3411, %vm3412
    %v3414 = vsel %vm3413, %v3406, %v3410
    %v3415 = vand.u32 2147483647, %v3360
    %vm3416 = vcmp.eq.f32.partialorder %v3415, 8.507059e+37
    %v3417 = vand.u32 %v3360, 2147483648
    %v3418 = vor.u32 1.1754944e-38, %v3417
    %v3419 = vsel %vm3416, %v3418, %v3414
    %v3420 = vmul.f32 1.0, %v3419
    %3425 = vrot.lane.b32.xlu0 %v3341, 64
    %v3426 = vpop.permute.xlu0 %3425
    %3427 = vrot.lane.b32.xlu0 %v3342, 64
    %v3428 = vpop.permute.xlu0 %3427
    %3429 = vrot.lane.b32.xlu0 %v3343, 64
    %v3430 = vpop.permute.xlu0 %3429
    %3431 = vrot.lane.b32.xlu0 %v3344, 64
    %v3432 = vpop.permute.xlu0 %3431
    %vm3437 = vcmask 916992
    %3438 = vst.msk [vmem:[%s13] sm:$0xff] %vm3437, %v3426
    %3439 = vst.msk [vmem:[%s13 + $0x10] sm:$0xff] %vm3437, %v3428
    %3440 = vst.msk [vmem:[%s13 + $0x20] sm:$0xff] %vm3437, %v3430
    %3441 = vst.msk [vmem:[%s13 + $0x30] sm:$0xff] %vm3437, %v3432
    %3446 = vrot.lane.b32.xlu0 %v3375, 64
    %v3447 = vpop.permute.xlu0 %3446
    %3448 = vrot.lane.b32.xlu0 %v3390, 64
    %v3449 = vpop.permute.xlu0 %3448
    %3450 = vrot.lane.b32.xlu0 %v3405, 64
    %v3451 = vpop.permute.xlu0 %3450
    %3452 = vrot.lane.b32.xlu0 %v3420, 64
    %v3453 = vpop.permute.xlu0 %3452
    %vm3458 = vcmask 1048448
    %3459 = vst.msk [vmem:[%s13] sm:$0xff] %vm3458, %v3447
    %3460 = vst.msk [vmem:[%s13 + $0x10] sm:$0xff] %vm3458, %v3449
    %3461 = vst.msk [vmem:[%s13 + $0x20] sm:$0xff] %vm3458, %v3451
    %3462 = vst.msk [vmem:[%s13 + $0x30] sm:$0xff] %vm3458, %v3453
    %v3463 = vld [vmem:[%s5] sm:$0xff]
    %v3464 = vld [vmem:[%s5 + $0x8] sm:$0xff]
    %3465 = vrot.lane.b32.xlu0 %v3375, 80
    %v3466 = vpop.permute.xlu0 %3465
    %3467 = vrot.lane.b32.xlu0 %v3390, 80
    %v3468 = vpop.permute.xlu0 %3467
    %3469 = vrot.lane.b32.xlu0 %v3405, 80
    %v3470 = vpop.permute.xlu0 %3469
    %3471 = vrot.lane.b32.xlu0 %v3420, 80
    %v3472 = vpop.permute.xlu0 %3471
    %v3473 = vsel %vm517, %v3466, 0
    %v3475 = vsel %vm517, %v3468, 0
    %v3477 = vsel %vm517, %v3470, 0
    %v3479 = vsel %vm517, %v3472, 0
    %3481 = vmatpush.msra.mxu0 0.0
    %3482 = vmatpush.msra.mxu0 0.0
    %3483 = vmatpush.msra.mxu0 0.0
    %3484 = vmatpush.msra.mxu0 0.0
    %3485 = vmatpush.msra.mxu0 0.0
    %3486 = vmatpush.msra.mxu0 0.0
    %3487 = vmatpush.msra.mxu0 0.0
    %3488 = vmatpush.msra.mxu0 0.0
    %3489 = vmatpush.msra.mxu0 0.0
    %3490 = vmatpush.msra.mxu0 0.0
    %3491 = vmatpush.msra.mxu0 0.0
    %3492 = vmatpush.msra.mxu0 0.0
    %3493 = vmatpush.msra.mxu0 0.0
    %3494 = vmatpush.msra.mxu0 0.0
    %3495 = vmatpush.msra.mxu0 %v3464
    %3496 = vmatpush.msra.mxu0 %v3463
    %3497 = vmatmul.f32.gmra.mxu0 %v3473
    %v3498 = vpop.f32.mrf.mxu0
    %v3499 = vadd.f32 0.0, %v3498
    %3500 = vmatmul.f32.gmra.mxu0 %v3475
    %v3501 = vpop.f32.mrf.mxu0
    %v3502 = vadd.f32 0.0, %v3501
    %3503 = vmatmul.f32.gmra.mxu0 %v3477
    %v3504 = vpop.f32.mrf.mxu0
    %v3505 = vadd.f32 0.0, %v3504
    %3506 = vmatmul.f32.gmra.mxu0 %v3479
    %v3507 = vpop.f32.mrf.mxu0
    %v3508 = vadd.f32 0.0, %v3507
    %3509 = vdwg.mxu0
    %v3510 = vmul.f32 %v3341, %v3499
    %v3511 = vmul.f32 %v3342, %v3502
    %v3512 = vmul.f32 %v3343, %v3505
    %v3513 = vmul.f32 %v3344, %v3508
    %v3514 = vsub.f32 1.0, %v3499
    %v3515 = vsub.f32 1.0, %v3502
    %v3516 = vsub.f32 1.0, %v3505
    %v3517 = vsub.f32 1.0, %v3508
    %v3518 = vmul.f32 %v555, %v3514
    %v3519 = vmul.f32 %v556, %v3515
    %v3520 = vmul.f32 %v557, %v3516
    %v3521 = vmul.f32 %v558, %v3517
    %v3522 = vadd.f32 %v3510, %v3518
    %v3523 = vadd.f32 %v3511, %v3519
    %v3524 = vadd.f32 %v3512, %v3520
    %v3525 = vadd.f32 %v3513, %v3521
    %v3526 = vsub.f32 1.0, %v447
    %v3527 = vsub.f32 1.0, %v462
    %v3528 = vsub.f32 1.0, %v477
    %v3529 = vsub.f32 1.0, %v492
    %v3530 = vsub.f32 1.0, %v3375
    %v3531 = vsub.f32 1.0, %v3390
    %v3532 = vsub.f32 1.0, %v3405
    %v3533 = vsub.f32 1.0, %v3420
    %v3534 = vmul.f32 %v3526, %v3530
    %v3535 = vmul.f32 %v3527, %v3531
    %v3536 = vmul.f32 %v3528, %v3532
    %v3537 = vmul.f32 %v3529, %v3533
    %v3538 = vsub.f32 1.0, %v3534
    %v3539 = vsub.f32 1.0, %v3535
    %v3540 = vsub.f32 1.0, %v3536
    %v3541 = vsub.f32 1.0, %v3537
    %s3542 = scalar_lea.vmem %s11, 64
    %v3543 = vld [vmem:[%s3542] sm:$0xf]
    %v3544 = vld [vmem:[%s3542 + $0x4] sm:$0xf]
    %v3545 = vld [vmem:[%s3542 + $0x8] sm:$0xf]
    %v3546 = vld [vmem:[%s3542 + $0xc] sm:$0xf]
    %v3547 = vld [vmem:[%s3542 + $0x10] sm:$0xf]
    %v3548 = vld [vmem:[%s3542 + $0x14] sm:$0xf]
    %v3549 = vld [vmem:[%s3542 + $0x18] sm:$0xf]
    %v3550 = vld [vmem:[%s3542 + $0x1c] sm:$0xf]
    %v3551 = vld [vmem:[%s3542 + $0x20] sm:$0xf]
    %v3552 = vld [vmem:[%s3542 + $0x24] sm:$0xf]
    %v3553 = vld [vmem:[%s3542 + $0x28] sm:$0xf]
    %v3554 = vld [vmem:[%s3542 + $0x2c] sm:$0xf]
    %v3555 = vld [vmem:[%s3542 + $0x30] sm:$0xf]
    %v3556 = vld [vmem:[%s3542 + $0x34] sm:$0xf]
    %v3557 = vld [vmem:[%s3542 + $0x38] sm:$0xf]
    %v3558 = vld [vmem:[%s3542 + $0x3c] sm:$0xf]
    %v3575 = vunpack.c.l.b16 %v3543
    %v3576 = vunpack.c.l.b16 %v3544
    %v3577 = vunpack.c.l.b16 %v3545
    %v3578 = vunpack.c.l.b16 %v3546
    %v3579 = vunpack.c.l.b16 %v3547
    %v3580 = vunpack.c.l.b16 %v3548
    %v3581 = vunpack.c.l.b16 %v3549
    %v3582 = vunpack.c.l.b16 %v3550
    %v3583 = vunpack.c.l.b16 %v3551
    %v3584 = vunpack.c.l.b16 %v3552
    %v3585 = vunpack.c.l.b16 %v3553
    %v3586 = vunpack.c.l.b16 %v3554
    %v3587 = vunpack.c.l.b16 %v3555
    %v3588 = vunpack.c.l.b16 %v3556
    %v3589 = vunpack.c.l.b16 %v3557
    %v3590 = vunpack.c.l.b16 %v3558
    %v3591 = vpack.c.b16 %v3576, %v3575
    %v3592 = vpack.c.b16 %v3578, %v3577
    %v3593 = vpack.c.b16 %v3580, %v3579
    %v3594 = vpack.c.b16 %v3582, %v3581
    %v3595 = vpack.c.b16 %v3584, %v3583
    %v3596 = vpack.c.b16 %v3586, %v3585
    %v3597 = vpack.c.b16 %v3588, %v3587
    %v3598 = vpack.c.b16 %v3590, %v3589
    %3607 = vmatpush.bf16.msra.mxu0 %v3598
    %3608 = vmatpush.bf16.msra.mxu0 %v3597
    %3609 = vmatpush.bf16.msra.mxu0 %v3596
    %3610 = vmatpush.bf16.msra.mxu0 %v3595
    %3611 = vmatpush.bf16.msra.mxu0 %v3594
    %3612 = vmatpush.bf16.msra.mxu0 %v3593
    %3613 = vmatpush.bf16.msra.mxu0 %v3592
    %3614 = vmatpush.bf16.msra.mxu0 %v3591
    %3615 = vmatmul.bf16.gmra.mxu0 %v3032
    %v3616 = vpop.f32.mrf.mxu0
    %v3617 = vadd.f32 0.0, %v3616
    %v3618 = vpop.f32.mrf.mxu0
    %v3619 = vadd.f32 0.0, %v3618
    %3620 = vmatmul.bf16.gmra.mxu0 %v3033
    %v3621 = vpop.f32.mrf.mxu0
    %v3622 = vadd.f32 0.0, %v3621
    %v3623 = vpop.f32.mrf.mxu0
    %v3624 = vadd.f32 0.0, %v3623
    %3625 = vdwg.mxu0
    %v3642 = vunpack.c.l.b16 %v559
    %v3643 = vunpack.c.l.b16 %v560
    %v3644 = vunpack.c.l.b16 %v561
    %v3645 = vunpack.c.l.b16 %v562
    %v3646 = vunpack.c.l.b16 %v563
    %v3647 = vunpack.c.l.b16 %v564
    %v3648 = vunpack.c.l.b16 %v565
    %v3649 = vunpack.c.l.b16 %v566
    %v3650 = vunpack.c.l.b16 %v567
    %v3651 = vunpack.c.l.b16 %v568
    %v3652 = vunpack.c.l.b16 %v569
    %v3653 = vunpack.c.l.b16 %v570
    %v3654 = vunpack.c.l.b16 %v571
    %v3655 = vunpack.c.l.b16 %v572
    %v3656 = vunpack.c.l.b16 %v573
    %v3657 = vunpack.c.l.b16 %v574
    %v3658 = vpack.c.b16 %v3643, %v3642
    %v3659 = vpack.c.b16 %v3645, %v3644
    %v3660 = vpack.c.b16 %v3647, %v3646
    %v3661 = vpack.c.b16 %v3649, %v3648
    %v3662 = vpack.c.b16 %v3651, %v3650
    %v3663 = vpack.c.b16 %v3653, %v3652
    %v3664 = vpack.c.b16 %v3655, %v3654
    %v3665 = vpack.c.b16 %v3657, %v3656
    %3674 = vmatpush.bf16.msra.mxu0 %v3665
    %3675 = vmatpush.bf16.msra.mxu0 %v3664
    %3676 = vmatpush.bf16.msra.mxu0 %v3663
    %3677 = vmatpush.bf16.msra.mxu0 %v3662
    %3678 = vmatpush.bf16.msra.mxu0 %v3661
    %3679 = vmatpush.bf16.msra.mxu0 %v3660
    %3680 = vmatpush.bf16.msra.mxu0 %v3659
    %3681 = vmatpush.bf16.msra.mxu0 %v3658
    %3682 = vmatmul.bf16.gmra.mxu0 %v73
    %v3683 = vpop.f32.mrf.mxu0
    %v3684 = vadd.f32 %v3617, %v3683
    %v3685 = vpop.f32.mrf.mxu0
    %v3686 = vadd.f32 %v3619, %v3685
    %3687 = vmatmul.bf16.gmra.mxu0 %v74
    %v3688 = vpop.f32.mrf.mxu0
    %v3689 = vadd.f32 %v3622, %v3688
    %v3690 = vpop.f32.mrf.mxu0
    %v3691 = vadd.f32 %v3624, %v3690
    %3692 = vdwg.mxu0
    %s3693 = scalar_lea.vmem %s1, 32
    %v3694 = vld [vmem:[%s3693] sm:$0xff]
    %v3695 = vld [vmem:[%s3693 + $0x8] sm:$0xff]
    %v3696 = vld [vmem:[%s3693 + $0x10] sm:$0xff]
    %v3697 = vld [vmem:[%s3693 + $0x18] sm:$0xff]
    %v3698 = vpack.c.bf16 %v3695, %v3694
    %v3699 = vpack.c.bf16 %v3697, %v3696
    %3700 = vmatpush.bf16.msra.mxu0 0
    %3701 = vmatpush.bf16.msra.mxu0 0
    %3702 = vmatpush.bf16.msra.mxu0 0
    %3703 = vmatpush.bf16.msra.mxu0 0
    %3704 = vmatpush.bf16.msra.mxu0 0
    %3705 = vmatpush.bf16.msra.mxu0 0
    %3706 = vmatpush.bf16.msra.mxu0 %v3699
    %3707 = vmatpush.bf16.msra.mxu0 %v3698
    %3708 = vmatmul.bf16.gmra.mxu0 %v87
    %v3709 = vpop.f32.mrf.mxu0
    %v3710 = vadd.f32 0.0, %v3709
    %v3711 = vpop.f32.mrf.mxu0
    %v3712 = vadd.f32 0.0, %v3711
    %3713 = vmatmul.bf16.gmra.mxu0 %v90
    %v3714 = vpop.f32.mrf.mxu0
    %v3715 = vadd.f32 0.0, %v3714
    %v3716 = vpop.f32.mrf.mxu0
    %v3717 = vadd.f32 0.0, %v3716
    %3718 = vdwg.mxu0
    %v3719 = vpack.c.bf16 %v3712, %v3710
    %v3720 = vpack.c.bf16 %v3717, %v3715
    %3721 = vmatpush.bf16.msra.mxu0 0
    %3722 = vmatpush.bf16.msra.mxu0 0
    %3723 = vmatpush.bf16.msra.mxu0 0
    %3724 = vmatpush.bf16.msra.mxu0 0
    %3725 = vmatpush.bf16.msra.mxu0 0
    %3726 = vmatpush.bf16.msra.mxu0 0
    %3727 = vmatpush.bf16.msra.mxu0 %v3699
    %3728 = vmatpush.bf16.msra.mxu0 %v3698
    %3729 = vmatmul.bf16.gmra.mxu0 %v124
    %v3730 = vpop.f32.mrf.mxu0
    %v3731 = vadd.f32 0.0, %v3730
    %v3732 = vpop.f32.mrf.mxu0
    %v3733 = vadd.f32 0.0, %v3732
    %3734 = vmatmul.bf16.gmra.mxu0 %v127
    %v3735 = vpop.f32.mrf.mxu0
    %v3736 = vadd.f32 0.0, %v3735
    %v3737 = vpop.f32.mrf.mxu0
    %v3738 = vadd.f32 0.0, %v3737
    %3739 = vdwg.mxu0
    %v3740 = vpack.c.bf16 %v3733, %v3731
    %v3741 = vpack.c.bf16 %v3738, %v3736
    %s3742 = scalar_lea.vmem [#allocation2], 960
    %v3743 = vld [vmem:[%s3742] sm:$0xf]
    %v3744 = vld [vmem:[%s3742 + $0x4] sm:$0xf]
    %v3745 = vld [vmem:[%s3742 + $0x8] sm:$0xf]
    %v3746 = vld [vmem:[%s3742 + $0xc] sm:$0xf]
    %v3747 = vld [vmem:[%s3742 + $0x10] sm:$0xf]
    %v3748 = vld [vmem:[%s3742 + $0x14] sm:$0xf]
    %v3749 = vld [vmem:[%s3742 + $0x18] sm:$0xf]
    %v3750 = vld [vmem:[%s3742 + $0x1c] sm:$0xf]
    %v3751 = vld [vmem:[%s3742 + $0x20] sm:$0xf]
    %v3752 = vld [vmem:[%s3742 + $0x24] sm:$0xf]
    %v3753 = vld [vmem:[%s3742 + $0x28] sm:$0xf]
    %v3754 = vld [vmem:[%s3742 + $0x2c] sm:$0xf]
    %v3755 = vld [vmem:[%s3742 + $0x30] sm:$0xf]
    %v3756 = vld [vmem:[%s3742 + $0x34] sm:$0xf]
    %v3757 = vld [vmem:[%s3742 + $0x38] sm:$0xf]
    %v3758 = vld [vmem:[%s3742 + $0x3c] sm:$0xf]
    %s3759 = scalar_lea.vmem [#allocation2], 1024
    %v3760 = vld [vmem:[%s3759] sm:$0xf]
    %v3761 = vld [vmem:[%s3759 + $0x4] sm:$0xf]
    %v3762 = vld [vmem:[%s3759 + $0x8] sm:$0xf]
    %v3763 = vld [vmem:[%s3759 + $0xc] sm:$0xf]
    %v3764 = vld [vmem:[%s3759 + $0x10] sm:$0xf]
    %v3765 = vld [vmem:[%s3759 + $0x14] sm:$0xf]
    %v3766 = vld [vmem:[%s3759 + $0x18] sm:$0xf]
    %v3767 = vld [vmem:[%s3759 + $0x1c] sm:$0xf]
    %v3768 = vld [vmem:[%s3759 + $0x20] sm:$0xf]
    %v3769 = vld [vmem:[%s3759 + $0x24] sm:$0xf]
    %v3770 = vld [vmem:[%s3759 + $0x28] sm:$0xf]
    %v3771 = vld [vmem:[%s3759 + $0x2c] sm:$0xf]
    %v3772 = vld [vmem:[%s3759 + $0x30] sm:$0xf]
    %v3773 = vld [vmem:[%s3759 + $0x34] sm:$0xf]
    %v3774 = vld [vmem:[%s3759 + $0x38] sm:$0xf]
    %v3775 = vld [vmem:[%s3759 + $0x3c] sm:$0xf]
    %v3792 = vunpack.c.l.b16 %v3760
    %v3793 = vunpack.c.l.b16 %v3761
    %v3794 = vunpack.c.l.b16 %v3762
    %v3795 = vunpack.c.l.b16 %v3763
    %v3796 = vunpack.c.l.b16 %v3764
    %v3797 = vunpack.c.l.b16 %v3765
    %v3798 = vunpack.c.l.b16 %v3766
    %v3799 = vunpack.c.l.b16 %v3767
    %v3800 = vunpack.c.l.b16 %v3768
    %v3801 = vunpack.c.l.b16 %v3769
    %v3802 = vunpack.c.l.b16 %v3770
    %v3803 = vunpack.c.l.b16 %v3771
    %v3804 = vunpack.c.l.b16 %v3772
    %v3805 = vunpack.c.l.b16 %v3773
    %v3806 = vunpack.c.l.b16 %v3774
    %v3807 = vunpack.c.l.b16 %v3775
    %v3808 = vpack.c.b16 %v3793, %v3792
    %v3809 = vpack.c.b16 %v3795, %v3794
    %v3810 = vpack.c.b16 %v3797, %v3796
    %v3811 = vpack.c.b16 %v3799, %v3798
    %v3812 = vpack.c.b16 %v3801, %v3800
    %v3813 = vpack.c.b16 %v3803, %v3802
    %v3814 = vpack.c.b16 %v3805, %v3804
    %v3815 = vpack.c.b16 %v3807, %v3806
    %3824 = vmatpush.bf16.msra.mxu0 %v3815
    %3825 = vmatpush.bf16.msra.mxu0 %v3814
    %3826 = vmatpush.bf16.msra.mxu0 %v3813
    %3827 = vmatpush.bf16.msra.mxu0 %v3812
    %3828 = vmatpush.bf16.msra.mxu0 %v3811
    %3829 = vmatpush.bf16.msra.mxu0 %v3810
    %3830 = vmatpush.bf16.msra.mxu0 %v3809
    %3831 = vmatpush.bf16.msra.mxu0 %v3808
    %3832 = vmatmul.bf16.gmra.mxu0 %v3032
    %v3833 = vpop.f32.mrf.mxu0
    %v3834 = vadd.f32 0.0, %v3833
    %v3835 = vpop.f32.mrf.mxu0
    %v3836 = vadd.f32 0.0, %v3835
    %3837 = vmatmul.bf16.gmra.mxu0 %v3033
    %v3838 = vpop.f32.mrf.mxu0
    %v3839 = vadd.f32 0.0, %v3838
    %v3840 = vpop.f32.mrf.mxu0
    %v3841 = vadd.f32 0.0, %v3840
    %3842 = vdwg.mxu0
    %v3859 = vunpack.c.l.b16 %v3743
    %v3860 = vunpack.c.l.b16 %v3744
    %v3861 = vunpack.c.l.b16 %v3745
    %v3862 = vunpack.c.l.b16 %v3746
    %v3863 = vunpack.c.l.b16 %v3747
    %v3864 = vunpack.c.l.b16 %v3748
    %v3865 = vunpack.c.l.b16 %v3749
    %v3866 = vunpack.c.l.b16 %v3750
    %v3867 = vunpack.c.l.b16 %v3751
    %v3868 = vunpack.c.l.b16 %v3752
    %v3869 = vunpack.c.l.b16 %v3753
    %v3870 = vunpack.c.l.b16 %v3754
    %v3871 = vunpack.c.l.b16 %v3755
    %v3872 = vunpack.c.l.b16 %v3756
    %v3873 = vunpack.c.l.b16 %v3757
    %v3874 = vunpack.c.l.b16 %v3758
    %v3875 = vpack.c.b16 %v3860, %v3859
    %v3876 = vpack.c.b16 %v3862, %v3861
    %v3877 = vpack.c.b16 %v3864, %v3863
    %v3878 = vpack.c.b16 %v3866, %v3865
    %v3879 = vpack.c.b16 %v3868, %v3867
    %v3880 = vpack.c.b16 %v3870, %v3869
    %v3881 = vpack.c.b16 %v3872, %v3871
    %v3882 = vpack.c.b16 %v3874, %v3873
    %3891 = vmatpush.bf16.msra.mxu0 %v3882
    %3892 = vmatpush.bf16.msra.mxu0 %v3881
    %3893 = vmatpush.bf16.msra.mxu0 %v3880
    %3894 = vmatpush.bf16.msra.mxu0 %v3879
    %3895 = vmatpush.bf16.msra.mxu0 %v3878
    %3896 = vmatpush.bf16.msra.mxu0 %v3877
    %3897 = vmatpush.bf16.msra.mxu0 %v3876
    %3898 = vmatpush.bf16.msra.mxu0 %v3875
    %3899 = vmatmul.bf16.gmra.mxu0 %v3053
    %v3900 = vpop.f32.mrf.mxu0
    %v3901 = vadd.f32 %v3834, %v3900
    %v3902 = vpop.f32.mrf.mxu0
    %v3903 = vadd.f32 %v3836, %v3902
    %3904 = vmatmul.bf16.gmra.mxu0 %v3054
    %v3905 = vpop.f32.mrf.mxu0
    %v3906 = vadd.f32 %v3839, %v3905
    %v3907 = vpop.f32.mrf.mxu0
    %v3908 = vadd.f32 %v3841, %v3907
    %3909 = vdwg.mxu0
    %s3910 = scalar_lea.vmem [#allocation2], 1088
    %v3911 = vld [vmem:[%s3910] sm:$0xf]
    %v3912 = vld [vmem:[%s3910 + $0x4] sm:$0xf]
    %v3913 = vld [vmem:[%s3910 + $0x8] sm:$0xf]
    %v3914 = vld [vmem:[%s3910 + $0xc] sm:$0xf]
    %v3915 = vld [vmem:[%s3910 + $0x10] sm:$0xf]
    %v3916 = vld [vmem:[%s3910 + $0x14] sm:$0xf]
    %v3917 = vld [vmem:[%s3910 + $0x18] sm:$0xf]
    %v3918 = vld [vmem:[%s3910 + $0x1c] sm:$0xf]
    %v3919 = vld [vmem:[%s3910 + $0x20] sm:$0xf]
    %v3920 = vld [vmem:[%s3910 + $0x24] sm:$0xf]
    %v3921 = vld [vmem:[%s3910 + $0x28] sm:$0xf]
    %v3922 = vld [vmem:[%s3910 + $0x2c] sm:$0xf]
    %v3923 = vld [vmem:[%s3910 + $0x30] sm:$0xf]
    %v3924 = vld [vmem:[%s3910 + $0x34] sm:$0xf]
    %v3925 = vld [vmem:[%s3910 + $0x38] sm:$0xf]
    %v3926 = vld [vmem:[%s3910 + $0x3c] sm:$0xf]
    %v3943 = vunpack.c.l.b16 %v3911
    %v3944 = vunpack.c.l.b16 %v3912
    %v3945 = vunpack.c.l.b16 %v3913
    %v3946 = vunpack.c.l.b16 %v3914
    %v3947 = vunpack.c.l.b16 %v3915
    %v3948 = vunpack.c.l.b16 %v3916
    %v3949 = vunpack.c.l.b16 %v3917
    %v3950 = vunpack.c.l.b16 %v3918
    %v3951 = vunpack.c.l.b16 %v3919
    %v3952 = vunpack.c.l.b16 %v3920
    %v3953 = vunpack.c.l.b16 %v3921
    %v3954 = vunpack.c.l.b16 %v3922
    %v3955 = vunpack.c.l.b16 %v3923
    %v3956 = vunpack.c.l.b16 %v3924
    %v3957 = vunpack.c.l.b16 %v3925
    %v3958 = vunpack.c.l.b16 %v3926
    %v3959 = vpack.c.b16 %v3944, %v3943
    %v3960 = vpack.c.b16 %v3946, %v3945
    %v3961 = vpack.c.b16 %v3948, %v3947
    %v3962 = vpack.c.b16 %v3950, %v3949
    %v3963 = vpack.c.b16 %v3952, %v3951
    %v3964 = vpack.c.b16 %v3954, %v3953
    %v3965 = vpack.c.b16 %v3956, %v3955
    %v3966 = vpack.c.b16 %v3958, %v3957
    %3975 = vmatpush.bf16.msra.mxu0 %v3966
    %3976 = vmatpush.bf16.msra.mxu0 %v3965
    %3977 = vmatpush.bf16.msra.mxu0 %v3964
    %3978 = vmatpush.bf16.msra.mxu0 %v3963
    %3979 = vmatpush.bf16.msra.mxu0 %v3962
    %3980 = vmatpush.bf16.msra.mxu0 %v3961
    %3981 = vmatpush.bf16.msra.mxu0 %v3960
    %3982 = vmatpush.bf16.msra.mxu0 %v3959
    %3983 = vmatmul.bf16.gmra.mxu0 %v3074
    %v3984 = vpop.f32.mrf.mxu0
    %v3985 = vadd.f32 0.0, %v3984
    %v3986 = vpop.f32.mrf.mxu0
    %v3987 = vadd.f32 0.0, %v3986
    %3988 = vmatmul.bf16.gmra.mxu0 %v3075
    %v3989 = vpop.f32.mrf.mxu0
    %v3990 = vadd.f32 0.0, %v3989
    %v3991 = vpop.f32.mrf.mxu0
    %v3992 = vadd.f32 0.0, %v3991
    %3993 = vdwg.mxu0
    %v3994 = vadd.f32 %v3901, %v3985
    %v3995 = vadd.f32 %v3903, %v3987
    %v3996 = vadd.f32 %v3906, %v3990
    %v3997 = vadd.f32 %v3908, %v3992
    %s3998 = scalar_lea.vmem %s9, 192
    %v3999 = vld [vmem:[%s3998] sm:$0xf]
    %v4000 = vld [vmem:[%s3998 + $0x4] sm:$0xf]
    %v4001 = vld [vmem:[%s3998 + $0x8] sm:$0xf]
    %v4002 = vld [vmem:[%s3998 + $0xc] sm:$0xf]
    %v4003 = vld [vmem:[%s3998 + $0x10] sm:$0xf]
    %v4004 = vld [vmem:[%s3998 + $0x14] sm:$0xf]
    %v4005 = vld [vmem:[%s3998 + $0x18] sm:$0xf]
    %v4006 = vld [vmem:[%s3998 + $0x1c] sm:$0xf]
    %s4007 = scalar_lea.vmem %s9, 224
    %v4008 = vld [vmem:[%s4007] sm:$0xf]
    %v4009 = vld [vmem:[%s4007 + $0x4] sm:$0xf]
    %v4010 = vld [vmem:[%s4007 + $0x8] sm:$0xf]
    %v4011 = vld [vmem:[%s4007 + $0xc] sm:$0xf]
    %v4012 = vld [vmem:[%s4007 + $0x10] sm:$0xf]
    %v4013 = vld [vmem:[%s4007 + $0x14] sm:$0xf]
    %v4014 = vld [vmem:[%s4007 + $0x18] sm:$0xf]
    %v4015 = vld [vmem:[%s4007 + $0x1c] sm:$0xf]
    %v4024 = vunpack.c.l.b16 %v4008
    %v4025 = vunpack.c.l.b16 %v4009
    %v4026 = vunpack.c.l.b16 %v4010
    %v4027 = vunpack.c.l.b16 %v4011
    %v4028 = vunpack.c.l.b16 %v4012
    %v4029 = vunpack.c.l.b16 %v4013
    %v4030 = vunpack.c.l.b16 %v4014
    %v4031 = vunpack.c.l.b16 %v4015
    %v4032 = vpack.c.b16 %v4025, %v4024
    %v4033 = vpack.c.b16 %v4027, %v4026
    %v4034 = vpack.c.b16 %v4029, %v4028
    %v4035 = vpack.c.b16 %v4031, %v4030
    %v4041 = vsel %vm919, %v3698, 0
    %v4044 = vsel %vm919, %v3699, 0
    %4046 = vmatpush.bf16.msra.mxu0 0
    %4047 = vmatpush.bf16.msra.mxu0 0
    %4048 = vmatpush.bf16.msra.mxu0 0
    %4049 = vmatpush.bf16.msra.mxu0 0
    %4050 = vmatpush.bf16.msra.mxu0 %v4035
    %4051 = vmatpush.bf16.msra.mxu0 %v4034
    %4052 = vmatpush.bf16.msra.mxu0 %v4033
    %4053 = vmatpush.bf16.msra.mxu0 %v4032
    %4054 = vmatmul.bf16.gmra.mxu0 %v4041
    %v4055 = vpop.f32.mrf.mxu0
    %v4056 = vadd.f32 0.0, %v4055
    %v4057 = vpop.f32.mrf.mxu0
    %v4058 = vadd.f32 0.0, %v4057
    %4059 = vmatmul.bf16.gmra.mxu0 %v4044
    %v4060 = vpop.f32.mrf.mxu0
    %v4061 = vadd.f32 0.0, %v4060
    %v4062 = vpop.f32.mrf.mxu0
    %v4063 = vadd.f32 0.0, %v4062
    %4064 = vdwg.mxu0
    %v4073 = vunpack.c.l.b16 %v3999
    %v4074 = vunpack.c.l.b16 %v4000
    %v4075 = vunpack.c.l.b16 %v4001
    %v4076 = vunpack.c.l.b16 %v4002
    %v4077 = vunpack.c.l.b16 %v4003
    %v4078 = vunpack.c.l.b16 %v4004
    %v4079 = vunpack.c.l.b16 %v4005
    %v4080 = vunpack.c.l.b16 %v4006
    %v4081 = vpack.c.b16 %v4074, %v4073
    %v4082 = vpack.c.b16 %v4076, %v4075
    %v4083 = vpack.c.b16 %v4078, %v4077
    %v4084 = vpack.c.b16 %v4080, %v4079
    %v4090 = vsel %vm919, %v3719, 0
    %v4093 = vsel %vm919, %v3720, 0
    %4095 = vmatpush.bf16.msra.mxu0 0
    %4096 = vmatpush.bf16.msra.mxu0 0
    %4097 = vmatpush.bf16.msra.mxu0 0
    %4098 = vmatpush.bf16.msra.mxu0 0
    %4099 = vmatpush.bf16.msra.mxu0 %v4084
    %4100 = vmatpush.bf16.msra.mxu0 %v4083
    %4101 = vmatpush.bf16.msra.mxu0 %v4082
    %4102 = vmatpush.bf16.msra.mxu0 %v4081
    %4103 = vmatmul.bf16.gmra.mxu0 %v4090
    %v4104 = vpop.f32.mrf.mxu0
    %v4105 = vadd.f32 %v4056, %v4104
    %v4106 = vpop.f32.mrf.mxu0
    %v4107 = vadd.f32 %v4058, %v4106
    %4108 = vmatmul.bf16.gmra.mxu0 %v4093
    %v4109 = vpop.f32.mrf.mxu0
    %v4110 = vadd.f32 %v4061, %v4109
    %v4111 = vpop.f32.mrf.mxu0
    %v4112 = vadd.f32 %v4063, %v4111
    %4113 = vdwg.mxu0
    %s4114 = scalar_lea.vmem %s9, 256
    %v4115 = vld [vmem:[%s4114] sm:$0xf]
    %v4116 = vld [vmem:[%s4114 + $0x4] sm:$0xf]
    %v4117 = vld [vmem:[%s4114 + $0x8] sm:$0xf]
    %v4118 = vld [vmem:[%s4114 + $0xc] sm:$0xf]
    %v4119 = vld [vmem:[%s4114 + $0x10] sm:$0xf]
    %v4120 = vld [vmem:[%s4114 + $0x14] sm:$0xf]
    %v4121 = vld [vmem:[%s4114 + $0x18] sm:$0xf]
    %v4122 = vld [vmem:[%s4114 + $0x1c] sm:$0xf]
    %v4131 = vunpack.c.l.b16 %v4115
    %v4132 = vunpack.c.l.b16 %v4116
    %v4133 = vunpack.c.l.b16 %v4117
    %v4134 = vunpack.c.l.b16 %v4118
    %v4135 = vunpack.c.l.b16 %v4119
    %v4136 = vunpack.c.l.b16 %v4120
    %v4137 = vunpack.c.l.b16 %v4121
    %v4138 = vunpack.c.l.b16 %v4122
    %v4139 = vpack.c.b16 %v4132, %v4131
    %v4140 = vpack.c.b16 %v4134, %v4133
    %v4141 = vpack.c.b16 %v4136, %v4135
    %v4142 = vpack.c.b16 %v4138, %v4137
    %v4148 = vsel %vm919, %v3740, 0
    %v4151 = vsel %vm919, %v3741, 0
    %4153 = vmatpush.bf16.msra.mxu0 0
    %4154 = vmatpush.bf16.msra.mxu0 0
    %4155 = vmatpush.bf16.msra.mxu0 0
    %4156 = vmatpush.bf16.msra.mxu0 0
    %4157 = vmatpush.bf16.msra.mxu0 %v4142
    %4158 = vmatpush.bf16.msra.mxu0 %v4141
    %4159 = vmatpush.bf16.msra.mxu0 %v4140
    %4160 = vmatpush.bf16.msra.mxu0 %v4139
    %4161 = vmatmul.bf16.gmra.mxu0 %v4148
    %v4162 = vpop.f32.mrf.mxu0
    %v4163 = vadd.f32 0.0, %v4162
    %v4164 = vpop.f32.mrf.mxu0
    %v4165 = vadd.f32 0.0, %v4164
    %4166 = vmatmul.bf16.gmra.mxu0 %v4151
    %v4167 = vpop.f32.mrf.mxu0
    %v4168 = vadd.f32 0.0, %v4167
    %v4169 = vpop.f32.mrf.mxu0
    %v4170 = vadd.f32 0.0, %v4169
    %4171 = vdwg.mxu0
    %v4172 = vadd.f32 %v4105, %v4163
    %v4173 = vadd.f32 %v4107, %v4165
    %v4174 = vadd.f32 %v4110, %v4168
    %v4175 = vadd.f32 %v4112, %v4170
    %v4176 = vadd.f32 %v3994, %v4172
    %v4177 = vadd.f32 %v3995, %v4173
    %v4178 = vadd.f32 %v3996, %v4174
    %v4179 = vadd.f32 %v3997, %v4175
    %s4180 = scalar_lea.vmem [#allocation2], 1152
    %v4181 = vld [vmem:[%s4180] sm:$0xf]
    %v4182 = vld [vmem:[%s4180 + $0x4] sm:$0xf]
    %v4183 = vld [vmem:[%s4180 + $0x8] sm:$0xf]
    %v4184 = vld [vmem:[%s4180 + $0xc] sm:$0xf]
    %v4185 = vld [vmem:[%s4180 + $0x10] sm:$0xf]
    %v4186 = vld [vmem:[%s4180 + $0x14] sm:$0xf]
    %v4187 = vld [vmem:[%s4180 + $0x18] sm:$0xf]
    %v4188 = vld [vmem:[%s4180 + $0x1c] sm:$0xf]
    %v4189 = vld [vmem:[%s4180 + $0x20] sm:$0xf]
    %v4190 = vld [vmem:[%s4180 + $0x24] sm:$0xf]
    %v4191 = vld [vmem:[%s4180 + $0x28] sm:$0xf]
    %v4192 = vld [vmem:[%s4180 + $0x2c] sm:$0xf]
    %v4193 = vld [vmem:[%s4180 + $0x30] sm:$0xf]
    %v4194 = vld [vmem:[%s4180 + $0x34] sm:$0xf]
    %v4195 = vld [vmem:[%s4180 + $0x38] sm:$0xf]
    %v4196 = vld [vmem:[%s4180 + $0x3c] sm:$0xf]
    %s4197 = scalar_lea.vmem [#allocation2], 1216
    %v4198 = vld [vmem:[%s4197] sm:$0xf]
    %v4199 = vld [vmem:[%s4197 + $0x4] sm:$0xf]
    %v4200 = vld [vmem:[%s4197 + $0x8] sm:$0xf]
    %v4201 = vld [vmem:[%s4197 + $0xc] sm:$0xf]
    %v4202 = vld [vmem:[%s4197 + $0x10] sm:$0xf]
    %v4203 = vld [vmem:[%s4197 + $0x14] sm:$0xf]
    %v4204 = vld [vmem:[%s4197 + $0x18] sm:$0xf]
    %v4205 = vld [vmem:[%s4197 + $0x1c] sm:$0xf]
    %v4206 = vld [vmem:[%s4197 + $0x20] sm:$0xf]
    %v4207 = vld [vmem:[%s4197 + $0x24] sm:$0xf]
    %v4208 = vld [vmem:[%s4197 + $0x28] sm:$0xf]
    %v4209 = vld [vmem:[%s4197 + $0x2c] sm:$0xf]
    %v4210 = vld [vmem:[%s4197 + $0x30] sm:$0xf]
    %v4211 = vld [vmem:[%s4197 + $0x34] sm:$0xf]
    %v4212 = vld [vmem:[%s4197 + $0x38] sm:$0xf]
    %v4213 = vld [vmem:[%s4197 + $0x3c] sm:$0xf]
    %v4230 = vunpack.c.l.b16 %v4198
    %v4231 = vunpack.c.l.b16 %v4199
    %v4232 = vunpack.c.l.b16 %v4200
    %v4233 = vunpack.c.l.b16 %v4201
    %v4234 = vunpack.c.l.b16 %v4202
    %v4235 = vunpack.c.l.b16 %v4203
    %v4236 = vunpack.c.l.b16 %v4204
    %v4237 = vunpack.c.l.b16 %v4205
    %v4238 = vunpack.c.l.b16 %v4206
    %v4239 = vunpack.c.l.b16 %v4207
    %v4240 = vunpack.c.l.b16 %v4208
    %v4241 = vunpack.c.l.b16 %v4209
    %v4242 = vunpack.c.l.b16 %v4210
    %v4243 = vunpack.c.l.b16 %v4211
    %v4244 = vunpack.c.l.b16 %v4212
    %v4245 = vunpack.c.l.b16 %v4213
    %v4246 = vpack.c.b16 %v4231, %v4230
    %v4247 = vpack.c.b16 %v4233, %v4232
    %v4248 = vpack.c.b16 %v4235, %v4234
    %v4249 = vpack.c.b16 %v4237, %v4236
    %v4250 = vpack.c.b16 %v4239, %v4238
    %v4251 = vpack.c.b16 %v4241, %v4240
    %v4252 = vpack.c.b16 %v4243, %v4242
    %v4253 = vpack.c.b16 %v4245, %v4244
    %4262 = vmatpush.bf16.msra.mxu0 %v4253
    %4263 = vmatpush.bf16.msra.mxu0 %v4252
    %4264 = vmatpush.bf16.msra.mxu0 %v4251
    %4265 = vmatpush.bf16.msra.mxu0 %v4250
    %4266 = vmatpush.bf16.msra.mxu0 %v4249
    %4267 = vmatpush.bf16.msra.mxu0 %v4248
    %4268 = vmatpush.bf16.msra.mxu0 %v4247
    %4269 = vmatpush.bf16.msra.mxu0 %v4246
    %4270 = vmatmul.bf16.gmra.mxu0 %v3032
    %v4271 = vpop.f32.mrf.mxu0
    %v4272 = vadd.f32 0.0, %v4271
    %v4273 = vpop.f32.mrf.mxu0
    %v4274 = vadd.f32 0.0, %v4273
    %4275 = vmatmul.bf16.gmra.mxu0 %v3033
    %v4276 = vpop.f32.mrf.mxu0
    %v4277 = vadd.f32 0.0, %v4276
    %v4278 = vpop.f32.mrf.mxu0
    %v4279 = vadd.f32 0.0, %v4278
    %4280 = vdwg.mxu0
    %v4297 = vunpack.c.l.b16 %v4181
    %v4298 = vunpack.c.l.b16 %v4182
    %v4299 = vunpack.c.l.b16 %v4183
    %v4300 = vunpack.c.l.b16 %v4184
    %v4301 = vunpack.c.l.b16 %v4185
    %v4302 = vunpack.c.l.b16 %v4186
    %v4303 = vunpack.c.l.b16 %v4187
    %v4304 = vunpack.c.l.b16 %v4188
    %v4305 = vunpack.c.l.b16 %v4189
    %v4306 = vunpack.c.l.b16 %v4190
    %v4307 = vunpack.c.l.b16 %v4191
    %v4308 = vunpack.c.l.b16 %v4192
    %v4309 = vunpack.c.l.b16 %v4193
    %v4310 = vunpack.c.l.b16 %v4194
    %v4311 = vunpack.c.l.b16 %v4195
    %v4312 = vunpack.c.l.b16 %v4196
    %v4313 = vpack.c.b16 %v4298, %v4297
    %v4314 = vpack.c.b16 %v4300, %v4299
    %v4315 = vpack.c.b16 %v4302, %v4301
    %v4316 = vpack.c.b16 %v4304, %v4303
    %v4317 = vpack.c.b16 %v4306, %v4305
    %v4318 = vpack.c.b16 %v4308, %v4307
    %v4319 = vpack.c.b16 %v4310, %v4309
    %v4320 = vpack.c.b16 %v4312, %v4311
    %4329 = vmatpush.bf16.msra.mxu0 %v4320
    %4330 = vmatpush.bf16.msra.mxu0 %v4319
    %4331 = vmatpush.bf16.msra.mxu0 %v4318
    %4332 = vmatpush.bf16.msra.mxu0 %v4317
    %4333 = vmatpush.bf16.msra.mxu0 %v4316
    %4334 = vmatpush.bf16.msra.mxu0 %v4315
    %4335 = vmatpush.bf16.msra.mxu0 %v4314
    %4336 = vmatpush.bf16.msra.mxu0 %v4313
    %4337 = vmatmul.bf16.gmra.mxu0 %v3053
    %v4338 = vpop.f32.mrf.mxu0
    %v4339 = vadd.f32 %v4272, %v4338
    %v4340 = vpop.f32.mrf.mxu0
    %v4341 = vadd.f32 %v4274, %v4340
    %4342 = vmatmul.bf16.gmra.mxu0 %v3054
    %v4343 = vpop.f32.mrf.mxu0
    %v4344 = vadd.f32 %v4277, %v4343
    %v4345 = vpop.f32.mrf.mxu0
    %v4346 = vadd.f32 %v4279, %v4345
    %4347 = vdwg.mxu0
    %s4348 = scalar_lea.vmem [#allocation2], 1280
    %v4349 = vld [vmem:[%s4348] sm:$0xf]
    %v4350 = vld [vmem:[%s4348 + $0x4] sm:$0xf]
    %v4351 = vld [vmem:[%s4348 + $0x8] sm:$0xf]
    %v4352 = vld [vmem:[%s4348 + $0xc] sm:$0xf]
    %v4353 = vld [vmem:[%s4348 + $0x10] sm:$0xf]
    %v4354 = vld [vmem:[%s4348 + $0x14] sm:$0xf]
    %v4355 = vld [vmem:[%s4348 + $0x18] sm:$0xf]
    %v4356 = vld [vmem:[%s4348 + $0x1c] sm:$0xf]
    %v4357 = vld [vmem:[%s4348 + $0x20] sm:$0xf]
    %v4358 = vld [vmem:[%s4348 + $0x24] sm:$0xf]
    %v4359 = vld [vmem:[%s4348 + $0x28] sm:$0xf]
    %v4360 = vld [vmem:[%s4348 + $0x2c] sm:$0xf]
    %v4361 = vld [vmem:[%s4348 + $0x30] sm:$0xf]
    %v4362 = vld [vmem:[%s4348 + $0x34] sm:$0xf]
    %v4363 = vld [vmem:[%s4348 + $0x38] sm:$0xf]
    %v4364 = vld [vmem:[%s4348 + $0x3c] sm:$0xf]
    %v4381 = vunpack.c.l.b16 %v4349
    %v4382 = vunpack.c.l.b16 %v4350
    %v4383 = vunpack.c.l.b16 %v4351
    %v4384 = vunpack.c.l.b16 %v4352
    %v4385 = vunpack.c.l.b16 %v4353
    %v4386 = vunpack.c.l.b16 %v4354
    %v4387 = vunpack.c.l.b16 %v4355
    %v4388 = vunpack.c.l.b16 %v4356
    %v4389 = vunpack.c.l.b16 %v4357
    %v4390 = vunpack.c.l.b16 %v4358
    %v4391 = vunpack.c.l.b16 %v4359
    %v4392 = vunpack.c.l.b16 %v4360
    %v4393 = vunpack.c.l.b16 %v4361
    %v4394 = vunpack.c.l.b16 %v4362
    %v4395 = vunpack.c.l.b16 %v4363
    %v4396 = vunpack.c.l.b16 %v4364
    %v4397 = vpack.c.b16 %v4382, %v4381
    %v4398 = vpack.c.b16 %v4384, %v4383
    %v4399 = vpack.c.b16 %v4386, %v4385
    %v4400 = vpack.c.b16 %v4388, %v4387
    %v4401 = vpack.c.b16 %v4390, %v4389
    %v4402 = vpack.c.b16 %v4392, %v4391
    %v4403 = vpack.c.b16 %v4394, %v4393
    %v4404 = vpack.c.b16 %v4396, %v4395
    %4413 = vmatpush.bf16.msra.mxu0 %v4404
    %4414 = vmatpush.bf16.msra.mxu0 %v4403
    %4415 = vmatpush.bf16.msra.mxu0 %v4402
    %4416 = vmatpush.bf16.msra.mxu0 %v4401
    %4417 = vmatpush.bf16.msra.mxu0 %v4400
    %4418 = vmatpush.bf16.msra.mxu0 %v4399
    %4419 = vmatpush.bf16.msra.mxu0 %v4398
    %4420 = vmatpush.bf16.msra.mxu0 %v4397
    %4421 = vmatmul.bf16.gmra.mxu0 %v3074
    %v4422 = vpop.f32.mrf.mxu0
    %v4423 = vadd.f32 0.0, %v4422
    %v4424 = vpop.f32.mrf.mxu0
    %v4425 = vadd.f32 0.0, %v4424
    %4426 = vmatmul.bf16.gmra.mxu0 %v3075
    %v4427 = vpop.f32.mrf.mxu0
    %v4428 = vadd.f32 0.0, %v4427
    %v4429 = vpop.f32.mrf.mxu0
    %v4430 = vadd.f32 0.0, %v4429
    %4431 = vdwg.mxu0
    %v4432 = vadd.f32 %v4339, %v4423
    %v4433 = vadd.f32 %v4341, %v4425
    %v4434 = vadd.f32 %v4344, %v4428
    %v4435 = vadd.f32 %v4346, %v4430
    %s4436 = scalar_lea.vmem %s9, 288
    %v4437 = vld [vmem:[%s4436] sm:$0xf]
    %v4438 = vld [vmem:[%s4436 + $0x4] sm:$0xf]
    %v4439 = vld [vmem:[%s4436 + $0x8] sm:$0xf]
    %v4440 = vld [vmem:[%s4436 + $0xc] sm:$0xf]
    %v4441 = vld [vmem:[%s4436 + $0x10] sm:$0xf]
    %v4442 = vld [vmem:[%s4436 + $0x14] sm:$0xf]
    %v4443 = vld [vmem:[%s4436 + $0x18] sm:$0xf]
    %v4444 = vld [vmem:[%s4436 + $0x1c] sm:$0xf]
    %s4445 = scalar_lea.vmem %s9, 320
    %v4446 = vld [vmem:[%s4445] sm:$0xf]
    %v4447 = vld [vmem:[%s4445 + $0x4] sm:$0xf]
    %v4448 = vld [vmem:[%s4445 + $0x8] sm:$0xf]
    %v4449 = vld [vmem:[%s4445 + $0xc] sm:$0xf]
    %v4450 = vld [vmem:[%s4445 + $0x10] sm:$0xf]
    %v4451 = vld [vmem:[%s4445 + $0x14] sm:$0xf]
    %v4452 = vld [vmem:[%s4445 + $0x18] sm:$0xf]
    %v4453 = vld [vmem:[%s4445 + $0x1c] sm:$0xf]
    %v4462 = vunpack.c.l.b16 %v4446
    %v4463 = vunpack.c.l.b16 %v4447
    %v4464 = vunpack.c.l.b16 %v4448
    %v4465 = vunpack.c.l.b16 %v4449
    %v4466 = vunpack.c.l.b16 %v4450
    %v4467 = vunpack.c.l.b16 %v4451
    %v4468 = vunpack.c.l.b16 %v4452
    %v4469 = vunpack.c.l.b16 %v4453
    %v4470 = vpack.c.b16 %v4463, %v4462
    %v4471 = vpack.c.b16 %v4465, %v4464
    %v4472 = vpack.c.b16 %v4467, %v4466
    %v4473 = vpack.c.b16 %v4469, %v4468
    %4478 = vmatpush.bf16.msra.mxu0 0
    %4479 = vmatpush.bf16.msra.mxu0 0
    %4480 = vmatpush.bf16.msra.mxu0 0
    %4481 = vmatpush.bf16.msra.mxu0 0
    %4482 = vmatpush.bf16.msra.mxu0 %v4473
    %4483 = vmatpush.bf16.msra.mxu0 %v4472
    %4484 = vmatpush.bf16.msra.mxu0 %v4471
    %4485 = vmatpush.bf16.msra.mxu0 %v4470
    %4486 = vmatmul.bf16.gmra.mxu0 %v4041
    %v4487 = vpop.f32.mrf.mxu0
    %v4488 = vadd.f32 0.0, %v4487
    %v4489 = vpop.f32.mrf.mxu0
    %v4490 = vadd.f32 0.0, %v4489
    %4491 = vmatmul.bf16.gmra.mxu0 %v4044
    %v4492 = vpop.f32.mrf.mxu0
    %v4493 = vadd.f32 0.0, %v4492
    %v4494 = vpop.f32.mrf.mxu0
    %v4495 = vadd.f32 0.0, %v4494
    %4496 = vdwg.mxu0
    %v4505 = vunpack.c.l.b16 %v4437
    %v4506 = vunpack.c.l.b16 %v4438
    %v4507 = vunpack.c.l.b16 %v4439
    %v4508 = vunpack.c.l.b16 %v4440
    %v4509 = vunpack.c.l.b16 %v4441
    %v4510 = vunpack.c.l.b16 %v4442
    %v4511 = vunpack.c.l.b16 %v4443
    %v4512 = vunpack.c.l.b16 %v4444
    %v4513 = vpack.c.b16 %v4506, %v4505
    %v4514 = vpack.c.b16 %v4508, %v4507
    %v4515 = vpack.c.b16 %v4510, %v4509
    %v4516 = vpack.c.b16 %v4512, %v4511
    %4521 = vmatpush.bf16.msra.mxu0 0
    %4522 = vmatpush.bf16.msra.mxu0 0
    %4523 = vmatpush.bf16.msra.mxu0 0
    %4524 = vmatpush.bf16.msra.mxu0 0
    %4525 = vmatpush.bf16.msra.mxu0 %v4516
    %4526 = vmatpush.bf16.msra.mxu0 %v4515
    %4527 = vmatpush.bf16.msra.mxu0 %v4514
    %4528 = vmatpush.bf16.msra.mxu0 %v4513
    %4529 = vmatmul.bf16.gmra.mxu0 %v4090
    %v4530 = vpop.f32.mrf.mxu0
    %v4531 = vadd.f32 %v4488, %v4530
    %v4532 = vpop.f32.mrf.mxu0
    %v4533 = vadd.f32 %v4490, %v4532
    %4534 = vmatmul.bf16.gmra.mxu0 %v4093
    %v4535 = vpop.f32.mrf.mxu0
    %v4536 = vadd.f32 %v4493, %v4535
    %v4537 = vpop.f32.mrf.mxu0
    %v4538 = vadd.f32 %v4495, %v4537
    %4539 = vdwg.mxu0
    %s4540 = scalar_lea.vmem %s9, 352
    %v4541 = vld [vmem:[%s4540] sm:$0xf]
    %v4542 = vld [vmem:[%s4540 + $0x4] sm:$0xf]
    %v4543 = vld [vmem:[%s4540 + $0x8] sm:$0xf]
    %v4544 = vld [vmem:[%s4540 + $0xc] sm:$0xf]
    %v4545 = vld [vmem:[%s4540 + $0x10] sm:$0xf]
    %v4546 = vld [vmem:[%s4540 + $0x14] sm:$0xf]
    %v4547 = vld [vmem:[%s4540 + $0x18] sm:$0xf]
    %v4548 = vld [vmem:[%s4540 + $0x1c] sm:$0xf]
    %v4557 = vunpack.c.l.b16 %v4541
    %v4558 = vunpack.c.l.b16 %v4542
    %v4559 = vunpack.c.l.b16 %v4543
    %v4560 = vunpack.c.l.b16 %v4544
    %v4561 = vunpack.c.l.b16 %v4545
    %v4562 = vunpack.c.l.b16 %v4546
    %v4563 = vunpack.c.l.b16 %v4547
    %v4564 = vunpack.c.l.b16 %v4548
    %v4565 = vpack.c.b16 %v4558, %v4557
    %v4566 = vpack.c.b16 %v4560, %v4559
    %v4567 = vpack.c.b16 %v4562, %v4561
    %v4568 = vpack.c.b16 %v4564, %v4563
    %4573 = vmatpush.bf16.msra.mxu0 0
    %4574 = vmatpush.bf16.msra.mxu0 0
    %4575 = vmatpush.bf16.msra.mxu0 0
    %4576 = vmatpush.bf16.msra.mxu0 0
    %4577 = vmatpush.bf16.msra.mxu0 %v4568
    %4578 = vmatpush.bf16.msra.mxu0 %v4567
    %4579 = vmatpush.bf16.msra.mxu0 %v4566
    %4580 = vmatpush.bf16.msra.mxu0 %v4565
    %4581 = vmatmul.bf16.gmra.mxu0 %v4148
    %v4582 = vpop.f32.mrf.mxu0
    %v4583 = vadd.f32 0.0, %v4582
    %v4584 = vpop.f32.mrf.mxu0
    %v4585 = vadd.f32 0.0, %v4584
    %4586 = vmatmul.bf16.gmra.mxu0 %v4151
    %v4587 = vpop.f32.mrf.mxu0
    %v4588 = vadd.f32 0.0, %v4587
    %v4589 = vpop.f32.mrf.mxu0
    %v4590 = vadd.f32 0.0, %v4589
    %4591 = vdwg.mxu0
    %v4592 = vadd.f32 %v4531, %v4583
    %v4593 = vadd.f32 %v4533, %v4585
    %v4594 = vadd.f32 %v4536, %v4588
    %v4595 = vadd.f32 %v4538, %v4590
    %v4596 = vadd.f32 %v4432, %v4592
    %v4597 = vadd.f32 %v4433, %v4593
    %v4598 = vadd.f32 %v4434, %v4594
    %v4599 = vadd.f32 %v4435, %v4595
    %s4600 = scalar_lea.vmem %s10, 10
    %v4601 = vld [vmem:[%s4600] sm:$0x1]
    %s4602 = scalar_lea.vmem %s10, 11
    %v4603 = vld [vmem:[%s4602] sm:$0x1]
    %v4604 = vadd.f32 %v4176, %v4177
    %v4605 = vadd.f32 %v4604, %v4178
    %v4606 = vadd.f32 %v4605, %v4179
    %v4607 = vrot.slane %v4606, 4
    %v4608 = vadd.f32 %v4606, %v4607
    %v4609 = vrot.slane %v4608, 2
    %v4610 = vadd.f32 %v4608, %v4609
    %v4611 = vrot.slane %v4610, 1
    %v4612 = vadd.f32 %v4610, %v4611
    %v4613 = vmul.f32 %v4612, %v1498
    %v4614 = vld [vmem:[%s4] sm:$0xff]
    %v4615 = vld [vmem:[%s4 + $0x8] sm:$0xff]
    %v4616 = vld [vmem:[%s4 + $0x10] sm:$0xff]
    %v4617 = vld [vmem:[%s4 + $0x18] sm:$0xff]
    %v4618 = vld [vmem:[%s4 + $0x20] sm:$0xff]
    %v4619 = vld [vmem:[%s4 + $0x28] sm:$0xff]
    %v4620 = vld [vmem:[%s4 + $0x30] sm:$0xff]
    %v4621 = vld [vmem:[%s4 + $0x38] sm:$0xff]
    %v4622 = vld [vmem:[%s4 + $0x40] sm:$0xff]
    %v4623 = vld [vmem:[%s4 + $0x48] sm:$0xff]
    %v4624 = vld [vmem:[%s4 + $0x50] sm:$0xff]
    %v4625 = vld [vmem:[%s4 + $0x58] sm:$0xff]
    %v4626 = vld [vmem:[%s4 + $0x60] sm:$0xff]
    %v4627 = vld [vmem:[%s4 + $0x68] sm:$0xff]
    %v4628 = vld [vmem:[%s4 + $0x70] sm:$0xff]
    %v4629 = vld [vmem:[%s4 + $0x78] sm:$0xff]
    %4630 = vmatpush.msra.mxu0 %v4629
    %4631 = vmatpush.msra.mxu0 %v4628
    %4632 = vmatpush.msra.mxu0 %v4627
    %4633 = vmatpush.msra.mxu0 %v4626
    %4634 = vmatpush.msra.mxu0 %v4625
    %4635 = vmatpush.msra.mxu0 %v4624
    %4636 = vmatpush.msra.mxu0 %v4623
    %4637 = vmatpush.msra.mxu0 %v4622
    %4638 = vmatpush.msra.mxu0 %v4621
    %4639 = vmatpush.msra.mxu0 %v4620
    %4640 = vmatpush.msra.mxu0 %v4619
    %4641 = vmatpush.msra.mxu0 %v4618
    %4642 = vmatpush.msra.mxu0 %v4617
    %4643 = vmatpush.msra.mxu0 %v4616
    %4644 = vmatpush.msra.mxu0 %v4615
    %4645 = vmatpush.msra.mxu0 %v4614
    %4646 = vmatmul.f32.gmra.mxu0 %v4613
    %v4647 = vpop.f32.mrf.mxu0
    %v4648 = vadd.f32 0.0, %v4647
    %4649 = vdwg.mxu0
    %v4650 = vperm.slane %v4648, 0
    %v4651 = vsub.f32 %v4176, %v4650
    %v4652 = vsub.f32 %v4177, %v4650
    %v4653 = vsub.f32 %v4178, %v4650
    %v4654 = vsub.f32 %v4179, %v4650
    %v4655 = vmul.f32 %v4651, %v4651
    %v4656 = vmul.f32 %v4652, %v4652
    %v4657 = vmul.f32 %v4653, %v4653
    %v4658 = vmul.f32 %v4654, %v4654
    %v4659 = vadd.f32 %v4655, %v4656
    %v4660 = vadd.f32 %v4659, %v4657
    %v4661 = vadd.f32 %v4660, %v4658
    %v4662 = vrot.slane %v4661, 4
    %v4663 = vadd.f32 %v4661, %v4662
    %v4664 = vrot.slane %v4663, 2
    %v4665 = vadd.f32 %v4663, %v4664
    %v4666 = vrot.slane %v4665, 1
    %v4667 = vadd.f32 %v4665, %v4666
    %v4668 = vmul.f32 %v4667, %v1498
    %4669 = vmatpush.msra.mxu0 %v4629
    %4670 = vmatpush.msra.mxu0 %v4628
    %4671 = vmatpush.msra.mxu0 %v4627
    %4672 = vmatpush.msra.mxu0 %v4626
    %4673 = vmatpush.msra.mxu0 %v4625
    %4674 = vmatpush.msra.mxu0 %v4624
    %4675 = vmatpush.msra.mxu0 %v4623
    %4676 = vmatpush.msra.mxu0 %v4622
    %4677 = vmatpush.msra.mxu0 %v4621
    %4678 = vmatpush.msra.mxu0 %v4620
    %4679 = vmatpush.msra.mxu0 %v4619
    %4680 = vmatpush.msra.mxu0 %v4618
    %4681 = vmatpush.msra.mxu0 %v4617
    %4682 = vmatpush.msra.mxu0 %v4616
    %4683 = vmatpush.msra.mxu0 %v4615
    %4684 = vmatpush.msra.mxu0 %v4614
    %4685 = vmatmul.f32.gmra.mxu0 %v4668
    %v4686 = vpop.f32.mrf.mxu0
    %v4687 = vadd.f32 1e-05, %v4686
    %4688 = vdwg.mxu0
    %v4689 = vrsqrt.pop %v4687
    %v4690 = vmul.f32 %v4689, %v4687
    %v4691 = vmul.f32 %v4690, %v4689
    %v4692 = vmul.f32 0.5, %v4691
    %v4693 = vsub.f32 1.5, %v4692
    %v4694 = vmul.f32 %v4689, %v4693
    %vm4695 = vweird.f32 %v4687
    %vm4696 = vweird.f32 %v4689
    %vm4697 = vmor %vm4695, %vm4696
    %v4698 = vsel %vm4697, %v4689, %v4694
    %v4699 = vperm.slane %v4698, 0
    %v4700 = vmul.f32 %v4651, %v4699
    %v4701 = vmul.f32 %v4652, %v4699
    %v4702 = vmul.f32 %v4653, %v4699
    %v4703 = vmul.f32 %v4654, %v4699
    %v4705 = vperm.slane %v4601, 0
    %v4707 = vmul.f32 %v4700, %v4705
    %v4708 = vmul.f32 %v4701, %v4705
    %v4709 = vmul.f32 %v4702, %v4705
    %v4710 = vmul.f32 %v4703, %v4705
    %v4712 = vperm.slane %v4603, 0
    %v4714 = vadd.f32 %v4707, %v4712
    %v4715 = vadd.f32 %v4708, %v4712
    %v4716 = vadd.f32 %v4709, %v4712
    %v4717 = vadd.f32 %v4710, %v4712
    %s4718 = scalar_lea.vmem %s10, 12
    %v4719 = vld [vmem:[%s4718] sm:$0x1]
    %s4720 = scalar_lea.vmem %s10, 13
    %v4721 = vld [vmem:[%s4720] sm:$0x1]
    %v4722 = vadd.f32 %v4596, %v4597
    %v4723 = vadd.f32 %v4722, %v4598
    %v4724 = vadd.f32 %v4723, %v4599
    %v4725 = vrot.slane %v4724, 4
    %v4726 = vadd.f32 %v4724, %v4725
    %v4727 = vrot.slane %v4726, 2
    %v4728 = vadd.f32 %v4726, %v4727
    %v4729 = vrot.slane %v4728, 1
    %v4730 = vadd.f32 %v4728, %v4729
    %v4731 = vmul.f32 %v4730, %v1498
    %4732 = vmatpush.msra.mxu0 %v4629
    %4733 = vmatpush.msra.mxu0 %v4628
    %4734 = vmatpush.msra.mxu0 %v4627
    %4735 = vmatpush.msra.mxu0 %v4626
    %4736 = vmatpush.msra.mxu0 %v4625
    %4737 = vmatpush.msra.mxu0 %v4624
    %4738 = vmatpush.msra.mxu0 %v4623
    %4739 = vmatpush.msra.mxu0 %v4622
    %4740 = vmatpush.msra.mxu0 %v4621
    %4741 = vmatpush.msra.mxu0 %v4620
    %4742 = vmatpush.msra.mxu0 %v4619
    %4743 = vmatpush.msra.mxu0 %v4618
    %4744 = vmatpush.msra.mxu0 %v4617
    %4745 = vmatpush.msra.mxu0 %v4616
    %4746 = vmatpush.msra.mxu0 %v4615
    %4747 = vmatpush.msra.mxu0 %v4614
    %4748 = vmatmul.f32.gmra.mxu0 %v4731
    %v4749 = vpop.f32.mrf.mxu0
    %v4750 = vadd.f32 0.0, %v4749
    %4751 = vdwg.mxu0
    %v4752 = vperm.slane %v4750, 0
    %v4753 = vsub.f32 %v4596, %v4752
    %v4754 = vsub.f32 %v4597, %v4752
    %v4755 = vsub.f32 %v4598, %v4752
    %v4756 = vsub.f32 %v4599, %v4752
    %v4757 = vmul.f32 %v4753, %v4753
    %v4758 = vmul.f32 %v4754, %v4754
    %v4759 = vmul.f32 %v4755, %v4755
    %v4760 = vmul.f32 %v4756, %v4756
    %v4761 = vadd.f32 %v4757, %v4758
    %v4762 = vadd.f32 %v4761, %v4759
    %v4763 = vadd.f32 %v4762, %v4760
    %v4764 = vrot.slane %v4763, 4
    %v4765 = vadd.f32 %v4763, %v4764
    %v4766 = vrot.slane %v4765, 2
    %v4767 = vadd.f32 %v4765, %v4766
    %v4768 = vrot.slane %v4767, 1
    %v4769 = vadd.f32 %v4767, %v4768
    %v4770 = vmul.f32 %v4769, %v1498
    %4771 = vmatpush.msra.mxu0 %v4629
    %4772 = vmatpush.msra.mxu0 %v4628
    %4773 = vmatpush.msra.mxu0 %v4627
    %4774 = vmatpush.msra.mxu0 %v4626
    %4775 = vmatpush.msra.mxu0 %v4625
    %4776 = vmatpush.msra.mxu0 %v4624
    %4777 = vmatpush.msra.mxu0 %v4623
    %4778 = vmatpush.msra.mxu0 %v4622
    %4779 = vmatpush.msra.mxu0 %v4621
    %4780 = vmatpush.msra.mxu0 %v4620
    %4781 = vmatpush.msra.mxu0 %v4619
    %4782 = vmatpush.msra.mxu0 %v4618
    %4783 = vmatpush.msra.mxu0 %v4617
    %4784 = vmatpush.msra.mxu0 %v4616
    %4785 = vmatpush.msra.mxu0 %v4615
    %4786 = vmatpush.msra.mxu0 %v4614
    %4787 = vmatmul.f32.gmra.mxu0 %v4770
    %v4788 = vpop.f32.mrf.mxu0
    %v4789 = vadd.f32 1e-05, %v4788
    %4790 = vdwg.mxu0
    %v4791 = vrsqrt.pop %v4789
    %v4792 = vmul.f32 %v4791, %v4789
    %v4793 = vmul.f32 %v4792, %v4791
    %v4794 = vmul.f32 0.5, %v4793
    %v4795 = vsub.f32 1.5, %v4794
    %v4796 = vmul.f32 %v4791, %v4795
    %vm4797 = vweird.f32 %v4789
    %vm4798 = vweird.f32 %v4791
    %vm4799 = vmor %vm4797, %vm4798
    %v4800 = vsel %vm4799, %v4791, %v4796
    %v4801 = vperm.slane %v4800, 0
    %v4802 = vmul.f32 %v4753, %v4801
    %v4803 = vmul.f32 %v4754, %v4801
    %v4804 = vmul.f32 %v4755, %v4801
    %v4805 = vmul.f32 %v4756, %v4801
    %v4807 = vperm.slane %v4719, 0
    %v4809 = vmul.f32 %v4802, %v4807
    %v4810 = vmul.f32 %v4803, %v4807
    %v4811 = vmul.f32 %v4804, %v4807
    %v4812 = vmul.f32 %v4805, %v4807
    %v4814 = vperm.slane %v4721, 0
    %v4816 = vadd.f32 %v4809, %v4814
    %v4817 = vadd.f32 %v4810, %v4814
    %v4818 = vadd.f32 %v4811, %v4814
    %v4819 = vadd.f32 %v4812, %v4814
    %v4820 = vxor.u32 %v4816, 2147483648
    %v4821 = vxor.u32 %v4817, 2147483648
    %v4822 = vxor.u32 %v4818, 2147483648
    %v4823 = vxor.u32 %v4819, 2147483648
    %v4824 = vmul.f32 %v4820, 1.442695
    %v4825 = vpow.pop %v4824
    %v4826 = vmul.f32 %v4821, 1.442695
    %v4827 = vpow.pop %v4826
    %v4828 = vmul.f32 %v4822, 1.442695
    %v4829 = vpow.pop %v4828
    %v4830 = vmul.f32 %v4823, 1.442695
    %v4831 = vpow.pop %v4830
    %v4832 = vadd.f32 %v4825, 1.0
    %v4833 = vadd.f32 %v4827, 1.0
    %v4834 = vadd.f32 %v4829, 1.0
    %v4835 = vadd.f32 %v4831, 1.0
    %v4836 = vrcp.pop %v4832
    %v4837 = vmul.f32 %v4832, %v4836
    %v4838 = vsub.f32 1.0, %v4837
    %v4839 = vmul.f32 %v4836, %v4838
    %v4840 = vadd.f32 %v4836, %v4839
    %vm4841 = vweird.f32 %v4832
    %vm4842 = vweird.f32 %v4836
    %vm4843 = vmor %vm4841, %vm4842
    %v4844 = vsel %vm4843, %v4836, %v4840
    %v4845 = vand.u32 2147483647, %v4832
    %vm4846 = vcmp.eq.f32.partialorder %v4845, 8.507059e+37
    %v4847 = vand.u32 %v4832, 2147483648
    %v4848 = vor.u32 1.1754944e-38, %v4847
    %v4849 = vsel %vm4846, %v4848, %v4844
    %v4850 = vmul.f32 1.0, %v4849
    %v4851 = vrcp.pop %v4833
    %v4852 = vmul.f32 %v4833, %v4851
    %v4853 = vsub.f32 1.0, %v4852
    %v4854 = vmul.f32 %v4851, %v4853
    %v4855 = vadd.f32 %v4851, %v4854
    %vm4856 = vweird.f32 %v4833
    %vm4857 = vweird.f32 %v4851
    %vm4858 = vmor %vm4856, %vm4857
    %v4859 = vsel %vm4858, %v4851, %v4855
    %v4860 = vand.u32 2147483647, %v4833
    %vm4861 = vcmp.eq.f32.partialorder %v4860, 8.507059e+37
    %v4862 = vand.u32 %v4833, 2147483648
    %v4863 = vor.u32 1.1754944e-38, %v4862
    %v4864 = vsel %vm4861, %v4863, %v4859
    %v4865 = vmul.f32 1.0, %v4864
    %v4866 = vrcp.pop %v4834
    %v4867 = vmul.f32 %v4834, %v4866
    %v4868 = vsub.f32 1.0, %v4867
    %v4869 = vmul.f32 %v4866, %v4868
    %v4870 = vadd.f32 %v4866, %v4869
    %vm4871 = vweird.f32 %v4834
    %vm4872 = vweird.f32 %v4866
    %vm4873 = vmor %vm4871, %vm4872
    %v4874 = vsel %vm4873, %v4866, %v4870
    %v4875 = vand.u32 2147483647, %v4834
    %vm4876 = vcmp.eq.f32.partialorder %v4875, 8.507059e+37
    %v4877 = vand.u32 %v4834, 2147483648
    %v4878 = vor.u32 1.1754944e-38, %v4877
    %v4879 = vsel %vm4876, %v4878, %v4874
    %v4880 = vmul.f32 1.0, %v4879
    %v4881 = vrcp.pop %v4835
    %v4882 = vmul.f32 %v4835, %v4881
    %v4883 = vsub.f32 1.0, %v4882
    %v4884 = vmul.f32 %v4881, %v4883
    %v4885 = vadd.f32 %v4881, %v4884
    %vm4886 = vweird.f32 %v4835
    %vm4887 = vweird.f32 %v4881
    %vm4888 = vmor %vm4886, %vm4887
    %v4889 = vsel %vm4888, %v4881, %v4885
    %v4890 = vand.u32 2147483647, %v4835
    %vm4891 = vcmp.eq.f32.partialorder %v4890, 8.507059e+37
    %v4892 = vand.u32 %v4835, 2147483648
    %v4893 = vor.u32 1.1754944e-38, %v4892
    %v4894 = vsel %vm4891, %v4893, %v4889
    %v4895 = vmul.f32 1.0, %v4894
    %v4896 = vmul.f32 %v4714, %v4850
    %v4897 = vmul.f32 %v4715, %v4865
    %v4898 = vmul.f32 %v4716, %v4880
    %v4899 = vmul.f32 %v4717, %v4895
    %v4900 = vpack.c.bf16 %v4897, %v4896
    %v4901 = vpack.c.bf16 %v4899, %v4898
    %4902 = vmatpush.bf16.msra.mxu0 0
    %4903 = vmatpush.bf16.msra.mxu0 0
    %4904 = vmatpush.bf16.msra.mxu0 0
    %4905 = vmatpush.bf16.msra.mxu0 0
    %4906 = vmatpush.bf16.msra.mxu0 0
    %4907 = vmatpush.bf16.msra.mxu0 0
    %4908 = vmatpush.bf16.msra.mxu0 %v4901
    %4909 = vmatpush.bf16.msra.mxu0 %v4900
    %4910 = vmatmul.bf16.gmra.mxu0 %v87
    %v4911 = vpop.f32.mrf.mxu0
    %v4912 = vadd.f32 0.0, %v4911
    %v4913 = vpop.f32.mrf.mxu0
    %v4914 = vadd.f32 0.0, %v4913
    %4915 = vmatmul.bf16.gmra.mxu0 %v90
    %v4916 = vpop.f32.mrf.mxu0
    %v4917 = vadd.f32 0.0, %v4916
    %v4918 = vpop.f32.mrf.mxu0
    %v4919 = vadd.f32 0.0, %v4918
    %4920 = vdwg.mxu0
    %v4921 = vpack.c.bf16 %v4914, %v4912
    %v4922 = vpack.c.bf16 %v4919, %v4917
    %4923 = vmatpush.bf16.msra.mxu0 0
    %4924 = vmatpush.bf16.msra.mxu0 0
    %4925 = vmatpush.bf16.msra.mxu0 0
    %4926 = vmatpush.bf16.msra.mxu0 0
    %4927 = vmatpush.bf16.msra.mxu0 0
    %4928 = vmatpush.bf16.msra.mxu0 0
    %4929 = vmatpush.bf16.msra.mxu0 %v4901
    %4930 = vmatpush.bf16.msra.mxu0 %v4900
    %4931 = vmatmul.bf16.gmra.mxu0 %v124
    %v4932 = vpop.f32.mrf.mxu0
    %v4933 = vadd.f32 0.0, %v4932
    %v4934 = vpop.f32.mrf.mxu0
    %v4935 = vadd.f32 0.0, %v4934
    %4936 = vmatmul.bf16.gmra.mxu0 %v127
    %v4937 = vpop.f32.mrf.mxu0
    %v4938 = vadd.f32 0.0, %v4937
    %v4939 = vpop.f32.mrf.mxu0
    %v4940 = vadd.f32 0.0, %v4939
    %4941 = vdwg.mxu0
    %v4942 = vpack.c.bf16 %v4935, %v4933
    %v4943 = vpack.c.bf16 %v4940, %v4938
    %s4944 = scalar_lea.vmem [#allocation2], 1344
    %v4945 = vld [vmem:[%s4944] sm:$0xf]
    %v4946 = vld [vmem:[%s4944 + $0x4] sm:$0xf]
    %v4947 = vld [vmem:[%s4944 + $0x8] sm:$0xf]
    %v4948 = vld [vmem:[%s4944 + $0xc] sm:$0xf]
    %v4949 = vld [vmem:[%s4944 + $0x10] sm:$0xf]
    %v4950 = vld [vmem:[%s4944 + $0x14] sm:$0xf]
    %v4951 = vld [vmem:[%s4944 + $0x18] sm:$0xf]
    %v4952 = vld [vmem:[%s4944 + $0x1c] sm:$0xf]
    %v4953 = vld [vmem:[%s4944 + $0x20] sm:$0xf]
    %v4954 = vld [vmem:[%s4944 + $0x24] sm:$0xf]
    %v4955 = vld [vmem:[%s4944 + $0x28] sm:$0xf]
    %v4956 = vld [vmem:[%s4944 + $0x2c] sm:$0xf]
    %v4957 = vld [vmem:[%s4944 + $0x30] sm:$0xf]
    %v4958 = vld [vmem:[%s4944 + $0x34] sm:$0xf]
    %v4959 = vld [vmem:[%s4944 + $0x38] sm:$0xf]
    %v4960 = vld [vmem:[%s4944 + $0x3c] sm:$0xf]
    %s4961 = scalar_lea.vmem [#allocation2], 1408
    %v4962 = vld [vmem:[%s4961] sm:$0xf]
    %v4963 = vld [vmem:[%s4961 + $0x4] sm:$0xf]
    %v4964 = vld [vmem:[%s4961 + $0x8] sm:$0xf]
    %v4965 = vld [vmem:[%s4961 + $0xc] sm:$0xf]
    %v4966 = vld [vmem:[%s4961 + $0x10] sm:$0xf]
    %v4967 = vld [vmem:[%s4961 + $0x14] sm:$0xf]
    %v4968 = vld [vmem:[%s4961 + $0x18] sm:$0xf]
    %v4969 = vld [vmem:[%s4961 + $0x1c] sm:$0xf]
    %v4970 = vld [vmem:[%s4961 + $0x20] sm:$0xf]
    %v4971 = vld [vmem:[%s4961 + $0x24] sm:$0xf]
    %v4972 = vld [vmem:[%s4961 + $0x28] sm:$0xf]
    %v4973 = vld [vmem:[%s4961 + $0x2c] sm:$0xf]
    %v4974 = vld [vmem:[%s4961 + $0x30] sm:$0xf]
    %v4975 = vld [vmem:[%s4961 + $0x34] sm:$0xf]
    %v4976 = vld [vmem:[%s4961 + $0x38] sm:$0xf]
    %v4977 = vld [vmem:[%s4961 + $0x3c] sm:$0xf]
    %v4994 = vunpack.c.l.b16 %v4962
    %v4995 = vunpack.c.l.b16 %v4963
    %v4996 = vunpack.c.l.b16 %v4964
    %v4997 = vunpack.c.l.b16 %v4965
    %v4998 = vunpack.c.l.b16 %v4966
    %v4999 = vunpack.c.l.b16 %v4967
    %v5000 = vunpack.c.l.b16 %v4968
    %v5001 = vunpack.c.l.b16 %v4969
    %v5002 = vunpack.c.l.b16 %v4970
    %v5003 = vunpack.c.l.b16 %v4971
    %v5004 = vunpack.c.l.b16 %v4972
    %v5005 = vunpack.c.l.b16 %v4973
    %v5006 = vunpack.c.l.b16 %v4974
    %v5007 = vunpack.c.l.b16 %v4975
    %v5008 = vunpack.c.l.b16 %v4976
    %v5009 = vunpack.c.l.b16 %v4977
    %v5010 = vpack.c.b16 %v4995, %v4994
    %v5011 = vpack.c.b16 %v4997, %v4996
    %v5012 = vpack.c.b16 %v4999, %v4998
    %v5013 = vpack.c.b16 %v5001, %v5000
    %v5014 = vpack.c.b16 %v5003, %v5002
    %v5015 = vpack.c.b16 %v5005, %v5004
    %v5016 = vpack.c.b16 %v5007, %v5006
    %v5017 = vpack.c.b16 %v5009, %v5008
    %5026 = vmatpush.bf16.msra.mxu0 %v5017
    %5027 = vmatpush.bf16.msra.mxu0 %v5016
    %5028 = vmatpush.bf16.msra.mxu0 %v5015
    %5029 = vmatpush.bf16.msra.mxu0 %v5014
    %5030 = vmatpush.bf16.msra.mxu0 %v5013
    %5031 = vmatpush.bf16.msra.mxu0 %v5012
    %5032 = vmatpush.bf16.msra.mxu0 %v5011
    %5033 = vmatpush.bf16.msra.mxu0 %v5010
    %5034 = vmatmul.bf16.gmra.mxu0 %v4900
    %v5035 = vpop.f32.mrf.mxu0
    %v5036 = vadd.f32 0.0, %v5035
    %v5037 = vpop.f32.mrf.mxu0
    %v5038 = vadd.f32 0.0, %v5037
    %5039 = vmatmul.bf16.gmra.mxu0 %v4901
    %v5040 = vpop.f32.mrf.mxu0
    %v5041 = vadd.f32 0.0, %v5040
    %v5042 = vpop.f32.mrf.mxu0
    %v5043 = vadd.f32 0.0, %v5042
    %5044 = vdwg.mxu0
    %v5061 = vunpack.c.l.b16 %v4945
    %v5062 = vunpack.c.l.b16 %v4946
    %v5063 = vunpack.c.l.b16 %v4947
    %v5064 = vunpack.c.l.b16 %v4948
    %v5065 = vunpack.c.l.b16 %v4949
    %v5066 = vunpack.c.l.b16 %v4950
    %v5067 = vunpack.c.l.b16 %v4951
    %v5068 = vunpack.c.l.b16 %v4952
    %v5069 = vunpack.c.l.b16 %v4953
    %v5070 = vunpack.c.l.b16 %v4954
    %v5071 = vunpack.c.l.b16 %v4955
    %v5072 = vunpack.c.l.b16 %v4956
    %v5073 = vunpack.c.l.b16 %v4957
    %v5074 = vunpack.c.l.b16 %v4958
    %v5075 = vunpack.c.l.b16 %v4959
    %v5076 = vunpack.c.l.b16 %v4960
    %v5077 = vpack.c.b16 %v5062, %v5061
    %v5078 = vpack.c.b16 %v5064, %v5063
    %v5079 = vpack.c.b16 %v5066, %v5065
    %v5080 = vpack.c.b16 %v5068, %v5067
    %v5081 = vpack.c.b16 %v5070, %v5069
    %v5082 = vpack.c.b16 %v5072, %v5071
    %v5083 = vpack.c.b16 %v5074, %v5073
    %v5084 = vpack.c.b16 %v5076, %v5075
    %5093 = vmatpush.bf16.msra.mxu0 %v5084
    %5094 = vmatpush.bf16.msra.mxu0 %v5083
    %5095 = vmatpush.bf16.msra.mxu0 %v5082
    %5096 = vmatpush.bf16.msra.mxu0 %v5081
    %5097 = vmatpush.bf16.msra.mxu0 %v5080
    %5098 = vmatpush.bf16.msra.mxu0 %v5079
    %5099 = vmatpush.bf16.msra.mxu0 %v5078
    %5100 = vmatpush.bf16.msra.mxu0 %v5077
    %5101 = vmatmul.bf16.gmra.mxu0 %v4921
    %v5102 = vpop.f32.mrf.mxu0
    %v5103 = vadd.f32 %v5036, %v5102
    %v5104 = vpop.f32.mrf.mxu0
    %v5105 = vadd.f32 %v5038, %v5104
    %5106 = vmatmul.bf16.gmra.mxu0 %v4922
    %v5107 = vpop.f32.mrf.mxu0
    %v5108 = vadd.f32 %v5041, %v5107
    %v5109 = vpop.f32.mrf.mxu0
    %v5110 = vadd.f32 %v5043, %v5109
    %5111 = vdwg.mxu0
    %s5112 = scalar_lea.vmem [#allocation2], 1472
    %v5113 = vld [vmem:[%s5112] sm:$0xf]
    %v5114 = vld [vmem:[%s5112 + $0x4] sm:$0xf]
    %v5115 = vld [vmem:[%s5112 + $0x8] sm:$0xf]
    %v5116 = vld [vmem:[%s5112 + $0xc] sm:$0xf]
    %v5117 = vld [vmem:[%s5112 + $0x10] sm:$0xf]
    %v5118 = vld [vmem:[%s5112 + $0x14] sm:$0xf]
    %v5119 = vld [vmem:[%s5112 + $0x18] sm:$0xf]
    %v5120 = vld [vmem:[%s5112 + $0x1c] sm:$0xf]
    %v5121 = vld [vmem:[%s5112 + $0x20] sm:$0xf]
    %v5122 = vld [vmem:[%s5112 + $0x24] sm:$0xf]
    %v5123 = vld [vmem:[%s5112 + $0x28] sm:$0xf]
    %v5124 = vld [vmem:[%s5112 + $0x2c] sm:$0xf]
    %v5125 = vld [vmem:[%s5112 + $0x30] sm:$0xf]
    %v5126 = vld [vmem:[%s5112 + $0x34] sm:$0xf]
    %v5127 = vld [vmem:[%s5112 + $0x38] sm:$0xf]
    %v5128 = vld [vmem:[%s5112 + $0x3c] sm:$0xf]
    %v5145 = vunpack.c.l.b16 %v5113
    %v5146 = vunpack.c.l.b16 %v5114
    %v5147 = vunpack.c.l.b16 %v5115
    %v5148 = vunpack.c.l.b16 %v5116
    %v5149 = vunpack.c.l.b16 %v5117
    %v5150 = vunpack.c.l.b16 %v5118
    %v5151 = vunpack.c.l.b16 %v5119
    %v5152 = vunpack.c.l.b16 %v5120
    %v5153 = vunpack.c.l.b16 %v5121
    %v5154 = vunpack.c.l.b16 %v5122
    %v5155 = vunpack.c.l.b16 %v5123
    %v5156 = vunpack.c.l.b16 %v5124
    %v5157 = vunpack.c.l.b16 %v5125
    %v5158 = vunpack.c.l.b16 %v5126
    %v5159 = vunpack.c.l.b16 %v5127
    %v5160 = vunpack.c.l.b16 %v5128
    %v5161 = vpack.c.b16 %v5146, %v5145
    %v5162 = vpack.c.b16 %v5148, %v5147
    %v5163 = vpack.c.b16 %v5150, %v5149
    %v5164 = vpack.c.b16 %v5152, %v5151
    %v5165 = vpack.c.b16 %v5154, %v5153
    %v5166 = vpack.c.b16 %v5156, %v5155
    %v5167 = vpack.c.b16 %v5158, %v5157
    %v5168 = vpack.c.b16 %v5160, %v5159
    %5177 = vmatpush.bf16.msra.mxu0 %v5168
    %5178 = vmatpush.bf16.msra.mxu0 %v5167
    %5179 = vmatpush.bf16.msra.mxu0 %v5166
    %5180 = vmatpush.bf16.msra.mxu0 %v5165
    %5181 = vmatpush.bf16.msra.mxu0 %v5164
    %5182 = vmatpush.bf16.msra.mxu0 %v5163
    %5183 = vmatpush.bf16.msra.mxu0 %v5162
    %5184 = vmatpush.bf16.msra.mxu0 %v5161
    %5185 = vmatmul.bf16.gmra.mxu0 %v4942
    %v5186 = vpop.f32.mrf.mxu0
    %v5187 = vadd.f32 0.0, %v5186
    %v5188 = vpop.f32.mrf.mxu0
    %v5189 = vadd.f32 0.0, %v5188
    %5190 = vmatmul.bf16.gmra.mxu0 %v4943
    %v5191 = vpop.f32.mrf.mxu0
    %v5192 = vadd.f32 0.0, %v5191
    %v5193 = vpop.f32.mrf.mxu0
    %v5194 = vadd.f32 0.0, %v5193
    %5195 = vdwg.mxu0
    %v5196 = vadd.f32 %v5103, %v5187
    %v5197 = vadd.f32 %v5105, %v5189
    %v5198 = vadd.f32 %v5108, %v5192
    %v5199 = vadd.f32 %v5110, %v5194
    %s5200 = scalar_lea.vmem %s10, 14
    %v5201 = vld [vmem:[%s5200] sm:$0x1]
    %s5202 = scalar_lea.vmem %s10, 15
    %v5203 = vld [vmem:[%s5202] sm:$0x1]
    %v5204 = vadd.f32 %v5196, %v5197
    %v5205 = vadd.f32 %v5204, %v5198
    %v5206 = vadd.f32 %v5205, %v5199
    %v5207 = vrot.slane %v5206, 4
    %v5208 = vadd.f32 %v5206, %v5207
    %v5209 = vrot.slane %v5208, 2
    %v5210 = vadd.f32 %v5208, %v5209
    %v5211 = vrot.slane %v5210, 1
    %v5212 = vadd.f32 %v5210, %v5211
    %v5213 = vmul.f32 %v5212, %v1498
    %5214 = vmatpush.msra.mxu0 %v4629
    %5215 = vmatpush.msra.mxu0 %v4628
    %5216 = vmatpush.msra.mxu0 %v4627
    %5217 = vmatpush.msra.mxu0 %v4626
    %5218 = vmatpush.msra.mxu0 %v4625
    %5219 = vmatpush.msra.mxu0 %v4624
    %5220 = vmatpush.msra.mxu0 %v4623
    %5221 = vmatpush.msra.mxu0 %v4622
    %5222 = vmatpush.msra.mxu0 %v4621
    %5223 = vmatpush.msra.mxu0 %v4620
    %5224 = vmatpush.msra.mxu0 %v4619
    %5225 = vmatpush.msra.mxu0 %v4618
    %5226 = vmatpush.msra.mxu0 %v4617
    %5227 = vmatpush.msra.mxu0 %v4616
    %5228 = vmatpush.msra.mxu0 %v4615
    %5229 = vmatpush.msra.mxu0 %v4614
    %5230 = vmatmul.f32.gmra.mxu0 %v5213
    %v5231 = vpop.f32.mrf.mxu0
    %v5232 = vadd.f32 0.0, %v5231
    %5233 = vdwg.mxu0
    %v5234 = vperm.slane %v5232, 0
    %v5235 = vsub.f32 %v5196, %v5234
    %v5236 = vsub.f32 %v5197, %v5234
    %v5237 = vsub.f32 %v5198, %v5234
    %v5238 = vsub.f32 %v5199, %v5234
    %v5239 = vmul.f32 %v5235, %v5235
    %v5240 = vmul.f32 %v5236, %v5236
    %v5241 = vmul.f32 %v5237, %v5237
    %v5242 = vmul.f32 %v5238, %v5238
    %v5243 = vadd.f32 %v5239, %v5240
    %v5244 = vadd.f32 %v5243, %v5241
    %v5245 = vadd.f32 %v5244, %v5242
    %v5246 = vrot.slane %v5245, 4
    %v5247 = vadd.f32 %v5245, %v5246
    %v5248 = vrot.slane %v5247, 2
    %v5249 = vadd.f32 %v5247, %v5248
    %v5250 = vrot.slane %v5249, 1
    %v5251 = vadd.f32 %v5249, %v5250
    %v5252 = vmul.f32 %v5251, %v1498
    %5253 = vmatpush.msra.mxu0 %v4629
    %5254 = vmatpush.msra.mxu0 %v4628
    %5255 = vmatpush.msra.mxu0 %v4627
    %5256 = vmatpush.msra.mxu0 %v4626
    %5257 = vmatpush.msra.mxu0 %v4625
    %5258 = vmatpush.msra.mxu0 %v4624
    %5259 = vmatpush.msra.mxu0 %v4623
    %5260 = vmatpush.msra.mxu0 %v4622
    %5261 = vmatpush.msra.mxu0 %v4621
    %5262 = vmatpush.msra.mxu0 %v4620
    %5263 = vmatpush.msra.mxu0 %v4619
    %5264 = vmatpush.msra.mxu0 %v4618
    %5265 = vmatpush.msra.mxu0 %v4617
    %5266 = vmatpush.msra.mxu0 %v4616
    %5267 = vmatpush.msra.mxu0 %v4615
    %5268 = vmatpush.msra.mxu0 %v4614
    %5269 = vmatmul.f32.gmra.mxu0 %v5252
    %v5270 = vpop.f32.mrf.mxu0
    %v5271 = vadd.f32 1e-05, %v5270
    %5272 = vdwg.mxu0
    %v5273 = vrsqrt.pop %v5271
    %v5274 = vmul.f32 %v5273, %v5271
    %v5275 = vmul.f32 %v5274, %v5273
    %v5276 = vmul.f32 0.5, %v5275
    %v5277 = vsub.f32 1.5, %v5276
    %v5278 = vmul.f32 %v5273, %v5277
    %vm5279 = vweird.f32 %v5271
    %vm5280 = vweird.f32 %v5273
    %vm5281 = vmor %vm5279, %vm5280
    %v5282 = vsel %vm5281, %v5273, %v5278
    %v5283 = vperm.slane %v5282, 0
    %v5284 = vmul.f32 %v5235, %v5283
    %v5285 = vmul.f32 %v5236, %v5283
    %v5286 = vmul.f32 %v5237, %v5283
    %v5287 = vmul.f32 %v5238, %v5283
    %v5289 = vperm.slane %v5201, 0
    %v5291 = vmul.f32 %v5284, %v5289
    %v5292 = vmul.f32 %v5285, %v5289
    %v5293 = vmul.f32 %v5286, %v5289
    %v5294 = vmul.f32 %v5287, %v5289
    %v5296 = vperm.slane %v5203, 0
    %v5298 = vadd.f32 %v5291, %v5296
    %v5299 = vadd.f32 %v5292, %v5296
    %v5300 = vadd.f32 %v5293, %v5296
    %v5301 = vadd.f32 %v5294, %v5296
    %s5302 = scalar_lea.vmem [#allocation2], 1536
    %v5303 = vld [vmem:[%s5302] sm:$0xf]
    %v5304 = vld [vmem:[%s5302 + $0x4] sm:$0xf]
    %v5305 = vld [vmem:[%s5302 + $0x8] sm:$0xf]
    %v5306 = vld [vmem:[%s5302 + $0xc] sm:$0xf]
    %v5307 = vld [vmem:[%s5302 + $0x10] sm:$0xf]
    %v5308 = vld [vmem:[%s5302 + $0x14] sm:$0xf]
    %v5309 = vld [vmem:[%s5302 + $0x18] sm:$0xf]
    %v5310 = vld [vmem:[%s5302 + $0x1c] sm:$0xf]
    %v5311 = vld [vmem:[%s5302 + $0x20] sm:$0xf]
    %v5312 = vld [vmem:[%s5302 + $0x24] sm:$0xf]
    %v5313 = vld [vmem:[%s5302 + $0x28] sm:$0xf]
    %v5314 = vld [vmem:[%s5302 + $0x2c] sm:$0xf]
    %v5315 = vld [vmem:[%s5302 + $0x30] sm:$0xf]
    %v5316 = vld [vmem:[%s5302 + $0x34] sm:$0xf]
    %v5317 = vld [vmem:[%s5302 + $0x38] sm:$0xf]
    %v5318 = vld [vmem:[%s5302 + $0x3c] sm:$0xf]
    %s5319 = scalar_lea.vmem [#allocation2], 1600
    %v5320 = vld [vmem:[%s5319] sm:$0xf]
    %v5321 = vld [vmem:[%s5319 + $0x4] sm:$0xf]
    %v5322 = vld [vmem:[%s5319 + $0x8] sm:$0xf]
    %v5323 = vld [vmem:[%s5319 + $0xc] sm:$0xf]
    %v5324 = vld [vmem:[%s5319 + $0x10] sm:$0xf]
    %v5325 = vld [vmem:[%s5319 + $0x14] sm:$0xf]
    %v5326 = vld [vmem:[%s5319 + $0x18] sm:$0xf]
    %v5327 = vld [vmem:[%s5319 + $0x1c] sm:$0xf]
    %v5328 = vld [vmem:[%s5319 + $0x20] sm:$0xf]
    %v5329 = vld [vmem:[%s5319 + $0x24] sm:$0xf]
    %v5330 = vld [vmem:[%s5319 + $0x28] sm:$0xf]
    %v5331 = vld [vmem:[%s5319 + $0x2c] sm:$0xf]
    %v5332 = vld [vmem:[%s5319 + $0x30] sm:$0xf]
    %v5333 = vld [vmem:[%s5319 + $0x34] sm:$0xf]
    %v5334 = vld [vmem:[%s5319 + $0x38] sm:$0xf]
    %v5335 = vld [vmem:[%s5319 + $0x3c] sm:$0xf]
    %v5352 = vunpack.c.l.b16 %v5320
    %v5353 = vunpack.c.l.b16 %v5321
    %v5354 = vunpack.c.l.b16 %v5322
    %v5355 = vunpack.c.l.b16 %v5323
    %v5356 = vunpack.c.l.b16 %v5324
    %v5357 = vunpack.c.l.b16 %v5325
    %v5358 = vunpack.c.l.b16 %v5326
    %v5359 = vunpack.c.l.b16 %v5327
    %v5360 = vunpack.c.l.b16 %v5328
    %v5361 = vunpack.c.l.b16 %v5329
    %v5362 = vunpack.c.l.b16 %v5330
    %v5363 = vunpack.c.l.b16 %v5331
    %v5364 = vunpack.c.l.b16 %v5332
    %v5365 = vunpack.c.l.b16 %v5333
    %v5366 = vunpack.c.l.b16 %v5334
    %v5367 = vunpack.c.l.b16 %v5335
    %v5368 = vpack.c.b16 %v5353, %v5352
    %v5369 = vpack.c.b16 %v5355, %v5354
    %v5370 = vpack.c.b16 %v5357, %v5356
    %v5371 = vpack.c.b16 %v5359, %v5358
    %v5372 = vpack.c.b16 %v5361, %v5360
    %v5373 = vpack.c.b16 %v5363, %v5362
    %v5374 = vpack.c.b16 %v5365, %v5364
    %v5375 = vpack.c.b16 %v5367, %v5366
    %5384 = vmatpush.bf16.msra.mxu0 %v5375
    %5385 = vmatpush.bf16.msra.mxu0 %v5374
    %5386 = vmatpush.bf16.msra.mxu0 %v5373
    %5387 = vmatpush.bf16.msra.mxu0 %v5372
    %5388 = vmatpush.bf16.msra.mxu0 %v5371
    %5389 = vmatpush.bf16.msra.mxu0 %v5370
    %5390 = vmatpush.bf16.msra.mxu0 %v5369
    %5391 = vmatpush.bf16.msra.mxu0 %v5368
    %5392 = vmatmul.bf16.gmra.mxu0 %v4900
    %v5393 = vpop.f32.mrf.mxu0
    %v5394 = vadd.f32 0.0, %v5393
    %v5395 = vpop.f32.mrf.mxu0
    %v5396 = vadd.f32 0.0, %v5395
    %5397 = vmatmul.bf16.gmra.mxu0 %v4901
    %v5398 = vpop.f32.mrf.mxu0
    %v5399 = vadd.f32 0.0, %v5398
    %v5400 = vpop.f32.mrf.mxu0
    %v5401 = vadd.f32 0.0, %v5400
    %5402 = vdwg.mxu0
    %v5419 = vunpack.c.l.b16 %v5303
    %v5420 = vunpack.c.l.b16 %v5304
    %v5421 = vunpack.c.l.b16 %v5305
    %v5422 = vunpack.c.l.b16 %v5306
    %v5423 = vunpack.c.l.b16 %v5307
    %v5424 = vunpack.c.l.b16 %v5308
    %v5425 = vunpack.c.l.b16 %v5309
    %v5426 = vunpack.c.l.b16 %v5310
    %v5427 = vunpack.c.l.b16 %v5311
    %v5428 = vunpack.c.l.b16 %v5312
    %v5429 = vunpack.c.l.b16 %v5313
    %v5430 = vunpack.c.l.b16 %v5314
    %v5431 = vunpack.c.l.b16 %v5315
    %v5432 = vunpack.c.l.b16 %v5316
    %v5433 = vunpack.c.l.b16 %v5317
    %v5434 = vunpack.c.l.b16 %v5318
    %v5435 = vpack.c.b16 %v5420, %v5419
    %v5436 = vpack.c.b16 %v5422, %v5421
    %v5437 = vpack.c.b16 %v5424, %v5423
    %v5438 = vpack.c.b16 %v5426, %v5425
    %v5439 = vpack.c.b16 %v5428, %v5427
    %v5440 = vpack.c.b16 %v5430, %v5429
    %v5441 = vpack.c.b16 %v5432, %v5431
    %v5442 = vpack.c.b16 %v5434, %v5433
    %5451 = vmatpush.bf16.msra.mxu0 %v5442
    %5452 = vmatpush.bf16.msra.mxu0 %v5441
    %5453 = vmatpush.bf16.msra.mxu0 %v5440
    %5454 = vmatpush.bf16.msra.mxu0 %v5439
    %5455 = vmatpush.bf16.msra.mxu0 %v5438
    %5456 = vmatpush.bf16.msra.mxu0 %v5437
    %5457 = vmatpush.bf16.msra.mxu0 %v5436
    %5458 = vmatpush.bf16.msra.mxu0 %v5435
    %5459 = vmatmul.bf16.gmra.mxu0 %v4921
    %v5460 = vpop.f32.mrf.mxu0
    %v5461 = vadd.f32 %v5394, %v5460
    %v5462 = vpop.f32.mrf.mxu0
    %v5463 = vadd.f32 %v5396, %v5462
    %5464 = vmatmul.bf16.gmra.mxu0 %v4922
    %v5465 = vpop.f32.mrf.mxu0
    %v5466 = vadd.f32 %v5399, %v5465
    %v5467 = vpop.f32.mrf.mxu0
    %v5468 = vadd.f32 %v5401, %v5467
    %5469 = vdwg.mxu0
    %s5470 = scalar_lea.vmem [#allocation2], 1664
    %v5471 = vld [vmem:[%s5470] sm:$0xf]
    %v5472 = vld [vmem:[%s5470 + $0x4] sm:$0xf]
    %v5473 = vld [vmem:[%s5470 + $0x8] sm:$0xf]
    %v5474 = vld [vmem:[%s5470 + $0xc] sm:$0xf]
    %v5475 = vld [vmem:[%s5470 + $0x10] sm:$0xf]
    %v5476 = vld [vmem:[%s5470 + $0x14] sm:$0xf]
    %v5477 = vld [vmem:[%s5470 + $0x18] sm:$0xf]
    %v5478 = vld [vmem:[%s5470 + $0x1c] sm:$0xf]
    %v5479 = vld [vmem:[%s5470 + $0x20] sm:$0xf]
    %v5480 = vld [vmem:[%s5470 + $0x24] sm:$0xf]
    %v5481 = vld [vmem:[%s5470 + $0x28] sm:$0xf]
    %v5482 = vld [vmem:[%s5470 + $0x2c] sm:$0xf]
    %v5483 = vld [vmem:[%s5470 + $0x30] sm:$0xf]
    %v5484 = vld [vmem:[%s5470 + $0x34] sm:$0xf]
    %v5485 = vld [vmem:[%s5470 + $0x38] sm:$0xf]
    %v5486 = vld [vmem:[%s5470 + $0x3c] sm:$0xf]
    %v5503 = vunpack.c.l.b16 %v5471
    %v5504 = vunpack.c.l.b16 %v5472
    %v5505 = vunpack.c.l.b16 %v5473
    %v5506 = vunpack.c.l.b16 %v5474
    %v5507 = vunpack.c.l.b16 %v5475
    %v5508 = vunpack.c.l.b16 %v5476
    %v5509 = vunpack.c.l.b16 %v5477
    %v5510 = vunpack.c.l.b16 %v5478
    %v5511 = vunpack.c.l.b16 %v5479
    %v5512 = vunpack.c.l.b16 %v5480
    %v5513 = vunpack.c.l.b16 %v5481
    %v5514 = vunpack.c.l.b16 %v5482
    %v5515 = vunpack.c.l.b16 %v5483
    %v5516 = vunpack.c.l.b16 %v5484
    %v5517 = vunpack.c.l.b16 %v5485
    %v5518 = vunpack.c.l.b16 %v5486
    %v5519 = vpack.c.b16 %v5504, %v5503
    %v5520 = vpack.c.b16 %v5506, %v5505
    %v5521 = vpack.c.b16 %v5508, %v5507
    %v5522 = vpack.c.b16 %v5510, %v5509
    %v5523 = vpack.c.b16 %v5512, %v5511
    %v5524 = vpack.c.b16 %v5514, %v5513
    %v5525 = vpack.c.b16 %v5516, %v5515
    %v5526 = vpack.c.b16 %v5518, %v5517
    %5535 = vmatpush.bf16.msra.mxu0 %v5526
    %5536 = vmatpush.bf16.msra.mxu0 %v5525
    %5537 = vmatpush.bf16.msra.mxu0 %v5524
    %5538 = vmatpush.bf16.msra.mxu0 %v5523
    %5539 = vmatpush.bf16.msra.mxu0 %v5522
    %5540 = vmatpush.bf16.msra.mxu0 %v5521
    %5541 = vmatpush.bf16.msra.mxu0 %v5520
    %5542 = vmatpush.bf16.msra.mxu0 %v5519
    %5543 = vmatmul.bf16.gmra.mxu0 %v4942
    %v5544 = vpop.f32.mrf.mxu0
    %v5545 = vadd.f32 0.0, %v5544
    %v5546 = vpop.f32.mrf.mxu0
    %v5547 = vadd.f32 0.0, %v5546
    %5548 = vmatmul.bf16.gmra.mxu0 %v4943
    %v5549 = vpop.f32.mrf.mxu0
    %v5550 = vadd.f32 0.0, %v5549
    %v5551 = vpop.f32.mrf.mxu0
    %v5552 = vadd.f32 0.0, %v5551
    %5553 = vdwg.mxu0
    %v5554 = vadd.f32 %v5461, %v5545
    %v5555 = vadd.f32 %v5463, %v5547
    %v5556 = vadd.f32 %v5466, %v5550
    %v5557 = vadd.f32 %v5468, %v5552
    %s5558 = scalar_lea.vmem %s10, 16
    %v5559 = vld [vmem:[%s5558] sm:$0x1]
    %s5560 = scalar_lea.vmem %s10, 17
    %v5561 = vld [vmem:[%s5560] sm:$0x1]
    %v5562 = vadd.f32 %v5554, %v5555
    %v5563 = vadd.f32 %v5562, %v5556
    %v5564 = vadd.f32 %v5563, %v5557
    %v5565 = vrot.slane %v5564, 4
    %v5566 = vadd.f32 %v5564, %v5565
    %v5567 = vrot.slane %v5566, 2
    %v5568 = vadd.f32 %v5566, %v5567
    %v5569 = vrot.slane %v5568, 1
    %v5570 = vadd.f32 %v5568, %v5569
    %v5571 = vmul.f32 %v5570, %v1498
    %5572 = vmatpush.msra.mxu0 %v4629
    %5573 = vmatpush.msra.mxu0 %v4628
    %5574 = vmatpush.msra.mxu0 %v4627
    %5575 = vmatpush.msra.mxu0 %v4626
    %5576 = vmatpush.msra.mxu0 %v4625
    %5577 = vmatpush.msra.mxu0 %v4624
    %5578 = vmatpush.msra.mxu0 %v4623
    %5579 = vmatpush.msra.mxu0 %v4622
    %5580 = vmatpush.msra.mxu0 %v4621
    %5581 = vmatpush.msra.mxu0 %v4620
    %5582 = vmatpush.msra.mxu0 %v4619
    %5583 = vmatpush.msra.mxu0 %v4618
    %5584 = vmatpush.msra.mxu0 %v4617
    %5585 = vmatpush.msra.mxu0 %v4616
    %5586 = vmatpush.msra.mxu0 %v4615
    %5587 = vmatpush.msra.mxu0 %v4614
    %5588 = vmatmul.f32.gmra.mxu0 %v5571
    %v5589 = vpop.f32.mrf.mxu0
    %v5590 = vadd.f32 0.0, %v5589
    %5591 = vdwg.mxu0
    %v5592 = vperm.slane %v5590, 0
    %v5593 = vsub.f32 %v5554, %v5592
    %v5594 = vsub.f32 %v5555, %v5592
    %v5595 = vsub.f32 %v5556, %v5592
    %v5596 = vsub.f32 %v5557, %v5592
    %v5597 = vmul.f32 %v5593, %v5593
    %v5598 = vmul.f32 %v5594, %v5594
    %v5599 = vmul.f32 %v5595, %v5595
    %v5600 = vmul.f32 %v5596, %v5596
    %v5601 = vadd.f32 %v5597, %v5598
    %v5602 = vadd.f32 %v5601, %v5599
    %v5603 = vadd.f32 %v5602, %v5600
    %v5604 = vrot.slane %v5603, 4
    %v5605 = vadd.f32 %v5603, %v5604
    %v5606 = vrot.slane %v5605, 2
    %v5607 = vadd.f32 %v5605, %v5606
    %v5608 = vrot.slane %v5607, 1
    %v5609 = vadd.f32 %v5607, %v5608
    %v5610 = vmul.f32 %v5609, %v1498
    %5611 = vmatpush.msra.mxu0 %v4629
    %5612 = vmatpush.msra.mxu0 %v4628
    %5613 = vmatpush.msra.mxu0 %v4627
    %5614 = vmatpush.msra.mxu0 %v4626
    %5615 = vmatpush.msra.mxu0 %v4625
    %5616 = vmatpush.msra.mxu0 %v4624
    %5617 = vmatpush.msra.mxu0 %v4623
    %5618 = vmatpush.msra.mxu0 %v4622
    %5619 = vmatpush.msra.mxu0 %v4621
    %5620 = vmatpush.msra.mxu0 %v4620
    %5621 = vmatpush.msra.mxu0 %v4619
    %5622 = vmatpush.msra.mxu0 %v4618
    %5623 = vmatpush.msra.mxu0 %v4617
    %5624 = vmatpush.msra.mxu0 %v4616
    %5625 = vmatpush.msra.mxu0 %v4615
    %5626 = vmatpush.msra.mxu0 %v4614
    %5627 = vmatmul.f32.gmra.mxu0 %v5610
    %v5628 = vpop.f32.mrf.mxu0
    %v5629 = vadd.f32 1e-05, %v5628
    %5630 = vdwg.mxu0
    %v5631 = vrsqrt.pop %v5629
    %v5632 = vmul.f32 %v5631, %v5629
    %v5633 = vmul.f32 %v5632, %v5631
    %v5634 = vmul.f32 0.5, %v5633
    %v5635 = vsub.f32 1.5, %v5634
    %v5636 = vmul.f32 %v5631, %v5635
    %vm5637 = vweird.f32 %v5629
    %vm5638 = vweird.f32 %v5631
    %vm5639 = vmor %vm5637, %vm5638
    %v5640 = vsel %vm5639, %v5631, %v5636
    %v5641 = vperm.slane %v5640, 0
    %v5642 = vmul.f32 %v5593, %v5641
    %v5643 = vmul.f32 %v5594, %v5641
    %v5644 = vmul.f32 %v5595, %v5641
    %v5645 = vmul.f32 %v5596, %v5641
    %v5647 = vperm.slane %v5559, 0
    %v5649 = vmul.f32 %v5642, %v5647
    %v5650 = vmul.f32 %v5643, %v5647
    %v5651 = vmul.f32 %v5644, %v5647
    %v5652 = vmul.f32 %v5645, %v5647
    %v5654 = vperm.slane %v5561, 0
    %v5656 = vadd.f32 %v5649, %v5654
    %v5657 = vadd.f32 %v5650, %v5654
    %v5658 = vadd.f32 %v5651, %v5654
    %v5659 = vadd.f32 %v5652, %v5654
    %v5660 = vxor.u32 %v5656, 2147483648
    %v5661 = vxor.u32 %v5657, 2147483648
    %v5662 = vxor.u32 %v5658, 2147483648
    %v5663 = vxor.u32 %v5659, 2147483648
    %v5664 = vmul.f32 %v5660, 1.442695
    %v5665 = vpow.pop %v5664
    %v5666 = vmul.f32 %v5661, 1.442695
    %v5667 = vpow.pop %v5666
    %v5668 = vmul.f32 %v5662, 1.442695
    %v5669 = vpow.pop %v5668
    %v5670 = vmul.f32 %v5663, 1.442695
    %v5671 = vpow.pop %v5670
    %v5672 = vadd.f32 %v5665, 1.0
    %v5673 = vadd.f32 %v5667, 1.0
    %v5674 = vadd.f32 %v5669, 1.0
    %v5675 = vadd.f32 %v5671, 1.0
    %v5676 = vrcp.pop %v5672
    %v5677 = vmul.f32 %v5672, %v5676
    %v5678 = vsub.f32 1.0, %v5677
    %v5679 = vmul.f32 %v5676, %v5678
    %v5680 = vadd.f32 %v5676, %v5679
    %vm5681 = vweird.f32 %v5672
    %vm5682 = vweird.f32 %v5676
    %vm5683 = vmor %vm5681, %vm5682
    %v5684 = vsel %vm5683, %v5676, %v5680
    %v5685 = vand.u32 2147483647, %v5672
    %vm5686 = vcmp.eq.f32.partialorder %v5685, 8.507059e+37
    %v5687 = vand.u32 %v5672, 2147483648
    %v5688 = vor.u32 1.1754944e-38, %v5687
    %v5689 = vsel %vm5686, %v5688, %v5684
    %v5690 = vmul.f32 1.0, %v5689
    %v5691 = vrcp.pop %v5673
    %v5692 = vmul.f32 %v5673, %v5691
    %v5693 = vsub.f32 1.0, %v5692
    %v5694 = vmul.f32 %v5691, %v5693
    %v5695 = vadd.f32 %v5691, %v5694
    %vm5696 = vweird.f32 %v5673
    %vm5697 = vweird.f32 %v5691
    %vm5698 = vmor %vm5696, %vm5697
    %v5699 = vsel %vm5698, %v5691, %v5695
    %v5700 = vand.u32 2147483647, %v5673
    %vm5701 = vcmp.eq.f32.partialorder %v5700, 8.507059e+37
    %v5702 = vand.u32 %v5673, 2147483648
    %v5703 = vor.u32 1.1754944e-38, %v5702
    %v5704 = vsel %vm5701, %v5703, %v5699
    %v5705 = vmul.f32 1.0, %v5704
    %v5706 = vrcp.pop %v5674
    %v5707 = vmul.f32 %v5674, %v5706
    %v5708 = vsub.f32 1.0, %v5707
    %v5709 = vmul.f32 %v5706, %v5708
    %v5710 = vadd.f32 %v5706, %v5709
    %vm5711 = vweird.f32 %v5674
    %vm5712 = vweird.f32 %v5706
    %vm5713 = vmor %vm5711, %vm5712
    %v5714 = vsel %vm5713, %v5706, %v5710
    %v5715 = vand.u32 2147483647, %v5674
    %vm5716 = vcmp.eq.f32.partialorder %v5715, 8.507059e+37
    %v5717 = vand.u32 %v5674, 2147483648
    %v5718 = vor.u32 1.1754944e-38, %v5717
    %v5719 = vsel %vm5716, %v5718, %v5714
    %v5720 = vmul.f32 1.0, %v5719
    %v5721 = vrcp.pop %v5675
    %v5722 = vmul.f32 %v5675, %v5721
    %v5723 = vsub.f32 1.0, %v5722
    %v5724 = vmul.f32 %v5721, %v5723
    %v5725 = vadd.f32 %v5721, %v5724
    %vm5726 = vweird.f32 %v5675
    %vm5727 = vweird.f32 %v5721
    %vm5728 = vmor %vm5726, %vm5727
    %v5729 = vsel %vm5728, %v5721, %v5725
    %v5730 = vand.u32 2147483647, %v5675
    %vm5731 = vcmp.eq.f32.partialorder %v5730, 8.507059e+37
    %v5732 = vand.u32 %v5675, 2147483648
    %v5733 = vor.u32 1.1754944e-38, %v5732
    %v5734 = vsel %vm5731, %v5733, %v5729
    %v5735 = vmul.f32 1.0, %v5734
    %v5736 = vmul.f32 %v5298, %v5690
    %v5737 = vmul.f32 %v5299, %v5705
    %v5738 = vmul.f32 %v5300, %v5720
    %v5739 = vmul.f32 %v5301, %v5735
    %v5740 = vpack.c.bf16 %v5737, %v5736
    %v5741 = vpack.c.bf16 %v5739, %v5738
    %5742 = vmatpush.bf16.msra.mxu0 0
    %5743 = vmatpush.bf16.msra.mxu0 0
    %5744 = vmatpush.bf16.msra.mxu0 0
    %5745 = vmatpush.bf16.msra.mxu0 0
    %5746 = vmatpush.bf16.msra.mxu0 0
    %5747 = vmatpush.bf16.msra.mxu0 0
    %5748 = vmatpush.bf16.msra.mxu0 %v5741
    %5749 = vmatpush.bf16.msra.mxu0 %v5740
    %5750 = vmatmul.bf16.gmra.mxu0 %v87
    %v5751 = vpop.f32.mrf.mxu0
    %v5752 = vadd.f32 0.0, %v5751
    %v5753 = vpop.f32.mrf.mxu0
    %v5754 = vadd.f32 0.0, %v5753
    %5755 = vmatmul.bf16.gmra.mxu0 %v90
    %v5756 = vpop.f32.mrf.mxu0
    %v5757 = vadd.f32 0.0, %v5756
    %v5758 = vpop.f32.mrf.mxu0
    %v5759 = vadd.f32 0.0, %v5758
    %5760 = vdwg.mxu0
    %v5761 = vpack.c.bf16 %v5754, %v5752
    %v5762 = vpack.c.bf16 %v5759, %v5757
    %5763 = vmatpush.bf16.msra.mxu0 0
    %5764 = vmatpush.bf16.msra.mxu0 0
    %5765 = vmatpush.bf16.msra.mxu0 0
    %5766 = vmatpush.bf16.msra.mxu0 0
    %5767 = vmatpush.bf16.msra.mxu0 0
    %5768 = vmatpush.bf16.msra.mxu0 0
    %5769 = vmatpush.bf16.msra.mxu0 %v5741
    %5770 = vmatpush.bf16.msra.mxu0 %v5740
    %5771 = vmatmul.bf16.gmra.mxu0 %v124
    %v5772 = vpop.f32.mrf.mxu0
    %v5773 = vadd.f32 0.0, %v5772
    %v5774 = vpop.f32.mrf.mxu0
    %v5775 = vadd.f32 0.0, %v5774
    %5776 = vmatmul.bf16.gmra.mxu0 %v127
    %v5777 = vpop.f32.mrf.mxu0
    %v5778 = vadd.f32 0.0, %v5777
    %v5779 = vpop.f32.mrf.mxu0
    %v5780 = vadd.f32 0.0, %v5779
    %5781 = vdwg.mxu0
    %v5782 = vpack.c.bf16 %v5775, %v5773
    %v5783 = vpack.c.bf16 %v5780, %v5778
    %s5784 = scalar_lea.vmem [#allocation2], 1728
    %v5785 = vld [vmem:[%s5784] sm:$0xf]
    %v5786 = vld [vmem:[%s5784 + $0x4] sm:$0xf]
    %v5787 = vld [vmem:[%s5784 + $0x8] sm:$0xf]
    %v5788 = vld [vmem:[%s5784 + $0xc] sm:$0xf]
    %v5789 = vld [vmem:[%s5784 + $0x10] sm:$0xf]
    %v5790 = vld [vmem:[%s5784 + $0x14] sm:$0xf]
    %v5791 = vld [vmem:[%s5784 + $0x18] sm:$0xf]
    %v5792 = vld [vmem:[%s5784 + $0x1c] sm:$0xf]
    %v5793 = vld [vmem:[%s5784 + $0x20] sm:$0xf]
    %v5794 = vld [vmem:[%s5784 + $0x24] sm:$0xf]
    %v5795 = vld [vmem:[%s5784 + $0x28] sm:$0xf]
    %v5796 = vld [vmem:[%s5784 + $0x2c] sm:$0xf]
    %v5797 = vld [vmem:[%s5784 + $0x30] sm:$0xf]
    %v5798 = vld [vmem:[%s5784 + $0x34] sm:$0xf]
    %v5799 = vld [vmem:[%s5784 + $0x38] sm:$0xf]
    %v5800 = vld [vmem:[%s5784 + $0x3c] sm:$0xf]
    %s5801 = scalar_lea.vmem [#allocation2], 1792
    %v5802 = vld [vmem:[%s5801] sm:$0xf]
    %v5803 = vld [vmem:[%s5801 + $0x4] sm:$0xf]
    %v5804 = vld [vmem:[%s5801 + $0x8] sm:$0xf]
    %v5805 = vld [vmem:[%s5801 + $0xc] sm:$0xf]
    %v5806 = vld [vmem:[%s5801 + $0x10] sm:$0xf]
    %v5807 = vld [vmem:[%s5801 + $0x14] sm:$0xf]
    %v5808 = vld [vmem:[%s5801 + $0x18] sm:$0xf]
    %v5809 = vld [vmem:[%s5801 + $0x1c] sm:$0xf]
    %v5810 = vld [vmem:[%s5801 + $0x20] sm:$0xf]
    %v5811 = vld [vmem:[%s5801 + $0x24] sm:$0xf]
    %v5812 = vld [vmem:[%s5801 + $0x28] sm:$0xf]
    %v5813 = vld [vmem:[%s5801 + $0x2c] sm:$0xf]
    %v5814 = vld [vmem:[%s5801 + $0x30] sm:$0xf]
    %v5815 = vld [vmem:[%s5801 + $0x34] sm:$0xf]
    %v5816 = vld [vmem:[%s5801 + $0x38] sm:$0xf]
    %v5817 = vld [vmem:[%s5801 + $0x3c] sm:$0xf]
    %v5834 = vunpack.c.l.b16 %v5802
    %v5835 = vunpack.c.l.b16 %v5803
    %v5836 = vunpack.c.l.b16 %v5804
    %v5837 = vunpack.c.l.b16 %v5805
    %v5838 = vunpack.c.l.b16 %v5806
    %v5839 = vunpack.c.l.b16 %v5807
    %v5840 = vunpack.c.l.b16 %v5808
    %v5841 = vunpack.c.l.b16 %v5809
    %v5842 = vunpack.c.l.b16 %v5810
    %v5843 = vunpack.c.l.b16 %v5811
    %v5844 = vunpack.c.l.b16 %v5812
    %v5845 = vunpack.c.l.b16 %v5813
    %v5846 = vunpack.c.l.b16 %v5814
    %v5847 = vunpack.c.l.b16 %v5815
    %v5848 = vunpack.c.l.b16 %v5816
    %v5849 = vunpack.c.l.b16 %v5817
    %v5850 = vpack.c.b16 %v5835, %v5834
    %v5851 = vpack.c.b16 %v5837, %v5836
    %v5852 = vpack.c.b16 %v5839, %v5838
    %v5853 = vpack.c.b16 %v5841, %v5840
    %v5854 = vpack.c.b16 %v5843, %v5842
    %v5855 = vpack.c.b16 %v5845, %v5844
    %v5856 = vpack.c.b16 %v5847, %v5846
    %v5857 = vpack.c.b16 %v5849, %v5848
    %5866 = vmatpush.bf16.msra.mxu0 %v5857
    %5867 = vmatpush.bf16.msra.mxu0 %v5856
    %5868 = vmatpush.bf16.msra.mxu0 %v5855
    %5869 = vmatpush.bf16.msra.mxu0 %v5854
    %5870 = vmatpush.bf16.msra.mxu0 %v5853
    %5871 = vmatpush.bf16.msra.mxu0 %v5852
    %5872 = vmatpush.bf16.msra.mxu0 %v5851
    %5873 = vmatpush.bf16.msra.mxu0 %v5850
    %5874 = vmatmul.bf16.gmra.mxu0 %v5740
    %v5875 = vpop.f32.mrf.mxu0
    %v5876 = vadd.f32 0.0, %v5875
    %v5877 = vpop.f32.mrf.mxu0
    %v5878 = vadd.f32 0.0, %v5877
    %5879 = vmatmul.bf16.gmra.mxu0 %v5741
    %v5880 = vpop.f32.mrf.mxu0
    %v5881 = vadd.f32 0.0, %v5880
    %v5882 = vpop.f32.mrf.mxu0
    %v5883 = vadd.f32 0.0, %v5882
    %5884 = vdwg.mxu0
    %v5901 = vunpack.c.l.b16 %v5785
    %v5902 = vunpack.c.l.b16 %v5786
    %v5903 = vunpack.c.l.b16 %v5787
    %v5904 = vunpack.c.l.b16 %v5788
    %v5905 = vunpack.c.l.b16 %v5789
    %v5906 = vunpack.c.l.b16 %v5790
    %v5907 = vunpack.c.l.b16 %v5791
    %v5908 = vunpack.c.l.b16 %v5792
    %v5909 = vunpack.c.l.b16 %v5793
    %v5910 = vunpack.c.l.b16 %v5794
    %v5911 = vunpack.c.l.b16 %v5795
    %v5912 = vunpack.c.l.b16 %v5796
    %v5913 = vunpack.c.l.b16 %v5797
    %v5914 = vunpack.c.l.b16 %v5798
    %v5915 = vunpack.c.l.b16 %v5799
    %v5916 = vunpack.c.l.b16 %v5800
    %v5917 = vpack.c.b16 %v5902, %v5901
    %v5918 = vpack.c.b16 %v5904, %v5903
    %v5919 = vpack.c.b16 %v5906, %v5905
    %v5920 = vpack.c.b16 %v5908, %v5907
    %v5921 = vpack.c.b16 %v5910, %v5909
    %v5922 = vpack.c.b16 %v5912, %v5911
    %v5923 = vpack.c.b16 %v5914, %v5913
    %v5924 = vpack.c.b16 %v5916, %v5915
    %5933 = vmatpush.bf16.msra.mxu0 %v5924
    %5934 = vmatpush.bf16.msra.mxu0 %v5923
    %5935 = vmatpush.bf16.msra.mxu0 %v5922
    %5936 = vmatpush.bf16.msra.mxu0 %v5921
    %5937 = vmatpush.bf16.msra.mxu0 %v5920
    %5938 = vmatpush.bf16.msra.mxu0 %v5919
    %5939 = vmatpush.bf16.msra.mxu0 %v5918
    %5940 = vmatpush.bf16.msra.mxu0 %v5917
    %5941 = vmatmul.bf16.gmra.mxu0 %v5761
    %v5942 = vpop.f32.mrf.mxu0
    %v5943 = vadd.f32 %v5876, %v5942
    %v5944 = vpop.f32.mrf.mxu0
    %v5945 = vadd.f32 %v5878, %v5944
    %5946 = vmatmul.bf16.gmra.mxu0 %v5762
    %v5947 = vpop.f32.mrf.mxu0
    %v5948 = vadd.f32 %v5881, %v5947
    %v5949 = vpop.f32.mrf.mxu0
    %v5950 = vadd.f32 %v5883, %v5949
    %5951 = vdwg.mxu0
    %s5952 = scalar_lea.vmem [#allocation2], 1856
    %v5953 = vld [vmem:[%s5952] sm:$0xf]
    %v5954 = vld [vmem:[%s5952 + $0x4] sm:$0xf]
    %v5955 = vld [vmem:[%s5952 + $0x8] sm:$0xf]
    %v5956 = vld [vmem:[%s5952 + $0xc] sm:$0xf]
    %v5957 = vld [vmem:[%s5952 + $0x10] sm:$0xf]
    %v5958 = vld [vmem:[%s5952 + $0x14] sm:$0xf]
    %v5959 = vld [vmem:[%s5952 + $0x18] sm:$0xf]
    %v5960 = vld [vmem:[%s5952 + $0x1c] sm:$0xf]
    %v5961 = vld [vmem:[%s5952 + $0x20] sm:$0xf]
    %v5962 = vld [vmem:[%s5952 + $0x24] sm:$0xf]
    %v5963 = vld [vmem:[%s5952 + $0x28] sm:$0xf]
    %v5964 = vld [vmem:[%s5952 + $0x2c] sm:$0xf]
    %v5965 = vld [vmem:[%s5952 + $0x30] sm:$0xf]
    %v5966 = vld [vmem:[%s5952 + $0x34] sm:$0xf]
    %v5967 = vld [vmem:[%s5952 + $0x38] sm:$0xf]
    %v5968 = vld [vmem:[%s5952 + $0x3c] sm:$0xf]
    %v5985 = vunpack.c.l.b16 %v5953
    %v5986 = vunpack.c.l.b16 %v5954
    %v5987 = vunpack.c.l.b16 %v5955
    %v5988 = vunpack.c.l.b16 %v5956
    %v5989 = vunpack.c.l.b16 %v5957
    %v5990 = vunpack.c.l.b16 %v5958
    %v5991 = vunpack.c.l.b16 %v5959
    %v5992 = vunpack.c.l.b16 %v5960
    %v5993 = vunpack.c.l.b16 %v5961
    %v5994 = vunpack.c.l.b16 %v5962
    %v5995 = vunpack.c.l.b16 %v5963
    %v5996 = vunpack.c.l.b16 %v5964
    %v5997 = vunpack.c.l.b16 %v5965
    %v5998 = vunpack.c.l.b16 %v5966
    %v5999 = vunpack.c.l.b16 %v5967
    %v6000 = vunpack.c.l.b16 %v5968
    %v6001 = vpack.c.b16 %v5986, %v5985
    %v6002 = vpack.c.b16 %v5988, %v5987
    %v6003 = vpack.c.b16 %v5990, %v5989
    %v6004 = vpack.c.b16 %v5992, %v5991
    %v6005 = vpack.c.b16 %v5994, %v5993
    %v6006 = vpack.c.b16 %v5996, %v5995
    %v6007 = vpack.c.b16 %v5998, %v5997
    %v6008 = vpack.c.b16 %v6000, %v5999
    %6017 = vmatpush.bf16.msra.mxu0 %v6008
    %6018 = vmatpush.bf16.msra.mxu0 %v6007
    %6019 = vmatpush.bf16.msra.mxu0 %v6006
    %6020 = vmatpush.bf16.msra.mxu0 %v6005
    %6021 = vmatpush.bf16.msra.mxu0 %v6004
    %6022 = vmatpush.bf16.msra.mxu0 %v6003
    %6023 = vmatpush.bf16.msra.mxu0 %v6002
    %6024 = vmatpush.bf16.msra.mxu0 %v6001
    %6025 = vmatmul.bf16.gmra.mxu0 %v5782
    %v6026 = vpop.f32.mrf.mxu0
    %v6027 = vadd.f32 0.0, %v6026
    %v6028 = vpop.f32.mrf.mxu0
    %v6029 = vadd.f32 0.0, %v6028
    %6030 = vmatmul.bf16.gmra.mxu0 %v5783
    %v6031 = vpop.f32.mrf.mxu0
    %v6032 = vadd.f32 0.0, %v6031
    %v6033 = vpop.f32.mrf.mxu0
    %v6034 = vadd.f32 0.0, %v6033
    %6035 = vdwg.mxu0
    %v6036 = vadd.f32 %v5943, %v6027
    %v6037 = vadd.f32 %v5945, %v6029
    %v6038 = vadd.f32 %v5948, %v6032
    %v6039 = vadd.f32 %v5950, %v6034
    %s6040 = scalar_lea.vmem %s10, 18
    %v6041 = vld [vmem:[%s6040] sm:$0x1]
    %s6042 = scalar_lea.vmem %s10, 19
    %v6043 = vld [vmem:[%s6042] sm:$0x1]
    %v6044 = vadd.f32 %v6036, %v6037
    %v6045 = vadd.f32 %v6044, %v6038
    %v6046 = vadd.f32 %v6045, %v6039
    %v6047 = vrot.slane %v6046, 4
    %v6048 = vadd.f32 %v6046, %v6047
    %v6049 = vrot.slane %v6048, 2
    %v6050 = vadd.f32 %v6048, %v6049
    %v6051 = vrot.slane %v6050, 1
    %v6052 = vadd.f32 %v6050, %v6051
    %v6053 = vmul.f32 %v6052, %v1498
    %6054 = vmatpush.msra.mxu0 %v4629
    %6055 = vmatpush.msra.mxu0 %v4628
    %6056 = vmatpush.msra.mxu0 %v4627
    %6057 = vmatpush.msra.mxu0 %v4626
    %6058 = vmatpush.msra.mxu0 %v4625
    %6059 = vmatpush.msra.mxu0 %v4624
    %6060 = vmatpush.msra.mxu0 %v4623
    %6061 = vmatpush.msra.mxu0 %v4622
    %6062 = vmatpush.msra.mxu0 %v4621
    %6063 = vmatpush.msra.mxu0 %v4620
    %6064 = vmatpush.msra.mxu0 %v4619
    %6065 = vmatpush.msra.mxu0 %v4618
    %6066 = vmatpush.msra.mxu0 %v4617
    %6067 = vmatpush.msra.mxu0 %v4616
    %6068 = vmatpush.msra.mxu0 %v4615
    %6069 = vmatpush.msra.mxu0 %v4614
    %6070 = vmatmul.f32.gmra.mxu0 %v6053
    %v6071 = vpop.f32.mrf.mxu0
    %v6072 = vadd.f32 0.0, %v6071
    %6073 = vdwg.mxu0
    %v6074 = vperm.slane %v6072, 0
    %v6075 = vsub.f32 %v6036, %v6074
    %v6076 = vsub.f32 %v6037, %v6074
    %v6077 = vsub.f32 %v6038, %v6074
    %v6078 = vsub.f32 %v6039, %v6074
    %v6079 = vmul.f32 %v6075, %v6075
    %v6080 = vmul.f32 %v6076, %v6076
    %v6081 = vmul.f32 %v6077, %v6077
    %v6082 = vmul.f32 %v6078, %v6078
    %v6083 = vadd.f32 %v6079, %v6080
    %v6084 = vadd.f32 %v6083, %v6081
    %v6085 = vadd.f32 %v6084, %v6082
    %v6086 = vrot.slane %v6085, 4
    %v6087 = vadd.f32 %v6085, %v6086
    %v6088 = vrot.slane %v6087, 2
    %v6089 = vadd.f32 %v6087, %v6088
    %v6090 = vrot.slane %v6089, 1
    %v6091 = vadd.f32 %v6089, %v6090
    %v6092 = vmul.f32 %v6091, %v1498
    %6093 = vmatpush.msra.mxu0 %v4629
    %6094 = vmatpush.msra.mxu0 %v4628
    %6095 = vmatpush.msra.mxu0 %v4627
    %6096 = vmatpush.msra.mxu0 %v4626
    %6097 = vmatpush.msra.mxu0 %v4625
    %6098 = vmatpush.msra.mxu0 %v4624
    %6099 = vmatpush.msra.mxu0 %v4623
    %6100 = vmatpush.msra.mxu0 %v4622
    %6101 = vmatpush.msra.mxu0 %v4621
    %6102 = vmatpush.msra.mxu0 %v4620
    %6103 = vmatpush.msra.mxu0 %v4619
    %6104 = vmatpush.msra.mxu0 %v4618
    %6105 = vmatpush.msra.mxu0 %v4617
    %6106 = vmatpush.msra.mxu0 %v4616
    %6107 = vmatpush.msra.mxu0 %v4615
    %6108 = vmatpush.msra.mxu0 %v4614
    %6109 = vmatmul.f32.gmra.mxu0 %v6092
    %v6110 = vpop.f32.mrf.mxu0
    %v6111 = vadd.f32 1e-05, %v6110
    %6112 = vdwg.mxu0
    %v6113 = vrsqrt.pop %v6111
    %v6114 = vmul.f32 %v6113, %v6111
    %v6115 = vmul.f32 %v6114, %v6113
    %v6116 = vmul.f32 0.5, %v6115
    %v6117 = vsub.f32 1.5, %v6116
    %v6118 = vmul.f32 %v6113, %v6117
    %vm6119 = vweird.f32 %v6111
    %vm6120 = vweird.f32 %v6113
    %vm6121 = vmor %vm6119, %vm6120
    %v6122 = vsel %vm6121, %v6113, %v6118
    %v6123 = vperm.slane %v6122, 0
    %v6124 = vmul.f32 %v6075, %v6123
    %v6125 = vmul.f32 %v6076, %v6123
    %v6126 = vmul.f32 %v6077, %v6123
    %v6127 = vmul.f32 %v6078, %v6123
    %v6129 = vperm.slane %v6041, 0
    %v6131 = vmul.f32 %v6124, %v6129
    %v6132 = vmul.f32 %v6125, %v6129
    %v6133 = vmul.f32 %v6126, %v6129
    %v6134 = vmul.f32 %v6127, %v6129
    %v6136 = vperm.slane %v6043, 0
    %v6138 = vadd.f32 %v6131, %v6136
    %v6139 = vadd.f32 %v6132, %v6136
    %v6140 = vadd.f32 %v6133, %v6136
    %v6141 = vadd.f32 %v6134, %v6136
    %v6142 = vadd.f32 %v4896, %v6138
    %v6143 = vadd.f32 %v4897, %v6139
    %v6144 = vadd.f32 %v4898, %v6140
    %v6145 = vadd.f32 %v4899, %v6141
    %v6146 = vpack.c.bf16 %v6143, %v6142
    %v6147 = vpack.c.bf16 %v6145, %v6144
    %6148 = vmatpush.bf16.msra.mxu0 0
    %6149 = vmatpush.bf16.msra.mxu0 0
    %6150 = vmatpush.bf16.msra.mxu0 0
    %6151 = vmatpush.bf16.msra.mxu0 0
    %6152 = vmatpush.bf16.msra.mxu0 0
    %6153 = vmatpush.bf16.msra.mxu0 0
    %6154 = vmatpush.bf16.msra.mxu0 %v6147
    %6155 = vmatpush.bf16.msra.mxu0 %v6146
    %6156 = vmatmul.bf16.gmra.mxu0 %v87
    %v6157 = vpop.f32.mrf.mxu0
    %v6158 = vadd.f32 0.0, %v6157
    %v6159 = vpop.f32.mrf.mxu0
    %v6160 = vadd.f32 0.0, %v6159
    %6161 = vmatmul.bf16.gmra.mxu0 %v90
    %v6162 = vpop.f32.mrf.mxu0
    %v6163 = vadd.f32 0.0, %v6162
    %v6164 = vpop.f32.mrf.mxu0
    %v6165 = vadd.f32 0.0, %v6164
    %6166 = vdwg.mxu0
    %v6167 = vpack.c.bf16 %v6160, %v6158
    %v6168 = vpack.c.bf16 %v6165, %v6163
    %6169 = vmatpush.bf16.msra.mxu0 0
    %6170 = vmatpush.bf16.msra.mxu0 0
    %6171 = vmatpush.bf16.msra.mxu0 0
    %6172 = vmatpush.bf16.msra.mxu0 0
    %6173 = vmatpush.bf16.msra.mxu0 0
    %6174 = vmatpush.bf16.msra.mxu0 0
    %6175 = vmatpush.bf16.msra.mxu0 %v6147
    %6176 = vmatpush.bf16.msra.mxu0 %v6146
    %6177 = vmatmul.bf16.gmra.mxu0 %v124
    %v6178 = vpop.f32.mrf.mxu0
    %v6179 = vadd.f32 0.0, %v6178
    %v6180 = vpop.f32.mrf.mxu0
    %v6181 = vadd.f32 0.0, %v6180
    %6182 = vmatmul.bf16.gmra.mxu0 %v127
    %v6183 = vpop.f32.mrf.mxu0
    %v6184 = vadd.f32 0.0, %v6183
    %v6185 = vpop.f32.mrf.mxu0
    %v6186 = vadd.f32 0.0, %v6185
    %6187 = vdwg.mxu0
    %v6188 = vpack.c.bf16 %v6181, %v6179
    %v6189 = vpack.c.bf16 %v6186, %v6184
    %s6190 = scalar_lea.vmem %s6, 384
    %v6191 = vld [vmem:[%s6190] sm:$0xf]
    %v6192 = vld [vmem:[%s6190 + $0x4] sm:$0xf]
    %v6193 = vld [vmem:[%s6190 + $0x8] sm:$0xf]
    %v6194 = vld [vmem:[%s6190 + $0xc] sm:$0xf]
    %v6195 = vld [vmem:[%s6190 + $0x10] sm:$0xf]
    %v6196 = vld [vmem:[%s6190 + $0x14] sm:$0xf]
    %v6197 = vld [vmem:[%s6190 + $0x18] sm:$0xf]
    %v6198 = vld [vmem:[%s6190 + $0x1c] sm:$0xf]
    %v6199 = vld [vmem:[%s6190 + $0x20] sm:$0xf]
    %v6200 = vld [vmem:[%s6190 + $0x24] sm:$0xf]
    %v6201 = vld [vmem:[%s6190 + $0x28] sm:$0xf]
    %v6202 = vld [vmem:[%s6190 + $0x2c] sm:$0xf]
    %v6203 = vld [vmem:[%s6190 + $0x30] sm:$0xf]
    %v6204 = vld [vmem:[%s6190 + $0x34] sm:$0xf]
    %v6205 = vld [vmem:[%s6190 + $0x38] sm:$0xf]
    %v6206 = vld [vmem:[%s6190 + $0x3c] sm:$0xf]
    %s6207 = scalar_lea.vmem %s6, 448
    %v6208 = vld [vmem:[%s6207] sm:$0xf]
    %v6209 = vld [vmem:[%s6207 + $0x4] sm:$0xf]
    %v6210 = vld [vmem:[%s6207 + $0x8] sm:$0xf]
    %v6211 = vld [vmem:[%s6207 + $0xc] sm:$0xf]
    %v6212 = vld [vmem:[%s6207 + $0x10] sm:$0xf]
    %v6213 = vld [vmem:[%s6207 + $0x14] sm:$0xf]
    %v6214 = vld [vmem:[%s6207 + $0x18] sm:$0xf]
    %v6215 = vld [vmem:[%s6207 + $0x1c] sm:$0xf]
    %v6216 = vld [vmem:[%s6207 + $0x20] sm:$0xf]
    %v6217 = vld [vmem:[%s6207 + $0x24] sm:$0xf]
    %v6218 = vld [vmem:[%s6207 + $0x28] sm:$0xf]
    %v6219 = vld [vmem:[%s6207 + $0x2c] sm:$0xf]
    %v6220 = vld [vmem:[%s6207 + $0x30] sm:$0xf]
    %v6221 = vld [vmem:[%s6207 + $0x34] sm:$0xf]
    %v6222 = vld [vmem:[%s6207 + $0x38] sm:$0xf]
    %v6223 = vld [vmem:[%s6207 + $0x3c] sm:$0xf]
    %v6240 = vunpack.c.l.b16 %v6208
    %v6241 = vunpack.c.l.b16 %v6209
    %v6242 = vunpack.c.l.b16 %v6210
    %v6243 = vunpack.c.l.b16 %v6211
    %v6244 = vunpack.c.l.b16 %v6212
    %v6245 = vunpack.c.l.b16 %v6213
    %v6246 = vunpack.c.l.b16 %v6214
    %v6247 = vunpack.c.l.b16 %v6215
    %v6248 = vunpack.c.l.b16 %v6216
    %v6249 = vunpack.c.l.b16 %v6217
    %v6250 = vunpack.c.l.b16 %v6218
    %v6251 = vunpack.c.l.b16 %v6219
    %v6252 = vunpack.c.l.b16 %v6220
    %v6253 = vunpack.c.l.b16 %v6221
    %v6254 = vunpack.c.l.b16 %v6222
    %v6255 = vunpack.c.l.b16 %v6223
    %v6256 = vpack.c.b16 %v6241, %v6240
    %v6257 = vpack.c.b16 %v6243, %v6242
    %v6258 = vpack.c.b16 %v6245, %v6244
    %v6259 = vpack.c.b16 %v6247, %v6246
    %v6260 = vpack.c.b16 %v6249, %v6248
    %v6261 = vpack.c.b16 %v6251, %v6250
    %v6262 = vpack.c.b16 %v6253, %v6252
    %v6263 = vpack.c.b16 %v6255, %v6254
    %6272 = vmatpush.bf16.msra.mxu0 %v6263
    %6273 = vmatpush.bf16.msra.mxu0 %v6262
    %6274 = vmatpush.bf16.msra.mxu0 %v6261
    %6275 = vmatpush.bf16.msra.mxu0 %v6260
    %6276 = vmatpush.bf16.msra.mxu0 %v6259
    %6277 = vmatpush.bf16.msra.mxu0 %v6258
    %6278 = vmatpush.bf16.msra.mxu0 %v6257
    %6279 = vmatpush.bf16.msra.mxu0 %v6256
    %6280 = vmatmul.bf16.gmra.mxu0 %v6146
    %v6281 = vpop.f32.mrf.mxu0
    %v6282 = vadd.f32 0.0, %v6281
    %v6283 = vpop.f32.mrf.mxu0
    %v6284 = vadd.f32 0.0, %v6283
    %6285 = vmatmul.bf16.gmra.mxu0 %v6147
    %v6286 = vpop.f32.mrf.mxu0
    %v6287 = vadd.f32 0.0, %v6286
    %v6288 = vpop.f32.mrf.mxu0
    %v6289 = vadd.f32 0.0, %v6288
    %6290 = vdwg.mxu0
    %v6307 = vunpack.c.l.b16 %v6191
    %v6308 = vunpack.c.l.b16 %v6192
    %v6309 = vunpack.c.l.b16 %v6193
    %v6310 = vunpack.c.l.b16 %v6194
    %v6311 = vunpack.c.l.b16 %v6195
    %v6312 = vunpack.c.l.b16 %v6196
    %v6313 = vunpack.c.l.b16 %v6197
    %v6314 = vunpack.c.l.b16 %v6198
    %v6315 = vunpack.c.l.b16 %v6199
    %v6316 = vunpack.c.l.b16 %v6200
    %v6317 = vunpack.c.l.b16 %v6201
    %v6318 = vunpack.c.l.b16 %v6202
    %v6319 = vunpack.c.l.b16 %v6203
    %v6320 = vunpack.c.l.b16 %v6204
    %v6321 = vunpack.c.l.b16 %v6205
    %v6322 = vunpack.c.l.b16 %v6206
    %v6323 = vpack.c.b16 %v6308, %v6307
    %v6324 = vpack.c.b16 %v6310, %v6309
    %v6325 = vpack.c.b16 %v6312, %v6311
    %v6326 = vpack.c.b16 %v6314, %v6313
    %v6327 = vpack.c.b16 %v6316, %v6315
    %v6328 = vpack.c.b16 %v6318, %v6317
    %v6329 = vpack.c.b16 %v6320, %v6319
    %v6330 = vpack.c.b16 %v6322, %v6321
    %6339 = vmatpush.bf16.msra.mxu0 %v6330
    %6340 = vmatpush.bf16.msra.mxu0 %v6329
    %6341 = vmatpush.bf16.msra.mxu0 %v6328
    %6342 = vmatpush.bf16.msra.mxu0 %v6327
    %6343 = vmatpush.bf16.msra.mxu0 %v6326
    %6344 = vmatpush.bf16.msra.mxu0 %v6325
    %6345 = vmatpush.bf16.msra.mxu0 %v6324
    %6346 = vmatpush.bf16.msra.mxu0 %v6323
    %6347 = vmatmul.bf16.gmra.mxu0 %v6167
    %v6348 = vpop.f32.mrf.mxu0
    %v6349 = vadd.f32 %v6282, %v6348
    %v6350 = vpop.f32.mrf.mxu0
    %v6351 = vadd.f32 %v6284, %v6350
    %6352 = vmatmul.bf16.gmra.mxu0 %v6168
    %v6353 = vpop.f32.mrf.mxu0
    %v6354 = vadd.f32 %v6287, %v6353
    %v6355 = vpop.f32.mrf.mxu0
    %v6356 = vadd.f32 %v6289, %v6355
    %6357 = vdwg.mxu0
    %s6358 = scalar_lea.vmem %s6, 512
    %v6359 = vld [vmem:[%s6358] sm:$0xf]
    %v6360 = vld [vmem:[%s6358 + $0x4] sm:$0xf]
    %v6361 = vld [vmem:[%s6358 + $0x8] sm:$0xf]
    %v6362 = vld [vmem:[%s6358 + $0xc] sm:$0xf]
    %v6363 = vld [vmem:[%s6358 + $0x10] sm:$0xf]
    %v6364 = vld [vmem:[%s6358 + $0x14] sm:$0xf]
    %v6365 = vld [vmem:[%s6358 + $0x18] sm:$0xf]
    %v6366 = vld [vmem:[%s6358 + $0x1c] sm:$0xf]
    %v6367 = vld [vmem:[%s6358 + $0x20] sm:$0xf]
    %v6368 = vld [vmem:[%s6358 + $0x24] sm:$0xf]
    %v6369 = vld [vmem:[%s6358 + $0x28] sm:$0xf]
    %v6370 = vld [vmem:[%s6358 + $0x2c] sm:$0xf]
    %v6371 = vld [vmem:[%s6358 + $0x30] sm:$0xf]
    %v6372 = vld [vmem:[%s6358 + $0x34] sm:$0xf]
    %v6373 = vld [vmem:[%s6358 + $0x38] sm:$0xf]
    %v6374 = vld [vmem:[%s6358 + $0x3c] sm:$0xf]
    %v6391 = vunpack.c.l.b16 %v6359
    %v6392 = vunpack.c.l.b16 %v6360
    %v6393 = vunpack.c.l.b16 %v6361
    %v6394 = vunpack.c.l.b16 %v6362
    %v6395 = vunpack.c.l.b16 %v6363
    %v6396 = vunpack.c.l.b16 %v6364
    %v6397 = vunpack.c.l.b16 %v6365
    %v6398 = vunpack.c.l.b16 %v6366
    %v6399 = vunpack.c.l.b16 %v6367
    %v6400 = vunpack.c.l.b16 %v6368
    %v6401 = vunpack.c.l.b16 %v6369
    %v6402 = vunpack.c.l.b16 %v6370
    %v6403 = vunpack.c.l.b16 %v6371
    %v6404 = vunpack.c.l.b16 %v6372
    %v6405 = vunpack.c.l.b16 %v6373
    %v6406 = vunpack.c.l.b16 %v6374
    %v6407 = vpack.c.b16 %v6392, %v6391
    %v6408 = vpack.c.b16 %v6394, %v6393
    %v6409 = vpack.c.b16 %v6396, %v6395
    %v6410 = vpack.c.b16 %v6398, %v6397
    %v6411 = vpack.c.b16 %v6400, %v6399
    %v6412 = vpack.c.b16 %v6402, %v6401
    %v6413 = vpack.c.b16 %v6404, %v6403
    %v6414 = vpack.c.b16 %v6406, %v6405
    %6423 = vmatpush.bf16.msra.mxu0 %v6414
    %6424 = vmatpush.bf16.msra.mxu0 %v6413
    %6425 = vmatpush.bf16.msra.mxu0 %v6412
    %6426 = vmatpush.bf16.msra.mxu0 %v6411
    %6427 = vmatpush.bf16.msra.mxu0 %v6410
    %6428 = vmatpush.bf16.msra.mxu0 %v6409
    %6429 = vmatpush.bf16.msra.mxu0 %v6408
    %6430 = vmatpush.bf16.msra.mxu0 %v6407
    %6431 = vmatmul.bf16.gmra.mxu0 %v6188
    %v6432 = vpop.f32.mrf.mxu0
    %v6433 = vadd.f32 0.0, %v6432
    %v6434 = vpop.f32.mrf.mxu0
    %v6435 = vadd.f32 0.0, %v6434
    %6436 = vmatmul.bf16.gmra.mxu0 %v6189
    %v6437 = vpop.f32.mrf.mxu0
    %v6438 = vadd.f32 0.0, %v6437
    %v6439 = vpop.f32.mrf.mxu0
    %v6440 = vadd.f32 0.0, %v6439
    %6441 = vdwg.mxu0
    %v6442 = vadd.f32 %v6349, %v6433
    %v6443 = vadd.f32 %v6351, %v6435
    %v6444 = vadd.f32 %v6354, %v6438
    %v6445 = vadd.f32 %v6356, %v6440
    %s6446 = scalar_lea.vmem %s7, 2
    %v6447 = vld [vmem:[%s6446] sm:$0x1]
    %v6449 = vperm.slane %v6447, 0
    %v6451 = vadd.f32 %v6442, %v6449
    %v6452 = vadd.f32 %v6443, %v6449
    %v6453 = vadd.f32 %v6444, %v6449
    %v6454 = vadd.f32 %v6445, %v6449
    %v6455 = vtanh.pop %v6451
    %v6456 = vtanh.pop %v6452
    %v6457 = vtanh.pop %v6453
    %v6458 = vtanh.pop %v6454
    %v6459 = vxor.u32 %v6451, 2147483648
    %v6460 = vxor.u32 %v6452, 2147483648
    %v6461 = vxor.u32 %v6453, 2147483648
    %v6462 = vxor.u32 %v6454, 2147483648
    %v6463 = vmul.f32 %v6459, 1.442695
    %v6464 = vpow.pop %v6463
    %v6465 = vmul.f32 %v6460, 1.442695
    %v6466 = vpow.pop %v6465
    %v6467 = vmul.f32 %v6461, 1.442695
    %v6468 = vpow.pop %v6467
    %v6469 = vmul.f32 %v6462, 1.442695
    %v6470 = vpow.pop %v6469
    %v6471 = vadd.f32 %v6464, 1.0
    %v6472 = vadd.f32 %v6466, 1.0
    %v6473 = vadd.f32 %v6468, 1.0
    %v6474 = vadd.f32 %v6470, 1.0
    %v6475 = vrcp.pop %v6471
    %v6476 = vmul.f32 %v6471, %v6475
    %v6477 = vsub.f32 1.0, %v6476
    %v6478 = vmul.f32 %v6475, %v6477
    %v6479 = vadd.f32 %v6475, %v6478
    %vm6480 = vweird.f32 %v6471
    %vm6481 = vweird.f32 %v6475
    %vm6482 = vmor %vm6480, %vm6481
    %v6483 = vsel %vm6482, %v6475, %v6479
    %v6484 = vand.u32 2147483647, %v6471
    %vm6485 = vcmp.eq.f32.partialorder %v6484, 8.507059e+37
    %v6486 = vand.u32 %v6471, 2147483648
    %v6487 = vor.u32 1.1754944e-38, %v6486
    %v6488 = vsel %vm6485, %v6487, %v6483
    %v6489 = vmul.f32 1.0, %v6488
    %v6490 = vrcp.pop %v6472
    %v6491 = vmul.f32 %v6472, %v6490
    %v6492 = vsub.f32 1.0, %v6491
    %v6493 = vmul.f32 %v6490, %v6492
    %v6494 = vadd.f32 %v6490, %v6493
    %vm6495 = vweird.f32 %v6472
    %vm6496 = vweird.f32 %v6490
    %vm6497 = vmor %vm6495, %vm6496
    %v6498 = vsel %vm6497, %v6490, %v6494
    %v6499 = vand.u32 2147483647, %v6472
    %vm6500 = vcmp.eq.f32.partialorder %v6499, 8.507059e+37
    %v6501 = vand.u32 %v6472, 2147483648
    %v6502 = vor.u32 1.1754944e-38, %v6501
    %v6503 = vsel %vm6500, %v6502, %v6498
    %v6504 = vmul.f32 1.0, %v6503
    %v6505 = vrcp.pop %v6473
    %v6506 = vmul.f32 %v6473, %v6505
    %v6507 = vsub.f32 1.0, %v6506
    %v6508 = vmul.f32 %v6505, %v6507
    %v6509 = vadd.f32 %v6505, %v6508
    %vm6510 = vweird.f32 %v6473
    %vm6511 = vweird.f32 %v6505
    %vm6512 = vmor %vm6510, %vm6511
    %v6513 = vsel %vm6512, %v6505, %v6509
    %v6514 = vand.u32 2147483647, %v6473
    %vm6515 = vcmp.eq.f32.partialorder %v6514, 8.507059e+37
    %v6516 = vand.u32 %v6473, 2147483648
    %v6517 = vor.u32 1.1754944e-38, %v6516
    %v6518 = vsel %vm6515, %v6517, %v6513
    %v6519 = vmul.f32 1.0, %v6518
    %v6520 = vrcp.pop %v6474
    %v6521 = vmul.f32 %v6474, %v6520
    %v6522 = vsub.f32 1.0, %v6521
    %v6523 = vmul.f32 %v6520, %v6522
    %v6524 = vadd.f32 %v6520, %v6523
    %vm6525 = vweird.f32 %v6474
    %vm6526 = vweird.f32 %v6520
    %vm6527 = vmor %vm6525, %vm6526
    %v6528 = vsel %vm6527, %v6520, %v6524
    %v6529 = vand.u32 2147483647, %v6474
    %vm6530 = vcmp.eq.f32.partialorder %v6529, 8.507059e+37
    %v6531 = vand.u32 %v6474, 2147483648
    %v6532 = vor.u32 1.1754944e-38, %v6531
    %v6533 = vsel %vm6530, %v6532, %v6528
    %v6534 = vmul.f32 1.0, %v6533
    %6535 = vst.msk [vmem:[%s13 + $0x8] sm:$0xff] %vm493, %v6455
    %6536 = vst.msk [vmem:[%s13 + $0x18] sm:$0xff] %vm493, %v6456
    %6537 = vst.msk [vmem:[%s13 + $0x28] sm:$0xff] %vm493, %v6457
    %6538 = vst.msk [vmem:[%s13 + $0x38] sm:$0xff] %vm493, %v6458
    %6539 = vst.msk [vmem:[%s13 + $0x8] sm:$0xff] %vm498, %v6489
    %6540 = vst.msk [vmem:[%s13 + $0x18] sm:$0xff] %vm498, %v6504
    %6541 = vst.msk [vmem:[%s13 + $0x28] sm:$0xff] %vm498, %v6519
    %6542 = vst.msk [vmem:[%s13 + $0x38] sm:$0xff] %vm498, %v6534
    %v6543 = vld [vmem:[%s5] sm:$0xff]
    %v6544 = vld [vmem:[%s5 + $0x8] sm:$0xff]
    %6549 = vrot.lane.b32.xlu0 %v6489, 80
    %v6550 = vpop.permute.xlu0 %6549
    %6551 = vrot.lane.b32.xlu0 %v6504, 80
    %v6552 = vpop.permute.xlu0 %6551
    %6553 = vrot.lane.b32.xlu0 %v6519, 80
    %v6554 = vpop.permute.xlu0 %6553
    %6555 = vrot.lane.b32.xlu0 %v6534, 80
    %v6556 = vpop.permute.xlu0 %6555
    %v6557 = vsel %vm517, %v6550, 0
    %v6559 = vsel %vm517, %v6552, 0
    %v6561 = vsel %vm517, %v6554, 0
    %v6563 = vsel %vm517, %v6556, 0
    %6565 = vmatpush.msra.mxu0 0.0
    %6566 = vmatpush.msra.mxu0 0.0
    %6567 = vmatpush.msra.mxu0 0.0
    %6568 = vmatpush.msra.mxu0 0.0
    %6569 = vmatpush.msra.mxu0 0.0
    %6570 = vmatpush.msra.mxu0 0.0
    %6571 = vmatpush.msra.mxu0 0.0
    %6572 = vmatpush.msra.mxu0 0.0
    %6573 = vmatpush.msra.mxu0 0.0
    %6574 = vmatpush.msra.mxu0 0.0
    %6575 = vmatpush.msra.mxu0 0.0
    %6576 = vmatpush.msra.mxu0 0.0
    %6577 = vmatpush.msra.mxu0 0.0
    %6578 = vmatpush.msra.mxu0 0.0
    %6579 = vmatpush.msra.mxu0 %v6544
    %6580 = vmatpush.msra.mxu0 %v6543
    %6581 = vmatmul.f32.gmra.mxu0 %v6557
    %v6582 = vpop.f32.mrf.mxu0
    %v6583 = vadd.f32 0.0, %v6582
    %6584 = vmatmul.f32.gmra.mxu0 %v6559
    %v6585 = vpop.f32.mrf.mxu0
    %v6586 = vadd.f32 0.0, %v6585
    %6587 = vmatmul.f32.gmra.mxu0 %v6561
    %v6588 = vpop.f32.mrf.mxu0
    %v6589 = vadd.f32 0.0, %v6588
    %6590 = vmatmul.f32.gmra.mxu0 %v6563
    %v6591 = vpop.f32.mrf.mxu0
    %v6592 = vadd.f32 0.0, %v6591
    %6593 = vdwg.mxu0
    %v6594 = vmul.f32 %v6455, %v6583
    %v6595 = vmul.f32 %v6456, %v6586
    %v6596 = vmul.f32 %v6457, %v6589
    %v6597 = vmul.f32 %v6458, %v6592
    %v6598 = vsub.f32 1.0, %v6583
    %v6599 = vsub.f32 1.0, %v6586
    %v6600 = vsub.f32 1.0, %v6589
    %v6601 = vsub.f32 1.0, %v6592
    %v6602 = vmul.f32 %v3522, %v6598
    %v6603 = vmul.f32 %v3523, %v6599
    %v6604 = vmul.f32 %v3524, %v6600
    %v6605 = vmul.f32 %v3525, %v6601
    %v6606 = vadd.f32 %v6594, %v6602
    %v6607 = vadd.f32 %v6595, %v6603
    %v6608 = vadd.f32 %v6596, %v6604
    %v6609 = vadd.f32 %v6597, %v6605
    %v6610 = vsub.f32 1.0, %v3538
    %v6611 = vsub.f32 1.0, %v3539
    %v6612 = vsub.f32 1.0, %v3540
    %v6613 = vsub.f32 1.0, %v3541
    %v6614 = vsub.f32 1.0, %v6489
    %v6615 = vsub.f32 1.0, %v6504
    %v6616 = vsub.f32 1.0, %v6519
    %v6617 = vsub.f32 1.0, %v6534
    %v6618 = vmul.f32 %v6610, %v6614
    %v6619 = vmul.f32 %v6611, %v6615
    %v6620 = vmul.f32 %v6612, %v6616
    %v6621 = vmul.f32 %v6613, %v6617
    %v6622 = vsub.f32 1.0, %v6618
    %v6623 = vsub.f32 1.0, %v6619
    %v6624 = vsub.f32 1.0, %v6620
    %v6625 = vsub.f32 1.0, %v6621
    %s6626 = scalar_lea.vmem %s11, 128
    %v6627 = vld [vmem:[%s6626] sm:$0xf]
    %v6628 = vld [vmem:[%s6626 + $0x4] sm:$0xf]
    %v6629 = vld [vmem:[%s6626 + $0x8] sm:$0xf]
    %v6630 = vld [vmem:[%s6626 + $0xc] sm:$0xf]
    %v6631 = vld [vmem:[%s6626 + $0x10] sm:$0xf]
    %v6632 = vld [vmem:[%s6626 + $0x14] sm:$0xf]
    %v6633 = vld [vmem:[%s6626 + $0x18] sm:$0xf]
    %v6634 = vld [vmem:[%s6626 + $0x1c] sm:$0xf]
    %v6635 = vld [vmem:[%s6626 + $0x20] sm:$0xf]
    %v6636 = vld [vmem:[%s6626 + $0x24] sm:$0xf]
    %v6637 = vld [vmem:[%s6626 + $0x28] sm:$0xf]
    %v6638 = vld [vmem:[%s6626 + $0x2c] sm:$0xf]
    %v6639 = vld [vmem:[%s6626 + $0x30] sm:$0xf]
    %v6640 = vld [vmem:[%s6626 + $0x34] sm:$0xf]
    %v6641 = vld [vmem:[%s6626 + $0x38] sm:$0xf]
    %v6642 = vld [vmem:[%s6626 + $0x3c] sm:$0xf]
    %v6659 = vunpack.c.l.b16 %v6627
    %v6660 = vunpack.c.l.b16 %v6628
    %v6661 = vunpack.c.l.b16 %v6629
    %v6662 = vunpack.c.l.b16 %v6630
    %v6663 = vunpack.c.l.b16 %v6631
    %v6664 = vunpack.c.l.b16 %v6632
    %v6665 = vunpack.c.l.b16 %v6633
    %v6666 = vunpack.c.l.b16 %v6634
    %v6667 = vunpack.c.l.b16 %v6635
    %v6668 = vunpack.c.l.b16 %v6636
    %v6669 = vunpack.c.l.b16 %v6637
    %v6670 = vunpack.c.l.b16 %v6638
    %v6671 = vunpack.c.l.b16 %v6639
    %v6672 = vunpack.c.l.b16 %v6640
    %v6673 = vunpack.c.l.b16 %v6641
    %v6674 = vunpack.c.l.b16 %v6642
    %v6675 = vpack.c.b16 %v6660, %v6659
    %v6676 = vpack.c.b16 %v6662, %v6661
    %v6677 = vpack.c.b16 %v6664, %v6663
    %v6678 = vpack.c.b16 %v6666, %v6665
    %v6679 = vpack.c.b16 %v6668, %v6667
    %v6680 = vpack.c.b16 %v6670, %v6669
    %v6681 = vpack.c.b16 %v6672, %v6671
    %v6682 = vpack.c.b16 %v6674, %v6673
    %6691 = vmatpush.bf16.msra.mxu0 %v6682
    %6692 = vmatpush.bf16.msra.mxu0 %v6681
    %6693 = vmatpush.bf16.msra.mxu0 %v6680
    %6694 = vmatpush.bf16.msra.mxu0 %v6679
    %6695 = vmatpush.bf16.msra.mxu0 %v6678
    %6696 = vmatpush.bf16.msra.mxu0 %v6677
    %6697 = vmatpush.bf16.msra.mxu0 %v6676
    %6698 = vmatpush.bf16.msra.mxu0 %v6675
    %6699 = vmatmul.bf16.gmra.mxu0 %v6146
    %v6700 = vpop.f32.mrf.mxu0
    %v6701 = vadd.f32 0.0, %v6700
    %v6702 = vpop.f32.mrf.mxu0
    %v6703 = vadd.f32 0.0, %v6702
    %6704 = vmatmul.bf16.gmra.mxu0 %v6147
    %v6705 = vpop.f32.mrf.mxu0
    %v6706 = vadd.f32 0.0, %v6705
    %v6707 = vpop.f32.mrf.mxu0
    %v6708 = vadd.f32 0.0, %v6707
    %6709 = vdwg.mxu0
    %v6710 = vadd.f32 %v3684, %v6701
    %v6711 = vadd.f32 %v3686, %v6703
    %v6712 = vadd.f32 %v3689, %v6706
    %v6713 = vadd.f32 %v3691, %v6708
    %6714 = vst [vmem:[%s12] sm:$0xff] %v6710
    %6715 = vst [vmem:[%s12 + $0x8] sm:$0xff] %v6711
    %6716 = vst [vmem:[%s12 + $0x10] sm:$0xff] %v6712
    %6717 = vst [vmem:[%s12 + $0x18] sm:$0xff] %v6713
    %6718 = vst.msk [vmem:[%s14] sm:$0xff] %vm493, %v6606
    %6719 = vst.msk [vmem:[%s14 + $0x8] sm:$0xff] %vm493, %v6607
    %6720 = vst.msk [vmem:[%s14 + $0x10] sm:$0xff] %vm493, %v6608
    %6721 = vst.msk [vmem:[%s14 + $0x18] sm:$0xff] %vm493, %v6609
    %6722 = vst.msk [vmem:[%s14] sm:$0xff] %vm498, %v6622
    %6723 = vst.msk [vmem:[%s14 + $0x8] sm:$0xff] %vm498, %v6623
    %6724 = vst.msk [vmem:[%s14 + $0x10] sm:$0xff] %vm498, %v6624
    %6725 = vst.msk [vmem:[%s14 + $0x18] sm:$0xff] %vm498, %v6625
    // Predicated region
    $region54: #{multistage_forward.1} parent=1 // pred_check
      _
    $region55: #{multistage_forward.1} parent=1 // pred_check_branch
      %6727 = sbr.rel (0) target = $region57
    $region56: #{multistage_forward.1} parent=1 // pred_region
      _
    $region57: #{multistage_forward.1} parent=1 // pred_fallthru
      _
    // Predicated region
    $region58: #{multistage_forward.1} parent=1 // pred_check
      _
    $region59: #{multistage_forward.1} parent=1 // pred_check_branch
      %6729 = sbr.rel (0) target = $region61
    $region60: #{multistage_forward.1} parent=1 // pred_region
      _
    $region61: #{multistage_forward.1} parent=1 // pred_fallthru
      _
    // Predicated region
    $region62: #{multistage_forward.1} parent=1 // pred_check
      _
    $region63: #{multistage_forward.1} parent=1 // pred_check_branch
      %6731 = sbr.rel (0) target = $region65
    $region64: #{multistage_forward.1} parent=1 // pred_region
      _
    $region65: #{multistage_forward.1} parent=1 // pred_fallthru
      _
    // Predicated region
    $region66: #{multistage_forward.1} parent=1 // pred_check
      _
    $region67: #{multistage_forward.1} parent=1 // pred_check_branch
      %6733 = sbr.rel (0) target = $region69
    $region68: #{multistage_forward.1} parent=1 // pred_region
      _
    $region69: #{multistage_forward.1} parent=1 // pred_fallthru
      _
    // Predicated region
    $region70: #{multistage_forward.1} parent=1 // pred_check
      _
    $region71: #{multistage_forward.1} parent=1 // pred_check_branch
      %6735 = sbr.rel (0) target = $region73
    $region72: #{multistage_forward.1} parent=1 // pred_region
      _
    $region73: #{multistage_forward.1} parent=1 // pred_fallthru
      _
    // Predicated region
    $region74: #{multistage_forward.1} parent=1 // pred_check
      _
    $region75: #{multistage_forward.1} parent=1 // pred_check_branch
      %6737 = sbr.rel (0) target = $region77
    $region76: #{multistage_forward.1} parent=1 // pred_region
      _
    $region77: #{multistage_forward.1} parent=1 // pred_fallthru
      _
    %6738 = vsyncpa [#allocation3], 1

</llo_original>
